<compile_context>
chip_gen: v6e
topology: v6e:2x2x1
jax: 0.10.0
libtpu: 0.0.40
codegen_flags: <defaults>
</compile_context>

<pallas_src>
import functools

import jax
import jax.numpy as jnp
import numpy as np
from jax import lax
from jax.experimental import pallas as pl
from jax.experimental.pallas import tpu as pltpu

NUM_SPLITS = 16
SPLIT_PADDING = 3


def _w_upsample_matrix(w: int) -> np.ndarray:
    """(W, 2W) operator for PyTorch align_corners=False linear 2x upsample."""
    m = np.zeros((w, 2 * w), np.float32)
    for j in range(w):
        m[j, 2 * j] += 0.75
        m[max(j - 1, 0), 2 * j] += 0.25
        m[j, 2 * j + 1] += 0.75
        m[min(j + 1, w - 1), 2 * j + 1] += 0.25
    return m


def _fused_upsample_conv_kernel(
        a_ref, b_ref, c_ref, rw_ref, w_ref, m_ref, bias_ref, o_ref, slab_ref,
        *, c, d, h, w, ml, ncols, total, compute_dtype):
    """Grid step (n, i): read low-res planes (i-1, i, i+1), emit output planes
    (2i, 2i+1) of upsample2x -> conv3x3x3, already in flat NCDHW layout."""
    i = pl.program_id(1)
    two_w = 2 * w

    # -- D-axis 2x upsample (align_corners=False): the 4 upsampled planes
    #    surrounding the two output planes.  g0/g3 realize the conv's D
    #    zero-padding at the volume ends (the input index_maps already clamp).
    g0 = (i > 0).astype(compute_dtype)
    g3 = (i < d - 1).astype(compute_dtype)
    a = a_ref[0, 0]          # x[max(i-1,0)], rows (h, ci), lanes w
    b = b_ref[0, 0]          # x[i]
    cc = c_ref[0, 0]         # x[min(i+1,D-1)]
    q_planes = (
        g0 * (0.75 * a + 0.25 * b),     # up[2i-1]   (kd=0 of even plane)
        0.75 * b + 0.25 * a,            # up[2i]
        0.75 * b + 0.25 * cc,           # up[2i+1]
        g3 * (0.75 * cc + 0.25 * b),    # up[2i+2]   (kd=2 of odd plane)
    )

    # -- W-axis 2x upsample: one tiny constant matmul per plane (K = W, a few
    #    thousand MACs -> negligible; HIGHEST keeps the interpolation ~exact).
    rw = rw_ref[...]
    mids = [jnp.dot(q, rw, preferred_element_type=compute_dtype,
                    precision=lax.Precision.HIGHEST) for q in q_planes]

    # -- Zero the halo margins of the slab; the 2H row writes below fill the
    #    body densely.  The margins provide the conv's H zero-padding.
    slab_ref[:, :ml] = jnp.zeros((4 * c, ml), compute_dtype)
    slab_ref[:, ml + ncols:] = jnp.zeros((4 * c, total - ml - ncols),
                                         compute_dtype)

    # -- H-axis 2x upsample fused with the flatten: slab row block q holds
    #    plane q as a dense row-major (2H, 2W) image in its lanes.
    for vh in range(2 * h):
        j = vh // 2
        h1 = max(j - 1, 0) if vh % 2 == 0 else min(j + 1, h - 1)
        dst = ml + vh * two_w
        for q in range(4):
            row = (0.75 * mids[q][j * c:(j + 1) * c, :]
                   + 0.25 * mids[q][h1 * c:(h1 + 1) * c, :])
            slab_ref[q * c:(q + 1) * c, dst:dst + two_w] = row

    # -- 3x3x3 conv: per output parity, accumulate 9 K=3C matmuls on
    #    lane-shifted slab windows (DEFAULT precision, f32 accumulation).
    #    kw=0 / kw=2 taps wrap across W rows of the flat layout; a per-column
    #    mask zeroes exactly those (conv W-padding) contributions.
    wm = w_ref[...]
    bias = bias_ref[...]                 # (C, 1) -> lane-broadcast add
    mask0 = m_ref[0:1, :]                # zero where uw == 0
    mask2 = m_ref[1:2, :]                # zero where uw == 2W-1
    for p in range(2):                   # output plane 2i + p
        grp = [None, None, None]
        for kh in range(3):
            for kw in range(3):
                t = kh * 3 + kw
                start = ml + (kh - 1) * two_w + (kw - 1)
                win = slab_ref[p * c:(p + 3) * c, start:start + ncols]
                wt = wm[:, t * 3 * c:(t + 1) * 3 * c]
                y = jnp.dot(wt, win, preferred_element_type=jnp.float32)
                grp[kw] = y if grp[kw] is None else grp[kw] + y
        out = grp[1] + mask0 * grp[0] + mask2 * grp[2] + bias
        o_ref[0, :, p * ncols:(p + 1) * ncols] = out.astype(o_ref.dtype)


def split_upsample1_pallas(x, w_torch, bias, *, compute_dtype=jnp.float32):
    """x: (N, C, D, H, W).  Returns (N, C, 2D, 2H, 2W)."""
    n, c, d, h, w = x.shape
    ncols = 4 * h * w                       # dense (2H * 2W) output columns
    ml = 2 * w + 8                          # left halo margin  (>= 2W + 1)
    total = ml + ncols + 2 * w + 1          # + right halo margin (>= 2W + 1)
    total = ((total + 127) // 128) * 128    # lane-align the slab

    # Low-res input with rows ordered (h, ci) so fixed-h row blocks are
    # contiguous (cheap low-res copy; 8x smaller than the upsampled volume).
    x2 = jnp.transpose(x, (0, 2, 3, 1, 4)).reshape(n, d, h * c, w)
    x2 = x2.astype(compute_dtype)
    # Conv weight (Cout, Cin, kd, kh, kw) -> columns ordered (kh, kw, kd, ci).
    w2d = jnp.transpose(w_torch, (0, 3, 4, 2, 1)).reshape(c, 27 * c)
    w2d = w2d.astype(compute_dtype)
    bias2 = bias.reshape(c, 1).astype(jnp.float32)
    rw = jnp.asarray(_w_upsample_matrix(w), compute_dtype)
    uw = np.arange(ncols) % (2 * w)
    masks = jnp.asarray(
        np.stack([(uw != 0), (uw != 2 * w - 1)]).astype(np.float32))

    kernel = functools.partial(
        _fused_upsample_conv_kernel, c=c, d=d, h=h, w=w, ml=ml, ncols=ncols,
        total=total, compute_dtype=compute_dtype)

    out = pl.pallas_call(
        kernel,
        out_shape=jax.ShapeDtypeStruct((n, c, d * 2 * ncols), x.dtype),
        grid_spec=pltpu.PrefetchScalarGridSpec(
            num_scalar_prefetch=0,
            grid=(n, d),
            in_specs=[
                pl.BlockSpec((1, 1, h * c, w),
                             lambda ni, di: (ni, jnp.maximum(di - 1, 0), 0, 0)),
                pl.BlockSpec((1, 1, h * c, w),
                             lambda ni, di: (ni, di, 0, 0)),
                pl.BlockSpec((1, 1, h * c, w),
                             lambda ni, di: (ni, jnp.minimum(di + 1, d - 1), 0, 0)),
                pl.BlockSpec((w, 2 * w), lambda ni, di: (0, 0)),
                pl.BlockSpec((c, 27 * c), lambda ni, di: (0, 0)),
                pl.BlockSpec((2, ncols), lambda ni, di: (0, 0)),
                pl.BlockSpec((c, 1), lambda ni, di: (0, 0)),
            ],
            # Two dense output planes per step written straight into flat
            # NCDHW; trailing dim (2 * 2H * 2W) is lane-dense and 128-aligned.
            out_specs=pl.BlockSpec((1, c, 2 * ncols),
                                   lambda ni, di: (ni, 0, di)),
            scratch_shapes=[pltpu.VMEM((4 * c, total), compute_dtype)],
        ),
        compiler_params=pltpu.CompilerParams(
            dimension_semantics=("parallel", "parallel")),
    )(x2, x2, x2, rw, w2d, masks, bias2)

    # Pure metadata reshape -- no extra HBM pass.
    return out.reshape(n, c, 2 * d, 2 * h, 2 * w)


class SplitUpsample1Pallas:
    """Pallas port of SplitUpsample1 (use_convtranspose=False)."""

    def __init__(self, spatial_dims, in_channels, use_convtranspose, key,
                 compute_dtype=jnp.float32):
        assert spatial_dims == 3, "SplitUpsample1 is used with 3D tensors"
        # TODO(synk): transposed-conv (use_convtranspose=True) path not implemented.
        assert not use_convtranspose
        k_w, k_b = jax.random.split(key)
        fan_in = in_channels * 27
        bound = 1.0 / (fan_in ** 0.5)
        # PyTorch Conv3d weight layout (Cout, Cin, kd, kh, kw), init ~ U(-b, b).
        self.w_torch = jax.random.uniform(
            k_w, (in_channels, in_channels, 3, 3, 3), jnp.float32, -bound, bound)
        self.bias = jax.random.uniform(k_b, (in_channels,), jnp.float32,
                                       -bound, bound)
        # bf16 operands (f32 accumulation stays) halve DMA/VMEM and double MXU
        # rate on v6e/v7x; default is f32 so the correctness check stays tight.
        self.compute_dtype = compute_dtype

    def __call__(self, x_ncdhw):
        n, c, d, h, w = x_ncdhw.shape
        # Split-along-H conv equals the full conv when the upsampled H is
        # divisible by NUM_SPLITS (SPLIT_PADDING=3 overlap >= conv halo of 1).
        assert (2 * h) % NUM_SPLITS == 0
        return split_upsample1_pallas(x_ncdhw, self.w_torch, self.bias,
                                      compute_dtype=self.compute_dtype)


# -----------------------------------------------------------------------------
# Independent reference (gather-based upsample + XLA conv, HIGHEST precision).
# -----------------------------------------------------------------------------
def _upsample_linear_2x_ref(x, axis):
    n = x.shape[axis]
    out_idx = jnp.arange(2 * n, dtype=jnp.float32)
    src = jnp.clip((out_idx + 0.5) / 2.0 - 0.5, 0.0, float(n - 1))
    lo = jnp.floor(src).astype(jnp.int32)
    hi = jnp.minimum(lo + 1, n - 1)
    frac = src - lo.astype(jnp.float32)
    xlo = jnp.take(x, lo, axis=axis)
    xhi = jnp.take(x, hi, axis=axis)
    shape = [1] * x.ndim
    shape[axis] = 2 * n
    frac = frac.reshape(shape)
    return xlo * (1.0 - frac) + xhi * frac


def _reference(x_ncdhw, w_torch, bias):
    x = x_ncdhw
    for axis in (2, 3, 4):
        x = _upsample_linear_2x_ref(x, axis)
    x_ndhwc = jnp.transpose(x, (0, 2, 3, 4, 1))
    w_dhwio = jnp.transpose(w_torch, (2, 3, 4, 1, 0))
    y = lax.conv_general_dilated(
        x_ndhwc, w_dhwio, (1, 1, 1), "SAME",
        dimension_numbers=("NDHWC", "DHWIO", "NDHWC"),
        precision=lax.Precision.HIGHEST,
    ) + bias
    return jnp.transpose(y, (0, 4, 1, 2, 3))


if __name__ == "__main__":
    key = jax.random.PRNGKey(0)
    k_x, k_p = jax.random.split(key)

    # NCDHW input; H=8 so the upsampled H=16 is divisible by NUM_SPLITS=16.
    N, C, D, H, W = 2, 4, 4, 8, 8
    x = jax.random.normal(k_x, (N, C, D, H, W), jnp.float32)

    mod = SplitUpsample1Pallas(spatial_dims=3, in_channels=C,
                               use_convtranspose=False, key=k_p)

    y = jax.block_until_ready(mod(x))
    assert y.shape == (N, C, 2 * D, 2 * H, 2 * W), y.shape

    y_ref = jax.block_until_ready(_reference(x, mod.w_torch, mod.bias))
    # Conv matmuls run at DEFAULT (single-pass bf16-class) MXU precision, so
    # compare at 2e-2; observed error is typically a few 1e-3.
    err = float(jnp.max(jnp.abs(y - y_ref)))
    assert jnp.allclose(y, y_ref, rtol=2e-2, atol=2e-2), err

    print("KERNEL_OK")
</pallas_src>

<mosaic_0001>
module attributes {stable_mosaic.version = 11 : i64} {
  func.func @_fused_upsample_conv_kernel(%arg0: i32, %arg1: i32, %arg2: memref<1x1x32x8xf32, #tpu.memory_space<vmem>>, %arg3: memref<1x1x32x8xf32, #tpu.memory_space<vmem>>, %arg4: memref<1x1x32x8xf32, #tpu.memory_space<vmem>>, %arg5: memref<8x16xf32, #tpu.memory_space<vmem>>, %arg6: memref<4x108xf32, #tpu.memory_space<vmem>>, %arg7: memref<2x256xf32, #tpu.memory_space<vmem>>, %arg8: memref<4x1xf32, #tpu.memory_space<vmem>>, %arg9: memref<1x4x512xf32, #tpu.memory_space<vmem>>, %arg10: memref<16x384xf32, #tpu.memory_space<vmem>>) attributes {dimension_semantics = [#tpu.dimension_semantics<parallel>, #tpu.dimension_semantics<parallel>], iteration_bounds = array<i64: 2, 4>, scalar_prefetch = 0 : i64, scratch_operands = 1 : i64, tpu.core_type = #tpu.core_type<tc>, window_params = [{transform_indices = @transform_0, window_bounds = array<i64: 1, 1, 32, 8>}, {transform_indices = @transform_1, window_bounds = array<i64: 1, 1, 32, 8>}, {transform_indices = @transform_2, window_bounds = array<i64: 1, 1, 32, 8>}, {pipeline_mode = #tpu.pipeline_mode<synchronous>, transform_indices = @transform_3, window_bounds = array<i64: 8, 16>}, {pipeline_mode = #tpu.pipeline_mode<synchronous>, transform_indices = @transform_4, window_bounds = array<i64: 4, 108>}, {pipeline_mode = #tpu.pipeline_mode<synchronous>, transform_indices = @transform_5, window_bounds = array<i64: 2, 256>}, {pipeline_mode = #tpu.pipeline_mode<synchronous>, transform_indices = @transform_6, window_bounds = array<i64: 4, 1>}, {transform_indices = @transform_7, window_bounds = array<i64: 1, 4, 512>}]} {
    %c0_i32 = arith.constant 0 : i32
    %0 = arith.cmpi sgt, %arg1, %c0_i32 : i32
    %1 = arith.extui %0 : i1 to i32
    %2 = arith.sitofp %1 : i32 to f32
    %c3_i32 = arith.constant 3 : i32
    %3 = arith.cmpi slt, %arg1, %c3_i32 : i32
    %4 = arith.extui %3 : i1 to i32
    %5 = arith.sitofp %4 : i32 to f32
    %c0 = arith.constant 0 : index
    %c0_0 = arith.constant 0 : index
    %c0_1 = arith.constant 0 : index
    %c0_2 = arith.constant 0 : index
    %6 = vector.load %arg2[%c0, %c0_0, %c0_1, %c0_2] : memref<1x1x32x8xf32, #tpu.memory_space<vmem>>, vector<1x1x32x8xf32>
    %7 = vector.shape_cast %6 : vector<1x1x32x8xf32> to vector<32x8xf32>
    %c0_3 = arith.constant 0 : index
    %c0_4 = arith.constant 0 : index
    %c0_5 = arith.constant 0 : index
    %c0_6 = arith.constant 0 : index
    %8 = vector.load %arg3[%c0_3, %c0_4, %c0_5, %c0_6] : memref<1x1x32x8xf32, #tpu.memory_space<vmem>>, vector<1x1x32x8xf32>
    %9 = vector.shape_cast %8 : vector<1x1x32x8xf32> to vector<32x8xf32>
    %c0_7 = arith.constant 0 : index
    %c0_8 = arith.constant 0 : index
    %c0_9 = arith.constant 0 : index
    %c0_10 = arith.constant 0 : index
    %10 = vector.load %arg4[%c0_7, %c0_8, %c0_9, %c0_10] : memref<1x1x32x8xf32, #tpu.memory_space<vmem>>, vector<1x1x32x8xf32>
    %11 = vector.shape_cast %10 : vector<1x1x32x8xf32> to vector<32x8xf32>
    %cst = arith.constant 7.500000e-01 : f32
    %12 = vector.broadcast %cst : f32 to vector<32x8xf32>
    %13 = arith.mulf %12, %7 : vector<32x8xf32>
    %cst_11 = arith.constant 2.500000e-01 : f32
    %14 = vector.broadcast %cst_11 : f32 to vector<32x8xf32>
    %15 = arith.mulf %14, %9 : vector<32x8xf32>
    %16 = arith.addf %13, %15 : vector<32x8xf32>
    %17 = vector.broadcast %2 : f32 to vector<32x8xf32>
    %18 = arith.mulf %17, %16 : vector<32x8xf32>
    %cst_12 = arith.constant 7.500000e-01 : f32
    %19 = vector.broadcast %cst_12 : f32 to vector<32x8xf32>
    %20 = arith.mulf %19, %9 : vector<32x8xf32>
    %cst_13 = arith.constant 2.500000e-01 : f32
    %21 = vector.broadcast %cst_13 : f32 to vector<32x8xf32>
    %22 = arith.mulf %21, %7 : vector<32x8xf32>
    %23 = arith.addf %20, %22 : vector<32x8xf32>
    %cst_14 = arith.constant 7.500000e-01 : f32
    %24 = vector.broadcast %cst_14 : f32 to vector<32x8xf32>
    %25 = arith.mulf %24, %9 : vector<32x8xf32>
    %cst_15 = arith.constant 2.500000e-01 : f32
    %26 = vector.broadcast %cst_15 : f32 to vector<32x8xf32>
    %27 = arith.mulf %26, %11 : vector<32x8xf32>
    %28 = arith.addf %25, %27 : vector<32x8xf32>
    %cst_16 = arith.constant 7.500000e-01 : f32
    %29 = vector.broadcast %cst_16 : f32 to vector<32x8xf32>
    %30 = arith.mulf %29, %11 : vector<32x8xf32>
    %cst_17 = arith.constant 2.500000e-01 : f32
    %31 = vector.broadcast %cst_17 : f32 to vector<32x8xf32>
    %32 = arith.mulf %31, %9 : vector<32x8xf32>
    %33 = arith.addf %30, %32 : vector<32x8xf32>
    %34 = vector.broadcast %5 : f32 to vector<32x8xf32>
    %35 = arith.mulf %34, %33 : vector<32x8xf32>
    %c0_18 = arith.constant 0 : index
    %c0_19 = arith.constant 0 : index
    %36 = vector.load %arg5[%c0_18, %c0_19] : memref<8x16xf32, #tpu.memory_space<vmem>>, vector<8x16xf32>
    %cst_20 = arith.constant dense<0.000000e+00> : vector<32x16xf32>
    %37 = tpu.matmul %18, %36, %cst_20 {dimension_numbers = #tpu.dot_dimension_numbers<[1], [0], [0], [1], [0, 0, 1, 1], [], []>, precision = #tpu.contract_precision<fp32>} : vector<32x8xf32>, vector<8x16xf32>, vector<32x16xf32> -> vector<32x16xf32>
    %cst_21 = arith.constant dense<0.000000e+00> : vector<32x16xf32>
    %38 = tpu.matmul %23, %36, %cst_21 {dimension_numbers = #tpu.dot_dimension_numbers<[1], [0], [0], [1], [0, 0, 1, 1], [], []>, precision = #tpu.contract_precision<fp32>} : vector<32x8xf32>, vector<8x16xf32>, vector<32x16xf32> -> vector<32x16xf32>
    %cst_22 = arith.constant dense<0.000000e+00> : vector<32x16xf32>
    %39 = tpu.matmul %28, %36, %cst_22 {dimension_numbers = #tpu.dot_dimension_numbers<[1], [0], [0], [1], [0, 0, 1, 1], [], []>, precision = #tpu.contract_precision<fp32>} : vector<32x8xf32>, vector<8x16xf32>, vector<32x16xf32> -> vector<32x16xf32>
    %cst_23 = arith.constant dense<0.000000e+00> : vector<32x16xf32>
    %40 = tpu.matmul %35, %36, %cst_23 {dimension_numbers = #tpu.dot_dimension_numbers<[1], [0], [0], [1], [0, 0, 1, 1], [], []>, precision = #tpu.contract_precision<fp32>} : vector<32x8xf32>, vector<8x16xf32>, vector<32x16xf32> -> vector<32x16xf32>
    %cst_24 = arith.constant 0.000000e+00 : f32
    %41 = vector.broadcast %cst_24 : f32 to vector<16x24xf32>
    %c0_25 = arith.constant 0 : index
    %c0_26 = arith.constant 0 : index
    %42 = vector.load %arg10[%c0_25, %c0_26] : memref<16x384xf32, #tpu.memory_space<vmem>>, vector<16x24xf32>
    tpu.vector_store %arg10[%c0_25, %c0_26], %41 {strides = array<i32>} : memref<16x384xf32, #tpu.memory_space<vmem>>, vector<16x24xf32>,
    %cst_27 = arith.constant 0.000000e+00 : f32
    %43 = vector.broadcast %cst_27 : f32 to vector<16x104xf32>
    %c0_28 = arith.constant 0 : index
    %c280 = arith.constant 280 : index
    %44 = vector.load %arg10[%c0_28, %c280] : memref<16x384xf32, #tpu.memory_space<vmem>>, vector<16x104xf32>
    tpu.vector_store %arg10[%c0_28, %c280], %43 {strides = array<i32>} : memref<16x384xf32, #tpu.memory_space<vmem>>, vector<16x104xf32>,
    %45 = vector.extract_strided_slice %37 {offsets = [0, 0], sizes = [4, 16], strides = [1, 1]} : vector<32x16xf32> to vector<4x16xf32>
    %cst_29 = arith.constant 7.500000e-01 : f32
    %46 = vector.broadcast %cst_29 : f32 to vector<4x16xf32>
    %47 = arith.mulf %46, %45 : vector<4x16xf32>
    %48 = vector.extract_strided_slice %37 {offsets = [0, 0], sizes = [4, 16], strides = [1, 1]} : vector<32x16xf32> to vector<4x16xf32>
    %cst_30 = arith.constant 2.500000e-01 : f32
    %49 = vector.broadcast %cst_30 : f32 to vector<4x16xf32>
    %50 = arith.mulf %49, %48 : vector<4x16xf32>
    %51 = arith.addf %47, %50 : vector<4x16xf32>
    %c0_31 = arith.constant 0 : index
    %c24 = arith.constant 24 : index
    %52 = vector.load %arg10[%c0_31, %c24] : memref<16x384xf32, #tpu.memory_space<vmem>>, vector<4x16xf32>
    tpu.vector_store %arg10[%c0_31, %c24], %51 {strides = array<i32>} : memref<16x384xf32, #tpu.memory_space<vmem>>, vector<4x16xf32>,
    %53 = vector.extract_strided_slice %38 {offsets = [0, 0], sizes = [4, 16], strides = [1, 1]} : vector<32x16xf32> to vector<4x16xf32>
    %cst_32 = arith.constant 7.500000e-01 : f32
    %54 = vector.broadcast %cst_32 : f32 to vector<4x16xf32>
    %55 = arith.mulf %54, %53 : vector<4x16xf32>
    %56 = vector.extract_strided_slice %38 {offsets = [0, 0], sizes = [4, 16], strides = [1, 1]} : vector<32x16xf32> to vector<4x16xf32>
    %cst_33 = arith.constant 2.500000e-01 : f32
    %57 = vector.broadcast %cst_33 : f32 to vector<4x16xf32>
    %58 = arith.mulf %57, %56 : vector<4x16xf32>
    %59 = arith.addf %55, %58 : vector<4x16xf32>
    %c4 = arith.constant 4 : index
    %c24_34 = arith.constant 24 : index
    %60 = vector.load %arg10[%c4, %c24_34] : memref<16x384xf32, #tpu.memory_space<vmem>>, vector<4x16xf32>
    tpu.vector_store %arg10[%c4, %c24_34], %59 {strides = array<i32>} : memref<16x384xf32, #tpu.memory_space<vmem>>, vector<4x16xf32>,
    %61 = vector.extract_strided_slice %39 {offsets = [0, 0], sizes = [4, 16], strides = [1, 1]} : vector<32x16xf32> to vector<4x16xf32>
    %cst_35 = arith.constant 7.500000e-01 : f32
    %62 = vector.broadcast %cst_35 : f32 to vector<4x16xf32>
    %63 = arith.mulf %62, %61 : vector<4x16xf32>
    %64 = vector.extract_strided_slice %39 {offsets = [0, 0], sizes = [4, 16], strides = [1, 1]} : vector<32x16xf32> to vector<4x16xf32>
    %cst_36 = arith.constant 2.500000e-01 : f32
    %65 = vector.broadcast %cst_36 : f32 to vector<4x16xf32>
    %66 = arith.mulf %65, %64 : vector<4x16xf32>
    %67 = arith.addf %63, %66 : vector<4x16xf32>
    %c8 = arith.constant 8 : index
    %c24_37 = arith.constant 24 : index
    %68 = vector.load %arg10[%c8, %c24_37] : memref<16x384xf32, #tpu.memory_space<vmem>>, vector<4x16xf32>
    tpu.vector_store %arg10[%c8, %c24_37], %67 {strides = array<i32>} : memref<16x384xf32, #tpu.memory_space<vmem>>, vector<4x16xf32>,
    %69 = vector.extract_strided_slice %40 {offsets = [0, 0], sizes = [4, 16], strides = [1, 1]} : vector<32x16xf32> to vector<4x16xf32>
    %cst_38 = arith.constant 7.500000e-01 : f32
    %70 = vector.broadcast %cst_38 : f32 to vector<4x16xf32>
    %71 = arith.mulf %70, %69 : vector<4x16xf32>
    %72 = vector.extract_strided_slice %40 {offsets = [0, 0], sizes = [4, 16], strides = [1, 1]} : vector<32x16xf32> to vector<4x16xf32>
    %cst_39 = arith.constant 2.500000e-01 : f32
    %73 = vector.broadcast %cst_39 : f32 to vector<4x16xf32>
    %74 = arith.mulf %73, %72 : vector<4x16xf32>
    %75 = arith.addf %71, %74 : vector<4x16xf32>
    %c12 = arith.constant 12 : index
    %c24_40 = arith.constant 24 : index
    %76 = vector.load %arg10[%c12, %c24_40] : memref<16x384xf32, #tpu.memory_space<vmem>>, vector<4x16xf32>
    tpu.vector_store %arg10[%c12, %c24_40], %75 {strides = array<i32>} : memref<16x384xf32, #tpu.memory_space<vmem>>, vector<4x16xf32>,
    %77 = vector.extract_strided_slice %37 {offsets = [0, 0], sizes = [4, 16], strides = [1, 1]} : vector<32x16xf32> to vector<4x16xf32>
    %cst_41 = arith.constant 7.500000e-01 : f32
    %78 = vector.broadcast %cst_41 : f32 to vector<4x16xf32>
    %79 = arith.mulf %78, %77 : vector<4x16xf32>
    %80 = vector.extract_strided_slice %37 {offsets = [4, 0], sizes = [4, 16], strides = [1, 1]} : vector<32x16xf32> to vector<4x16xf32>
    %cst_42 = arith.constant 2.500000e-01 : f32
    %81 = vector.broadcast %cst_42 : f32 to vector<4x16xf32>
    %82 = arith.mulf %81, %80 : vector<4x16xf32>
    %83 = arith.addf %79, %82 : vector<4x16xf32>
    %c0_43 = arith.constant 0 : index
    %c40 = arith.constant 40 : index
    %84 = vector.load %arg10[%c0_43, %c40] : memref<16x384xf32, #tpu.memory_space<vmem>>, vector<4x16xf32>
    tpu.vector_store %arg10[%c0_43, %c40], %83 {strides = array<i32>} : memref<16x384xf32, #tpu.memory_space<vmem>>, vector<4x16xf32>,
    %85 = vector.extract_strided_slice %38 {offsets = [0, 0], sizes = [4, 16], strides = [1, 1]} : vector<32x16xf32> to vector<4x16xf32>
    %cst_44 = arith.constant 7.500000e-01 : f32
    %86 = vector.broadcast %cst_44 : f32 to vector<4x16xf32>
    %87 = arith.mulf %86, %85 : vector<4x16xf32>
    %88 = vector.extract_strided_slice %38 {offsets = [4, 0], sizes = [4, 16], strides = [1, 1]} : vector<32x16xf32> to vector<4x16xf32>
    %cst_45 = arith.constant 2.500000e-01 : f32
    %89 = vector.broadcast %cst_45 : f32 to vector<4x16xf32>
    %90 = arith.mulf %89, %88 : vector<4x16xf32>
    %91 = arith.addf %87, %90 : vector<4x16xf32>
    %c4_46 = arith.constant 4 : index
    %c40_47 = arith.constant 40 : index
    %92 = vector.load %arg10[%c4_46, %c40_47] : memref<16x384xf32, #tpu.memory_space<vmem>>, vector<4x16xf32>
    tpu.vector_store %arg10[%c4_46, %c40_47], %91 {strides = array<i32>} : memref<16x384xf32, #tpu.memory_space<vmem>>, vector<4x16xf32>,
    %93 = vector.extract_strided_slice %39 {offsets = [0, 0], sizes = [4, 16], strides = [1, 1]} : vector<32x16xf32> to vector<4x16xf32>
    %cst_48 = arith.constant 7.500000e-01 : f32
    %94 = vector.broadcast %cst_48 : f32 to vector<4x16xf32>
    %95 = arith.mulf %94, %93 : vector<4x16xf32>
    %96 = vector.extract_strided_slice %39 {offsets = [4, 0], sizes = [4, 16], strides = [1, 1]} : vector<32x16xf32> to vector<4x16xf32>
    %cst_49 = arith.constant 2.500000e-01 : f32
    %97 = vector.broadcast %cst_49 : f32 to vector<4x16xf32>
    %98 = arith.mulf %97, %96 : vector<4x16xf32>
    %99 = arith.addf %95, %98 : vector<4x16xf32>
    %c8_50 = arith.constant 8 : index
    %c40_51 = arith.constant 40 : index
    %100 = vector.load %arg10[%c8_50, %c40_51] : memref<16x384xf32, #tpu.memory_space<vmem>>, vector<4x16xf32>
    tpu.vector_store %arg10[%c8_50, %c40_51], %99 {strides = array<i32>} : memref<16x384xf32, #tpu.memory_space<vmem>>, vector<4x16xf32>,
    %101 = vector.extract_strided_slice %40 {offsets = [0, 0], sizes = [4, 16], strides = [1, 1]} : vector<32x16xf32> to vector<4x16xf32>
    %cst_52 = arith.constant 7.500000e-01 : f32
    %102 = vector.broadcast %cst_52 : f32 to vector<4x16xf32>
    %103 = arith.mulf %102, %101 : vector<4x16xf32>
    %104 = vector.extract_strided_slice %40 {offsets = [4, 0], sizes = [4, 16], strides = [1, 1]} : vector<32x16xf32> to vector<4x16xf32>
    %cst_53 = arith.constant 2.500000e-01 : f32
    %105 = vector.broadcast %cst_53 : f32 to vector<4x16xf32>
    %106 = arith.mulf %105, %104 : vector<4x16xf32>
    %107 = arith.addf %103, %106 : vector<4x16xf32>
    %c12_54 = arith.constant 12 : index
    %c40_55 = arith.constant 40 : index
    %108 = vector.load %arg10[%c12_54, %c40_55] : memref<16x384xf32, #tpu.memory_space<vmem>>, vector<4x16xf32>
    tpu.vector_store %arg10[%c12_54, %c40_55], %107 {strides = array<i32>} : memref<16x384xf32, #tpu.memory_space<vmem>>, vector<4x16xf32>,
    %109 = vector.extract_strided_slice %37 {offsets = [4, 0], sizes = [4, 16], strides = [1, 1]} : vector<32x16xf32> to vector<4x16xf32>
    %cst_56 = arith.constant 7.500000e-01 : f32
    %110 = vector.broadcast %cst_56 : f32 to vector<4x16xf32>
    %111 = arith.mulf %110, %109 : vector<4x16xf32>
    %112 = vector.extract_strided_slice %37 {offsets = [0, 0], sizes = [4, 16], strides = [1, 1]} : vector<32x16xf32> to vector<4x16xf32>
    %cst_57 = arith.constant 2.500000e-01 : f32
    %113 = vector.broadcast %cst_57 : f32 to vector<4x16xf32>
    %114 = arith.mulf %113, %112 : vector<4x16xf32>
    %115 = arith.addf %111, %114 : vector<4x16xf32>
    %c0_58 = arith.constant 0 : index
    %c56 = arith.constant 56 : index
    %116 = vector.load %arg10[%c0_58, %c56] : memref<16x384xf32, #tpu.memory_space<vmem>>, vector<4x16xf32>
    tpu.vector_store %arg10[%c0_58, %c56], %115 {strides = array<i32>} : memref<16x384xf32, #tpu.memory_space<vmem>>, vector<4x16xf32>,
    %117 = vector.extract_strided_slice %38 {offsets = [4, 0], sizes = [4, 16], strides = [1, 1]} : vector<32x16xf32> to vector<4x16xf32>
    %cst_59 = arith.constant 7.500000e-01 : f32
    %118 = vector.broadcast %cst_59 : f32 to vector<4x16xf32>
    %119 = arith.mulf %118, %117 : vector<4x16xf32>
    %120 = vector.extract_strided_slice %38 {offsets = [0, 0], sizes = [4, 16], strides = [1, 1]} : vector<32x16xf32> to vector<4x16xf32>
    %cst_60 = arith.constant 2.500000e-01 : f32
    %121 = vector.broadcast %cst_60 : f32 to vector<4x16xf32>
    %122 = arith.mulf %121, %120 : vector<4x16xf32>
    %123 = arith.addf %119, %122 : vector<4x16xf32>
    %c4_61 = arith.constant 4 : index
    %c56_62 = arith.constant 56 : index
    %124 = vector.load %arg10[%c4_61, %c56_62] : memref<16x384xf32, #tpu.memory_space<vmem>>, vector<4x16xf32>
    tpu.vector_store %arg10[%c4_61, %c56_62], %123 {strides = array<i32>} : memref<16x384xf32, #tpu.memory_space<vmem>>, vector<4x16xf32>,
    %125 = vector.extract_strided_slice %39 {offsets = [4, 0], sizes = [4, 16], strides = [1, 1]} : vector<32x16xf32> to vector<4x16xf32>
    %cst_63 = arith.constant 7.500000e-01 : f32
    %126 = vector.broadcast %cst_63 : f32 to vector<4x16xf32>
    %127 = arith.mulf %126, %125 : vector<4x16xf32>
    %128 = vector.extract_strided_slice %39 {offsets = [0, 0], sizes = [4, 16], strides = [1, 1]} : vector<32x16xf32> to vector<4x16xf32>
    %cst_64 = arith.constant 2.500000e-01 : f32
    %129 = vector.broadcast %cst_64 : f32 to vector<4x16xf32>
    %130 = arith.mulf %129, %128 : vector<4x16xf32>
    %131 = arith.addf %127, %130 : vector<4x16xf32>
    %c8_65 = arith.constant 8 : index
    %c56_66 = arith.constant 56 : index
    %132 = vector.load %arg10[%c8_65, %c56_66] : memref<16x384xf32, #tpu.memory_space<vmem>>, vector<4x16xf32>
    tpu.vector_store %arg10[%c8_65, %c56_66], %131 {strides = array<i32>} : memref<16x384xf32, #tpu.memory_space<vmem>>, vector<4x16xf32>,
    %133 = vector.extract_strided_slice %40 {offsets = [4, 0], sizes = [4, 16], strides = [1, 1]} : vector<32x16xf32> to vector<4x16xf32>
    %cst_67 = arith.constant 7.500000e-01 : f32
    %134 = vector.broadcast %cst_67 : f32 to vector<4x16xf32>
    %135 = arith.mulf %134, %133 : vector<4x16xf32>
    %136 = vector.extract_strided_slice %40 {offsets = [0, 0], sizes = [4, 16], strides = [1, 1]} : vector<32x16xf32> to vector<4x16xf32>
    %cst_68 = arith.constant 2.500000e-01 : f32
    %137 = vector.broadcast %cst_68 : f32 to vector<4x16xf32>
    %138 = arith.mulf %137, %136 : vector<4x16xf32>
    %139 = arith.addf %135, %138 : vector<4x16xf32>
    %c12_69 = arith.constant 12 : index
    %c56_70 = arith.constant 56 : index
    %140 = vector.load %arg10[%c12_69, %c56_70] : memref<16x384xf32, #tpu.memory_space<vmem>>, vector<4x16xf32>
    tpu.vector_store %arg10[%c12_69, %c56_70], %139 {strides = array<i32>} : memref<16x384xf32, #tpu.memory_space<vmem>>, vector<4x16xf32>,
    %141 = vector.extract_strided_slice %37 {offsets = [4, 0], sizes = [4, 16], strides = [1, 1]} : vector<32x16xf32> to vector<4x16xf32>
    %cst_71 = arith.constant 7.500000e-01 : f32
    %142 = vector.broadcast %cst_71 : f32 to vector<4x16xf32>
    %143 = arith.mulf %142, %141 : vector<4x16xf32>
    %144 = vector.extract_strided_slice %37 {offsets = [8, 0], sizes = [4, 16], strides = [1, 1]} : vector<32x16xf32> to vector<4x16xf32>
    %cst_72 = arith.constant 2.500000e-01 : f32
    %145 = vector.broadcast %cst_72 : f32 to vector<4x16xf32>
    %146 = arith.mulf %145, %144 : vector<4x16xf32>
    %147 = arith.addf %143, %146 : vector<4x16xf32>
    %c0_73 = arith.constant 0 : index
    %c72 = arith.constant 72 : index
    %148 = vector.load %arg10[%c0_73, %c72] : memref<16x384xf32, #tpu.memory_space<vmem>>, vector<4x16xf32>
    tpu.vector_store %arg10[%c0_73, %c72], %147 {strides = array<i32>} : memref<16x384xf32, #tpu.memory_space<vmem>>, vector<4x16xf32>,
    %149 = vector.extract_strided_slice %38 {offsets = [4, 0], sizes = [4, 16], strides = [1, 1]} : vector<32x16xf32> to vector<4x16xf32>
    %cst_74 = arith.constant 7.500000e-01 : f32
    %150 = vector.broadcast %cst_74 : f32 to vector<4x16xf32>
    %151 = arith.mulf %150, %149 : vector<4x16xf32>
    %152 = vector.extract_strided_slice %38 {offsets = [8, 0], sizes = [4, 16], strides = [1, 1]} : vector<32x16xf32> to vector<4x16xf32>
    %cst_75 = arith.constant 2.500000e-01 : f32
    %153 = vector.broadcast %cst_75 : f32 to vector<4x16xf32>
    %154 = arith.mulf %153, %152 : vector<4x16xf32>
    %155 = arith.addf %151, %154 : vector<4x16xf32>
    %c4_76 = arith.constant 4 : index
    %c72_77 = arith.constant 72 : index
    %156 = vector.load %arg10[%c4_76, %c72_77] : memref<16x384xf32, #tpu.memory_space<vmem>>, vector<4x16xf32>
    tpu.vector_store %arg10[%c4_76, %c72_77], %155 {strides = array<i32>} : memref<16x384xf32, #tpu.memory_space<vmem>>, vector<4x16xf32>,
    %157 = vector.extract_strided_slice %39 {offsets = [4, 0], sizes = [4, 16], strides = [1, 1]} : vector<32x16xf32> to vector<4x16xf32>
    %cst_78 = arith.constant 7.500000e-01 : f32
    %158 = vector.broadcast %cst_78 : f32 to vector<4x16xf32>
    %159 = arith.mulf %158, %157 : vector<4x16xf32>
    %160 = vector.extract_strided_slice %39 {offsets = [8, 0], sizes = [4, 16], strides = [1, 1]} : vector<32x16xf32> to vector<4x16xf32>
    %cst_79 = arith.constant 2.500000e-01 : f32
    %161 = vector.broadcast %cst_79 : f32 to vector<4x16xf32>
    %162 = arith.mulf %161, %160 : vector<4x16xf32>
    %163 = arith.addf %159, %162 : vector<4x16xf32>
    %c8_80 = arith.constant 8 : index
    %c72_81 = arith.constant 72 : index
    %164 = vector.load %arg10[%c8_80, %c72_81] : memref<16x384xf32, #tpu.memory_space<vmem>>, vector<4x16xf32>
    tpu.vector_store %arg10[%c8_80, %c72_81], %163 {strides = array<i32>} : memref<16x384xf32, #tpu.memory_space<vmem>>, vector<4x16xf32>,
    %165 = vector.extract_strided_slice %40 {offsets = [4, 0], sizes = [4, 16], strides = [1, 1]} : vector<32x16xf32> to vector<4x16xf32>
    %cst_82 = arith.constant 7.500000e-01 : f32
    %166 = vector.broadcast %cst_82 : f32 to vector<4x16xf32>
    %167 = arith.mulf %166, %165 : vector<4x16xf32>
    %168 = vector.extract_strided_slice %40 {offsets = [8, 0], sizes = [4, 16], strides = [1, 1]} : vector<32x16xf32> to vector<4x16xf32>
    %cst_83 = arith.constant 2.500000e-01 : f32
    %169 = vector.broadcast %cst_83 : f32 to vector<4x16xf32>
    %170 = arith.mulf %169, %168 : vector<4x16xf32>
    %171 = arith.addf %167, %170 : vector<4x16xf32>
    %c12_84 = arith.constant 12 : index
    %c72_85 = arith.constant 72 : index
    %172 = vector.load %arg10[%c12_84, %c72_85] : memref<16x384xf32, #tpu.memory_space<vmem>>, vector<4x16xf32>
    tpu.vector_store %arg10[%c12_84, %c72_85], %171 {strides = array<i32>} : memref<16x384xf32, #tpu.memory_space<vmem>>, vector<4x16xf32>,
    %173 = vector.extract_strided_slice %37 {offsets = [8, 0], sizes = [4, 16], strides = [1, 1]} : vector<32x16xf32> to vector<4x16xf32>
    %cst_86 = arith.constant 7.500000e-01 : f32
    %174 = vector.broadcast %cst_86 : f32 to vector<4x16xf32>
    %175 = arith.mulf %174, %173 : vector<4x16xf32>
    %176 = vector.extract_strided_slice %37 {offsets = [4, 0], sizes = [4, 16], strides = [1, 1]} : vector<32x16xf32> to vector<4x16xf32>
    %cst_87 = arith.constant 2.500000e-01 : f32
    %177 = vector.broadcast %cst_87 : f32 to vector<4x16xf32>
    %178 = arith.mulf %177, %176 : vector<4x16xf32>
    %179 = arith.addf %175, %178 : vector<4x16xf32>
    %c0_88 = arith.constant 0 : index
    %c88 = arith.constant 88 : index
    %180 = vector.load %arg10[%c0_88, %c88] : memref<16x384xf32, #tpu.memory_space<vmem>>, vector<4x16xf32>
    tpu.vector_store %arg10[%c0_88, %c88], %179 {strides = array<i32>} : memref<16x384xf32, #tpu.memory_space<vmem>>, vector<4x16xf32>,
    %181 = vector.extract_strided_slice %38 {offsets = [8, 0], sizes = [4, 16], strides = [1, 1]} : vector<32x16xf32> to vector<4x16xf32>
    %cst_89 = arith.constant 7.500000e-01 : f32
    %182 = vector.broadcast %cst_89 : f32 to vector<4x16xf32>
    %183 = arith.mulf %182, %181 : vector<4x16xf32>
    %184 = vector.extract_strided_slice %38 {offsets = [4, 0], sizes = [4, 16], strides = [1, 1]} : vector<32x16xf32> to vector<4x16xf32>
    %cst_90 = arith.constant 2.500000e-01 : f32
    %185 = vector.broadcast %cst_90 : f32 to vector<4x16xf32>
    %186 = arith.mulf %185, %184 : vector<4x16xf32>
    %187 = arith.addf %183, %186 : vector<4x16xf32>
    %c4_91 = arith.constant 4 : index
    %c88_92 = arith.constant 88 : index
    %188 = vector.load %arg10[%c4_91, %c88_92] : memref<16x384xf32, #tpu.memory_space<vmem>>, vector<4x16xf32>
    tpu.vector_store %arg10[%c4_91, %c88_92], %187 {strides = array<i32>} : memref<16x384xf32, #tpu.memory_space<vmem>>, vector<4x16xf32>,
    %189 = vector.extract_strided_slice %39 {offsets = [8, 0], sizes = [4, 16], strides = [1, 1]} : vector<32x16xf32> to vector<4x16xf32>
    %cst_93 = arith.constant 7.500000e-01 : f32
    %190 = vector.broadcast %cst_93 : f32 to vector<4x16xf32>
    %191 = arith.mulf %190, %189 : vector<4x16xf32>
    %192 = vector.extract_strided_slice %39 {offsets = [4, 0], sizes = [4, 16], strides = [1, 1]} : vector<32x16xf32> to vector<4x16xf32>
    %cst_94 = arith.constant 2.500000e-01 : f32
    %193 = vector.broadcast %cst_94 : f32 to vector<4x16xf32>
    %194 = arith.mulf %193, %192 : vector<4x16xf32>
    %195 = arith.addf %191, %194 : vector<4x16xf32>
    %c8_95 = arith.constant 8 : index
    %c88_96 = arith.constant 88 : index
    %196 = vector.load %arg10[%c8_95, %c88_96] : memref<16x384xf32, #tpu.memory_space<vmem>>, vector<4x16xf32>
    tpu.vector_store %arg10[%c8_95, %c88_96], %195 {strides = array<i32>} : memref<16x384xf32, #tpu.memory_space<vmem>>, vector<4x16xf32>,
    %197 = vector.extract_strided_slice %40 {offsets = [8, 0], sizes = [4, 16], strides = [1, 1]} : vector<32x16xf32> to vector<4x16xf32>
    %cst_97 = arith.constant 7.500000e-01 : f32
    %198 = vector.broadcast %cst_97 : f32 to vector<4x16xf32>
    %199 = arith.mulf %198, %197 : vector<4x16xf32>
    %200 = vector.extract_strided_slice %40 {offsets = [4, 0], sizes = [4, 16], strides = [1, 1]} : vector<32x16xf32> to vector<4x16xf32>
    %cst_98 = arith.constant 2.500000e-01 : f32
    %201 = vector.broadcast %cst_98 : f32 to vector<4x16xf32>
    %202 = arith.mulf %201, %200 : vector<4x16xf32>
    %203 = arith.addf %199, %202 : vector<4x16xf32>
    %c12_99 = arith.constant 12 : index
    %c88_100 = arith.constant 88 : index
    %204 = vector.load %arg10[%c12_99, %c88_100] : memref<16x384xf32, #tpu.memory_space<vmem>>, vector<4x16xf32>
    tpu.vector_store %arg10[%c12_99, %c88_100], %203 {strides = array<i32>} : memref<16x384xf32, #tpu.memory_space<vmem>>, vector<4x16xf32>,
    %205 = vector.extract_strided_slice %37 {offsets = [8, 0], sizes = [4, 16], strides = [1, 1]} : vector<32x16xf32> to vector<4x16xf32>
    %cst_101 = arith.constant 7.500000e-01 : f32
    %206 = vector.broadcast %cst_101 : f32 to vector<4x16xf32>
    %207 = arith.mulf %206, %205 : vector<4x16xf32>
    %208 = vector.extract_strided_slice %37 {offsets = [12, 0], sizes = [4, 16], strides = [1, 1]} : vector<32x16xf32> to vector<4x16xf32>
    %cst_102 = arith.constant 2.500000e-01 : f32
    %209 = vector.broadcast %cst_102 : f32 to vector<4x16xf32>
    %210 = arith.mulf %209, %208 : vector<4x16xf32>
    %211 = arith.addf %207, %210 : vector<4x16xf32>
    %c0_103 = arith.constant 0 : index
    %c104 = arith.constant 104 : index
    %212 = vector.load %arg10[%c0_103, %c104] : memref<16x384xf32, #tpu.memory_space<vmem>>, vector<4x16xf32>
    tpu.vector_store %arg10[%c0_103, %c104], %211 {strides = array<i32>} : memref<16x384xf32, #tpu.memory_space<vmem>>, vector<4x16xf32>,
    %213 = vector.extract_strided_slice %38 {offsets = [8, 0], sizes = [4, 16], strides = [1, 1]} : vector<32x16xf32> to vector<4x16xf32>
    %cst_104 = arith.constant 7.500000e-01 : f32
    %214 = vector.broadcast %cst_104 : f32 to vector<4x16xf32>
    %215 = arith.mulf %214, %213 : vector<4x16xf32>
    %216 = vector.extract_strided_slice %38 {offsets = [12, 0], sizes = [4, 16], strides = [1, 1]} : vector<32x16xf32> to vector<4x16xf32>
    %cst_105 = arith.constant 2.500000e-01 : f32
    %217 = vector.broadcast %cst_105 : f32 to vector<4x16xf32>
    %218 = arith.mulf %217, %216 : vector<4x16xf32>
    %219 = arith.addf %215, %218 : vector<4x16xf32>
    %c4_106 = arith.constant 4 : index
    %c104_107 = arith.constant 104 : index
    %220 = vector.load %arg10[%c4_106, %c104_107] : memref<16x384xf32, #tpu.memory_space<vmem>>, vector<4x16xf32>
    tpu.vector_store %arg10[%c4_106, %c104_107], %219 {strides = array<i32>} : memref<16x384xf32, #tpu.memory_space<vmem>>, vector<4x16xf32>,
    %221 = vector.extract_strided_slice %39 {offsets = [8, 0], sizes = [4, 16], strides = [1, 1]} : vector<32x16xf32> to vector<4x16xf32>
    %cst_108 = arith.constant 7.500000e-01 : f32
    %222 = vector.broadcast %cst_108 : f32 to vector<4x16xf32>
    %223 = arith.mulf %222, %221 : vector<4x16xf32>
    %224 = vector.extract_strided_slice %39 {offsets = [12, 0], sizes = [4, 16], strides = [1, 1]} : vector<32x16xf32> to vector<4x16xf32>
    %cst_109 = arith.constant 2.500000e-01 : f32
    %225 = vector.broadcast %cst_109 : f32 to vector<4x16xf32>
    %226 = arith.mulf %225, %224 : vector<4x16xf32>
    %227 = arith.addf %223, %226 : vector<4x16xf32>
    %c8_110 = arith.constant 8 : index
    %c104_111 = arith.constant 104 : index
    %228 = vector.load %arg10[%c8_110, %c104_111] : memref<16x384xf32, #tpu.memory_space<vmem>>, vector<4x16xf32>
    tpu.vector_store %arg10[%c8_110, %c104_111], %227 {strides = array<i32>} : memref<16x384xf32, #tpu.memory_space<vmem>>, vector<4x16xf32>,
    %229 = vector.extract_strided_slice %40 {offsets = [8, 0], sizes = [4, 16], strides = [1, 1]} : vector<32x16xf32> to vector<4x16xf32>
    %cst_112 = arith.constant 7.500000e-01 : f32
    %230 = vector.broadcast %cst_112 : f32 to vector<4x16xf32>
    %231 = arith.mulf %230, %229 : vector<4x16xf32>
    %232 = vector.extract_strided_slice %40 {offsets = [12, 0], sizes = [4, 16], strides = [1, 1]} : vector<32x16xf32> to vector<4x16xf32>
    %cst_113 = arith.constant 2.500000e-01 : f32
    %233 = vector.broadcast %cst_113 : f32 to vector<4x16xf32>
    %234 = arith.mulf %233, %232 : vector<4x16xf32>
    %235 = arith.addf %231, %234 : vector<4x16xf32>
    %c12_114 = arith.constant 12 : index
    %c104_115 = arith.constant 104 : index
    %236 = vector.load %arg10[%c12_114, %c104_115] : memref<16x384xf32, #tpu.memory_space<vmem>>, vector<4x16xf32>
    tpu.vector_store %arg10[%c12_114, %c104_115], %235 {strides = array<i32>} : memref<16x384xf32, #tpu.memory_space<vmem>>, vector<4x16xf32>,
    %237 = vector.extract_strided_slice %37 {offsets = [12, 0], sizes = [4, 16], strides = [1, 1]} : vector<32x16xf32> to vector<4x16xf32>
    %cst_116 = arith.constant 7.500000e-01 : f32
    %238 = vector.broadcast %cst_116 : f32 to vector<4x16xf32>
    %239 = arith.mulf %238, %237 : vector<4x16xf32>
    %240 = vector.extract_strided_slice %37 {offsets = [8, 0], sizes = [4, 16], strides = [1, 1]} : vector<32x16xf32> to vector<4x16xf32>
    %cst_117 = arith.constant 2.500000e-01 : f32
    %241 = vector.broadcast %cst_117 : f32 to vector<4x16xf32>
    %242 = arith.mulf %241, %240 : vector<4x16xf32>
    %243 = arith.addf %239, %242 : vector<4x16xf32>
    %c0_118 = arith.constant 0 : index
    %c120 = arith.constant 120 : index
    %244 = vector.load %arg10[%c0_118, %c120] : memref<16x384xf32, #tpu.memory_space<vmem>>, vector<4x16xf32>
    tpu.vector_store %arg10[%c0_118, %c120], %243 {strides = array<i32>} : memref<16x384xf32, #tpu.memory_space<vmem>>, vector<4x16xf32>,
    %245 = vector.extract_strided_slice %38 {offsets = [12, 0], sizes = [4, 16], strides = [1, 1]} : vector<32x16xf32> to vector<4x16xf32>
    %cst_119 = arith.constant 7.500000e-01 : f32
    %246 = vector.broadcast %cst_119 : f32 to vector<4x16xf32>
    %247 = arith.mulf %246, %245 : vector<4x16xf32>
    %248 = vector.extract_strided_slice %38 {offsets = [8, 0], sizes = [4, 16], strides = [1, 1]} : vector<32x16xf32> to vector<4x16xf32>
    %cst_120 = arith.constant 2.500000e-01 : f32
    %249 = vector.broadcast %cst_120 : f32 to vector<4x16xf32>
    %250 = arith.mulf %249, %248 : vector<4x16xf32>
    %251 = arith.addf %247, %250 : vector<4x16xf32>
    %c4_121 = arith.constant 4 : index
    %c120_122 = arith.constant 120 : index
    %252 = vector.load %arg10[%c4_121, %c120_122] : memref<16x384xf32, #tpu.memory_space<vmem>>, vector<4x16xf32>
    tpu.vector_store %arg10[%c4_121, %c120_122], %251 {strides = array<i32>} : memref<16x384xf32, #tpu.memory_space<vmem>>, vector<4x16xf32>,
    %253 = vector.extract_strided_slice %39 {offsets = [12, 0], sizes = [4, 16], strides = [1, 1]} : vector<32x16xf32> to vector<4x16xf32>
    %cst_123 = arith.constant 7.500000e-01 : f32
    %254 = vector.broadcast %cst_123 : f32 to vector<4x16xf32>
    %255 = arith.mulf %254, %253 : vector<4x16xf32>
    %256 = vector.extract_strided_slice %39 {offsets = [8, 0], sizes = [4, 16], strides = [1, 1]} : vector<32x16xf32> to vector<4x16xf32>
    %cst_124 = arith.constant 2.500000e-01 : f32
    %257 = vector.broadcast %cst_124 : f32 to vector<4x16xf32>
    %258 = arith.mulf %257, %256 : vector<4x16xf32>
    %259 = arith.addf %255, %258 : vector<4x16xf32>
    %c8_125 = arith.constant 8 : index
    %c120_126 = arith.constant 120 : index
    %260 = vector.load %arg10[%c8_125, %c120_126] : memref<16x384xf32, #tpu.memory_space<vmem>>, vector<4x16xf32>
    tpu.vector_store %arg10[%c8_125, %c120_126], %259 {strides = array<i32>} : memref<16x384xf32, #tpu.memory_space<vmem>>, vector<4x16xf32>,
    %261 = vector.extract_strided_slice %40 {offsets = [12, 0], sizes = [4, 16], strides = [1, 1]} : vector<32x16xf32> to vector<4x16xf32>
    %cst_127 = arith.constant 7.500000e-01 : f32
    %262 = vector.broadcast %cst_127 : f32 to vector<4x16xf32>
    %263 = arith.mulf %262, %261 : vector<4x16xf32>
    %264 = vector.extract_strided_slice %40 {offsets = [8, 0], sizes = [4, 16], strides = [1, 1]} : vector<32x16xf32> to vector<4x16xf32>
    %cst_128 = arith.constant 2.500000e-01 : f32
    %265 = vector.broadcast %cst_128 : f32 to vector<4x16xf32>
    %266 = arith.mulf %265, %264 : vector<4x16xf32>
    %267 = arith.addf %263, %266 : vector<4x16xf32>
    %c12_129 = arith.constant 12 : index
    %c120_130 = arith.constant 120 : index
    %268 = vector.load %arg10[%c12_129, %c120_130] : memref<16x384xf32, #tpu.memory_space<vmem>>, vector<4x16xf32>
    tpu.vector_store %arg10[%c12_129, %c120_130], %267 {strides = array<i32>} : memref<16x384xf32, #tpu.memory_space<vmem>>, vector<4x16xf32>,
    %269 = vector.extract_strided_slice %37 {offsets = [12, 0], sizes = [4, 16], strides = [1, 1]} : vector<32x16xf32> to vector<4x16xf32>
    %cst_131 = arith.constant 7.500000e-01 : f32
    %270 = vector.broadcast %cst_131 : f32 to vector<4x16xf32>
    %271 = arith.mulf %270, %269 : vector<4x16xf32>
    %272 = vector.extract_strided_slice %37 {offsets = [16, 0], sizes = [4, 16], strides = [1, 1]} : vector<32x16xf32> to vector<4x16xf32>
    %cst_132 = arith.constant 2.500000e-01 : f32
    %273 = vector.broadcast %cst_132 : f32 to vector<4x16xf32>
    %274 = arith.mulf %273, %272 : vector<4x16xf32>
    %275 = arith.addf %271, %274 : vector<4x16xf32>
    %c0_133 = arith.constant 0 : index
    %c136 = arith.constant 136 : index
    %276 = vector.load %arg10[%c0_133, %c136] : memref<16x384xf32, #tpu.memory_space<vmem>>, vector<4x16xf32>
    tpu.vector_store %arg10[%c0_133, %c136], %275 {strides = array<i32>} : memref<16x384xf32, #tpu.memory_space<vmem>>, vector<4x16xf32>,
    %277 = vector.extract_strided_slice %38 {offsets = [12, 0], sizes = [4, 16], strides = [1, 1]} : vector<32x16xf32> to vector<4x16xf32>
    %cst_134 = arith.constant 7.500000e-01 : f32
    %278 = vector.broadcast %cst_134 : f32 to vector<4x16xf32>
    %279 = arith.mulf %278, %277 : vector<4x16xf32>
    %280 = vector.extract_strided_slice %38 {offsets = [16, 0], sizes = [4, 16], strides = [1, 1]} : vector<32x16xf32> to vector<4x16xf32>
    %cst_135 = arith.constant 2.500000e-01 : f32
    %281 = vector.broadcast %cst_135 : f32 to vector<4x16xf32>
    %282 = arith.mulf %281, %280 : vector<4x16xf32>
    %283 = arith.addf %279, %282 : vector<4x16xf32>
    %c4_136 = arith.constant 4 : index
    %c136_137 = arith.constant 136 : index
    %284 = vector.load %arg10[%c4_136, %c136_137] : memref<16x384xf32, #tpu.memory_space<vmem>>, vector<4x16xf32>
    tpu.vector_store %arg10[%c4_136, %c136_137], %283 {strides = array<i32>} : memref<16x384xf32, #tpu.memory_space<vmem>>, vector<4x16xf32>,
    %285 = vector.extract_strided_slice %39 {offsets = [12, 0], sizes = [4, 16], strides = [1, 1]} : vector<32x16xf32> to vector<4x16xf32>
    %cst_138 = arith.constant 7.500000e-01 : f32
    %286 = vector.broadcast %cst_138 : f32 to vector<4x16xf32>
    %287 = arith.mulf %286, %285 : vector<4x16xf32>
    %288 = vector.extract_strided_slice %39 {offsets = [16, 0], sizes = [4, 16], strides = [1, 1]} : vector<32x16xf32> to vector<4x16xf32>
    %cst_139 = arith.constant 2.500000e-01 : f32
    %289 = vector.broadcast %cst_139 : f32 to vector<4x16xf32>
    %290 = arith.mulf %289, %288 : vector<4x16xf32>
    %291 = arith.addf %287, %290 : vector<4x16xf32>
    %c8_140 = arith.constant 8 : index
    %c136_141 = arith.constant 136 : index
    %292 = vector.load %arg10[%c8_140, %c136_141] : memref<16x384xf32, #tpu.memory_space<vmem>>, vector<4x16xf32>
    tpu.vector_store %arg10[%c8_140, %c136_141], %291 {strides = array<i32>} : memref<16x384xf32, #tpu.memory_space<vmem>>, vector<4x16xf32>,
    %293 = vector.extract_strided_slice %40 {offsets = [12, 0], sizes = [4, 16], strides = [1, 1]} : vector<32x16xf32> to vector<4x16xf32>
    %cst_142 = arith.constant 7.500000e-01 : f32
    %294 = vector.broadcast %cst_142 : f32 to vector<4x16xf32>
    %295 = arith.mulf %294, %293 : vector<4x16xf32>
    %296 = vector.extract_strided_slice %40 {offsets = [16, 0], sizes = [4, 16], strides = [1, 1]} : vector<32x16xf32> to vector<4x16xf32>
    %cst_143 = arith.constant 2.500000e-01 : f32
    %297 = vector.broadcast %cst_143 : f32 to vector<4x16xf32>
    %298 = arith.mulf %297, %296 : vector<4x16xf32>
    %299 = arith.addf %295, %298 : vector<4x16xf32>
    %c12_144 = arith.constant 12 : index
    %c136_145 = arith.constant 136 : index
    %300 = vector.load %arg10[%c12_144, %c136_145] : memref<16x384xf32, #tpu.memory_space<vmem>>, vector<4x16xf32>
    tpu.vector_store %arg10[%c12_144, %c136_145], %299 {strides = array<i32>} : memref<16x384xf32, #tpu.memory_space<vmem>>, vector<4x16xf32>,
    %301 = vector.extract_strided_slice %37 {offsets = [16, 0], sizes = [4, 16], strides = [1, 1]} : vector<32x16xf32> to vector<4x16xf32>
    %cst_146 = arith.constant 7.500000e-01 : f32
    %302 = vector.broadcast %cst_146 : f32 to vector<4x16xf32>
    %303 = arith.mulf %302, %301 : vector<4x16xf32>
    %304 = vector.extract_strided_slice %37 {offsets = [12, 0], sizes = [4, 16], strides = [1, 1]} : vector<32x16xf32> to vector<4x16xf32>
    %cst_147 = arith.constant 2.500000e-01 : f32
    %305 = vector.broadcast %cst_147 : f32 to vector<4x16xf32>
    %306 = arith.mulf %305, %304 : vector<4x16xf32>
    %307 = arith.addf %303, %306 : vector<4x16xf32>
    %c0_148 = arith.constant 0 : index
    %c152 = arith.constant 152 : index
    %308 = vector.load %arg10[%c0_148, %c152] : memref<16x384xf32, #tpu.memory_space<vmem>>, vector<4x16xf32>
    tpu.vector_store %arg10[%c0_148, %c152], %307 {strides = array<i32>} : memref<16x384xf32, #tpu.memory_space<vmem>>, vector<4x16xf32>,
    %309 = vector.extract_strided_slice %38 {offsets = [16, 0], sizes = [4, 16], strides = [1, 1]} : vector<32x16xf32> to vector<4x16xf32>
    %cst_149 = arith.constant 7.500000e-01 : f32
    %310 = vector.broadcast %cst_149 : f32 to vector<4x16xf32>
    %311 = arith.mulf %310, %309 : vector<4x16xf32>
    %312 = vector.extract_strided_slice %38 {offsets = [12, 0], sizes = [4, 16], strides = [1, 1]} : vector<32x16xf32> to vector<4x16xf32>
    %cst_150 = arith.constant 2.500000e-01 : f32
    %313 = vector.broadcast %cst_150 : f32 to vector<4x16xf32>
    %314 = arith.mulf %313, %312 : vector<4x16xf32>
    %315 = arith.addf %311, %314 : vector<4x16xf32>
    %c4_151 = arith.constant 4 : index
    %c152_152 = arith.constant 152 : index
    %316 = vector.load %arg10[%c4_151, %c152_152] : memref<16x384xf32, #tpu.memory_space<vmem>>, vector<4x16xf32>
    tpu.vector_store %arg10[%c4_151, %c152_152], %315 {strides = array<i32>} : memref<16x384xf32, #tpu.memory_space<vmem>>, vector<4x16xf32>,
    %317 = vector.extract_strided_slice %39 {offsets = [16, 0], sizes = [4, 16], strides = [1, 1]} : vector<32x16xf32> to vector<4x16xf32>
    %cst_153 = arith.constant 7.500000e-01 : f32
    %318 = vector.broadcast %cst_153 : f32 to vector<4x16xf32>
    %319 = arith.mulf %318, %317 : vector<4x16xf32>
    %320 = vector.extract_strided_slice %39 {offsets = [12, 0], sizes = [4, 16], strides = [1, 1]} : vector<32x16xf32> to vector<4x16xf32>
    %cst_154 = arith.constant 2.500000e-01 : f32
    %321 = vector.broadcast %cst_154 : f32 to vector<4x16xf32>
    %322 = arith.mulf %321, %320 : vector<4x16xf32>
    %323 = arith.addf %319, %322 : vector<4x16xf32>
    %c8_155 = arith.constant 8 : index
    %c152_156 = arith.constant 152 : index
    %324 = vector.load %arg10[%c8_155, %c152_156] : memref<16x384xf32, #tpu.memory_space<vmem>>, vector<4x16xf32>
    tpu.vector_store %arg10[%c8_155, %c152_156], %323 {strides = array<i32>} : memref<16x384xf32, #tpu.memory_space<vmem>>, vector<4x16xf32>,
    %325 = vector.extract_strided_slice %40 {offsets = [16, 0], sizes = [4, 16], strides = [1, 1]} : vector<32x16xf32> to vector<4x16xf32>
    %cst_157 = arith.constant 7.500000e-01 : f32
    %326 = vector.broadcast %cst_157 : f32 to vector<4x16xf32>
    %327 = arith.mulf %326, %325 : vector<4x16xf32>
    %328 = vector.extract_strided_slice %40 {offsets = [12, 0], sizes = [4, 16], strides = [1, 1]} : vector<32x16xf32> to vector<4x16xf32>
    %cst_158 = arith.constant 2.500000e-01 : f32
    %329 = vector.broadcast %cst_158 : f32 to vector<4x16xf32>
    %330 = arith.mulf %329, %328 : vector<4x16xf32>
    %331 = arith.addf %327, %330 : vector<4x16xf32>
    %c12_159 = arith.constant 12 : index
    %c152_160 = arith.constant 152 : index
    %332 = vector.load %arg10[%c12_159, %c152_160] : memref<16x384xf32, #tpu.memory_space<vmem>>, vector<4x16xf32>
    tpu.vector_store %arg10[%c12_159, %c152_160], %331 {strides = array<i32>} : memref<16x384xf32, #tpu.memory_space<vmem>>, vector<4x16xf32>,
    %333 = vector.extract_strided_slice %37 {offsets = [16, 0], sizes = [4, 16], strides = [1, 1]} : vector<32x16xf32> to vector<4x16xf32>
    %cst_161 = arith.constant 7.500000e-01 : f32
    %334 = vector.broadcast %cst_161 : f32 to vector<4x16xf32>
    %335 = arith.mulf %334, %333 : vector<4x16xf32>
    %336 = vector.extract_strided_slice %37 {offsets = [20, 0], sizes = [4, 16], strides = [1, 1]} : vector<32x16xf32> to vector<4x16xf32>
    %cst_162 = arith.constant 2.500000e-01 : f32
    %337 = vector.broadcast %cst_162 : f32 to vector<4x16xf32>
    %338 = arith.mulf %337, %336 : vector<4x16xf32>
    %339 = arith.addf %335, %338 : vector<4x16xf32>
    %c0_163 = arith.constant 0 : index
    %c168 = arith.constant 168 : index
    %340 = vector.load %arg10[%c0_163, %c168] : memref<16x384xf32, #tpu.memory_space<vmem>>, vector<4x16xf32>
    tpu.vector_store %arg10[%c0_163, %c168], %339 {strides = array<i32>} : memref<16x384xf32, #tpu.memory_space<vmem>>, vector<4x16xf32>,
    %341 = vector.extract_strided_slice %38 {offsets = [16, 0], sizes = [4, 16], strides = [1, 1]} : vector<32x16xf32> to vector<4x16xf32>
    %cst_164 = arith.constant 7.500000e-01 : f32
    %342 = vector.broadcast %cst_164 : f32 to vector<4x16xf32>
    %343 = arith.mulf %342, %341 : vector<4x16xf32>
    %344 = vector.extract_strided_slice %38 {offsets = [20, 0], sizes = [4, 16], strides = [1, 1]} : vector<32x16xf32> to vector<4x16xf32>
    %cst_165 = arith.constant 2.500000e-01 : f32
    %345 = vector.broadcast %cst_165 : f32 to vector<4x16xf32>
    %346 = arith.mulf %345, %344 : vector<4x16xf32>
    %347 = arith.addf %343, %346 : vector<4x16xf32>
    %c4_166 = arith.constant 4 : index
    %c168_167 = arith.constant 168 : index
    %348 = vector.load %arg10[%c4_166, %c168_167] : memref<16x384xf32, #tpu.memory_space<vmem>>, vector<4x16xf32>
    tpu.vector_store %arg10[%c4_166, %c168_167], %347 {strides = array<i32>} : memref<16x384xf32, #tpu.memory_space<vmem>>, vector<4x16xf32>,
    %349 = vector.extract_strided_slice %39 {offsets = [16, 0], sizes = [4, 16], strides = [1, 1]} : vector<32x16xf32> to vector<4x16xf32>
    %cst_168 = arith.constant 7.500000e-01 : f32
    %350 = vector.broadcast %cst_168 : f32 to vector<4x16xf32>
    %351 = arith.mulf %350, %349 : vector<4x16xf32>
    %352 = vector.extract_strided_slice %39 {offsets = [20, 0], sizes = [4, 16], strides = [1, 1]} : vector<32x16xf32> to vector<4x16xf32>
    %cst_169 = arith.constant 2.500000e-01 : f32
    %353 = vector.broadcast %cst_169 : f32 to vector<4x16xf32>
    %354 = arith.mulf %353, %352 : vector<4x16xf32>
    %355 = arith.addf %351, %354 : vector<4x16xf32>
    %c8_170 = arith.constant 8 : index
    %c168_171 = arith.constant 168 : index
    %356 = vector.load %arg10[%c8_170, %c168_171] : memref<16x384xf32, #tpu.memory_space<vmem>>, vector<4x16xf32>
    tpu.vector_store %arg10[%c8_170, %c168_171], %355 {strides = array<i32>} : memref<16x384xf32, #tpu.memory_space<vmem>>, vector<4x16xf32>,
    %357 = vector.extract_strided_slice %40 {offsets = [16, 0], sizes = [4, 16], strides = [1, 1]} : vector<32x16xf32> to vector<4x16xf32>
    %cst_172 = arith.constant 7.500000e-01 : f32
    %358 = vector.broadcast %cst_172 : f32 to vector<4x16xf32>
    %359 = arith.mulf %358, %357 : vector<4x16xf32>
    %360 = vector.extract_strided_slice %40 {offsets = [20, 0], sizes = [4, 16], strides = [1, 1]} : vector<32x16xf32> to vector<4x16xf32>
    %cst_173 = arith.constant 2.500000e-01 : f32
    %361 = vector.broadcast %cst_173 : f32 to vector<4x16xf32>
    %362 = arith.mulf %361, %360 : vector<4x16xf32>
    %363 = arith.addf %359, %362 : vector<4x16xf32>
    %c12_174 = arith.constant 12 : index
    %c168_175 = arith.constant 168 : index
    %364 = vector.load %arg10[%c12_174, %c168_175] : memref<16x384xf32, #tpu.memory_space<vmem>>, vector<4x16xf32>
    tpu.vector_store %arg10[%c12_174, %c168_175], %363 {strides = array<i32>} : memref<16x384xf32, #tpu.memory_space<vmem>>, vector<4x16xf32>,
    %365 = vector.extract_strided_slice %37 {offsets = [20, 0], sizes = [4, 16], strides = [1, 1]} : vector<32x16xf32> to vector<4x16xf32>
    %cst_176 = arith.constant 7.500000e-01 : f32
    %366 = vector.broadcast %cst_176 : f32 to vector<4x16xf32>
    %367 = arith.mulf %366, %365 : vector<4x16xf32>
    %368 = vector.extract_strided_slice %37 {offsets = [16, 0], sizes = [4, 16], strides = [1, 1]} : vector<32x16xf32> to vector<4x16xf32>
    %cst_177 = arith.constant 2.500000e-01 : f32
    %369 = vector.broadcast %cst_177 : f32 to vector<4x16xf32>
    %370 = arith.mulf %369, %368 : vector<4x16xf32>
    %371 = arith.addf %367, %370 : vector<4x16xf32>
    %c0_178 = arith.constant 0 : index
    %c184 = arith.constant 184 : index
    %372 = vector.load %arg10[%c0_178, %c184] : memref<16x384xf32, #tpu.memory_space<vmem>>, vector<4x16xf32>
    tpu.vector_store %arg10[%c0_178, %c184], %371 {strides = array<i32>} : memref<16x384xf32, #tpu.memory_space<vmem>>, vector<4x16xf32>,
    %373 = vector.extract_strided_slice %38 {offsets = [20, 0], sizes = [4, 16], strides = [1, 1]} : vector<32x16xf32> to vector<4x16xf32>
    %cst_179 = arith.constant 7.500000e-01 : f32
    %374 = vector.broadcast %cst_179 : f32 to vector<4x16xf32>
    %375 = arith.mulf %374, %373 : vector<4x16xf32>
    %376 = vector.extract_strided_slice %38 {offsets = [16, 0], sizes = [4, 16], strides = [1, 1]} : vector<32x16xf32> to vector<4x16xf32>
    %cst_180 = arith.constant 2.500000e-01 : f32
    %377 = vector.broadcast %cst_180 : f32 to vector<4x16xf32>
    %378 = arith.mulf %377, %376 : vector<4x16xf32>
    %379 = arith.addf %375, %378 : vector<4x16xf32>
    %c4_181 = arith.constant 4 : index
    %c184_182 = arith.constant 184 : index
    %380 = vector.load %arg10[%c4_181, %c184_182] : memref<16x384xf32, #tpu.memory_space<vmem>>, vector<4x16xf32>
    tpu.vector_store %arg10[%c4_181, %c184_182], %379 {strides = array<i32>} : memref<16x384xf32, #tpu.memory_space<vmem>>, vector<4x16xf32>,
    %381 = vector.extract_strided_slice %39 {offsets = [20, 0], sizes = [4, 16], strides = [1, 1]} : vector<32x16xf32> to vector<4x16xf32>
    %cst_183 = arith.constant 7.500000e-01 : f32
    %382 = vector.broadcast %cst_183 : f32 to vector<4x16xf32>
    %383 = arith.mulf %382, %381 : vector<4x16xf32>
    %384 = vector.extract_strided_slice %39 {offsets = [16, 0], sizes = [4, 16], strides = [1, 1]} : vector<32x16xf32> to vector<4x16xf32>
    %cst_184 = arith.constant 2.500000e-01 : f32
    %385 = vector.broadcast %cst_184 : f32 to vector<4x16xf32>
    %386 = arith.mulf %385, %384 : vector<4x16xf32>
    %387 = arith.addf %383, %386 : vector<4x16xf32>
    %c8_185 = arith.constant 8 : index
    %c184_186 = arith.constant 184 : index
    %388 = vector.load %arg10[%c8_185, %c184_186] : memref<16x384xf32, #tpu.memory_space<vmem>>, vector<4x16xf32>
    tpu.vector_store %arg10[%c8_185, %c184_186], %387 {strides = array<i32>} : memref<16x384xf32, #tpu.memory_space<vmem>>, vector<4x16xf32>,
    %389 = vector.extract_strided_slice %40 {offsets = [20, 0], sizes = [4, 16], strides = [1, 1]} : vector<32x16xf32> to vector<4x16xf32>
    %cst_187 = arith.constant 7.500000e-01 : f32
    %390 = vector.broadcast %cst_187 : f32 to vector<4x16xf32>
    %391 = arith.mulf %390, %389 : vector<4x16xf32>
    %392 = vector.extract_strided_slice %40 {offsets = [16, 0], sizes = [4, 16], strides = [1, 1]} : vector<32x16xf32> to vector<4x16xf32>
    %cst_188 = arith.constant 2.500000e-01 : f32
    %393 = vector.broadcast %cst_188 : f32 to vector<4x16xf32>
    %394 = arith.mulf %393, %392 : vector<4x16xf32>
    %395 = arith.addf %391, %394 : vector<4x16xf32>
    %c12_189 = arith.constant 12 : index
    %c184_190 = arith.constant 184 : index
    %396 = vector.load %arg10[%c12_189, %c184_190] : memref<16x384xf32, #tpu.memory_space<vmem>>, vector<4x16xf32>
    tpu.vector_store %arg10[%c12_189, %c184_190], %395 {strides = array<i32>} : memref<16x384xf32, #tpu.memory_space<vmem>>, vector<4x16xf32>,
    %397 = vector.extract_strided_slice %37 {offsets = [20, 0], sizes = [4, 16], strides = [1, 1]} : vector<32x16xf32> to vector<4x16xf32>
    %cst_191 = arith.constant 7.500000e-01 : f32
    %398 = vector.broadcast %cst_191 : f32 to vector<4x16xf32>
    %399 = arith.mulf %398, %397 : vector<4x16xf32>
    %400 = vector.extract_strided_slice %37 {offsets = [24, 0], sizes = [4, 16], strides = [1, 1]} : vector<32x16xf32> to vector<4x16xf32>
    %cst_192 = arith.constant 2.500000e-01 : f32
    %401 = vector.broadcast %cst_192 : f32 to vector<4x16xf32>
    %402 = arith.mulf %401, %400 : vector<4x16xf32>
    %403 = arith.addf %399, %402 : vector<4x16xf32>
    %c0_193 = arith.constant 0 : index
    %c200 = arith.constant 200 : index
    %404 = vector.load %arg10[%c0_193, %c200] : memref<16x384xf32, #tpu.memory_space<vmem>>, vector<4x16xf32>
    tpu.vector_store %arg10[%c0_193, %c200], %403 {strides = array<i32>} : memref<16x384xf32, #tpu.memory_space<vmem>>, vector<4x16xf32>,
    %405 = vector.extract_strided_slice %38 {offsets = [20, 0], sizes = [4, 16], strides = [1, 1]} : vector<32x16xf32> to vector<4x16xf32>
    %cst_194 = arith.constant 7.500000e-01 : f32
    %406 = vector.broadcast %cst_194 : f32 to vector<4x16xf32>
    %407 = arith.mulf %406, %405 : vector<4x16xf32>
    %408 = vector.extract_strided_slice %38 {offsets = [24, 0], sizes = [4, 16], strides = [1, 1]} : vector<32x16xf32> to vector<4x16xf32>
    %cst_195 = arith.constant 2.500000e-01 : f32
    %409 = vector.broadcast %cst_195 : f32 to vector<4x16xf32>
    %410 = arith.mulf %409, %408 : vector<4x16xf32>
    %411 = arith.addf %407, %410 : vector<4x16xf32>
    %c4_196 = arith.constant 4 : index
    %c200_197 = arith.constant 200 : index
    %412 = vector.load %arg10[%c4_196, %c200_197] : memref<16x384xf32, #tpu.memory_space<vmem>>, vector<4x16xf32>
    tpu.vector_store %arg10[%c4_196, %c200_197], %411 {strides = array<i32>} : memref<16x384xf32, #tpu.memory_space<vmem>>, vector<4x16xf32>,
    %413 = vector.extract_strided_slice %39 {offsets = [20, 0], sizes = [4, 16], strides = [1, 1]} : vector<32x16xf32> to vector<4x16xf32>
    %cst_198 = arith.constant 7.500000e-01 : f32
    %414 = vector.broadcast %cst_198 : f32 to vector<4x16xf32>
    %415 = arith.mulf %414, %413 : vector<4x16xf32>
    %416 = vector.extract_strided_slice %39 {offsets = [24, 0], sizes = [4, 16], strides = [1, 1]} : vector<32x16xf32> to vector<4x16xf32>
    %cst_199 = arith.constant 2.500000e-01 : f32
    %417 = vector.broadcast %cst_199 : f32 to vector<4x16xf32>
    %418 = arith.mulf %417, %416 : vector<4x16xf32>
    %419 = arith.addf %415, %418 : vector<4x16xf32>
    %c8_200 = arith.constant 8 : index
    %c200_201 = arith.constant 200 : index
    %420 = vector.load %arg10[%c8_200, %c200_201] : memref<16x384xf32, #tpu.memory_space<vmem>>, vector<4x16xf32>
    tpu.vector_store %arg10[%c8_200, %c200_201], %419 {strides = array<i32>} : memref<16x384xf32, #tpu.memory_space<vmem>>, vector<4x16xf32>,
    %421 = vector.extract_strided_slice %40 {offsets = [20, 0], sizes = [4, 16], strides = [1, 1]} : vector<32x16xf32> to vector<4x16xf32>
    %cst_202 = arith.constant 7.500000e-01 : f32
    %422 = vector.broadcast %cst_202 : f32 to vector<4x16xf32>
    %423 = arith.mulf %422, %421 : vector<4x16xf32>
    %424 = vector.extract_strided_slice %40 {offsets = [24, 0], sizes = [4, 16], strides = [1, 1]} : vector<32x16xf32> to vector<4x16xf32>
    %cst_203 = arith.constant 2.500000e-01 : f32
    %425 = vector.broadcast %cst_203 : f32 to vector<4x16xf32>
    %426 = arith.mulf %425, %424 : vector<4x16xf32>
    %427 = arith.addf %423, %426 : vector<4x16xf32>
    %c12_204 = arith.constant 12 : index
    %c200_205 = arith.constant 200 : index
    %428 = vector.load %arg10[%c12_204, %c200_205] : memref<16x384xf32, #tpu.memory_space<vmem>>, vector<4x16xf32>
    tpu.vector_store %arg10[%c12_204, %c200_205], %427 {strides = array<i32>} : memref<16x384xf32, #tpu.memory_space<vmem>>, vector<4x16xf32>,
    %429 = vector.extract_strided_slice %37 {offsets = [24, 0], sizes = [4, 16], strides = [1, 1]} : vector<32x16xf32> to vector<4x16xf32>
    %cst_206 = arith.constant 7.500000e-01 : f32
    %430 = vector.broadcast %cst_206 : f32 to vector<4x16xf32>
    %431 = arith.mulf %430, %429 : vector<4x16xf32>
    %432 = vector.extract_strided_slice %37 {offsets = [20, 0], sizes = [4, 16], strides = [1, 1]} : vector<32x16xf32> to vector<4x16xf32>
    %cst_207 = arith.constant 2.500000e-01 : f32
    %433 = vector.broadcast %cst_207 : f32 to vector<4x16xf32>
    %434 = arith.mulf %433, %432 : vector<4x16xf32>
    %435 = arith.addf %431, %434 : vector<4x16xf32>
    %c0_208 = arith.constant 0 : index
    %c216 = arith.constant 216 : index
    %436 = vector.load %arg10[%c0_208, %c216] : memref<16x384xf32, #tpu.memory_space<vmem>>, vector<4x16xf32>
    tpu.vector_store %arg10[%c0_208, %c216], %435 {strides = array<i32>} : memref<16x384xf32, #tpu.memory_space<vmem>>, vector<4x16xf32>,
    %437 = vector.extract_strided_slice %38 {offsets = [24, 0], sizes = [4, 16], strides = [1, 1]} : vector<32x16xf32> to vector<4x16xf32>
    %cst_209 = arith.constant 7.500000e-01 : f32
    %438 = vector.broadcast %cst_209 : f32 to vector<4x16xf32>
    %439 = arith.mulf %438, %437 : vector<4x16xf32>
    %440 = vector.extract_strided_slice %38 {offsets = [20, 0], sizes = [4, 16], strides = [1, 1]} : vector<32x16xf32> to vector<4x16xf32>
    %cst_210 = arith.constant 2.500000e-01 : f32
    %441 = vector.broadcast %cst_210 : f32 to vector<4x16xf32>
    %442 = arith.mulf %441, %440 : vector<4x16xf32>
    %443 = arith.addf %439, %442 : vector<4x16xf32>
    %c4_211 = arith.constant 4 : index
    %c216_212 = arith.constant 216 : index
    %444 = vector.load %arg10[%c4_211, %c216_212] : memref<16x384xf32, #tpu.memory_space<vmem>>, vector<4x16xf32>
    tpu.vector_store %arg10[%c4_211, %c216_212], %443 {strides = array<i32>} : memref<16x384xf32, #tpu.memory_space<vmem>>, vector<4x16xf32>,
    %445 = vector.extract_strided_slice %39 {offsets = [24, 0], sizes = [4, 16], strides = [1, 1]} : vector<32x16xf32> to vector<4x16xf32>
    %cst_213 = arith.constant 7.500000e-01 : f32
    %446 = vector.broadcast %cst_213 : f32 to vector<4x16xf32>
    %447 = arith.mulf %446, %445 : vector<4x16xf32>
    %448 = vector.extract_strided_slice %39 {offsets = [20, 0], sizes = [4, 16], strides = [1, 1]} : vector<32x16xf32> to vector<4x16xf32>
    %cst_214 = arith.constant 2.500000e-01 : f32
    %449 = vector.broadcast %cst_214 : f32 to vector<4x16xf32>
    %450 = arith.mulf %449, %448 : vector<4x16xf32>
    %451 = arith.addf %447, %450 : vector<4x16xf32>
    %c8_215 = arith.constant 8 : index
    %c216_216 = arith.constant 216 : index
    %452 = vector.load %arg10[%c8_215, %c216_216] : memref<16x384xf32, #tpu.memory_space<vmem>>, vector<4x16xf32>
    tpu.vector_store %arg10[%c8_215, %c216_216], %451 {strides = array<i32>} : memref<16x384xf32, #tpu.memory_space<vmem>>, vector<4x16xf32>,
    %453 = vector.extract_strided_slice %40 {offsets = [24, 0], sizes = [4, 16], strides = [1, 1]} : vector<32x16xf32> to vector<4x16xf32>
    %cst_217 = arith.constant 7.500000e-01 : f32
    %454 = vector.broadcast %cst_217 : f32 to vector<4x16xf32>
    %455 = arith.mulf %454, %453 : vector<4x16xf32>
    %456 = vector.extract_strided_slice %40 {offsets = [20, 0], sizes = [4, 16], strides = [1, 1]} : vector<32x16xf32> to vector<4x16xf32>
    %cst_218 = arith.constant 2.500000e-01 : f32
    %457 = vector.broadcast %cst_218 : f32 to vector<4x16xf32>
    %458 = arith.mulf %457, %456 : vector<4x16xf32>
    %459 = arith.addf %455, %458 : vector<4x16xf32>
    %c12_219 = arith.constant 12 : index
    %c216_220 = arith.constant 216 : index
    %460 = vector.load %arg10[%c12_219, %c216_220] : memref<16x384xf32, #tpu.memory_space<vmem>>, vector<4x16xf32>
    tpu.vector_store %arg10[%c12_219, %c216_220], %459 {strides = array<i32>} : memref<16x384xf32, #tpu.memory_space<vmem>>, vector<4x16xf32>,
    %461 = vector.extract_strided_slice %37 {offsets = [24, 0], sizes = [4, 16], strides = [1, 1]} : vector<32x16xf32> to vector<4x16xf32>
    %cst_221 = arith.constant 7.500000e-01 : f32
    %462 = vector.broadcast %cst_221 : f32 to vector<4x16xf32>
    %463 = arith.mulf %462, %461 : vector<4x16xf32>
    %464 = vector.extract_strided_slice %37 {offsets = [28, 0], sizes = [4, 16], strides = [1, 1]} : vector<32x16xf32> to vector<4x16xf32>
    %cst_222 = arith.constant 2.500000e-01 : f32
    %465 = vector.broadcast %cst_222 : f32 to vector<4x16xf32>
    %466 = arith.mulf %465, %464 : vector<4x16xf32>
    %467 = arith.addf %463, %466 : vector<4x16xf32>
    %c0_223 = arith.constant 0 : index
    %c232 = arith.constant 232 : index
    %468 = vector.load %arg10[%c0_223, %c232] : memref<16x384xf32, #tpu.memory_space<vmem>>, vector<4x16xf32>
    tpu.vector_store %arg10[%c0_223, %c232], %467 {strides = array<i32>} : memref<16x384xf32, #tpu.memory_space<vmem>>, vector<4x16xf32>,
    %469 = vector.extract_strided_slice %38 {offsets = [24, 0], sizes = [4, 16], strides = [1, 1]} : vector<32x16xf32> to vector<4x16xf32>
    %cst_224 = arith.constant 7.500000e-01 : f32
    %470 = vector.broadcast %cst_224 : f32 to vector<4x16xf32>
    %471 = arith.mulf %470, %469 : vector<4x16xf32>
    %472 = vector.extract_strided_slice %38 {offsets = [28, 0], sizes = [4, 16], strides = [1, 1]} : vector<32x16xf32> to vector<4x16xf32>
    %cst_225 = arith.constant 2.500000e-01 : f32
    %473 = vector.broadcast %cst_225 : f32 to vector<4x16xf32>
    %474 = arith.mulf %473, %472 : vector<4x16xf32>
    %475 = arith.addf %471, %474 : vector<4x16xf32>
    %c4_226 = arith.constant 4 : index
    %c232_227 = arith.constant 232 : index
    %476 = vector.load %arg10[%c4_226, %c232_227] : memref<16x384xf32, #tpu.memory_space<vmem>>, vector<4x16xf32>
    tpu.vector_store %arg10[%c4_226, %c232_227], %475 {strides = array<i32>} : memref<16x384xf32, #tpu.memory_space<vmem>>, vector<4x16xf32>,
    %477 = vector.extract_strided_slice %39 {offsets = [24, 0], sizes = [4, 16], strides = [1, 1]} : vector<32x16xf32> to vector<4x16xf32>
    %cst_228 = arith.constant 7.500000e-01 : f32
    %478 = vector.broadcast %cst_228 : f32 to vector<4x16xf32>
    %479 = arith.mulf %478, %477 : vector<4x16xf32>
    %480 = vector.extract_strided_slice %39 {offsets = [28, 0], sizes = [4, 16], strides = [1, 1]} : vector<32x16xf32> to vector<4x16xf32>
    %cst_229 = arith.constant 2.500000e-01 : f32
    %481 = vector.broadcast %cst_229 : f32 to vector<4x16xf32>
    %482 = arith.mulf %481, %480 : vector<4x16xf32>
    %483 = arith.addf %479, %482 : vector<4x16xf32>
    %c8_230 = arith.constant 8 : index
    %c232_231 = arith.constant 232 : index
    %484 = vector.load %arg10[%c8_230, %c232_231] : memref<16x384xf32, #tpu.memory_space<vmem>>, vector<4x16xf32>
    tpu.vector_store %arg10[%c8_230, %c232_231], %483 {strides = array<i32>} : memref<16x384xf32, #tpu.memory_space<vmem>>, vector<4x16xf32>,
    %485 = vector.extract_strided_slice %40 {offsets = [24, 0], sizes = [4, 16], strides = [1, 1]} : vector<32x16xf32> to vector<4x16xf32>
    %cst_232 = arith.constant 7.500000e-01 : f32
    %486 = vector.broadcast %cst_232 : f32 to vector<4x16xf32>
    %487 = arith.mulf %486, %485 : vector<4x16xf32>
    %488 = vector.extract_strided_slice %40 {offsets = [28, 0], sizes = [4, 16], strides = [1, 1]} : vector<32x16xf32> to vector<4x16xf32>
    %cst_233 = arith.constant 2.500000e-01 : f32
    %489 = vector.broadcast %cst_233 : f32 to vector<4x16xf32>
    %490 = arith.mulf %489, %488 : vector<4x16xf32>
    %491 = arith.addf %487, %490 : vector<4x16xf32>
    %c12_234 = arith.constant 12 : index
    %c232_235 = arith.constant 232 : index
    %492 = vector.load %arg10[%c12_234, %c232_235] : memref<16x384xf32, #tpu.memory_space<vmem>>, vector<4x16xf32>
    tpu.vector_store %arg10[%c12_234, %c232_235], %491 {strides = array<i32>} : memref<16x384xf32, #tpu.memory_space<vmem>>, vector<4x16xf32>,
    %493 = vector.extract_strided_slice %37 {offsets = [28, 0], sizes = [4, 16], strides = [1, 1]} : vector<32x16xf32> to vector<4x16xf32>
    %cst_236 = arith.constant 7.500000e-01 : f32
    %494 = vector.broadcast %cst_236 : f32 to vector<4x16xf32>
    %495 = arith.mulf %494, %493 : vector<4x16xf32>
    %496 = vector.extract_strided_slice %37 {offsets = [24, 0], sizes = [4, 16], strides = [1, 1]} : vector<32x16xf32> to vector<4x16xf32>
    %cst_237 = arith.constant 2.500000e-01 : f32
    %497 = vector.broadcast %cst_237 : f32 to vector<4x16xf32>
    %498 = arith.mulf %497, %496 : vector<4x16xf32>
    %499 = arith.addf %495, %498 : vector<4x16xf32>
    %c0_238 = arith.constant 0 : index
    %c248 = arith.constant 248 : index
    %500 = vector.load %arg10[%c0_238, %c248] : memref<16x384xf32, #tpu.memory_space<vmem>>, vector<4x16xf32>
    tpu.vector_store %arg10[%c0_238, %c248], %499 {strides = array<i32>} : memref<16x384xf32, #tpu.memory_space<vmem>>, vector<4x16xf32>,
    %501 = vector.extract_strided_slice %38 {offsets = [28, 0], sizes = [4, 16], strides = [1, 1]} : vector<32x16xf32> to vector<4x16xf32>
    %cst_239 = arith.constant 7.500000e-01 : f32
    %502 = vector.broadcast %cst_239 : f32 to vector<4x16xf32>
    %503 = arith.mulf %502, %501 : vector<4x16xf32>
    %504 = vector.extract_strided_slice %38 {offsets = [24, 0], sizes = [4, 16], strides = [1, 1]} : vector<32x16xf32> to vector<4x16xf32>
    %cst_240 = arith.constant 2.500000e-01 : f32
    %505 = vector.broadcast %cst_240 : f32 to vector<4x16xf32>
    %506 = arith.mulf %505, %504 : vector<4x16xf32>
    %507 = arith.addf %503, %506 : vector<4x16xf32>
    %c4_241 = arith.constant 4 : index
    %c248_242 = arith.constant 248 : index
    %508 = vector.load %arg10[%c4_241, %c248_242] : memref<16x384xf32, #tpu.memory_space<vmem>>, vector<4x16xf32>
    tpu.vector_store %arg10[%c4_241, %c248_242], %507 {strides = array<i32>} : memref<16x384xf32, #tpu.memory_space<vmem>>, vector<4x16xf32>,
    %509 = vector.extract_strided_slice %39 {offsets = [28, 0], sizes = [4, 16], strides = [1, 1]} : vector<32x16xf32> to vector<4x16xf32>
    %cst_243 = arith.constant 7.500000e-01 : f32
    %510 = vector.broadcast %cst_243 : f32 to vector<4x16xf32>
    %511 = arith.mulf %510, %509 : vector<4x16xf32>
    %512 = vector.extract_strided_slice %39 {offsets = [24, 0], sizes = [4, 16], strides = [1, 1]} : vector<32x16xf32> to vector<4x16xf32>
    %cst_244 = arith.constant 2.500000e-01 : f32
    %513 = vector.broadcast %cst_244 : f32 to vector<4x16xf32>
    %514 = arith.mulf %513, %512 : vector<4x16xf32>
    %515 = arith.addf %511, %514 : vector<4x16xf32>
    %c8_245 = arith.constant 8 : index
    %c248_246 = arith.constant 248 : index
    %516 = vector.load %arg10[%c8_245, %c248_246] : memref<16x384xf32, #tpu.memory_space<vmem>>, vector<4x16xf32>
    tpu.vector_store %arg10[%c8_245, %c248_246], %515 {strides = array<i32>} : memref<16x384xf32, #tpu.memory_space<vmem>>, vector<4x16xf32>,
    %517 = vector.extract_strided_slice %40 {offsets = [28, 0], sizes = [4, 16], strides = [1, 1]} : vector<32x16xf32> to vector<4x16xf32>
    %cst_247 = arith.constant 7.500000e-01 : f32
    %518 = vector.broadcast %cst_247 : f32 to vector<4x16xf32>
    %519 = arith.mulf %518, %517 : vector<4x16xf32>
    %520 = vector.extract_strided_slice %40 {offsets = [24, 0], sizes = [4, 16], strides = [1, 1]} : vector<32x16xf32> to vector<4x16xf32>
    %cst_248 = arith.constant 2.500000e-01 : f32
    %521 = vector.broadcast %cst_248 : f32 to vector<4x16xf32>
    %522 = arith.mulf %521, %520 : vector<4x16xf32>
    %523 = arith.addf %519, %522 : vector<4x16xf32>
    %c12_249 = arith.constant 12 : index
    %c248_250 = arith.constant 248 : index
    %524 = vector.load %arg10[%c12_249, %c248_250] : memref<16x384xf32, #tpu.memory_space<vmem>>, vector<4x16xf32>
    tpu.vector_store %arg10[%c12_249, %c248_250], %523 {strides = array<i32>} : memref<16x384xf32, #tpu.memory_space<vmem>>, vector<4x16xf32>,
    %525 = vector.extract_strided_slice %37 {offsets = [28, 0], sizes = [4, 16], strides = [1, 1]} : vector<32x16xf32> to vector<4x16xf32>
    %cst_251 = arith.constant 7.500000e-01 : f32
    %526 = vector.broadcast %cst_251 : f32 to vector<4x16xf32>
    %527 = arith.mulf %526, %525 : vector<4x16xf32>
    %528 = vector.extract_strided_slice %37 {offsets = [28, 0], sizes = [4, 16], strides = [1, 1]} : vector<32x16xf32> to vector<4x16xf32>
    %cst_252 = arith.constant 2.500000e-01 : f32
    %529 = vector.broadcast %cst_252 : f32 to vector<4x16xf32>
    %530 = arith.mulf %529, %528 : vector<4x16xf32>
    %531 = arith.addf %527, %530 : vector<4x16xf32>
    %c0_253 = arith.constant 0 : index
    %c264 = arith.constant 264 : index
    %532 = vector.load %arg10[%c0_253, %c264] : memref<16x384xf32, #tpu.memory_space<vmem>>, vector<4x16xf32>
    tpu.vector_store %arg10[%c0_253, %c264], %531 {strides = array<i32>} : memref<16x384xf32, #tpu.memory_space<vmem>>, vector<4x16xf32>,
    %533 = vector.extract_strided_slice %38 {offsets = [28, 0], sizes = [4, 16], strides = [1, 1]} : vector<32x16xf32> to vector<4x16xf32>
    %cst_254 = arith.constant 7.500000e-01 : f32
    %534 = vector.broadcast %cst_254 : f32 to vector<4x16xf32>
    %535 = arith.mulf %534, %533 : vector<4x16xf32>
    %536 = vector.extract_strided_slice %38 {offsets = [28, 0], sizes = [4, 16], strides = [1, 1]} : vector<32x16xf32> to vector<4x16xf32>
    %cst_255 = arith.constant 2.500000e-01 : f32
    %537 = vector.broadcast %cst_255 : f32 to vector<4x16xf32>
    %538 = arith.mulf %537, %536 : vector<4x16xf32>
    %539 = arith.addf %535, %538 : vector<4x16xf32>
    %c4_256 = arith.constant 4 : index
    %c264_257 = arith.constant 264 : index
    %540 = vector.load %arg10[%c4_256, %c264_257] : memref<16x384xf32, #tpu.memory_space<vmem>>, vector<4x16xf32>
    tpu.vector_store %arg10[%c4_256, %c264_257], %539 {strides = array<i32>} : memref<16x384xf32, #tpu.memory_space<vmem>>, vector<4x16xf32>,
    %541 = vector.extract_strided_slice %39 {offsets = [28, 0], sizes = [4, 16], strides = [1, 1]} : vector<32x16xf32> to vector<4x16xf32>
    %cst_258 = arith.constant 7.500000e-01 : f32
    %542 = vector.broadcast %cst_258 : f32 to vector<4x16xf32>
    %543 = arith.mulf %542, %541 : vector<4x16xf32>
    %544 = vector.extract_strided_slice %39 {offsets = [28, 0], sizes = [4, 16], strides = [1, 1]} : vector<32x16xf32> to vector<4x16xf32>
    %cst_259 = arith.constant 2.500000e-01 : f32
    %545 = vector.broadcast %cst_259 : f32 to vector<4x16xf32>
    %546 = arith.mulf %545, %544 : vector<4x16xf32>
    %547 = arith.addf %543, %546 : vector<4x16xf32>
    %c8_260 = arith.constant 8 : index
    %c264_261 = arith.constant 264 : index
    %548 = vector.load %arg10[%c8_260, %c264_261] : memref<16x384xf32, #tpu.memory_space<vmem>>, vector<4x16xf32>
    tpu.vector_store %arg10[%c8_260, %c264_261], %547 {strides = array<i32>} : memref<16x384xf32, #tpu.memory_space<vmem>>, vector<4x16xf32>,
    %549 = vector.extract_strided_slice %40 {offsets = [28, 0], sizes = [4, 16], strides = [1, 1]} : vector<32x16xf32> to vector<4x16xf32>
    %cst_262 = arith.constant 7.500000e-01 : f32
    %550 = vector.broadcast %cst_262 : f32 to vector<4x16xf32>
    %551 = arith.mulf %550, %549 : vector<4x16xf32>
    %552 = vector.extract_strided_slice %40 {offsets = [28, 0], sizes = [4, 16], strides = [1, 1]} : vector<32x16xf32> to vector<4x16xf32>
    %cst_263 = arith.constant 2.500000e-01 : f32
    %553 = vector.broadcast %cst_263 : f32 to vector<4x16xf32>
    %554 = arith.mulf %553, %552 : vector<4x16xf32>
    %555 = arith.addf %551, %554 : vector<4x16xf32>
    %c12_264 = arith.constant 12 : index
    %c264_265 = arith.constant 264 : index
    %556 = vector.load %arg10[%c12_264, %c264_265] : memref<16x384xf32, #tpu.memory_space<vmem>>, vector<4x16xf32>
    tpu.vector_store %arg10[%c12_264, %c264_265], %555 {strides = array<i32>} : memref<16x384xf32, #tpu.memory_space<vmem>>, vector<4x16xf32>,
    %c0_266 = arith.constant 0 : index
    %c0_267 = arith.constant 0 : index
    %557 = vector.load %arg6[%c0_266, %c0_267] : memref<4x108xf32, #tpu.memory_space<vmem>>, vector<4x108xf32>
    %c0_268 = arith.constant 0 : index
    %c0_269 = arith.constant 0 : index
    %558 = vector.load %arg8[%c0_268, %c0_269] : memref<4x1xf32, #tpu.memory_space<vmem>>, vector<4x1xf32>
    %c0_270 = arith.constant 0 : index
    %c0_271 = arith.constant 0 : index
    %559 = vector.load %arg7[%c0_270, %c0_271] : memref<2x256xf32, #tpu.memory_space<vmem>>, vector<1x256xf32>
    %c1 = arith.constant 1 : index
    %c0_272 = arith.constant 0 : index
    %560 = vector.load %arg7[%c1, %c0_272] : memref<2x256xf32, #tpu.memory_space<vmem>>, vector<1x256xf32>
    %c0_273 = arith.constant 0 : index
    %c7 = arith.constant 7 : index
    %561 = vector.load %arg10[%c0_273, %c7] : memref<16x384xf32, #tpu.memory_space<vmem>>, vector<12x256xf32>
    %562 = vector.extract_strided_slice %557 {offsets = [0, 0], sizes = [4, 12], strides = [1, 1]} : vector<4x108xf32> to vector<4x12xf32>
    %cst_274 = arith.constant dense<0.000000e+00> : vector<4x256xf32>
    %563 = tpu.matmul %562, %561, %cst_274 {dimension_numbers = #tpu.dot_dimension_numbers<[1], [0], [0], [1], [0, 0, 1, 1], [], []>} : vector<4x12xf32>, vector<12x256xf32>, vector<4x256xf32> -> vector<4x256xf32>
    %c0_275 = arith.constant 0 : index
    %c8_276 = arith.constant 8 : index
    %564 = vector.load %arg10[%c0_275, %c8_276] : memref<16x384xf32, #tpu.memory_space<vmem>>, vector<12x256xf32>
    %565 = vector.extract_strided_slice %557 {offsets = [0, 12], sizes = [4, 12], strides = [1, 1]} : vector<4x108xf32> to vector<4x12xf32>
    %cst_277 = arith.constant dense<0.000000e+00> : vector<4x256xf32>
    %566 = tpu.matmul %565, %564, %cst_277 {dimension_numbers = #tpu.dot_dimension_numbers<[1], [0], [0], [1], [0, 0, 1, 1], [], []>} : vector<4x12xf32>, vector<12x256xf32>, vector<4x256xf32> -> vector<4x256xf32>
    %c0_278 = arith.constant 0 : index
    %c9 = arith.constant 9 : index
    %567 = vector.load %arg10[%c0_278, %c9] : memref<16x384xf32, #tpu.memory_space<vmem>>, vector<12x256xf32>
    %568 = vector.extract_strided_slice %557 {offsets = [0, 24], sizes = [4, 12], strides = [1, 1]} : vector<4x108xf32> to vector<4x12xf32>
    %cst_279 = arith.constant dense<0.000000e+00> : vector<4x256xf32>
    %569 = tpu.matmul %568, %567, %cst_279 {dimension_numbers = #tpu.dot_dimension_numbers<[1], [0], [0], [1], [0, 0, 1, 1], [], []>} : vector<4x12xf32>, vector<12x256xf32>, vector<4x256xf32> -> vector<4x256xf32>
    %c0_280 = arith.constant 0 : index
    %c23 = arith.constant 23 : index
    %570 = vector.load %arg10[%c0_280, %c23] : memref<16x384xf32, #tpu.memory_space<vmem>>, vector<12x256xf32>
    %571 = vector.extract_strided_slice %557 {offsets = [0, 36], sizes = [4, 12], strides = [1, 1]} : vector<4x108xf32> to vector<4x12xf32>
    %cst_281 = arith.constant dense<0.000000e+00> : vector<4x256xf32>
    %572 = tpu.matmul %571, %570, %cst_281 {dimension_numbers = #tpu.dot_dimension_numbers<[1], [0], [0], [1], [0, 0, 1, 1], [], []>} : vector<4x12xf32>, vector<12x256xf32>, vector<4x256xf32> -> vector<4x256xf32>
    %573 = arith.addf %563, %572 : vector<4x256xf32>
    %c0_282 = arith.constant 0 : index
    %c24_283 = arith.constant 24 : index
    %574 = vector.load %arg10[%c0_282, %c24_283] : memref<16x384xf32, #tpu.memory_space<vmem>>, vector<12x256xf32>
    %575 = vector.extract_strided_slice %557 {offsets = [0, 48], sizes = [4, 12], strides = [1, 1]} : vector<4x108xf32> to vector<4x12xf32>
    %cst_284 = arith.constant dense<0.000000e+00> : vector<4x256xf32>
    %576 = tpu.matmul %575, %574, %cst_284 {dimension_numbers = #tpu.dot_dimension_numbers<[1], [0], [0], [1], [0, 0, 1, 1], [], []>} : vector<4x12xf32>, vector<12x256xf32>, vector<4x256xf32> -> vector<4x256xf32>
    %577 = arith.addf %566, %576 : vector<4x256xf32>
    %c0_285 = arith.constant 0 : index
    %c25 = arith.constant 25 : index
    %578 = vector.load %arg10[%c0_285, %c25] : memref<16x384xf32, #tpu.memory_space<vmem>>, vector<12x256xf32>
    %579 = vector.extract_strided_slice %557 {offsets = [0, 60], sizes = [4, 12], strides = [1, 1]} : vector<4x108xf32> to vector<4x12xf32>
    %cst_286 = arith.constant dense<0.000000e+00> : vector<4x256xf32>
    %580 = tpu.matmul %579, %578, %cst_286 {dimension_numbers = #tpu.dot_dimension_numbers<[1], [0], [0], [1], [0, 0, 1, 1], [], []>} : vector<4x12xf32>, vector<12x256xf32>, vector<4x256xf32> -> vector<4x256xf32>
    %581 = arith.addf %569, %580 : vector<4x256xf32>
    %c0_287 = arith.constant 0 : index
    %c39 = arith.constant 39 : index
    %582 = vector.load %arg10[%c0_287, %c39] : memref<16x384xf32, #tpu.memory_space<vmem>>, vector<12x256xf32>
    %583 = vector.extract_strided_slice %557 {offsets = [0, 72], sizes = [4, 12], strides = [1, 1]} : vector<4x108xf32> to vector<4x12xf32>
    %cst_288 = arith.constant dense<0.000000e+00> : vector<4x256xf32>
    %584 = tpu.matmul %583, %582, %cst_288 {dimension_numbers = #tpu.dot_dimension_numbers<[1], [0], [0], [1], [0, 0, 1, 1], [], []>} : vector<4x12xf32>, vector<12x256xf32>, vector<4x256xf32> -> vector<4x256xf32>
    %585 = arith.addf %573, %584 : vector<4x256xf32>
    %c0_289 = arith.constant 0 : index
    %c40_290 = arith.constant 40 : index
    %586 = vector.load %arg10[%c0_289, %c40_290] : memref<16x384xf32, #tpu.memory_space<vmem>>, vector<12x256xf32>
    %587 = vector.extract_strided_slice %557 {offsets = [0, 84], sizes = [4, 12], strides = [1, 1]} : vector<4x108xf32> to vector<4x12xf32>
    %cst_291 = arith.constant dense<0.000000e+00> : vector<4x256xf32>
    %588 = tpu.matmul %587, %586, %cst_291 {dimension_numbers = #tpu.dot_dimension_numbers<[1], [0], [0], [1], [0, 0, 1, 1], [], []>} : vector<4x12xf32>, vector<12x256xf32>, vector<4x256xf32> -> vector<4x256xf32>
    %589 = arith.addf %577, %588 : vector<4x256xf32>
    %c0_292 = arith.constant 0 : index
    %c41 = arith.constant 41 : index
    %590 = vector.load %arg10[%c0_292, %c41] : memref<16x384xf32, #tpu.memory_space<vmem>>, vector<12x256xf32>
    %591 = vector.extract_strided_slice %557 {offsets = [0, 96], sizes = [4, 12], strides = [1, 1]} : vector<4x108xf32> to vector<4x12xf32>
    %cst_293 = arith.constant dense<0.000000e+00> : vector<4x256xf32>
    %592 = tpu.matmul %591, %590, %cst_293 {dimension_numbers = #tpu.dot_dimension_numbers<[1], [0], [0], [1], [0, 0, 1, 1], [], []>} : vector<4x12xf32>, vector<12x256xf32>, vector<4x256xf32> -> vector<4x256xf32>
    %593 = arith.addf %581, %592 : vector<4x256xf32>
    %594 = vector.broadcast %559 : vector<1x256xf32> to vector<4x256xf32>
    %595 = arith.mulf %594, %585 : vector<4x256xf32>
    %596 = arith.addf %589, %595 : vector<4x256xf32>
    %597 = vector.broadcast %560 : vector<1x256xf32> to vector<4x256xf32>
    %598 = arith.mulf %597, %593 : vector<4x256xf32>
    %599 = arith.addf %596, %598 : vector<4x256xf32>
    %600 = vector.broadcast %558 : vector<4x1xf32> to vector<4x256xf32>
    %601 = arith.addf %599, %600 : vector<4x256xf32>
    %c0_294 = arith.constant 0 : index
    %c0_295 = arith.constant 0 : index
    %c0_296 = arith.constant 0 : index
    %602 = vector.load %arg9[%c0_294, %c0_295, %c0_296] : memref<1x4x512xf32, #tpu.memory_space<vmem>>, vector<1x4x256xf32>
    %603 = vector.shape_cast %602 : vector<1x4x256xf32> to vector<4x256xf32>
    %604 = vector.shape_cast %601 : vector<4x256xf32> to vector<1x4x256xf32>
    tpu.vector_store %arg9[%c0_294, %c0_295, %c0_296], %604 {strides = array<i32>} : memref<1x4x512xf32, #tpu.memory_space<vmem>>, vector<1x4x256xf32>,
    %c4_297 = arith.constant 4 : index
    %c7_298 = arith.constant 7 : index
    %605 = vector.load %arg10[%c4_297, %c7_298] : memref<16x384xf32, #tpu.memory_space<vmem>>, vector<12x256xf32>
    %606 = vector.extract_strided_slice %557 {offsets = [0, 0], sizes = [4, 12], strides = [1, 1]} : vector<4x108xf32> to vector<4x12xf32>
    %cst_299 = arith.constant dense<0.000000e+00> : vector<4x256xf32>
    %607 = tpu.matmul %606, %605, %cst_299 {dimension_numbers = #tpu.dot_dimension_numbers<[1], [0], [0], [1], [0, 0, 1, 1], [], []>} : vector<4x12xf32>, vector<12x256xf32>, vector<4x256xf32> -> vector<4x256xf32>
    %c4_300 = arith.constant 4 : index
    %c8_301 = arith.constant 8 : index
    %608 = vector.load %arg10[%c4_300, %c8_301] : memref<16x384xf32, #tpu.memory_space<vmem>>, vector<12x256xf32>
    %609 = vector.extract_strided_slice %557 {offsets = [0, 12], sizes = [4, 12], strides = [1, 1]} : vector<4x108xf32> to vector<4x12xf32>
    %cst_302 = arith.constant dense<0.000000e+00> : vector<4x256xf32>
    %610 = tpu.matmul %609, %608, %cst_302 {dimension_numbers = #tpu.dot_dimension_numbers<[1], [0], [0], [1], [0, 0, 1, 1], [], []>} : vector<4x12xf32>, vector<12x256xf32>, vector<4x256xf32> -> vector<4x256xf32>
    %c4_303 = arith.constant 4 : index
    %c9_304 = arith.constant 9 : index
    %611 = vector.load %arg10[%c4_303, %c9_304] : memref<16x384xf32, #tpu.memory_space<vmem>>, vector<12x256xf32>
    %612 = vector.extract_strided_slice %557 {offsets = [0, 24], sizes = [4, 12], strides = [1, 1]} : vector<4x108xf32> to vector<4x12xf32>
    %cst_305 = arith.constant dense<0.000000e+00> : vector<4x256xf32>
    %613 = tpu.matmul %612, %611, %cst_305 {dimension_numbers = #tpu.dot_dimension_numbers<[1], [0], [0], [1], [0, 0, 1, 1], [], []>} : vector<4x12xf32>, vector<12x256xf32>, vector<4x256xf32> -> vector<4x256xf32>
    %c4_306 = arith.constant 4 : index
    %c23_307 = arith.constant 23 : index
    %614 = vector.load %arg10[%c4_306, %c23_307] : memref<16x384xf32, #tpu.memory_space<vmem>>, vector<12x256xf32>
    %615 = vector.extract_strided_slice %557 {offsets = [0, 36], sizes = [4, 12], strides = [1, 1]} : vector<4x108xf32> to vector<4x12xf32>
    %cst_308 = arith.constant dense<0.000000e+00> : vector<4x256xf32>
    %616 = tpu.matmul %615, %614, %cst_308 {dimension_numbers = #tpu.dot_dimension_numbers<[1], [0], [0], [1], [0, 0, 1, 1], [], []>} : vector<4x12xf32>, vector<12x256xf32>, vector<4x256xf32> -> vector<4x256xf32>
    %617 = arith.addf %607, %616 : vector<4x256xf32>
    %c4_309 = arith.constant 4 : index
    %c24_310 = arith.constant 24 : index
    %618 = vector.load %arg10[%c4_309, %c24_310] : memref<16x384xf32, #tpu.memory_space<vmem>>, vector<12x256xf32>
    %619 = vector.extract_strided_slice %557 {offsets = [0, 48], sizes = [4, 12], strides = [1, 1]} : vector<4x108xf32> to vector<4x12xf32>
    %cst_311 = arith.constant dense<0.000000e+00> : vector<4x256xf32>
    %620 = tpu.matmul %619, %618, %cst_311 {dimension_numbers = #tpu.dot_dimension_numbers<[1], [0], [0], [1], [0, 0, 1, 1], [], []>} : vector<4x12xf32>, vector<12x256xf32>, vector<4x256xf32> -> vector<4x256xf32>
    %621 = arith.addf %610, %620 : vector<4x256xf32>
    %c4_312 = arith.constant 4 : index
    %c25_313 = arith.constant 25 : index
    %622 = vector.load %arg10[%c4_312, %c25_313] : memref<16x384xf32, #tpu.memory_space<vmem>>, vector<12x256xf32>
    %623 = vector.extract_strided_slice %557 {offsets = [0, 60], sizes = [4, 12], strides = [1, 1]} : vector<4x108xf32> to vector<4x12xf32>
    %cst_314 = arith.constant dense<0.000000e+00> : vector<4x256xf32>
    %624 = tpu.matmul %623, %622, %cst_314 {dimension_numbers = #tpu.dot_dimension_numbers<[1], [0], [0], [1], [0, 0, 1, 1], [], []>} : vector<4x12xf32>, vector<12x256xf32>, vector<4x256xf32> -> vector<4x256xf32>
    %625 = arith.addf %613, %624 : vector<4x256xf32>
    %c4_315 = arith.constant 4 : index
    %c39_316 = arith.constant 39 : index
    %626 = vector.load %arg10[%c4_315, %c39_316] : memref<16x384xf32, #tpu.memory_space<vmem>>, vector<12x256xf32>
    %627 = vector.extract_strided_slice %557 {offsets = [0, 72], sizes = [4, 12], strides = [1, 1]} : vector<4x108xf32> to vector<4x12xf32>
    %cst_317 = arith.constant dense<0.000000e+00> : vector<4x256xf32>
    %628 = tpu.matmul %627, %626, %cst_317 {dimension_numbers = #tpu.dot_dimension_numbers<[1], [0], [0], [1], [0, 0, 1, 1], [], []>} : vector<4x12xf32>, vector<12x256xf32>, vector<4x256xf32> -> vector<4x256xf32>
    %629 = arith.addf %617, %628 : vector<4x256xf32>
    %c4_318 = arith.constant 4 : index
    %c40_319 = arith.constant 40 : index
    %630 = vector.load %arg10[%c4_318, %c40_319] : memref<16x384xf32, #tpu.memory_space<vmem>>, vector<12x256xf32>
    %631 = vector.extract_strided_slice %557 {offsets = [0, 84], sizes = [4, 12], strides = [1, 1]} : vector<4x108xf32> to vector<4x12xf32>
    %cst_320 = arith.constant dense<0.000000e+00> : vector<4x256xf32>
    %632 = tpu.matmul %631, %630, %cst_320 {dimension_numbers = #tpu.dot_dimension_numbers<[1], [0], [0], [1], [0, 0, 1, 1], [], []>} : vector<4x12xf32>, vector<12x256xf32>, vector<4x256xf32> -> vector<4x256xf32>
    %633 = arith.addf %621, %632 : vector<4x256xf32>
    %c4_321 = arith.constant 4 : index
    %c41_322 = arith.constant 41 : index
    %634 = vector.load %arg10[%c4_321, %c41_322] : memref<16x384xf32, #tpu.memory_space<vmem>>, vector<12x256xf32>
    %635 = vector.extract_strided_slice %557 {offsets = [0, 96], sizes = [4, 12], strides = [1, 1]} : vector<4x108xf32> to vector<4x12xf32>
    %cst_323 = arith.constant dense<0.000000e+00> : vector<4x256xf32>
    %636 = tpu.matmul %635, %634, %cst_323 {dimension_numbers = #tpu.dot_dimension_numbers<[1], [0], [0], [1], [0, 0, 1, 1], [], []>} : vector<4x12xf32>, vector<12x256xf32>, vector<4x256xf32> -> vector<4x256xf32>
    %637 = arith.addf %625, %636 : vector<4x256xf32>
    %638 = vector.broadcast %559 : vector<1x256xf32> to vector<4x256xf32>
    %639 = arith.mulf %638, %629 : vector<4x256xf32>
    %640 = arith.addf %633, %639 : vector<4x256xf32>
    %641 = vector.broadcast %560 : vector<1x256xf32> to vector<4x256xf32>
    %642 = arith.mulf %641, %637 : vector<4x256xf32>
    %643 = arith.addf %640, %642 : vector<4x256xf32>
    %644 = vector.broadcast %558 : vector<4x1xf32> to vector<4x256xf32>
    %645 = arith.addf %643, %644 : vector<4x256xf32>
    %c0_324 = arith.constant 0 : index
    %c0_325 = arith.constant 0 : index
    %c256 = arith.constant 256 : index
    %646 = vector.load %arg9[%c0_324, %c0_325, %c256] : memref<1x4x512xf32, #tpu.memory_space<vmem>>, vector<1x4x256xf32>
    %647 = vector.shape_cast %646 : vector<1x4x256xf32> to vector<4x256xf32>
    %648 = vector.shape_cast %645 : vector<4x256xf32> to vector<1x4x256xf32>
    tpu.vector_store %arg9[%c0_324, %c0_325, %c256], %648 {strides = array<i32>} : memref<1x4x512xf32, #tpu.memory_space<vmem>>, vector<1x4x256xf32>,
    return
  }
  func.func @transform_0(%arg0: i32, %arg1: i32) -> (i32, i32, i32, i32) {
    %c1_i32 = arith.constant 1 : i32
    %0 = arith.subi %arg1, %c1_i32 : i32
    %c0_i32 = arith.constant 0 : i32
    %1 = arith.maxsi %0, %c0_i32 : i32
    %c0_i32_0 = arith.constant 0 : i32
    %c0_i32_1 = arith.constant 0 : i32
    %c0_i32_2 = arith.constant 0 : i32
    return %arg0, %1, %c0_i32_0, %c0_i32_1 : i32, i32, i32, i32
  }
  func.func @transform_1(%arg0: i32, %arg1: i32) -> (i32, i32, i32, i32) {
    %c0_i32 = arith.constant 0 : i32
    %c0_i32_0 = arith.constant 0 : i32
    %c0_i32_1 = arith.constant 0 : i32
    return %arg0, %arg1, %c0_i32, %c0_i32_0 : i32, i32, i32, i32
  }
  func.func @transform_2(%arg0: i32, %arg1: i32) -> (i32, i32, i32, i32) {
    %c1_i32 = arith.constant 1 : i32
    %0 = arith.addi %arg1, %c1_i32 : i32
    %c3_i32 = arith.constant 3 : i32
    %1 = arith.minsi %0, %c3_i32 : i32
    %c0_i32 = arith.constant 0 : i32
    %c0_i32_0 = arith.constant 0 : i32
    %c0_i32_1 = arith.constant 0 : i32
    return %arg0, %1, %c0_i32, %c0_i32_0 : i32, i32, i32, i32
  }
  func.func @transform_3(%arg0: i32, %arg1: i32) -> (i32, i32) {
    %c0_i32 = arith.constant 0 : i32
    %c0_i32_0 = arith.constant 0 : i32
    %c0_i32_1 = arith.constant 0 : i32
    return %c0_i32, %c0_i32_0 : i32, i32
  }
  func.func @transform_4(%arg0: i32, %arg1: i32) -> (i32, i32) {
    %c0_i32 = arith.constant 0 : i32
    %c0_i32_0 = arith.constant 0 : i32
    %c0_i32_1 = arith.constant 0 : i32
    return %c0_i32, %c0_i32_0 : i32, i32
  }
  func.func @transform_5(%arg0: i32, %arg1: i32) -> (i32, i32) {
    %c0_i32 = arith.constant 0 : i32
    %c0_i32_0 = arith.constant 0 : i32
    %c0_i32_1 = arith.constant 0 : i32
    return %c0_i32, %c0_i32_0 : i32, i32
  }
  func.func @transform_6(%arg0: i32, %arg1: i32) -> (i32, i32) {
    %c0_i32 = arith.constant 0 : i32
    %c0_i32_0 = arith.constant 0 : i32
    %c0_i32_1 = arith.constant 0 : i32
    return %c0_i32, %c0_i32_0 : i32, i32
  }
  func.func @transform_7(%arg0: i32, %arg1: i32) -> (i32, i32, i32) {
    %c0_i32 = arith.constant 0 : i32
    %c0_i32_0 = arith.constant 0 : i32
    return %arg0, %c0_i32, %arg1 : i32, i32, i32
  }
}

</mosaic_0001>

<llo_original>
// kernel: tpu_custom_call.1
$region0: #{tpu_custom_call.1}
  #allocation0 [shape = 'u32[]', space=smem, size = 0x4, offset = 0x4, fixed_abs, tag = 'smem constant byte address 0x4 - core index']
  #allocation1 [shape = 'u32[144,128]{1,0:T(1,128)}', space=vmem, size = 0x12000, scoped, tag = 'internal scratch']
  #allocation2 [shape = 'f32[16,384]{1,0:T(8,128)}', space=vmem, size = 0x6000, scoped, tag = 'scratch operand']
  %s0 = inlined_call_operand.vmem [shape: f32[2,4,32,8], index: 0, kind: input, shape index: {}]
  %s1 = inlined_call_operand.vmem [shape: f32[2,4,32,8], index: 1, kind: input, shape index: {}]
  %s2 = inlined_call_operand.vmem [shape: f32[2,4,32,8], index: 2, kind: input, shape index: {}]
  %s3 = inlined_call_operand.vmem [shape: f32[8,16], index: 3, kind: input, shape index: {}]
  %s4 = inlined_call_operand.vmem [shape: f32[4,108], index: 4, kind: input, shape index: {}]
  %s5 = inlined_call_operand.vmem [shape: f32[2,256], index: 5, kind: input, shape index: {}]
  %s6 = inlined_call_operand.vmem [shape: f32[4,1], index: 6, kind: input, shape index: {}]
  %s7 = inlined_call_operand.hbm [shape: f32[2,4,2048], index: 7, kind: output, shape index: {}]
  %s8 = sld [smem:[#allocation0]]
  $region61: #{tpu_custom_call.1} parent=0
    _
  %s10 = ssub.s32 1, %s8
  %s11 = scalar_select 0, %s10, %s8
  $region1: #{tpu_custom_call.1} parent=0
    #allocation3 [shape = 'u8[16384]{0}', space=vmem, size = 0x4000, scoped, tag = 'output window, operand 0']
    #allocation4 [shape = 's32[2]{0}', space=sflag, size = 0x8, scoped, tag = 'scoped memory for tpu_custom_call.1']
    %12 = vsyncpa [#allocation4], 0
    %s13 = scalar_lea.sflag [#allocation4], 1
    %14 = vsyncpa %s13, 0
    loop: start=0, step=1, limit=10
    $region2: #{tpu_custom_call.1} parent=1 // loop_pre_header
      _
    $region3: #{tpu_custom_call.1} parent=1 // loop_header
      %s16 = sphi 0, %s20
      %p17 = scmp.ge.s32.totalorder %s16, 10
      %s23 = sphi 0, %s35
      %s24 = sphi 0, %s31
      %s25 = sphi 0, %s23
      %s26 = sphi 0, %s24
      %s27 = sphi 0, %s25
      %s28 = sphi 0, %s26
      %s46 = sphi 0, %s48
      %s49 = sphi 0, %s46
      %s50 = sphi 0, %s49
      %s66 = sphi 0, %s50
      %s74 = sphi 0, %s76
      %s77 = sphi 0, %s74
      %s78 = sphi 0, %s77
      %s94 = sphi 0, %s78
      %s108 = sphi 0, %s110
      %s111 = sphi 0, %s108
      %s112 = sphi 0, %s111
      %s128 = sphi 0, %s112
      %s132 = sphi 0, %s132
      %s134 = sphi 0, %s132
      %s135 = sphi 0, %s134
      %s149 = sphi 0, %s135
      %s153 = sphi 0, %s153
      %s155 = sphi 0, %s153
      %s156 = sphi 0, %s155
      %s170 = sphi 0, %s156
      %s174 = sphi 0, %s174
      %s176 = sphi 0, %s174
      %s177 = sphi 0, %s176
      %s191 = sphi 0, %s177
      %s195 = sphi 0, %s195
      %s197 = sphi 0, %s195
      %s198 = sphi 0, %s197
      %s212 = sphi 0, %s198
      %s220 = sphi 0, %s222
      %s223 = sphi 0, %s220
      %s224 = sphi 0, %s223
      %s240 = sphi 0, %s224
    $region4: #{tpu_custom_call.1} parent=1 // loop_header_branch
      %19 = sbr.rel (%p17) target = $region8
    $region5: #{tpu_custom_call.1} parent=1 // loop_body
      %s21 = ssub.s32 %s16, 1
      %s22 = ssub.s32 %s16, 2
      %s29 = sadd.s32 1, %s24
      %p30 = scmp.ge.s32.totalorder %s29, 4
      %s31 = scalar_select %p30, 0, %s29
      %s32 = sadd.s32 1, %s23
      %s33 = scalar_select %p30, %s32, %s23
      %p34 = scmp.ge.s32.totalorder %s33, 2
      %s35 = scalar_select %p34, 0, %s33
      %s36 = ssub.s32 %s24, 1
      %p37 = scmp.gt.s32.totalorder %s36, 0
      %s38 = scalar_select %p37, %s36, 0
      %s39 = ssub.s32 %s31, 1
      %p40 = scmp.gt.s32.totalorder %s39, 0
      %s41 = scalar_select %p40, %s39, 0
      %s42 = ssub.s32 %s23, %s35
      %s43 = ssub.s32 %s38, %s41
      %s44 = sor.u32 %s42, %s43
      %p45 = scmp.eq.s32.totalorder %s44, 0
      %s47 = sadd.s32 %s46, 1
      %s48 = scalar_select %p45, %s46, %s47
      %p51 = pneg %p45
      %p52 = scmp.eq.s32.totalorder %s16, 7
      %p53 = por %p51, %p52
      %p54 = scmp.ne.s32.totalorder %s46, %s49
      %p55 = scmp.eq.s32.totalorder %s16, 0
      %p56 = por %p54, %p55
      %p57 = scmp.ne.s32.totalorder %s46, %s49
      %p58 = scmp.eq.s32.totalorder %s21, 7
      %p59 = por %p57, %p58
      %p60 = scmp.ne.s32.totalorder %s49, %s50
      %p61 = scmp.eq.s32.totalorder %s21, 0
      %p62 = por %p60, %p61
      %p63 = scmp.ne.s32.totalorder %s49, %s50
      %p64 = scmp.eq.s32.totalorder %s22, 7
      %p65 = por %p63, %p64
      %p67 = scmp.ne.s32.totalorder %s50, %s66
      %p68 = scmp.eq.s32.totalorder %s22, 0
      %p69 = por %p67, %p68
      %s70 = ssub.s32 %s23, %s35
      %s71 = ssub.s32 %s24, %s31
      %s72 = sor.u32 %s70, %s71
      %p73 = scmp.eq.s32.totalorder %s72, 0
      %s75 = sadd.s32 %s74, 1
      %s76 = scalar_select %p73, %s74, %s75
      %p79 = pneg %p73
      %p80 = scmp.eq.s32.totalorder %s16, 7
      %p81 = por %p79, %p80
      %p82 = scmp.ne.s32.totalorder %s74, %s77
      %p83 = scmp.eq.s32.totalorder %s16, 0
      %p84 = por %p82, %p83
      %p85 = scmp.ne.s32.totalorder %s74, %s77
      %p86 = scmp.eq.s32.totalorder %s21, 7
      %p87 = por %p85, %p86
      %p88 = scmp.ne.s32.totalorder %s77, %s78
      %p89 = scmp.eq.s32.totalorder %s21, 0
      %p90 = por %p88, %p89
      %p91 = scmp.ne.s32.totalorder %s77, %s78
      %p92 = scmp.eq.s32.totalorder %s22, 7
      %p93 = por %p91, %p92
      %p95 = scmp.ne.s32.totalorder %s78, %s94
      %p96 = scmp.eq.s32.totalorder %s22, 0
      %p97 = por %p95, %p96
      %s98 = sadd.s32 %s24, 1
      %p99 = scmp.lt.s32.totalorder %s98, 3
      %s100 = scalar_select %p99, %s98, 3
      %s101 = sadd.s32 %s31, 1
      %p102 = scmp.lt.s32.totalorder %s101, 3
      %s103 = scalar_select %p102, %s101, 3
      %s104 = ssub.s32 %s23, %s35
      %s105 = ssub.s32 %s100, %s103
      %s106 = sor.u32 %s104, %s105
      %p107 = scmp.eq.s32.totalorder %s106, 0
      %s109 = sadd.s32 %s108, 1
      %s110 = scalar_select %p107, %s108, %s109
      %p113 = pneg %p107
      %p114 = scmp.eq.s32.totalorder %s16, 7
      %p115 = por %p113, %p114
      %p116 = scmp.ne.s32.totalorder %s108, %s111
      %p117 = scmp.eq.s32.totalorder %s16, 0
      %p118 = por %p116, %p117
      %p119 = scmp.ne.s32.totalorder %s108, %s111
      %p120 = scmp.eq.s32.totalorder %s21, 7
      %p121 = por %p119, %p120
      %p122 = scmp.ne.s32.totalorder %s111, %s112
      %p123 = scmp.eq.s32.totalorder %s21, 0
      %p124 = por %p122, %p123
      %p125 = scmp.ne.s32.totalorder %s111, %s112
      %p126 = scmp.eq.s32.totalorder %s22, 7
      %p127 = por %p125, %p126
      %p129 = scmp.ne.s32.totalorder %s112, %s128
      %p130 = scmp.eq.s32.totalorder %s22, 0
      %p131 = por %p129, %p130
      %s133 = sadd.s32 %s132, 1
      %p136 = scmp.eq.s32.totalorder %s16, 7
      %p137 = scmp.ne.s32.totalorder %s132, %s134
      %p138 = scmp.eq.s32.totalorder %s16, 0
      %p139 = por %p137, %p138
      %p140 = scmp.ne.s32.totalorder %s132, %s134
      %p141 = scmp.eq.s32.totalorder %s21, 7
      %p142 = por %p140, %p141
      %p143 = scmp.ne.s32.totalorder %s134, %s135
      %p144 = scmp.eq.s32.totalorder %s21, 0
      %p145 = por %p143, %p144
      %p146 = scmp.ne.s32.totalorder %s134, %s135
      %p147 = scmp.eq.s32.totalorder %s22, 7
      %p148 = por %p146, %p147
      %p150 = scmp.ne.s32.totalorder %s135, %s149
      %p151 = scmp.eq.s32.totalorder %s22, 0
      %p152 = por %p150, %p151
      %s154 = sadd.s32 %s153, 1
      %p157 = scmp.eq.s32.totalorder %s16, 7
      %p158 = scmp.ne.s32.totalorder %s153, %s155
      %p159 = scmp.eq.s32.totalorder %s16, 0
      %p160 = por %p158, %p159
      %p161 = scmp.ne.s32.totalorder %s153, %s155
      %p162 = scmp.eq.s32.totalorder %s21, 7
      %p163 = por %p161, %p162
      %p164 = scmp.ne.s32.totalorder %s155, %s156
      %p165 = scmp.eq.s32.totalorder %s21, 0
      %p166 = por %p164, %p165
      %p167 = scmp.ne.s32.totalorder %s155, %s156
      %p168 = scmp.eq.s32.totalorder %s22, 7
      %p169 = por %p167, %p168
      %p171 = scmp.ne.s32.totalorder %s156, %s170
      %p172 = scmp.eq.s32.totalorder %s22, 0
      %p173 = por %p171, %p172
      %s175 = sadd.s32 %s174, 1
      %p178 = scmp.eq.s32.totalorder %s16, 7
      %p179 = scmp.ne.s32.totalorder %s174, %s176
      %p180 = scmp.eq.s32.totalorder %s16, 0
      %p181 = por %p179, %p180
      %p182 = scmp.ne.s32.totalorder %s174, %s176
      %p183 = scmp.eq.s32.totalorder %s21, 7
      %p184 = por %p182, %p183
      %p185 = scmp.ne.s32.totalorder %s176, %s177
      %p186 = scmp.eq.s32.totalorder %s21, 0
      %p187 = por %p185, %p186
      %p188 = scmp.ne.s32.totalorder %s176, %s177
      %p189 = scmp.eq.s32.totalorder %s22, 7
      %p190 = por %p188, %p189
      %p192 = scmp.ne.s32.totalorder %s177, %s191
      %p193 = scmp.eq.s32.totalorder %s22, 0
      %p194 = por %p192, %p193
      %s196 = sadd.s32 %s195, 1
      %p199 = scmp.eq.s32.totalorder %s16, 7
      %p200 = scmp.ne.s32.totalorder %s195, %s197
      %p201 = scmp.eq.s32.totalorder %s16, 0
      %p202 = por %p200, %p201
      %p203 = scmp.ne.s32.totalorder %s195, %s197
      %p204 = scmp.eq.s32.totalorder %s21, 7
      %p205 = por %p203, %p204
      %p206 = scmp.ne.s32.totalorder %s197, %s198
      %p207 = scmp.eq.s32.totalorder %s21, 0
      %p208 = por %p206, %p207
      %p209 = scmp.ne.s32.totalorder %s197, %s198
      %p210 = scmp.eq.s32.totalorder %s22, 7
      %p211 = por %p209, %p210
      %p213 = scmp.ne.s32.totalorder %s198, %s212
      %p214 = scmp.eq.s32.totalorder %s22, 0
      %p215 = por %p213, %p214
      %s216 = ssub.s32 %s23, %s35
      %s217 = ssub.s32 %s24, %s31
      %s218 = sor.u32 %s216, %s217
      %p219 = scmp.eq.s32.totalorder %s218, 0
      %s221 = sadd.s32 %s220, 1
      %s222 = scalar_select %p219, %s220, %s221
      %p225 = pneg %p219
      %p226 = scmp.eq.s32.totalorder %s16, 7
      %p227 = por %p225, %p226
      %p228 = scmp.ne.s32.totalorder %s220, %s223
      %p229 = scmp.eq.s32.totalorder %s16, 0
      %p230 = por %p228, %p229
      %p231 = scmp.ne.s32.totalorder %s220, %s223
      %p232 = scmp.eq.s32.totalorder %s21, 7
      %p233 = por %p231, %p232
      %p234 = scmp.ne.s32.totalorder %s223, %s224
      %p235 = scmp.eq.s32.totalorder %s21, 0
      %p236 = por %p234, %p235
      %p237 = scmp.ne.s32.totalorder %s223, %s224
      %p238 = scmp.eq.s32.totalorder %s22, 7
      %p239 = por %p237, %p238
      %p241 = scmp.ne.s32.totalorder %s224, %s240
      %p242 = scmp.eq.s32.totalorder %s22, 0
      %p243 = por %p241, %p242
      %p244 = scmp.le.s32.totalorder 1, %s16
      %p245 = scmp.lt.s32.totalorder %s16, 9
      %p246 = pnand %p244, %p245
      %p247 = pneg %p246
      // Predicated region
      $region9: #{tpu_custom_call.1} parent=5 // pred_check
        _
      $region10: #{tpu_custom_call.1} parent=5 // pred_check_branch
        %249 = sbr.rel (%p246) target = $region12
      $region11: #{tpu_custom_call.1} parent=5 // pred_region
        %s250 = ssub.s32 %s16, 1
        // Predicated region
        $region13: #{tpu_custom_call.1} parent=11 // pred_check
          %p251 = pneg %p145
        $region14: #{tpu_custom_call.1} parent=11 // pred_check_branch
          %253 = sbr.rel (%p251) target = $region16
        $region15: #{tpu_custom_call.1} parent=11 // pred_region
          _
        $region16: #{tpu_custom_call.1} parent=11 // pred_fallthru
          _
        // Predicated region
        $region17: #{tpu_custom_call.1} parent=11 // pred_check
          %p254 = pneg %p166
        $region18: #{tpu_custom_call.1} parent=11 // pred_check_branch
          %256 = sbr.rel (%p254) target = $region20
        $region19: #{tpu_custom_call.1} parent=11 // pred_region
          _
        $region20: #{tpu_custom_call.1} parent=11 // pred_fallthru
          _
        // Predicated region
        $region21: #{tpu_custom_call.1} parent=11 // pred_check
          %p257 = pneg %p187
        $region22: #{tpu_custom_call.1} parent=11 // pred_check_branch
          %259 = sbr.rel (%p257) target = $region24
        $region23: #{tpu_custom_call.1} parent=11 // pred_region
          _
        $region24: #{tpu_custom_call.1} parent=11 // pred_fallthru
          _
        // Predicated region
        $region25: #{tpu_custom_call.1} parent=11 // pred_check
          %p260 = pneg %p208
        $region26: #{tpu_custom_call.1} parent=11 // pred_check_branch
          %262 = sbr.rel (%p260) target = $region28
        $region27: #{tpu_custom_call.1} parent=11 // pred_region
          _
        $region28: #{tpu_custom_call.1} parent=11 // pred_fallthru
          _
      $region12: #{tpu_custom_call.1} parent=5 // pred_fallthru
        _
      %p263 = scmp.lt.s32.totalorder %s16, 8
      // Predicated region
      $region29: #{tpu_custom_call.1} parent=5 // pred_check
        %p264 = pneg %p263
      $region30: #{tpu_custom_call.1} parent=5 // pred_check_branch
        %266 = sbr.rel (%p264) target = $region32
      $region31: #{tpu_custom_call.1} parent=5 // pred_region
        // Predicated region
        $region33: #{tpu_custom_call.1} parent=31 // pred_check
          %p267 = pneg %p56
        $region34: #{tpu_custom_call.1} parent=31 // pred_check_branch
          %269 = sbr.rel (%p267) target = $region36
        $region35: #{tpu_custom_call.1} parent=31 // pred_region
          %s270 = ssub.s32 %s24, 1
          %p271 = scmp.gt.s32.totalorder %s270, 0
          %s272 = scalar_select %p271, %s270, 0
          %p273 = scmp.lt.s32.totalorder %s23, 1
          %s274 = scalar_select %p273, %s23, 1
          %p275 = scmp.lt.s32.totalorder %s272, 3
          %s276 = scalar_select %p275, %s272, 3
          %s277 = smul.addr %s276, 4
          %s278 = smul.addr %s274, 16
          %s279 = sadd.s32 %s277, %s278
          %s280 = smul.addr %s279, 8
          %s281 = scalar_lea.vmem %s0, %s280
          %s282 = ssub.s32 %s24, 1
          %p283 = scmp.gt.s32.totalorder %s282, 0
          %s284 = scalar_select %p283, %s282, 0
        $region36: #{tpu_custom_call.1} parent=31 // pred_fallthru
          _
        // Predicated region
        $region37: #{tpu_custom_call.1} parent=31 // pred_check
          %p285 = pneg %p84
        $region38: #{tpu_custom_call.1} parent=31 // pred_check_branch
          %287 = sbr.rel (%p285) target = $region40
        $region39: #{tpu_custom_call.1} parent=31 // pred_region
          %p288 = scmp.lt.s32.totalorder %s23, 1
          %s289 = scalar_select %p288, %s23, 1
          %p290 = scmp.lt.s32.totalorder %s24, 3
          %s291 = scalar_select %p290, %s24, 3
          %s292 = smul.addr %s291, 4
          %s293 = smul.addr %s289, 16
          %s294 = sadd.s32 %s292, %s293
          %s295 = smul.addr %s294, 8
          %s296 = scalar_lea.vmem %s1, %s295
        $region40: #{tpu_custom_call.1} parent=31 // pred_fallthru
          _
        // Predicated region
        $region41: #{tpu_custom_call.1} parent=31 // pred_check
          %p297 = pneg %p118
        $region42: #{tpu_custom_call.1} parent=31 // pred_check_branch
          %299 = sbr.rel (%p297) target = $region44
        $region43: #{tpu_custom_call.1} parent=31 // pred_region
          %s300 = sadd.s32 %s24, 1
          %p301 = scmp.lt.s32.totalorder %s300, 3
          %s302 = scalar_select %p301, %s300, 3
          %p303 = scmp.lt.s32.totalorder %s23, 1
          %s304 = scalar_select %p303, %s23, 1
          %p305 = scmp.lt.s32.totalorder %s302, 3
          %s306 = scalar_select %p305, %s302, 3
          %s307 = smul.addr %s306, 4
          %s308 = smul.addr %s304, 16
          %s309 = sadd.s32 %s307, %s308
          %s310 = smul.addr %s309, 8
          %s311 = scalar_lea.vmem %s2, %s310
          %s312 = sadd.s32 %s24, 1
          %p313 = scmp.lt.s32.totalorder %s312, 3
          %s314 = scalar_select %p313, %s312, 3
        $region44: #{tpu_custom_call.1} parent=31 // pred_fallthru
          _
      $region32: #{tpu_custom_call.1} parent=5 // pred_fallthru
        _
      %p315 = scmp.le.s32.totalorder 1, %s16
      %p316 = scmp.lt.s32.totalorder %s16, 9
      %p317 = pnand %p315, %p316
      %p318 = pneg %p317
      // Predicated region
      $region45: #{tpu_custom_call.1} parent=5 // pred_check
        _
      $region46: #{tpu_custom_call.1} parent=5 // pred_check_branch
        %320 = sbr.rel (%p317) target = $region48
      $region47: #{tpu_custom_call.1} parent=5 // pred_region
        %s321 = ssub.s32 %s16, 1
        %s322 = ssub.s32 %s26, 1
        %p323 = scmp.gt.s32.totalorder %s322, 0
        %s324 = scalar_select %p323, %s322, 0
        %p325 = scmp.lt.s32.totalorder %s25, 1
        %s326 = scalar_select %p325, %s25, 1
        %p327 = scmp.lt.s32.totalorder %s324, 3
        %s328 = scalar_select %p327, %s324, 3
        %s329 = smul.addr %s328, 4
        %s330 = smul.addr %s326, 16
        %s331 = sadd.s32 %s329, %s330
        %s332 = smul.addr %s331, 8
        %s333 = scalar_lea.vmem %s0, %s332
        %p334 = pneg %p62
        %p335 = pneg %p59
        %p336 = scmp.lt.s32.totalorder %s25, 1
        %s337 = scalar_select %p336, %s25, 1
        %p338 = scmp.lt.s32.totalorder %s26, 3
        %s339 = scalar_select %p338, %s26, 3
        %s340 = smul.addr %s339, 4
        %s341 = smul.addr %s337, 16
        %s342 = sadd.s32 %s340, %s341
        %s343 = smul.addr %s342, 8
        %s344 = scalar_lea.vmem %s1, %s343
        %p345 = pneg %p90
        %p346 = pneg %p87
        %s347 = sadd.s32 %s26, 1
        %p348 = scmp.lt.s32.totalorder %s347, 3
        %s349 = scalar_select %p348, %s347, 3
        %p350 = scmp.lt.s32.totalorder %s25, 1
        %s351 = scalar_select %p350, %s25, 1
        %p352 = scmp.lt.s32.totalorder %s349, 3
        %s353 = scalar_select %p352, %s349, 3
        %s354 = smul.addr %s353, 4
        %s355 = smul.addr %s351, 16
        %s356 = sadd.s32 %s354, %s355
        %s357 = smul.addr %s356, 8
        %s358 = scalar_lea.vmem %s2, %s357
        %p359 = pneg %p124
        %p360 = pneg %p121
        %p361 = pneg %p145
        %p362 = pneg %p142
        %p363 = pneg %p166
        %p364 = pneg %p163
        %p365 = pneg %p187
        %p366 = pneg %p184
        %p367 = pneg %p208
        %p368 = pneg %p205
        %p369 = pneg %p236
        %p370 = pneg %p233
        %s371 = sand.u32 %s223, 1
        %s372 = scalar_lea.sflag [#allocation4], %s371
        %s373 = sand.u32 %s223, 1
        %s374 = smul.addr %s373, 16
        %s375 = scalar_lea.vmem [#allocation3], %s374
        %s376 = ssub.s32 %s26, 1
        %p377 = scmp.gt.s32.totalorder %s376, 0
        %s378 = scalar_select %p377, %s376, 0
        %p379 = scmp.lt.s32.totalorder %s25, 1
        %s380 = scalar_select %p379, %s25, 1
        %p381 = scmp.lt.s32.totalorder %s378, 3
        %s382 = scalar_select %p381, %s378, 3
        %s383 = smul.addr %s382, 4
        %s384 = smul.addr %s380, 16
        %s385 = sadd.s32 %s383, %s384
        %s386 = smul.addr %s385, 8
        %s387 = scalar_lea.vmem %s0, %s386
        %s388 = ssub.s32 %s26, 1
        %p389 = scmp.gt.s32.totalorder %s388, 0
        %s390 = scalar_select %p389, %s388, 0
        %p391 = scmp.lt.s32.totalorder %s25, 1
        %s392 = scalar_select %p391, %s25, 1
        %p393 = scmp.lt.s32.totalorder %s26, 3
        %s394 = scalar_select %p393, %s26, 3
        %s395 = smul.addr %s394, 4
        %s396 = smul.addr %s392, 16
        %s397 = sadd.s32 %s395, %s396
        %s398 = smul.addr %s397, 8
        %s399 = scalar_lea.vmem %s1, %s398
        %s400 = sadd.s32 %s26, 1
        %p401 = scmp.lt.s32.totalorder %s400, 3
        %s402 = scalar_select %p401, %s400, 3
        %p403 = scmp.lt.s32.totalorder %s25, 1
        %s404 = scalar_select %p403, %s25, 1
        %p405 = scmp.lt.s32.totalorder %s402, 3
        %s406 = scalar_select %p405, %s402, 3
        %s407 = smul.addr %s406, 4
        %s408 = smul.addr %s404, 16
        %s409 = sadd.s32 %s407, %s408
        %s410 = smul.addr %s409, 8
        %s411 = scalar_lea.vmem %s2, %s410
        %s412 = sadd.s32 %s26, 1
        %p413 = scmp.lt.s32.totalorder %s412, 3
        %s414 = scalar_select %p413, %s412, 3
        %s415 = smul.u32 4, %s26
        %p416 = scmp.gt.s32.totalorder %s26, 0
        %s417 = scalar_select %p416, 1, 0
        %s418 = scvt.s32.f32 %s417
        %p419 = scmp.lt.s32.totalorder %s26, 3
        %s420 = scalar_select %p419, 1, 0
        %s421 = scvt.s32.f32 %s420
        %v422 = vld [vmem:[%s387] sm:$0xff]
        %v423 = vld [vmem:[%s387 + $0x8] sm:$0xff]
        %v424 = vld [vmem:[%s387 + $0x10] sm:$0xff]
        %v425 = vld [vmem:[%s387 + $0x18] sm:$0xff]
        %v426 = vld [vmem:[%s399] sm:$0xff]
        %v427 = vld [vmem:[%s399 + $0x8] sm:$0xff]
        %v428 = vld [vmem:[%s399 + $0x10] sm:$0xff]
        %v429 = vld [vmem:[%s399 + $0x18] sm:$0xff]
        %v430 = vld [vmem:[%s411] sm:$0xff]
        %v431 = vld [vmem:[%s411 + $0x8] sm:$0xff]
        %v432 = vld [vmem:[%s411 + $0x10] sm:$0xff]
        %v433 = vld [vmem:[%s411 + $0x18] sm:$0xff]
        %v434 = vmul.f32 %v422, 0.75
        %v435 = vmul.f32 %v423, 0.75
        %v436 = vmul.f32 %v424, 0.75
        %v437 = vmul.f32 %v425, 0.75
        %v438 = vmul.f32 %v426, 0.25
        %v439 = vmul.f32 %v427, 0.25
        %v440 = vmul.f32 %v428, 0.25
        %v441 = vmul.f32 %v429, 0.25
        %v442 = vadd.f32 %v434, %v438
        %v443 = vadd.f32 %v435, %v439
        %v444 = vadd.f32 %v436, %v440
        %v445 = vadd.f32 %v437, %v441
        %v446 = vstv %s418
        %v447 = vmul.f32 %v446, %v442
        %v448 = vmul.f32 %v446, %v443
        %v449 = vmul.f32 %v446, %v444
        %v450 = vmul.f32 %v446, %v445
        %v451 = vmul.f32 %v426, 0.75
        %v452 = vmul.f32 %v427, 0.75
        %v453 = vmul.f32 %v428, 0.75
        %v454 = vmul.f32 %v429, 0.75
        %v455 = vmul.f32 %v422, 0.25
        %v456 = vmul.f32 %v423, 0.25
        %v457 = vmul.f32 %v424, 0.25
        %v458 = vmul.f32 %v425, 0.25
        %v459 = vadd.f32 %v451, %v455
        %v460 = vadd.f32 %v452, %v456
        %v461 = vadd.f32 %v453, %v457
        %v462 = vadd.f32 %v454, %v458
        %v463 = vmul.f32 %v430, 0.25
        %v464 = vmul.f32 %v431, 0.25
        %v465 = vmul.f32 %v432, 0.25
        %v466 = vmul.f32 %v433, 0.25
        %v467 = vadd.f32 %v451, %v463
        %v468 = vadd.f32 %v452, %v464
        %v469 = vadd.f32 %v453, %v465
        %v470 = vadd.f32 %v454, %v466
        %v471 = vmul.f32 %v430, 0.75
        %v472 = vmul.f32 %v431, 0.75
        %v473 = vmul.f32 %v432, 0.75
        %v474 = vmul.f32 %v433, 0.75
        %v475 = vadd.f32 %v471, %v438
        %v476 = vadd.f32 %v472, %v439
        %v477 = vadd.f32 %v473, %v440
        %v478 = vadd.f32 %v474, %v441
        %v479 = vstv %s421
        %v480 = vmul.f32 %v479, %v475
        %v481 = vmul.f32 %v479, %v476
        %v482 = vmul.f32 %v479, %v477
        %v483 = vmul.f32 %v479, %v478
        %v484 = vld [vmem:[%s3] sm:$0xff]
        %vm485 = vcmask 64512
        %v487 = vsel %vm485, %v447, 0
        %v490 = vsel %vm485, %v448, 0
        %v493 = vsel %vm485, %v449, 0
        %v496 = vsel %vm485, %v450, 0
        %498 = vmatprep.subr.mxu0 0.0
        %499 = vmatpush1.msra.mxu0 0.0
        %500 = vmatprep.subr.mxu0 0.0
        %501 = vmatpush1.msra.mxu0 0.0
        %502 = vmatprep.subr.mxu0 0.0
        %503 = vmatpush1.msra.mxu0 0.0
        %504 = vmatprep.subr.mxu0 0.0
        %505 = vmatpush1.msra.mxu0 0.0
        %506 = vmatprep.subr.mxu0 0.0
        %507 = vmatpush1.msra.mxu0 0.0
        %508 = vmatprep.subr.mxu0 0.0
        %509 = vmatpush1.msra.mxu0 0.0
        %510 = vmatprep.subr.mxu0 0.0
        %511 = vmatpush1.msra.mxu0 0.0
        %512 = vmatprep.subr.mxu0 0.0
        %513 = vmatpush1.msra.mxu0 0.0
        %514 = vmatprep.subr.mxu0 0.0
        %515 = vmatpush1.msra.mxu0 0.0
        %516 = vmatprep.subr.mxu0 0.0
        %517 = vmatpush1.msra.mxu0 0.0
        %518 = vmatprep.subr.mxu0 0.0
        %519 = vmatpush1.msra.mxu0 0.0
        %520 = vmatprep.subr.mxu0 0.0
        %521 = vmatpush1.msra.mxu0 0.0
        %522 = vmatprep.subr.mxu0 0.0
        %523 = vmatpush1.msra.mxu0 0.0
        %524 = vmatprep.subr.mxu0 0.0
        %525 = vmatpush1.msra.mxu0 0.0
        %526 = vmatprep.subr.mxu0 0.0
        %527 = vmatpush1.msra.mxu0 0.0
        %528 = vmatprep.subr.mxu0 0.0
        %v529 = vand.u32 %v484, 4294901760
        %530 = vmatpush1.msra.mxu0 %v529
        %531 = vmatprep.subr.mxu0 0.0
        %532 = vmatpush2.msra.mxu0 0.0
        %533 = vmatprep.subr.mxu0 0.0
        %534 = vmatpush2.msra.mxu0 0.0
        %535 = vmatprep.subr.mxu0 0.0
        %536 = vmatpush2.msra.mxu0 0.0
        %537 = vmatprep.subr.mxu0 0.0
        %538 = vmatpush2.msra.mxu0 0.0
        %539 = vmatprep.subr.mxu0 0.0
        %540 = vmatpush2.msra.mxu0 0.0
        %541 = vmatprep.subr.mxu0 0.0
        %542 = vmatpush2.msra.mxu0 0.0
        %543 = vmatprep.subr.mxu0 0.0
        %544 = vmatpush2.msra.mxu0 0.0
        %545 = vmatprep.subr.mxu0 0.0
        %546 = vmatpush2.msra.mxu0 0.0
        %547 = vmatprep.subr.mxu0 0.0
        %548 = vmatpush2.msra.mxu0 0.0
        %549 = vmatprep.subr.mxu0 0.0
        %550 = vmatpush2.msra.mxu0 0.0
        %551 = vmatprep.subr.mxu0 0.0
        %552 = vmatpush2.msra.mxu0 0.0
        %553 = vmatprep.subr.mxu0 0.0
        %554 = vmatpush2.msra.mxu0 0.0
        %555 = vmatprep.subr.mxu0 0.0
        %556 = vmatpush2.msra.mxu0 0.0
        %557 = vmatprep.subr.mxu0 0.0
        %558 = vmatpush2.msra.mxu0 0.0
        %559 = vmatprep.subr.mxu0 0.0
        %560 = vmatpush2.msra.mxu0 0.0
        %561 = vmatprep.subr.mxu0 0.0
        %562 = vmatpush2.msra.mxu0 0.0
        %563 = vmatprep.mubr.f32.mxu0 0.0
        %v564 = vand.u32 %v487, 4294901760
        %v565 = vsub.f32 %v487, %v564
        %v566 = vand.u32 %v565, 4294901760
        %v567 = vsub.f32 %v565, %v566
        %v568 = vand.u32 %v567, 4294901760
        %569 = vmatmul.mubr.f32.gmra.mxu0 %v568
        %v570 = vpop.f32.mrf.mxu0
        %v571 = vadd.f32 0.0, %v570
        %v572 = vpop.f32.mrf.mxu0
        %573 = vmatprep.mubr.f32.mxu0 0.0
        %v574 = vand.u32 %v490, 4294901760
        %v575 = vsub.f32 %v490, %v574
        %v576 = vand.u32 %v575, 4294901760
        %v577 = vsub.f32 %v575, %v576
        %v578 = vand.u32 %v577, 4294901760
        %579 = vmatmul.mubr.f32.gmra.mxu0 %v578
        %v580 = vpop.f32.mrf.mxu0
        %v581 = vadd.f32 0.0, %v580
        %v582 = vpop.f32.mrf.mxu0
        %583 = vmatprep.mubr.f32.mxu0 0.0
        %v584 = vand.u32 %v493, 4294901760
        %v585 = vsub.f32 %v493, %v584
        %v586 = vand.u32 %v585, 4294901760
        %v587 = vsub.f32 %v585, %v586
        %v588 = vand.u32 %v587, 4294901760
        %589 = vmatmul.mubr.f32.gmra.mxu0 %v588
        %v590 = vpop.f32.mrf.mxu0
        %v591 = vadd.f32 0.0, %v590
        %v592 = vpop.f32.mrf.mxu0
        %593 = vmatprep.mubr.f32.mxu0 0.0
        %v594 = vand.u32 %v496, 4294901760
        %v595 = vsub.f32 %v496, %v594
        %v596 = vand.u32 %v595, 4294901760
        %v597 = vsub.f32 %v595, %v596
        %v598 = vand.u32 %v597, 4294901760
        %599 = vmatmul.mubr.f32.gmra.mxu0 %v598
        %v600 = vpop.f32.mrf.mxu0
        %v601 = vadd.f32 0.0, %v600
        %v602 = vpop.f32.mrf.mxu0
        %603 = vdwg.mxu0
        %604 = vmatprep.subr.mxu0 0.0
        %605 = vmatpush1.msra.mxu0 0.0
        %606 = vmatprep.subr.mxu0 0.0
        %607 = vmatpush1.msra.mxu0 0.0
        %608 = vmatprep.subr.mxu0 0.0
        %609 = vmatpush1.msra.mxu0 0.0
        %610 = vmatprep.subr.mxu0 0.0
        %611 = vmatpush1.msra.mxu0 0.0
        %612 = vmatprep.subr.mxu0 0.0
        %613 = vmatpush1.msra.mxu0 0.0
        %614 = vmatprep.subr.mxu0 0.0
        %615 = vmatpush1.msra.mxu0 0.0
        %616 = vmatprep.subr.mxu0 0.0
        %617 = vmatpush1.msra.mxu0 0.0
        %618 = vmatprep.subr.mxu0 0.0
        %619 = vmatpush1.msra.mxu0 0.0
        %620 = vmatprep.subr.mxu0 0.0
        %621 = vmatpush1.msra.mxu0 0.0
        %622 = vmatprep.subr.mxu0 0.0
        %623 = vmatpush1.msra.mxu0 0.0
        %624 = vmatprep.subr.mxu0 0.0
        %625 = vmatpush1.msra.mxu0 0.0
        %626 = vmatprep.subr.mxu0 0.0
        %627 = vmatpush1.msra.mxu0 0.0
        %628 = vmatprep.subr.mxu0 0.0
        %629 = vmatpush1.msra.mxu0 0.0
        %630 = vmatprep.subr.mxu0 0.0
        %631 = vmatpush1.msra.mxu0 0.0
        %632 = vmatprep.subr.mxu0 0.0
        %633 = vmatpush1.msra.mxu0 0.0
        %634 = vmatprep.subr.mxu0 0.0
        %v635 = vand.u32 %v484, 4294901760
        %v636 = vsub.f32 %v484, %v635
        %v637 = vand.u32 %v636, 4294901760
        %v638 = vsub.f32 %v636, %v637
        %v639 = vand.u32 %v638, 4294901760
        %640 = vmatpush1.msra.mxu0 %v639
        %641 = vmatprep.subr.mxu0 0.0
        %642 = vmatpush2.msra.mxu0 0.0
        %643 = vmatprep.subr.mxu0 0.0
        %644 = vmatpush2.msra.mxu0 0.0
        %645 = vmatprep.subr.mxu0 0.0
        %646 = vmatpush2.msra.mxu0 0.0
        %647 = vmatprep.subr.mxu0 0.0
        %648 = vmatpush2.msra.mxu0 0.0
        %649 = vmatprep.subr.mxu0 0.0
        %650 = vmatpush2.msra.mxu0 0.0
        %651 = vmatprep.subr.mxu0 0.0
        %652 = vmatpush2.msra.mxu0 0.0
        %653 = vmatprep.subr.mxu0 0.0
        %654 = vmatpush2.msra.mxu0 0.0
        %655 = vmatprep.subr.mxu0 0.0
        %656 = vmatpush2.msra.mxu0 0.0
        %657 = vmatprep.subr.mxu0 0.0
        %658 = vmatpush2.msra.mxu0 0.0
        %659 = vmatprep.subr.mxu0 0.0
        %660 = vmatpush2.msra.mxu0 0.0
        %661 = vmatprep.subr.mxu0 0.0
        %662 = vmatpush2.msra.mxu0 0.0
        %663 = vmatprep.subr.mxu0 0.0
        %664 = vmatpush2.msra.mxu0 0.0
        %665 = vmatprep.subr.mxu0 0.0
        %666 = vmatpush2.msra.mxu0 0.0
        %667 = vmatprep.subr.mxu0 0.0
        %668 = vmatpush2.msra.mxu0 0.0
        %669 = vmatprep.subr.mxu0 0.0
        %670 = vmatpush2.msra.mxu0 0.0
        %671 = vmatprep.subr.mxu0 0.0
        %672 = vmatpush2.msra.mxu0 0.0
        %673 = vmatprep.mubr.f32.mxu0 0.0
        %v674 = vand.u32 %v487, 4294901760
        %675 = vmatmul.mubr.f32.gmra.mxu0 %v674
        %v676 = vpop.f32.mrf.mxu0
        %v677 = vadd.f32 %v571, %v676
        %v678 = vpop.f32.mrf.mxu0
        %679 = vmatprep.mubr.f32.mxu0 0.0
        %v680 = vand.u32 %v490, 4294901760
        %681 = vmatmul.mubr.f32.gmra.mxu0 %v680
        %v682 = vpop.f32.mrf.mxu0
        %v683 = vadd.f32 %v581, %v682
        %v684 = vpop.f32.mrf.mxu0
        %685 = vmatprep.mubr.f32.mxu0 0.0
        %v686 = vand.u32 %v493, 4294901760
        %687 = vmatmul.mubr.f32.gmra.mxu0 %v686
        %v688 = vpop.f32.mrf.mxu0
        %v689 = vadd.f32 %v591, %v688
        %v690 = vpop.f32.mrf.mxu0
        %691 = vmatprep.mubr.f32.mxu0 0.0
        %v692 = vand.u32 %v496, 4294901760
        %693 = vmatmul.mubr.f32.gmra.mxu0 %v692
        %v694 = vpop.f32.mrf.mxu0
        %v695 = vadd.f32 %v601, %v694
        %v696 = vpop.f32.mrf.mxu0
        %697 = vdwg.mxu0
        %698 = vmatprep.subr.mxu0 0.0
        %699 = vmatpush1.msra.mxu0 0.0
        %700 = vmatprep.subr.mxu0 0.0
        %701 = vmatpush1.msra.mxu0 0.0
        %702 = vmatprep.subr.mxu0 0.0
        %703 = vmatpush1.msra.mxu0 0.0
        %704 = vmatprep.subr.mxu0 0.0
        %705 = vmatpush1.msra.mxu0 0.0
        %706 = vmatprep.subr.mxu0 0.0
        %707 = vmatpush1.msra.mxu0 0.0
        %708 = vmatprep.subr.mxu0 0.0
        %709 = vmatpush1.msra.mxu0 0.0
        %710 = vmatprep.subr.mxu0 0.0
        %711 = vmatpush1.msra.mxu0 0.0
        %712 = vmatprep.subr.mxu0 0.0
        %713 = vmatpush1.msra.mxu0 0.0
        %714 = vmatprep.subr.mxu0 0.0
        %715 = vmatpush1.msra.mxu0 0.0
        %716 = vmatprep.subr.mxu0 0.0
        %717 = vmatpush1.msra.mxu0 0.0
        %718 = vmatprep.subr.mxu0 0.0
        %719 = vmatpush1.msra.mxu0 0.0
        %720 = vmatprep.subr.mxu0 0.0
        %721 = vmatpush1.msra.mxu0 0.0
        %722 = vmatprep.subr.mxu0 0.0
        %723 = vmatpush1.msra.mxu0 0.0
        %724 = vmatprep.subr.mxu0 0.0
        %725 = vmatpush1.msra.mxu0 0.0
        %726 = vmatprep.subr.mxu0 0.0
        %727 = vmatpush1.msra.mxu0 0.0
        %728 = vmatprep.subr.mxu0 0.0
        %v729 = vand.u32 %v484, 4294901760
        %v730 = vsub.f32 %v484, %v729
        %731 = vmatpush1.msra.mxu0 %v730
        %732 = vmatprep.subr.mxu0 0.0
        %733 = vmatpush2.msra.mxu0 0.0
        %734 = vmatprep.subr.mxu0 0.0
        %735 = vmatpush2.msra.mxu0 0.0
        %736 = vmatprep.subr.mxu0 0.0
        %737 = vmatpush2.msra.mxu0 0.0
        %738 = vmatprep.subr.mxu0 0.0
        %739 = vmatpush2.msra.mxu0 0.0
        %740 = vmatprep.subr.mxu0 0.0
        %741 = vmatpush2.msra.mxu0 0.0
        %742 = vmatprep.subr.mxu0 0.0
        %743 = vmatpush2.msra.mxu0 0.0
        %744 = vmatprep.subr.mxu0 0.0
        %745 = vmatpush2.msra.mxu0 0.0
        %746 = vmatprep.subr.mxu0 0.0
        %747 = vmatpush2.msra.mxu0 0.0
        %748 = vmatprep.subr.mxu0 0.0
        %749 = vmatpush2.msra.mxu0 0.0
        %750 = vmatprep.subr.mxu0 0.0
        %751 = vmatpush2.msra.mxu0 0.0
        %752 = vmatprep.subr.mxu0 0.0
        %753 = vmatpush2.msra.mxu0 0.0
        %754 = vmatprep.subr.mxu0 0.0
        %755 = vmatpush2.msra.mxu0 0.0
        %756 = vmatprep.subr.mxu0 0.0
        %757 = vmatpush2.msra.mxu0 0.0
        %758 = vmatprep.subr.mxu0 0.0
        %759 = vmatpush2.msra.mxu0 0.0
        %760 = vmatprep.subr.mxu0 0.0
        %761 = vmatpush2.msra.mxu0 0.0
        %762 = vmatprep.subr.mxu0 0.0
        %763 = vmatpush2.msra.mxu0 0.0
        %764 = vmatprep.mubr.f32.mxu0 0.0
        %v765 = vand.u32 %v487, 4294901760
        %v766 = vsub.f32 %v487, %v765
        %767 = vmatmul.mubr.f32.gmra.mxu0 %v766
        %v768 = vpop.f32.mrf.mxu0
        %v769 = vadd.f32 %v677, %v768
        %v770 = vpop.f32.mrf.mxu0
        %771 = vmatprep.mubr.f32.mxu0 0.0
        %v772 = vand.u32 %v490, 4294901760
        %v773 = vsub.f32 %v490, %v772
        %774 = vmatmul.mubr.f32.gmra.mxu0 %v773
        %v775 = vpop.f32.mrf.mxu0
        %v776 = vadd.f32 %v683, %v775
        %v777 = vpop.f32.mrf.mxu0
        %778 = vmatprep.mubr.f32.mxu0 0.0
        %v779 = vand.u32 %v493, 4294901760
        %v780 = vsub.f32 %v493, %v779
        %781 = vmatmul.mubr.f32.gmra.mxu0 %v780
        %v782 = vpop.f32.mrf.mxu0
        %v783 = vadd.f32 %v689, %v782
        %v784 = vpop.f32.mrf.mxu0
        %785 = vmatprep.mubr.f32.mxu0 0.0
        %v786 = vand.u32 %v496, 4294901760
        %v787 = vsub.f32 %v496, %v786
        %788 = vmatmul.mubr.f32.gmra.mxu0 %v787
        %v789 = vpop.f32.mrf.mxu0
        %v790 = vadd.f32 %v695, %v789
        %v791 = vpop.f32.mrf.mxu0
        %792 = vdwg.mxu0
        %793 = vmatprep.subr.mxu0 0.0
        %794 = vmatpush1.msra.mxu0 0.0
        %795 = vmatprep.subr.mxu0 0.0
        %796 = vmatpush1.msra.mxu0 0.0
        %797 = vmatprep.subr.mxu0 0.0
        %798 = vmatpush1.msra.mxu0 0.0
        %799 = vmatprep.subr.mxu0 0.0
        %800 = vmatpush1.msra.mxu0 0.0
        %801 = vmatprep.subr.mxu0 0.0
        %802 = vmatpush1.msra.mxu0 0.0
        %803 = vmatprep.subr.mxu0 0.0
        %804 = vmatpush1.msra.mxu0 0.0
        %805 = vmatprep.subr.mxu0 0.0
        %806 = vmatpush1.msra.mxu0 0.0
        %807 = vmatprep.subr.mxu0 0.0
        %808 = vmatpush1.msra.mxu0 0.0
        %809 = vmatprep.subr.mxu0 0.0
        %810 = vmatpush1.msra.mxu0 0.0
        %811 = vmatprep.subr.mxu0 0.0
        %812 = vmatpush1.msra.mxu0 0.0
        %813 = vmatprep.subr.mxu0 0.0
        %814 = vmatpush1.msra.mxu0 0.0
        %815 = vmatprep.subr.mxu0 0.0
        %816 = vmatpush1.msra.mxu0 0.0
        %817 = vmatprep.subr.mxu0 0.0
        %818 = vmatpush1.msra.mxu0 0.0
        %819 = vmatprep.subr.mxu0 0.0
        %820 = vmatpush1.msra.mxu0 0.0
        %821 = vmatprep.subr.mxu0 0.0
        %822 = vmatpush1.msra.mxu0 0.0
        %823 = vmatprep.subr.mxu0 0.0
        %v824 = vand.u32 %v484, 4294901760
        %825 = vmatpush1.msra.mxu0 %v824
        %826 = vmatprep.subr.mxu0 0.0
        %827 = vmatpush2.msra.mxu0 0.0
        %828 = vmatprep.subr.mxu0 0.0
        %829 = vmatpush2.msra.mxu0 0.0
        %830 = vmatprep.subr.mxu0 0.0
        %831 = vmatpush2.msra.mxu0 0.0
        %832 = vmatprep.subr.mxu0 0.0
        %833 = vmatpush2.msra.mxu0 0.0
        %834 = vmatprep.subr.mxu0 0.0
        %835 = vmatpush2.msra.mxu0 0.0
        %836 = vmatprep.subr.mxu0 0.0
        %837 = vmatpush2.msra.mxu0 0.0
        %838 = vmatprep.subr.mxu0 0.0
        %839 = vmatpush2.msra.mxu0 0.0
        %840 = vmatprep.subr.mxu0 0.0
        %841 = vmatpush2.msra.mxu0 0.0
        %842 = vmatprep.subr.mxu0 0.0
        %843 = vmatpush2.msra.mxu0 0.0
        %844 = vmatprep.subr.mxu0 0.0
        %845 = vmatpush2.msra.mxu0 0.0
        %846 = vmatprep.subr.mxu0 0.0
        %847 = vmatpush2.msra.mxu0 0.0
        %848 = vmatprep.subr.mxu0 0.0
        %849 = vmatpush2.msra.mxu0 0.0
        %850 = vmatprep.subr.mxu0 0.0
        %851 = vmatpush2.msra.mxu0 0.0
        %852 = vmatprep.subr.mxu0 0.0
        %853 = vmatpush2.msra.mxu0 0.0
        %854 = vmatprep.subr.mxu0 0.0
        %855 = vmatpush2.msra.mxu0 0.0
        %856 = vmatprep.subr.mxu0 0.0
        %857 = vmatpush2.msra.mxu0 0.0
        %858 = vmatprep.mubr.f32.mxu0 0.0
        %v859 = vand.u32 %v487, 4294901760
        %v860 = vsub.f32 %v487, %v859
        %v861 = vand.u32 %v860, 4294901760
        %862 = vmatmul.mubr.f32.gmra.mxu0 %v861
        %v863 = vpop.f32.mrf.mxu0
        %v864 = vadd.f32 %v769, %v863
        %v865 = vpop.f32.mrf.mxu0
        %866 = vmatprep.mubr.f32.mxu0 0.0
        %v867 = vand.u32 %v490, 4294901760
        %v868 = vsub.f32 %v490, %v867
        %v869 = vand.u32 %v868, 4294901760
        %870 = vmatmul.mubr.f32.gmra.mxu0 %v869
        %v871 = vpop.f32.mrf.mxu0
        %v872 = vadd.f32 %v776, %v871
        %v873 = vpop.f32.mrf.mxu0
        %874 = vmatprep.mubr.f32.mxu0 0.0
        %v875 = vand.u32 %v493, 4294901760
        %v876 = vsub.f32 %v493, %v875
        %v877 = vand.u32 %v876, 4294901760
        %878 = vmatmul.mubr.f32.gmra.mxu0 %v877
        %v879 = vpop.f32.mrf.mxu0
        %v880 = vadd.f32 %v783, %v879
        %v881 = vpop.f32.mrf.mxu0
        %882 = vmatprep.mubr.f32.mxu0 0.0
        %v883 = vand.u32 %v496, 4294901760
        %v884 = vsub.f32 %v496, %v883
        %v885 = vand.u32 %v884, 4294901760
        %886 = vmatmul.mubr.f32.gmra.mxu0 %v885
        %v887 = vpop.f32.mrf.mxu0
        %v888 = vadd.f32 %v790, %v887
        %v889 = vpop.f32.mrf.mxu0
        %890 = vdwg.mxu0
        %891 = vmatprep.subr.mxu0 0.0
        %892 = vmatpush1.msra.mxu0 0.0
        %893 = vmatprep.subr.mxu0 0.0
        %894 = vmatpush1.msra.mxu0 0.0
        %895 = vmatprep.subr.mxu0 0.0
        %896 = vmatpush1.msra.mxu0 0.0
        %897 = vmatprep.subr.mxu0 0.0
        %898 = vmatpush1.msra.mxu0 0.0
        %899 = vmatprep.subr.mxu0 0.0
        %900 = vmatpush1.msra.mxu0 0.0
        %901 = vmatprep.subr.mxu0 0.0
        %902 = vmatpush1.msra.mxu0 0.0
        %903 = vmatprep.subr.mxu0 0.0
        %904 = vmatpush1.msra.mxu0 0.0
        %905 = vmatprep.subr.mxu0 0.0
        %906 = vmatpush1.msra.mxu0 0.0
        %907 = vmatprep.subr.mxu0 0.0
        %908 = vmatpush1.msra.mxu0 0.0
        %909 = vmatprep.subr.mxu0 0.0
        %910 = vmatpush1.msra.mxu0 0.0
        %911 = vmatprep.subr.mxu0 0.0
        %912 = vmatpush1.msra.mxu0 0.0
        %913 = vmatprep.subr.mxu0 0.0
        %914 = vmatpush1.msra.mxu0 0.0
        %915 = vmatprep.subr.mxu0 0.0
        %916 = vmatpush1.msra.mxu0 0.0
        %917 = vmatprep.subr.mxu0 0.0
        %918 = vmatpush1.msra.mxu0 0.0
        %919 = vmatprep.subr.mxu0 0.0
        %920 = vmatpush1.msra.mxu0 0.0
        %921 = vmatprep.subr.mxu0 0.0
        %v922 = vand.u32 %v484, 4294901760
        %v923 = vsub.f32 %v484, %v922
        %v924 = vand.u32 %v923, 4294901760
        %925 = vmatpush1.msra.mxu0 %v924
        %926 = vmatprep.subr.mxu0 0.0
        %927 = vmatpush2.msra.mxu0 0.0
        %928 = vmatprep.subr.mxu0 0.0
        %929 = vmatpush2.msra.mxu0 0.0
        %930 = vmatprep.subr.mxu0 0.0
        %931 = vmatpush2.msra.mxu0 0.0
        %932 = vmatprep.subr.mxu0 0.0
        %933 = vmatpush2.msra.mxu0 0.0
        %934 = vmatprep.subr.mxu0 0.0
        %935 = vmatpush2.msra.mxu0 0.0
        %936 = vmatprep.subr.mxu0 0.0
        %937 = vmatpush2.msra.mxu0 0.0
        %938 = vmatprep.subr.mxu0 0.0
        %939 = vmatpush2.msra.mxu0 0.0
        %940 = vmatprep.subr.mxu0 0.0
        %941 = vmatpush2.msra.mxu0 0.0
        %942 = vmatprep.subr.mxu0 0.0
        %943 = vmatpush2.msra.mxu0 0.0
        %944 = vmatprep.subr.mxu0 0.0
        %945 = vmatpush2.msra.mxu0 0.0
        %946 = vmatprep.subr.mxu0 0.0
        %947 = vmatpush2.msra.mxu0 0.0
        %948 = vmatprep.subr.mxu0 0.0
        %949 = vmatpush2.msra.mxu0 0.0
        %950 = vmatprep.subr.mxu0 0.0
        %951 = vmatpush2.msra.mxu0 0.0
        %952 = vmatprep.subr.mxu0 0.0
        %953 = vmatpush2.msra.mxu0 0.0
        %954 = vmatprep.subr.mxu0 0.0
        %955 = vmatpush2.msra.mxu0 0.0
        %956 = vmatprep.subr.mxu0 0.0
        %957 = vmatpush2.msra.mxu0 0.0
        %958 = vmatprep.mubr.f32.mxu0 0.0
        %v959 = vand.u32 %v487, 4294901760
        %960 = vmatmul.mubr.f32.gmra.mxu0 %v959
        %v961 = vpop.f32.mrf.mxu0
        %v962 = vadd.f32 %v864, %v961
        %v963 = vpop.f32.mrf.mxu0
        %964 = vmatprep.mubr.f32.mxu0 0.0
        %v965 = vand.u32 %v490, 4294901760
        %966 = vmatmul.mubr.f32.gmra.mxu0 %v965
        %v967 = vpop.f32.mrf.mxu0
        %v968 = vadd.f32 %v872, %v967
        %v969 = vpop.f32.mrf.mxu0
        %970 = vmatprep.mubr.f32.mxu0 0.0
        %v971 = vand.u32 %v493, 4294901760
        %972 = vmatmul.mubr.f32.gmra.mxu0 %v971
        %v973 = vpop.f32.mrf.mxu0
        %v974 = vadd.f32 %v880, %v973
        %v975 = vpop.f32.mrf.mxu0
        %976 = vmatprep.mubr.f32.mxu0 0.0
        %v977 = vand.u32 %v496, 4294901760
        %978 = vmatmul.mubr.f32.gmra.mxu0 %v977
        %v979 = vpop.f32.mrf.mxu0
        %v980 = vadd.f32 %v888, %v979
        %v981 = vpop.f32.mrf.mxu0
        %982 = vdwg.mxu0
        %983 = vmatprep.subr.mxu0 0.0
        %984 = vmatpush1.msra.mxu0 0.0
        %985 = vmatprep.subr.mxu0 0.0
        %986 = vmatpush1.msra.mxu0 0.0
        %987 = vmatprep.subr.mxu0 0.0
        %988 = vmatpush1.msra.mxu0 0.0
        %989 = vmatprep.subr.mxu0 0.0
        %990 = vmatpush1.msra.mxu0 0.0
        %991 = vmatprep.subr.mxu0 0.0
        %992 = vmatpush1.msra.mxu0 0.0
        %993 = vmatprep.subr.mxu0 0.0
        %994 = vmatpush1.msra.mxu0 0.0
        %995 = vmatprep.subr.mxu0 0.0
        %996 = vmatpush1.msra.mxu0 0.0
        %997 = vmatprep.subr.mxu0 0.0
        %998 = vmatpush1.msra.mxu0 0.0
        %999 = vmatprep.subr.mxu0 0.0
        %1000 = vmatpush1.msra.mxu0 0.0
        %1001 = vmatprep.subr.mxu0 0.0
        %1002 = vmatpush1.msra.mxu0 0.0
        %1003 = vmatprep.subr.mxu0 0.0
        %1004 = vmatpush1.msra.mxu0 0.0
        %1005 = vmatprep.subr.mxu0 0.0
        %1006 = vmatpush1.msra.mxu0 0.0
        %1007 = vmatprep.subr.mxu0 0.0
        %1008 = vmatpush1.msra.mxu0 0.0
        %1009 = vmatprep.subr.mxu0 0.0
        %1010 = vmatpush1.msra.mxu0 0.0
        %1011 = vmatprep.subr.mxu0 0.0
        %1012 = vmatpush1.msra.mxu0 0.0
        %1013 = vmatprep.subr.mxu0 0.0
        %v1014 = vand.u32 %v484, 4294901760
        %1015 = vmatpush1.msra.mxu0 %v1014
        %1016 = vmatprep.subr.mxu0 0.0
        %1017 = vmatpush2.msra.mxu0 0.0
        %1018 = vmatprep.subr.mxu0 0.0
        %1019 = vmatpush2.msra.mxu0 0.0
        %1020 = vmatprep.subr.mxu0 0.0
        %1021 = vmatpush2.msra.mxu0 0.0
        %1022 = vmatprep.subr.mxu0 0.0
        %1023 = vmatpush2.msra.mxu0 0.0
        %1024 = vmatprep.subr.mxu0 0.0
        %1025 = vmatpush2.msra.mxu0 0.0
        %1026 = vmatprep.subr.mxu0 0.0
        %1027 = vmatpush2.msra.mxu0 0.0
        %1028 = vmatprep.subr.mxu0 0.0
        %1029 = vmatpush2.msra.mxu0 0.0
        %1030 = vmatprep.subr.mxu0 0.0
        %1031 = vmatpush2.msra.mxu0 0.0
        %1032 = vmatprep.subr.mxu0 0.0
        %1033 = vmatpush2.msra.mxu0 0.0
        %1034 = vmatprep.subr.mxu0 0.0
        %1035 = vmatpush2.msra.mxu0 0.0
        %1036 = vmatprep.subr.mxu0 0.0
        %1037 = vmatpush2.msra.mxu0 0.0
        %1038 = vmatprep.subr.mxu0 0.0
        %1039 = vmatpush2.msra.mxu0 0.0
        %1040 = vmatprep.subr.mxu0 0.0
        %1041 = vmatpush2.msra.mxu0 0.0
        %1042 = vmatprep.subr.mxu0 0.0
        %1043 = vmatpush2.msra.mxu0 0.0
        %1044 = vmatprep.subr.mxu0 0.0
        %1045 = vmatpush2.msra.mxu0 0.0
        %1046 = vmatprep.subr.mxu0 0.0
        %1047 = vmatpush2.msra.mxu0 0.0
        %1048 = vmatprep.mubr.f32.mxu0 0.0
        %v1049 = vand.u32 %v487, 4294901760
        %1050 = vmatmul.mubr.f32.gmra.mxu0 %v1049
        %v1051 = vpop.f32.mrf.mxu0
        %v1052 = vadd.f32 %v962, %v1051
        %v1053 = vpop.f32.mrf.mxu0
        %1054 = vmatprep.mubr.f32.mxu0 0.0
        %v1055 = vand.u32 %v490, 4294901760
        %1056 = vmatmul.mubr.f32.gmra.mxu0 %v1055
        %v1057 = vpop.f32.mrf.mxu0
        %v1058 = vadd.f32 %v968, %v1057
        %v1059 = vpop.f32.mrf.mxu0
        %1060 = vmatprep.mubr.f32.mxu0 0.0
        %v1061 = vand.u32 %v493, 4294901760
        %1062 = vmatmul.mubr.f32.gmra.mxu0 %v1061
        %v1063 = vpop.f32.mrf.mxu0
        %v1064 = vadd.f32 %v974, %v1063
        %v1065 = vpop.f32.mrf.mxu0
        %1066 = vmatprep.mubr.f32.mxu0 0.0
        %v1067 = vand.u32 %v496, 4294901760
        %1068 = vmatmul.mubr.f32.gmra.mxu0 %v1067
        %v1069 = vpop.f32.mrf.mxu0
        %v1070 = vadd.f32 %v980, %v1069
        %v1071 = vpop.f32.mrf.mxu0
        %1072 = vdwg.mxu0
        %v1074 = vsel %vm485, %v459, 0
        %v1077 = vsel %vm485, %v460, 0
        %v1080 = vsel %vm485, %v461, 0
        %v1083 = vsel %vm485, %v462, 0
        %1085 = vmatprep.subr.mxu0 0.0
        %1086 = vmatpush1.msra.mxu0 0.0
        %1087 = vmatprep.subr.mxu0 0.0
        %1088 = vmatpush1.msra.mxu0 0.0
        %1089 = vmatprep.subr.mxu0 0.0
        %1090 = vmatpush1.msra.mxu0 0.0
        %1091 = vmatprep.subr.mxu0 0.0
        %1092 = vmatpush1.msra.mxu0 0.0
        %1093 = vmatprep.subr.mxu0 0.0
        %1094 = vmatpush1.msra.mxu0 0.0
        %1095 = vmatprep.subr.mxu0 0.0
        %1096 = vmatpush1.msra.mxu0 0.0
        %1097 = vmatprep.subr.mxu0 0.0
        %1098 = vmatpush1.msra.mxu0 0.0
        %1099 = vmatprep.subr.mxu0 0.0
        %1100 = vmatpush1.msra.mxu0 0.0
        %1101 = vmatprep.subr.mxu0 0.0
        %1102 = vmatpush1.msra.mxu0 0.0
        %1103 = vmatprep.subr.mxu0 0.0
        %1104 = vmatpush1.msra.mxu0 0.0
        %1105 = vmatprep.subr.mxu0 0.0
        %1106 = vmatpush1.msra.mxu0 0.0
        %1107 = vmatprep.subr.mxu0 0.0
        %1108 = vmatpush1.msra.mxu0 0.0
        %1109 = vmatprep.subr.mxu0 0.0
        %1110 = vmatpush1.msra.mxu0 0.0
        %1111 = vmatprep.subr.mxu0 0.0
        %1112 = vmatpush1.msra.mxu0 0.0
        %1113 = vmatprep.subr.mxu0 0.0
        %1114 = vmatpush1.msra.mxu0 0.0
        %1115 = vmatprep.subr.mxu0 0.0
        %v1116 = vand.u32 %v484, 4294901760
        %1117 = vmatpush1.msra.mxu0 %v1116
        %1118 = vmatprep.subr.mxu0 0.0
        %1119 = vmatpush2.msra.mxu0 0.0
        %1120 = vmatprep.subr.mxu0 0.0
        %1121 = vmatpush2.msra.mxu0 0.0
        %1122 = vmatprep.subr.mxu0 0.0
        %1123 = vmatpush2.msra.mxu0 0.0
        %1124 = vmatprep.subr.mxu0 0.0
        %1125 = vmatpush2.msra.mxu0 0.0
        %1126 = vmatprep.subr.mxu0 0.0
        %1127 = vmatpush2.msra.mxu0 0.0
        %1128 = vmatprep.subr.mxu0 0.0
        %1129 = vmatpush2.msra.mxu0 0.0
        %1130 = vmatprep.subr.mxu0 0.0
        %1131 = vmatpush2.msra.mxu0 0.0
        %1132 = vmatprep.subr.mxu0 0.0
        %1133 = vmatpush2.msra.mxu0 0.0
        %1134 = vmatprep.subr.mxu0 0.0
        %1135 = vmatpush2.msra.mxu0 0.0
        %1136 = vmatprep.subr.mxu0 0.0
        %1137 = vmatpush2.msra.mxu0 0.0
        %1138 = vmatprep.subr.mxu0 0.0
        %1139 = vmatpush2.msra.mxu0 0.0
        %1140 = vmatprep.subr.mxu0 0.0
        %1141 = vmatpush2.msra.mxu0 0.0
        %1142 = vmatprep.subr.mxu0 0.0
        %1143 = vmatpush2.msra.mxu0 0.0
        %1144 = vmatprep.subr.mxu0 0.0
        %1145 = vmatpush2.msra.mxu0 0.0
        %1146 = vmatprep.subr.mxu0 0.0
        %1147 = vmatpush2.msra.mxu0 0.0
        %1148 = vmatprep.subr.mxu0 0.0
        %1149 = vmatpush2.msra.mxu0 0.0
        %1150 = vmatprep.mubr.f32.mxu0 0.0
        %v1151 = vand.u32 %v1074, 4294901760
        %v1152 = vsub.f32 %v1074, %v1151
        %v1153 = vand.u32 %v1152, 4294901760
        %v1154 = vsub.f32 %v1152, %v1153
        %v1155 = vand.u32 %v1154, 4294901760
        %1156 = vmatmul.mubr.f32.gmra.mxu0 %v1155
        %v1157 = vpop.f32.mrf.mxu0
        %v1158 = vadd.f32 0.0, %v1157
        %v1159 = vpop.f32.mrf.mxu0
        %1160 = vmatprep.mubr.f32.mxu0 0.0
        %v1161 = vand.u32 %v1077, 4294901760
        %v1162 = vsub.f32 %v1077, %v1161
        %v1163 = vand.u32 %v1162, 4294901760
        %v1164 = vsub.f32 %v1162, %v1163
        %v1165 = vand.u32 %v1164, 4294901760
        %1166 = vmatmul.mubr.f32.gmra.mxu0 %v1165
        %v1167 = vpop.f32.mrf.mxu0
        %v1168 = vadd.f32 0.0, %v1167
        %v1169 = vpop.f32.mrf.mxu0
        %1170 = vmatprep.mubr.f32.mxu0 0.0
        %v1171 = vand.u32 %v1080, 4294901760
        %v1172 = vsub.f32 %v1080, %v1171
        %v1173 = vand.u32 %v1172, 4294901760
        %v1174 = vsub.f32 %v1172, %v1173
        %v1175 = vand.u32 %v1174, 4294901760
        %1176 = vmatmul.mubr.f32.gmra.mxu0 %v1175
        %v1177 = vpop.f32.mrf.mxu0
        %v1178 = vadd.f32 0.0, %v1177
        %v1179 = vpop.f32.mrf.mxu0
        %1180 = vmatprep.mubr.f32.mxu0 0.0
        %v1181 = vand.u32 %v1083, 4294901760
        %v1182 = vsub.f32 %v1083, %v1181
        %v1183 = vand.u32 %v1182, 4294901760
        %v1184 = vsub.f32 %v1182, %v1183
        %v1185 = vand.u32 %v1184, 4294901760
        %1186 = vmatmul.mubr.f32.gmra.mxu0 %v1185
        %v1187 = vpop.f32.mrf.mxu0
        %v1188 = vadd.f32 0.0, %v1187
        %v1189 = vpop.f32.mrf.mxu0
        %1190 = vdwg.mxu0
        %1191 = vmatprep.subr.mxu0 0.0
        %1192 = vmatpush1.msra.mxu0 0.0
        %1193 = vmatprep.subr.mxu0 0.0
        %1194 = vmatpush1.msra.mxu0 0.0
        %1195 = vmatprep.subr.mxu0 0.0
        %1196 = vmatpush1.msra.mxu0 0.0
        %1197 = vmatprep.subr.mxu0 0.0
        %1198 = vmatpush1.msra.mxu0 0.0
        %1199 = vmatprep.subr.mxu0 0.0
        %1200 = vmatpush1.msra.mxu0 0.0
        %1201 = vmatprep.subr.mxu0 0.0
        %1202 = vmatpush1.msra.mxu0 0.0
        %1203 = vmatprep.subr.mxu0 0.0
        %1204 = vmatpush1.msra.mxu0 0.0
        %1205 = vmatprep.subr.mxu0 0.0
        %1206 = vmatpush1.msra.mxu0 0.0
        %1207 = vmatprep.subr.mxu0 0.0
        %1208 = vmatpush1.msra.mxu0 0.0
        %1209 = vmatprep.subr.mxu0 0.0
        %1210 = vmatpush1.msra.mxu0 0.0
        %1211 = vmatprep.subr.mxu0 0.0
        %1212 = vmatpush1.msra.mxu0 0.0
        %1213 = vmatprep.subr.mxu0 0.0
        %1214 = vmatpush1.msra.mxu0 0.0
        %1215 = vmatprep.subr.mxu0 0.0
        %1216 = vmatpush1.msra.mxu0 0.0
        %1217 = vmatprep.subr.mxu0 0.0
        %1218 = vmatpush1.msra.mxu0 0.0
        %1219 = vmatprep.subr.mxu0 0.0
        %1220 = vmatpush1.msra.mxu0 0.0
        %1221 = vmatprep.subr.mxu0 0.0
        %v1222 = vand.u32 %v484, 4294901760
        %v1223 = vsub.f32 %v484, %v1222
        %v1224 = vand.u32 %v1223, 4294901760
        %v1225 = vsub.f32 %v1223, %v1224
        %v1226 = vand.u32 %v1225, 4294901760
        %1227 = vmatpush1.msra.mxu0 %v1226
        %1228 = vmatprep.subr.mxu0 0.0
        %1229 = vmatpush2.msra.mxu0 0.0
        %1230 = vmatprep.subr.mxu0 0.0
        %1231 = vmatpush2.msra.mxu0 0.0
        %1232 = vmatprep.subr.mxu0 0.0
        %1233 = vmatpush2.msra.mxu0 0.0
        %1234 = vmatprep.subr.mxu0 0.0
        %1235 = vmatpush2.msra.mxu0 0.0
        %1236 = vmatprep.subr.mxu0 0.0
        %1237 = vmatpush2.msra.mxu0 0.0
        %1238 = vmatprep.subr.mxu0 0.0
        %1239 = vmatpush2.msra.mxu0 0.0
        %1240 = vmatprep.subr.mxu0 0.0
        %1241 = vmatpush2.msra.mxu0 0.0
        %1242 = vmatprep.subr.mxu0 0.0
        %1243 = vmatpush2.msra.mxu0 0.0
        %1244 = vmatprep.subr.mxu0 0.0
        %1245 = vmatpush2.msra.mxu0 0.0
        %1246 = vmatprep.subr.mxu0 0.0
        %1247 = vmatpush2.msra.mxu0 0.0
        %1248 = vmatprep.subr.mxu0 0.0
        %1249 = vmatpush2.msra.mxu0 0.0
        %1250 = vmatprep.subr.mxu0 0.0
        %1251 = vmatpush2.msra.mxu0 0.0
        %1252 = vmatprep.subr.mxu0 0.0
        %1253 = vmatpush2.msra.mxu0 0.0
        %1254 = vmatprep.subr.mxu0 0.0
        %1255 = vmatpush2.msra.mxu0 0.0
        %1256 = vmatprep.subr.mxu0 0.0
        %1257 = vmatpush2.msra.mxu0 0.0
        %1258 = vmatprep.subr.mxu0 0.0
        %1259 = vmatpush2.msra.mxu0 0.0
        %1260 = vmatprep.mubr.f32.mxu0 0.0
        %v1261 = vand.u32 %v1074, 4294901760
        %1262 = vmatmul.mubr.f32.gmra.mxu0 %v1261
        %v1263 = vpop.f32.mrf.mxu0
        %v1264 = vadd.f32 %v1158, %v1263
        %v1265 = vpop.f32.mrf.mxu0
        %1266 = vmatprep.mubr.f32.mxu0 0.0
        %v1267 = vand.u32 %v1077, 4294901760
        %1268 = vmatmul.mubr.f32.gmra.mxu0 %v1267
        %v1269 = vpop.f32.mrf.mxu0
        %v1270 = vadd.f32 %v1168, %v1269
        %v1271 = vpop.f32.mrf.mxu0
        %1272 = vmatprep.mubr.f32.mxu0 0.0
        %v1273 = vand.u32 %v1080, 4294901760
        %1274 = vmatmul.mubr.f32.gmra.mxu0 %v1273
        %v1275 = vpop.f32.mrf.mxu0
        %v1276 = vadd.f32 %v1178, %v1275
        %v1277 = vpop.f32.mrf.mxu0
        %1278 = vmatprep.mubr.f32.mxu0 0.0
        %v1279 = vand.u32 %v1083, 4294901760
        %1280 = vmatmul.mubr.f32.gmra.mxu0 %v1279
        %v1281 = vpop.f32.mrf.mxu0
        %v1282 = vadd.f32 %v1188, %v1281
        %v1283 = vpop.f32.mrf.mxu0
        %1284 = vdwg.mxu0
        %1285 = vmatprep.subr.mxu0 0.0
        %1286 = vmatpush1.msra.mxu0 0.0
        %1287 = vmatprep.subr.mxu0 0.0
        %1288 = vmatpush1.msra.mxu0 0.0
        %1289 = vmatprep.subr.mxu0 0.0
        %1290 = vmatpush1.msra.mxu0 0.0
        %1291 = vmatprep.subr.mxu0 0.0
        %1292 = vmatpush1.msra.mxu0 0.0
        %1293 = vmatprep.subr.mxu0 0.0
        %1294 = vmatpush1.msra.mxu0 0.0
        %1295 = vmatprep.subr.mxu0 0.0
        %1296 = vmatpush1.msra.mxu0 0.0
        %1297 = vmatprep.subr.mxu0 0.0
        %1298 = vmatpush1.msra.mxu0 0.0
        %1299 = vmatprep.subr.mxu0 0.0
        %1300 = vmatpush1.msra.mxu0 0.0
        %1301 = vmatprep.subr.mxu0 0.0
        %1302 = vmatpush1.msra.mxu0 0.0
        %1303 = vmatprep.subr.mxu0 0.0
        %1304 = vmatpush1.msra.mxu0 0.0
        %1305 = vmatprep.subr.mxu0 0.0
        %1306 = vmatpush1.msra.mxu0 0.0
        %1307 = vmatprep.subr.mxu0 0.0
        %1308 = vmatpush1.msra.mxu0 0.0
        %1309 = vmatprep.subr.mxu0 0.0
        %1310 = vmatpush1.msra.mxu0 0.0
        %1311 = vmatprep.subr.mxu0 0.0
        %1312 = vmatpush1.msra.mxu0 0.0
        %1313 = vmatprep.subr.mxu0 0.0
        %1314 = vmatpush1.msra.mxu0 0.0
        %1315 = vmatprep.subr.mxu0 0.0
        %v1316 = vand.u32 %v484, 4294901760
        %v1317 = vsub.f32 %v484, %v1316
        %1318 = vmatpush1.msra.mxu0 %v1317
        %1319 = vmatprep.subr.mxu0 0.0
        %1320 = vmatpush2.msra.mxu0 0.0
        %1321 = vmatprep.subr.mxu0 0.0
        %1322 = vmatpush2.msra.mxu0 0.0
        %1323 = vmatprep.subr.mxu0 0.0
        %1324 = vmatpush2.msra.mxu0 0.0
        %1325 = vmatprep.subr.mxu0 0.0
        %1326 = vmatpush2.msra.mxu0 0.0
        %1327 = vmatprep.subr.mxu0 0.0
        %1328 = vmatpush2.msra.mxu0 0.0
        %1329 = vmatprep.subr.mxu0 0.0
        %1330 = vmatpush2.msra.mxu0 0.0
        %1331 = vmatprep.subr.mxu0 0.0
        %1332 = vmatpush2.msra.mxu0 0.0
        %1333 = vmatprep.subr.mxu0 0.0
        %1334 = vmatpush2.msra.mxu0 0.0
        %1335 = vmatprep.subr.mxu0 0.0
        %1336 = vmatpush2.msra.mxu0 0.0
        %1337 = vmatprep.subr.mxu0 0.0
        %1338 = vmatpush2.msra.mxu0 0.0
        %1339 = vmatprep.subr.mxu0 0.0
        %1340 = vmatpush2.msra.mxu0 0.0
        %1341 = vmatprep.subr.mxu0 0.0
        %1342 = vmatpush2.msra.mxu0 0.0
        %1343 = vmatprep.subr.mxu0 0.0
        %1344 = vmatpush2.msra.mxu0 0.0
        %1345 = vmatprep.subr.mxu0 0.0
        %1346 = vmatpush2.msra.mxu0 0.0
        %1347 = vmatprep.subr.mxu0 0.0
        %1348 = vmatpush2.msra.mxu0 0.0
        %1349 = vmatprep.subr.mxu0 0.0
        %1350 = vmatpush2.msra.mxu0 0.0
        %1351 = vmatprep.mubr.f32.mxu0 0.0
        %v1352 = vand.u32 %v1074, 4294901760
        %v1353 = vsub.f32 %v1074, %v1352
        %1354 = vmatmul.mubr.f32.gmra.mxu0 %v1353
        %v1355 = vpop.f32.mrf.mxu0
        %v1356 = vadd.f32 %v1264, %v1355
        %v1357 = vpop.f32.mrf.mxu0
        %1358 = vmatprep.mubr.f32.mxu0 0.0
        %v1359 = vand.u32 %v1077, 4294901760
        %v1360 = vsub.f32 %v1077, %v1359
        %1361 = vmatmul.mubr.f32.gmra.mxu0 %v1360
        %v1362 = vpop.f32.mrf.mxu0
        %v1363 = vadd.f32 %v1270, %v1362
        %v1364 = vpop.f32.mrf.mxu0
        %1365 = vmatprep.mubr.f32.mxu0 0.0
        %v1366 = vand.u32 %v1080, 4294901760
        %v1367 = vsub.f32 %v1080, %v1366
        %1368 = vmatmul.mubr.f32.gmra.mxu0 %v1367
        %v1369 = vpop.f32.mrf.mxu0
        %v1370 = vadd.f32 %v1276, %v1369
        %v1371 = vpop.f32.mrf.mxu0
        %1372 = vmatprep.mubr.f32.mxu0 0.0
        %v1373 = vand.u32 %v1083, 4294901760
        %v1374 = vsub.f32 %v1083, %v1373
        %1375 = vmatmul.mubr.f32.gmra.mxu0 %v1374
        %v1376 = vpop.f32.mrf.mxu0
        %v1377 = vadd.f32 %v1282, %v1376
        %v1378 = vpop.f32.mrf.mxu0
        %1379 = vdwg.mxu0
        %1380 = vmatprep.subr.mxu0 0.0
        %1381 = vmatpush1.msra.mxu0 0.0
        %1382 = vmatprep.subr.mxu0 0.0
        %1383 = vmatpush1.msra.mxu0 0.0
        %1384 = vmatprep.subr.mxu0 0.0
        %1385 = vmatpush1.msra.mxu0 0.0
        %1386 = vmatprep.subr.mxu0 0.0
        %1387 = vmatpush1.msra.mxu0 0.0
        %1388 = vmatprep.subr.mxu0 0.0
        %1389 = vmatpush1.msra.mxu0 0.0
        %1390 = vmatprep.subr.mxu0 0.0
        %1391 = vmatpush1.msra.mxu0 0.0
        %1392 = vmatprep.subr.mxu0 0.0
        %1393 = vmatpush1.msra.mxu0 0.0
        %1394 = vmatprep.subr.mxu0 0.0
        %1395 = vmatpush1.msra.mxu0 0.0
        %1396 = vmatprep.subr.mxu0 0.0
        %1397 = vmatpush1.msra.mxu0 0.0
        %1398 = vmatprep.subr.mxu0 0.0
        %1399 = vmatpush1.msra.mxu0 0.0
        %1400 = vmatprep.subr.mxu0 0.0
        %1401 = vmatpush1.msra.mxu0 0.0
        %1402 = vmatprep.subr.mxu0 0.0
        %1403 = vmatpush1.msra.mxu0 0.0
        %1404 = vmatprep.subr.mxu0 0.0
        %1405 = vmatpush1.msra.mxu0 0.0
        %1406 = vmatprep.subr.mxu0 0.0
        %1407 = vmatpush1.msra.mxu0 0.0
        %1408 = vmatprep.subr.mxu0 0.0
        %1409 = vmatpush1.msra.mxu0 0.0
        %1410 = vmatprep.subr.mxu0 0.0
        %v1411 = vand.u32 %v484, 4294901760
        %1412 = vmatpush1.msra.mxu0 %v1411
        %1413 = vmatprep.subr.mxu0 0.0
        %1414 = vmatpush2.msra.mxu0 0.0
        %1415 = vmatprep.subr.mxu0 0.0
        %1416 = vmatpush2.msra.mxu0 0.0
        %1417 = vmatprep.subr.mxu0 0.0
        %1418 = vmatpush2.msra.mxu0 0.0
        %1419 = vmatprep.subr.mxu0 0.0
        %1420 = vmatpush2.msra.mxu0 0.0
        %1421 = vmatprep.subr.mxu0 0.0
        %1422 = vmatpush2.msra.mxu0 0.0
        %1423 = vmatprep.subr.mxu0 0.0
        %1424 = vmatpush2.msra.mxu0 0.0
        %1425 = vmatprep.subr.mxu0 0.0
        %1426 = vmatpush2.msra.mxu0 0.0
        %1427 = vmatprep.subr.mxu0 0.0
        %1428 = vmatpush2.msra.mxu0 0.0
        %1429 = vmatprep.subr.mxu0 0.0
        %1430 = vmatpush2.msra.mxu0 0.0
        %1431 = vmatprep.subr.mxu0 0.0
        %1432 = vmatpush2.msra.mxu0 0.0
        %1433 = vmatprep.subr.mxu0 0.0
        %1434 = vmatpush2.msra.mxu0 0.0
        %1435 = vmatprep.subr.mxu0 0.0
        %1436 = vmatpush2.msra.mxu0 0.0
        %1437 = vmatprep.subr.mxu0 0.0
        %1438 = vmatpush2.msra.mxu0 0.0
        %1439 = vmatprep.subr.mxu0 0.0
        %1440 = vmatpush2.msra.mxu0 0.0
        %1441 = vmatprep.subr.mxu0 0.0
        %1442 = vmatpush2.msra.mxu0 0.0
        %1443 = vmatprep.subr.mxu0 0.0
        %1444 = vmatpush2.msra.mxu0 0.0
        %1445 = vmatprep.mubr.f32.mxu0 0.0
        %v1446 = vand.u32 %v1074, 4294901760
        %v1447 = vsub.f32 %v1074, %v1446
        %v1448 = vand.u32 %v1447, 4294901760
        %1449 = vmatmul.mubr.f32.gmra.mxu0 %v1448
        %v1450 = vpop.f32.mrf.mxu0
        %v1451 = vadd.f32 %v1356, %v1450
        %v1452 = vpop.f32.mrf.mxu0
        %1453 = vmatprep.mubr.f32.mxu0 0.0
        %v1454 = vand.u32 %v1077, 4294901760
        %v1455 = vsub.f32 %v1077, %v1454
        %v1456 = vand.u32 %v1455, 4294901760
        %1457 = vmatmul.mubr.f32.gmra.mxu0 %v1456
        %v1458 = vpop.f32.mrf.mxu0
        %v1459 = vadd.f32 %v1363, %v1458
        %v1460 = vpop.f32.mrf.mxu0
        %1461 = vmatprep.mubr.f32.mxu0 0.0
        %v1462 = vand.u32 %v1080, 4294901760
        %v1463 = vsub.f32 %v1080, %v1462
        %v1464 = vand.u32 %v1463, 4294901760
        %1465 = vmatmul.mubr.f32.gmra.mxu0 %v1464
        %v1466 = vpop.f32.mrf.mxu0
        %v1467 = vadd.f32 %v1370, %v1466
        %v1468 = vpop.f32.mrf.mxu0
        %1469 = vmatprep.mubr.f32.mxu0 0.0
        %v1470 = vand.u32 %v1083, 4294901760
        %v1471 = vsub.f32 %v1083, %v1470
        %v1472 = vand.u32 %v1471, 4294901760
        %1473 = vmatmul.mubr.f32.gmra.mxu0 %v1472
        %v1474 = vpop.f32.mrf.mxu0
        %v1475 = vadd.f32 %v1377, %v1474
        %v1476 = vpop.f32.mrf.mxu0
        %1477 = vdwg.mxu0
        %1478 = vmatprep.subr.mxu0 0.0
        %1479 = vmatpush1.msra.mxu0 0.0
        %1480 = vmatprep.subr.mxu0 0.0
        %1481 = vmatpush1.msra.mxu0 0.0
        %1482 = vmatprep.subr.mxu0 0.0
        %1483 = vmatpush1.msra.mxu0 0.0
        %1484 = vmatprep.subr.mxu0 0.0
        %1485 = vmatpush1.msra.mxu0 0.0
        %1486 = vmatprep.subr.mxu0 0.0
        %1487 = vmatpush1.msra.mxu0 0.0
        %1488 = vmatprep.subr.mxu0 0.0
        %1489 = vmatpush1.msra.mxu0 0.0
        %1490 = vmatprep.subr.mxu0 0.0
        %1491 = vmatpush1.msra.mxu0 0.0
        %1492 = vmatprep.subr.mxu0 0.0
        %1493 = vmatpush1.msra.mxu0 0.0
        %1494 = vmatprep.subr.mxu0 0.0
        %1495 = vmatpush1.msra.mxu0 0.0
        %1496 = vmatprep.subr.mxu0 0.0
        %1497 = vmatpush1.msra.mxu0 0.0
        %1498 = vmatprep.subr.mxu0 0.0
        %1499 = vmatpush1.msra.mxu0 0.0
        %1500 = vmatprep.subr.mxu0 0.0
        %1501 = vmatpush1.msra.mxu0 0.0
        %1502 = vmatprep.subr.mxu0 0.0
        %1503 = vmatpush1.msra.mxu0 0.0
        %1504 = vmatprep.subr.mxu0 0.0
        %1505 = vmatpush1.msra.mxu0 0.0
        %1506 = vmatprep.subr.mxu0 0.0
        %1507 = vmatpush1.msra.mxu0 0.0
        %1508 = vmatprep.subr.mxu0 0.0
        %v1509 = vand.u32 %v484, 4294901760
        %v1510 = vsub.f32 %v484, %v1509
        %v1511 = vand.u32 %v1510, 4294901760
        %1512 = vmatpush1.msra.mxu0 %v1511
        %1513 = vmatprep.subr.mxu0 0.0
        %1514 = vmatpush2.msra.mxu0 0.0
        %1515 = vmatprep.subr.mxu0 0.0
        %1516 = vmatpush2.msra.mxu0 0.0
        %1517 = vmatprep.subr.mxu0 0.0
        %1518 = vmatpush2.msra.mxu0 0.0
        %1519 = vmatprep.subr.mxu0 0.0
        %1520 = vmatpush2.msra.mxu0 0.0
        %1521 = vmatprep.subr.mxu0 0.0
        %1522 = vmatpush2.msra.mxu0 0.0
        %1523 = vmatprep.subr.mxu0 0.0
        %1524 = vmatpush2.msra.mxu0 0.0
        %1525 = vmatprep.subr.mxu0 0.0
        %1526 = vmatpush2.msra.mxu0 0.0
        %1527 = vmatprep.subr.mxu0 0.0
        %1528 = vmatpush2.msra.mxu0 0.0
        %1529 = vmatprep.subr.mxu0 0.0
        %1530 = vmatpush2.msra.mxu0 0.0
        %1531 = vmatprep.subr.mxu0 0.0
        %1532 = vmatpush2.msra.mxu0 0.0
        %1533 = vmatprep.subr.mxu0 0.0
        %1534 = vmatpush2.msra.mxu0 0.0
        %1535 = vmatprep.subr.mxu0 0.0
        %1536 = vmatpush2.msra.mxu0 0.0
        %1537 = vmatprep.subr.mxu0 0.0
        %1538 = vmatpush2.msra.mxu0 0.0
        %1539 = vmatprep.subr.mxu0 0.0
        %1540 = vmatpush2.msra.mxu0 0.0
        %1541 = vmatprep.subr.mxu0 0.0
        %1542 = vmatpush2.msra.mxu0 0.0
        %1543 = vmatprep.subr.mxu0 0.0
        %1544 = vmatpush2.msra.mxu0 0.0
        %1545 = vmatprep.mubr.f32.mxu0 0.0
        %v1546 = vand.u32 %v1074, 4294901760
        %1547 = vmatmul.mubr.f32.gmra.mxu0 %v1546
        %v1548 = vpop.f32.mrf.mxu0
        %v1549 = vadd.f32 %v1451, %v1548
        %v1550 = vpop.f32.mrf.mxu0
        %1551 = vmatprep.mubr.f32.mxu0 0.0
        %v1552 = vand.u32 %v1077, 4294901760
        %1553 = vmatmul.mubr.f32.gmra.mxu0 %v1552
        %v1554 = vpop.f32.mrf.mxu0
        %v1555 = vadd.f32 %v1459, %v1554
        %v1556 = vpop.f32.mrf.mxu0
        %1557 = vmatprep.mubr.f32.mxu0 0.0
        %v1558 = vand.u32 %v1080, 4294901760
        %1559 = vmatmul.mubr.f32.gmra.mxu0 %v1558
        %v1560 = vpop.f32.mrf.mxu0
        %v1561 = vadd.f32 %v1467, %v1560
        %v1562 = vpop.f32.mrf.mxu0
        %1563 = vmatprep.mubr.f32.mxu0 0.0
        %v1564 = vand.u32 %v1083, 4294901760
        %1565 = vmatmul.mubr.f32.gmra.mxu0 %v1564
        %v1566 = vpop.f32.mrf.mxu0
        %v1567 = vadd.f32 %v1475, %v1566
        %v1568 = vpop.f32.mrf.mxu0
        %1569 = vdwg.mxu0
        %1570 = vmatprep.subr.mxu0 0.0
        %1571 = vmatpush1.msra.mxu0 0.0
        %1572 = vmatprep.subr.mxu0 0.0
        %1573 = vmatpush1.msra.mxu0 0.0
        %1574 = vmatprep.subr.mxu0 0.0
        %1575 = vmatpush1.msra.mxu0 0.0
        %1576 = vmatprep.subr.mxu0 0.0
        %1577 = vmatpush1.msra.mxu0 0.0
        %1578 = vmatprep.subr.mxu0 0.0
        %1579 = vmatpush1.msra.mxu0 0.0
        %1580 = vmatprep.subr.mxu0 0.0
        %1581 = vmatpush1.msra.mxu0 0.0
        %1582 = vmatprep.subr.mxu0 0.0
        %1583 = vmatpush1.msra.mxu0 0.0
        %1584 = vmatprep.subr.mxu0 0.0
        %1585 = vmatpush1.msra.mxu0 0.0
        %1586 = vmatprep.subr.mxu0 0.0
        %1587 = vmatpush1.msra.mxu0 0.0
        %1588 = vmatprep.subr.mxu0 0.0
        %1589 = vmatpush1.msra.mxu0 0.0
        %1590 = vmatprep.subr.mxu0 0.0
        %1591 = vmatpush1.msra.mxu0 0.0
        %1592 = vmatprep.subr.mxu0 0.0
        %1593 = vmatpush1.msra.mxu0 0.0
        %1594 = vmatprep.subr.mxu0 0.0
        %1595 = vmatpush1.msra.mxu0 0.0
        %1596 = vmatprep.subr.mxu0 0.0
        %1597 = vmatpush1.msra.mxu0 0.0
        %1598 = vmatprep.subr.mxu0 0.0
        %1599 = vmatpush1.msra.mxu0 0.0
        %1600 = vmatprep.subr.mxu0 0.0
        %v1601 = vand.u32 %v484, 4294901760
        %1602 = vmatpush1.msra.mxu0 %v1601
        %1603 = vmatprep.subr.mxu0 0.0
        %1604 = vmatpush2.msra.mxu0 0.0
        %1605 = vmatprep.subr.mxu0 0.0
        %1606 = vmatpush2.msra.mxu0 0.0
        %1607 = vmatprep.subr.mxu0 0.0
        %1608 = vmatpush2.msra.mxu0 0.0
        %1609 = vmatprep.subr.mxu0 0.0
        %1610 = vmatpush2.msra.mxu0 0.0
        %1611 = vmatprep.subr.mxu0 0.0
        %1612 = vmatpush2.msra.mxu0 0.0
        %1613 = vmatprep.subr.mxu0 0.0
        %1614 = vmatpush2.msra.mxu0 0.0
        %1615 = vmatprep.subr.mxu0 0.0
        %1616 = vmatpush2.msra.mxu0 0.0
        %1617 = vmatprep.subr.mxu0 0.0
        %1618 = vmatpush2.msra.mxu0 0.0
        %1619 = vmatprep.subr.mxu0 0.0
        %1620 = vmatpush2.msra.mxu0 0.0
        %1621 = vmatprep.subr.mxu0 0.0
        %1622 = vmatpush2.msra.mxu0 0.0
        %1623 = vmatprep.subr.mxu0 0.0
        %1624 = vmatpush2.msra.mxu0 0.0
        %1625 = vmatprep.subr.mxu0 0.0
        %1626 = vmatpush2.msra.mxu0 0.0
        %1627 = vmatprep.subr.mxu0 0.0
        %1628 = vmatpush2.msra.mxu0 0.0
        %1629 = vmatprep.subr.mxu0 0.0
        %1630 = vmatpush2.msra.mxu0 0.0
        %1631 = vmatprep.subr.mxu0 0.0
        %1632 = vmatpush2.msra.mxu0 0.0
        %1633 = vmatprep.subr.mxu0 0.0
        %1634 = vmatpush2.msra.mxu0 0.0
        %1635 = vmatprep.mubr.f32.mxu0 0.0
        %v1636 = vand.u32 %v1074, 4294901760
        %1637 = vmatmul.mubr.f32.gmra.mxu0 %v1636
        %v1638 = vpop.f32.mrf.mxu0
        %v1639 = vadd.f32 %v1549, %v1638
        %v1640 = vpop.f32.mrf.mxu0
        %1641 = vmatprep.mubr.f32.mxu0 0.0
        %v1642 = vand.u32 %v1077, 4294901760
        %1643 = vmatmul.mubr.f32.gmra.mxu0 %v1642
        %v1644 = vpop.f32.mrf.mxu0
        %v1645 = vadd.f32 %v1555, %v1644
        %v1646 = vpop.f32.mrf.mxu0
        %1647 = vmatprep.mubr.f32.mxu0 0.0
        %v1648 = vand.u32 %v1080, 4294901760
        %1649 = vmatmul.mubr.f32.gmra.mxu0 %v1648
        %v1650 = vpop.f32.mrf.mxu0
        %v1651 = vadd.f32 %v1561, %v1650
        %v1652 = vpop.f32.mrf.mxu0
        %1653 = vmatprep.mubr.f32.mxu0 0.0
        %v1654 = vand.u32 %v1083, 4294901760
        %1655 = vmatmul.mubr.f32.gmra.mxu0 %v1654
        %v1656 = vpop.f32.mrf.mxu0
        %v1657 = vadd.f32 %v1567, %v1656
        %v1658 = vpop.f32.mrf.mxu0
        %1659 = vdwg.mxu0
        %v1661 = vsel %vm485, %v467, 0
        %v1664 = vsel %vm485, %v468, 0
        %v1667 = vsel %vm485, %v469, 0
        %v1670 = vsel %vm485, %v470, 0
        %1672 = vmatprep.subr.mxu0 0.0
        %1673 = vmatpush1.msra.mxu0 0.0
        %1674 = vmatprep.subr.mxu0 0.0
        %1675 = vmatpush1.msra.mxu0 0.0
        %1676 = vmatprep.subr.mxu0 0.0
        %1677 = vmatpush1.msra.mxu0 0.0
        %1678 = vmatprep.subr.mxu0 0.0
        %1679 = vmatpush1.msra.mxu0 0.0
        %1680 = vmatprep.subr.mxu0 0.0
        %1681 = vmatpush1.msra.mxu0 0.0
        %1682 = vmatprep.subr.mxu0 0.0
        %1683 = vmatpush1.msra.mxu0 0.0
        %1684 = vmatprep.subr.mxu0 0.0
        %1685 = vmatpush1.msra.mxu0 0.0
        %1686 = vmatprep.subr.mxu0 0.0
        %1687 = vmatpush1.msra.mxu0 0.0
        %1688 = vmatprep.subr.mxu0 0.0
        %1689 = vmatpush1.msra.mxu0 0.0
        %1690 = vmatprep.subr.mxu0 0.0
        %1691 = vmatpush1.msra.mxu0 0.0
        %1692 = vmatprep.subr.mxu0 0.0
        %1693 = vmatpush1.msra.mxu0 0.0
        %1694 = vmatprep.subr.mxu0 0.0
        %1695 = vmatpush1.msra.mxu0 0.0
        %1696 = vmatprep.subr.mxu0 0.0
        %1697 = vmatpush1.msra.mxu0 0.0
        %1698 = vmatprep.subr.mxu0 0.0
        %1699 = vmatpush1.msra.mxu0 0.0
        %1700 = vmatprep.subr.mxu0 0.0
        %1701 = vmatpush1.msra.mxu0 0.0
        %1702 = vmatprep.subr.mxu0 0.0
        %v1703 = vand.u32 %v484, 4294901760
        %1704 = vmatpush1.msra.mxu0 %v1703
        %1705 = vmatprep.subr.mxu0 0.0
        %1706 = vmatpush2.msra.mxu0 0.0
        %1707 = vmatprep.subr.mxu0 0.0
        %1708 = vmatpush2.msra.mxu0 0.0
        %1709 = vmatprep.subr.mxu0 0.0
        %1710 = vmatpush2.msra.mxu0 0.0
        %1711 = vmatprep.subr.mxu0 0.0
        %1712 = vmatpush2.msra.mxu0 0.0
        %1713 = vmatprep.subr.mxu0 0.0
        %1714 = vmatpush2.msra.mxu0 0.0
        %1715 = vmatprep.subr.mxu0 0.0
        %1716 = vmatpush2.msra.mxu0 0.0
        %1717 = vmatprep.subr.mxu0 0.0
        %1718 = vmatpush2.msra.mxu0 0.0
        %1719 = vmatprep.subr.mxu0 0.0
        %1720 = vmatpush2.msra.mxu0 0.0
        %1721 = vmatprep.subr.mxu0 0.0
        %1722 = vmatpush2.msra.mxu0 0.0
        %1723 = vmatprep.subr.mxu0 0.0
        %1724 = vmatpush2.msra.mxu0 0.0
        %1725 = vmatprep.subr.mxu0 0.0
        %1726 = vmatpush2.msra.mxu0 0.0
        %1727 = vmatprep.subr.mxu0 0.0
        %1728 = vmatpush2.msra.mxu0 0.0
        %1729 = vmatprep.subr.mxu0 0.0
        %1730 = vmatpush2.msra.mxu0 0.0
        %1731 = vmatprep.subr.mxu0 0.0
        %1732 = vmatpush2.msra.mxu0 0.0
        %1733 = vmatprep.subr.mxu0 0.0
        %1734 = vmatpush2.msra.mxu0 0.0
        %1735 = vmatprep.subr.mxu0 0.0
        %1736 = vmatpush2.msra.mxu0 0.0
        %1737 = vmatprep.mubr.f32.mxu0 0.0
        %v1738 = vand.u32 %v1661, 4294901760
        %v1739 = vsub.f32 %v1661, %v1738
        %v1740 = vand.u32 %v1739, 4294901760
        %v1741 = vsub.f32 %v1739, %v1740
        %v1742 = vand.u32 %v1741, 4294901760
        %1743 = vmatmul.mubr.f32.gmra.mxu0 %v1742
        %v1744 = vpop.f32.mrf.mxu0
        %v1745 = vadd.f32 0.0, %v1744
        %v1746 = vpop.f32.mrf.mxu0
        %1747 = vmatprep.mubr.f32.mxu0 0.0
        %v1748 = vand.u32 %v1664, 4294901760
        %v1749 = vsub.f32 %v1664, %v1748
        %v1750 = vand.u32 %v1749, 4294901760
        %v1751 = vsub.f32 %v1749, %v1750
        %v1752 = vand.u32 %v1751, 4294901760
        %1753 = vmatmul.mubr.f32.gmra.mxu0 %v1752
        %v1754 = vpop.f32.mrf.mxu0
        %v1755 = vadd.f32 0.0, %v1754
        %v1756 = vpop.f32.mrf.mxu0
        %1757 = vmatprep.mubr.f32.mxu0 0.0
        %v1758 = vand.u32 %v1667, 4294901760
        %v1759 = vsub.f32 %v1667, %v1758
        %v1760 = vand.u32 %v1759, 4294901760
        %v1761 = vsub.f32 %v1759, %v1760
        %v1762 = vand.u32 %v1761, 4294901760
        %1763 = vmatmul.mubr.f32.gmra.mxu0 %v1762
        %v1764 = vpop.f32.mrf.mxu0
        %v1765 = vadd.f32 0.0, %v1764
        %v1766 = vpop.f32.mrf.mxu0
        %1767 = vmatprep.mubr.f32.mxu0 0.0
        %v1768 = vand.u32 %v1670, 4294901760
        %v1769 = vsub.f32 %v1670, %v1768
        %v1770 = vand.u32 %v1769, 4294901760
        %v1771 = vsub.f32 %v1769, %v1770
        %v1772 = vand.u32 %v1771, 4294901760
        %1773 = vmatmul.mubr.f32.gmra.mxu0 %v1772
        %v1774 = vpop.f32.mrf.mxu0
        %v1775 = vadd.f32 0.0, %v1774
        %v1776 = vpop.f32.mrf.mxu0
        %1777 = vdwg.mxu0
        %1778 = vmatprep.subr.mxu0 0.0
        %1779 = vmatpush1.msra.mxu0 0.0
        %1780 = vmatprep.subr.mxu0 0.0
        %1781 = vmatpush1.msra.mxu0 0.0
        %1782 = vmatprep.subr.mxu0 0.0
        %1783 = vmatpush1.msra.mxu0 0.0
        %1784 = vmatprep.subr.mxu0 0.0
        %1785 = vmatpush1.msra.mxu0 0.0
        %1786 = vmatprep.subr.mxu0 0.0
        %1787 = vmatpush1.msra.mxu0 0.0
        %1788 = vmatprep.subr.mxu0 0.0
        %1789 = vmatpush1.msra.mxu0 0.0
        %1790 = vmatprep.subr.mxu0 0.0
        %1791 = vmatpush1.msra.mxu0 0.0
        %1792 = vmatprep.subr.mxu0 0.0
        %1793 = vmatpush1.msra.mxu0 0.0
        %1794 = vmatprep.subr.mxu0 0.0
        %1795 = vmatpush1.msra.mxu0 0.0
        %1796 = vmatprep.subr.mxu0 0.0
        %1797 = vmatpush1.msra.mxu0 0.0
        %1798 = vmatprep.subr.mxu0 0.0
        %1799 = vmatpush1.msra.mxu0 0.0
        %1800 = vmatprep.subr.mxu0 0.0
        %1801 = vmatpush1.msra.mxu0 0.0
        %1802 = vmatprep.subr.mxu0 0.0
        %1803 = vmatpush1.msra.mxu0 0.0
        %1804 = vmatprep.subr.mxu0 0.0
        %1805 = vmatpush1.msra.mxu0 0.0
        %1806 = vmatprep.subr.mxu0 0.0
        %1807 = vmatpush1.msra.mxu0 0.0
        %1808 = vmatprep.subr.mxu0 0.0
        %v1809 = vand.u32 %v484, 4294901760
        %v1810 = vsub.f32 %v484, %v1809
        %v1811 = vand.u32 %v1810, 4294901760
        %v1812 = vsub.f32 %v1810, %v1811
        %v1813 = vand.u32 %v1812, 4294901760
        %1814 = vmatpush1.msra.mxu0 %v1813
        %1815 = vmatprep.subr.mxu0 0.0
        %1816 = vmatpush2.msra.mxu0 0.0
        %1817 = vmatprep.subr.mxu0 0.0
        %1818 = vmatpush2.msra.mxu0 0.0
        %1819 = vmatprep.subr.mxu0 0.0
        %1820 = vmatpush2.msra.mxu0 0.0
        %1821 = vmatprep.subr.mxu0 0.0
        %1822 = vmatpush2.msra.mxu0 0.0
        %1823 = vmatprep.subr.mxu0 0.0
        %1824 = vmatpush2.msra.mxu0 0.0
        %1825 = vmatprep.subr.mxu0 0.0
        %1826 = vmatpush2.msra.mxu0 0.0
        %1827 = vmatprep.subr.mxu0 0.0
        %1828 = vmatpush2.msra.mxu0 0.0
        %1829 = vmatprep.subr.mxu0 0.0
        %1830 = vmatpush2.msra.mxu0 0.0
        %1831 = vmatprep.subr.mxu0 0.0
        %1832 = vmatpush2.msra.mxu0 0.0
        %1833 = vmatprep.subr.mxu0 0.0
        %1834 = vmatpush2.msra.mxu0 0.0
        %1835 = vmatprep.subr.mxu0 0.0
        %1836 = vmatpush2.msra.mxu0 0.0
        %1837 = vmatprep.subr.mxu0 0.0
        %1838 = vmatpush2.msra.mxu0 0.0
        %1839 = vmatprep.subr.mxu0 0.0
        %1840 = vmatpush2.msra.mxu0 0.0
        %1841 = vmatprep.subr.mxu0 0.0
        %1842 = vmatpush2.msra.mxu0 0.0
        %1843 = vmatprep.subr.mxu0 0.0
        %1844 = vmatpush2.msra.mxu0 0.0
        %1845 = vmatprep.subr.mxu0 0.0
        %1846 = vmatpush2.msra.mxu0 0.0
        %1847 = vmatprep.mubr.f32.mxu0 0.0
        %v1848 = vand.u32 %v1661, 4294901760
        %1849 = vmatmul.mubr.f32.gmra.mxu0 %v1848
        %v1850 = vpop.f32.mrf.mxu0
        %v1851 = vadd.f32 %v1745, %v1850
        %v1852 = vpop.f32.mrf.mxu0
        %1853 = vmatprep.mubr.f32.mxu0 0.0
        %v1854 = vand.u32 %v1664, 4294901760
        %1855 = vmatmul.mubr.f32.gmra.mxu0 %v1854
        %v1856 = vpop.f32.mrf.mxu0
        %v1857 = vadd.f32 %v1755, %v1856
        %v1858 = vpop.f32.mrf.mxu0
        %1859 = vmatprep.mubr.f32.mxu0 0.0
        %v1860 = vand.u32 %v1667, 4294901760
        %1861 = vmatmul.mubr.f32.gmra.mxu0 %v1860
        %v1862 = vpop.f32.mrf.mxu0
        %v1863 = vadd.f32 %v1765, %v1862
        %v1864 = vpop.f32.mrf.mxu0
        %1865 = vmatprep.mubr.f32.mxu0 0.0
        %v1866 = vand.u32 %v1670, 4294901760
        %1867 = vmatmul.mubr.f32.gmra.mxu0 %v1866
        %v1868 = vpop.f32.mrf.mxu0
        %v1869 = vadd.f32 %v1775, %v1868
        %v1870 = vpop.f32.mrf.mxu0
        %1871 = vdwg.mxu0
        %1872 = vmatprep.subr.mxu0 0.0
        %1873 = vmatpush1.msra.mxu0 0.0
        %1874 = vmatprep.subr.mxu0 0.0
        %1875 = vmatpush1.msra.mxu0 0.0
        %1876 = vmatprep.subr.mxu0 0.0
        %1877 = vmatpush1.msra.mxu0 0.0
        %1878 = vmatprep.subr.mxu0 0.0
        %1879 = vmatpush1.msra.mxu0 0.0
        %1880 = vmatprep.subr.mxu0 0.0
        %1881 = vmatpush1.msra.mxu0 0.0
        %1882 = vmatprep.subr.mxu0 0.0
        %1883 = vmatpush1.msra.mxu0 0.0
        %1884 = vmatprep.subr.mxu0 0.0
        %1885 = vmatpush1.msra.mxu0 0.0
        %1886 = vmatprep.subr.mxu0 0.0
        %1887 = vmatpush1.msra.mxu0 0.0
        %1888 = vmatprep.subr.mxu0 0.0
        %1889 = vmatpush1.msra.mxu0 0.0
        %1890 = vmatprep.subr.mxu0 0.0
        %1891 = vmatpush1.msra.mxu0 0.0
        %1892 = vmatprep.subr.mxu0 0.0
        %1893 = vmatpush1.msra.mxu0 0.0
        %1894 = vmatprep.subr.mxu0 0.0
        %1895 = vmatpush1.msra.mxu0 0.0
        %1896 = vmatprep.subr.mxu0 0.0
        %1897 = vmatpush1.msra.mxu0 0.0
        %1898 = vmatprep.subr.mxu0 0.0
        %1899 = vmatpush1.msra.mxu0 0.0
        %1900 = vmatprep.subr.mxu0 0.0
        %1901 = vmatpush1.msra.mxu0 0.0
        %1902 = vmatprep.subr.mxu0 0.0
        %v1903 = vand.u32 %v484, 4294901760
        %v1904 = vsub.f32 %v484, %v1903
        %1905 = vmatpush1.msra.mxu0 %v1904
        %1906 = vmatprep.subr.mxu0 0.0
        %1907 = vmatpush2.msra.mxu0 0.0
        %1908 = vmatprep.subr.mxu0 0.0
        %1909 = vmatpush2.msra.mxu0 0.0
        %1910 = vmatprep.subr.mxu0 0.0
        %1911 = vmatpush2.msra.mxu0 0.0
        %1912 = vmatprep.subr.mxu0 0.0
        %1913 = vmatpush2.msra.mxu0 0.0
        %1914 = vmatprep.subr.mxu0 0.0
        %1915 = vmatpush2.msra.mxu0 0.0
        %1916 = vmatprep.subr.mxu0 0.0
        %1917 = vmatpush2.msra.mxu0 0.0
        %1918 = vmatprep.subr.mxu0 0.0
        %1919 = vmatpush2.msra.mxu0 0.0
        %1920 = vmatprep.subr.mxu0 0.0
        %1921 = vmatpush2.msra.mxu0 0.0
        %1922 = vmatprep.subr.mxu0 0.0
        %1923 = vmatpush2.msra.mxu0 0.0
        %1924 = vmatprep.subr.mxu0 0.0
        %1925 = vmatpush2.msra.mxu0 0.0
        %1926 = vmatprep.subr.mxu0 0.0
        %1927 = vmatpush2.msra.mxu0 0.0
        %1928 = vmatprep.subr.mxu0 0.0
        %1929 = vmatpush2.msra.mxu0 0.0
        %1930 = vmatprep.subr.mxu0 0.0
        %1931 = vmatpush2.msra.mxu0 0.0
        %1932 = vmatprep.subr.mxu0 0.0
        %1933 = vmatpush2.msra.mxu0 0.0
        %1934 = vmatprep.subr.mxu0 0.0
        %1935 = vmatpush2.msra.mxu0 0.0
        %1936 = vmatprep.subr.mxu0 0.0
        %1937 = vmatpush2.msra.mxu0 0.0
        %1938 = vmatprep.mubr.f32.mxu0 0.0
        %v1939 = vand.u32 %v1661, 4294901760
        %v1940 = vsub.f32 %v1661, %v1939
        %1941 = vmatmul.mubr.f32.gmra.mxu0 %v1940
        %v1942 = vpop.f32.mrf.mxu0
        %v1943 = vadd.f32 %v1851, %v1942
        %v1944 = vpop.f32.mrf.mxu0
        %1945 = vmatprep.mubr.f32.mxu0 0.0
        %v1946 = vand.u32 %v1664, 4294901760
        %v1947 = vsub.f32 %v1664, %v1946
        %1948 = vmatmul.mubr.f32.gmra.mxu0 %v1947
        %v1949 = vpop.f32.mrf.mxu0
        %v1950 = vadd.f32 %v1857, %v1949
        %v1951 = vpop.f32.mrf.mxu0
        %1952 = vmatprep.mubr.f32.mxu0 0.0
        %v1953 = vand.u32 %v1667, 4294901760
        %v1954 = vsub.f32 %v1667, %v1953
        %1955 = vmatmul.mubr.f32.gmra.mxu0 %v1954
        %v1956 = vpop.f32.mrf.mxu0
        %v1957 = vadd.f32 %v1863, %v1956
        %v1958 = vpop.f32.mrf.mxu0
        %1959 = vmatprep.mubr.f32.mxu0 0.0
        %v1960 = vand.u32 %v1670, 4294901760
        %v1961 = vsub.f32 %v1670, %v1960
        %1962 = vmatmul.mubr.f32.gmra.mxu0 %v1961
        %v1963 = vpop.f32.mrf.mxu0
        %v1964 = vadd.f32 %v1869, %v1963
        %v1965 = vpop.f32.mrf.mxu0
        %1966 = vdwg.mxu0
        %1967 = vmatprep.subr.mxu0 0.0
        %1968 = vmatpush1.msra.mxu0 0.0
        %1969 = vmatprep.subr.mxu0 0.0
        %1970 = vmatpush1.msra.mxu0 0.0
        %1971 = vmatprep.subr.mxu0 0.0
        %1972 = vmatpush1.msra.mxu0 0.0
        %1973 = vmatprep.subr.mxu0 0.0
        %1974 = vmatpush1.msra.mxu0 0.0
        %1975 = vmatprep.subr.mxu0 0.0
        %1976 = vmatpush1.msra.mxu0 0.0
        %1977 = vmatprep.subr.mxu0 0.0
        %1978 = vmatpush1.msra.mxu0 0.0
        %1979 = vmatprep.subr.mxu0 0.0
        %1980 = vmatpush1.msra.mxu0 0.0
        %1981 = vmatprep.subr.mxu0 0.0
        %1982 = vmatpush1.msra.mxu0 0.0
        %1983 = vmatprep.subr.mxu0 0.0
        %1984 = vmatpush1.msra.mxu0 0.0
        %1985 = vmatprep.subr.mxu0 0.0
        %1986 = vmatpush1.msra.mxu0 0.0
        %1987 = vmatprep.subr.mxu0 0.0
        %1988 = vmatpush1.msra.mxu0 0.0
        %1989 = vmatprep.subr.mxu0 0.0
        %1990 = vmatpush1.msra.mxu0 0.0
        %1991 = vmatprep.subr.mxu0 0.0
        %1992 = vmatpush1.msra.mxu0 0.0
        %1993 = vmatprep.subr.mxu0 0.0
        %1994 = vmatpush1.msra.mxu0 0.0
        %1995 = vmatprep.subr.mxu0 0.0
        %1996 = vmatpush1.msra.mxu0 0.0
        %1997 = vmatprep.subr.mxu0 0.0
        %v1998 = vand.u32 %v484, 4294901760
        %1999 = vmatpush1.msra.mxu0 %v1998
        %2000 = vmatprep.subr.mxu0 0.0
        %2001 = vmatpush2.msra.mxu0 0.0
        %2002 = vmatprep.subr.mxu0 0.0
        %2003 = vmatpush2.msra.mxu0 0.0
        %2004 = vmatprep.subr.mxu0 0.0
        %2005 = vmatpush2.msra.mxu0 0.0
        %2006 = vmatprep.subr.mxu0 0.0
        %2007 = vmatpush2.msra.mxu0 0.0
        %2008 = vmatprep.subr.mxu0 0.0
        %2009 = vmatpush2.msra.mxu0 0.0
        %2010 = vmatprep.subr.mxu0 0.0
        %2011 = vmatpush2.msra.mxu0 0.0
        %2012 = vmatprep.subr.mxu0 0.0
        %2013 = vmatpush2.msra.mxu0 0.0
        %2014 = vmatprep.subr.mxu0 0.0
        %2015 = vmatpush2.msra.mxu0 0.0
        %2016 = vmatprep.subr.mxu0 0.0
        %2017 = vmatpush2.msra.mxu0 0.0
        %2018 = vmatprep.subr.mxu0 0.0
        %2019 = vmatpush2.msra.mxu0 0.0
        %2020 = vmatprep.subr.mxu0 0.0
        %2021 = vmatpush2.msra.mxu0 0.0
        %2022 = vmatprep.subr.mxu0 0.0
        %2023 = vmatpush2.msra.mxu0 0.0
        %2024 = vmatprep.subr.mxu0 0.0
        %2025 = vmatpush2.msra.mxu0 0.0
        %2026 = vmatprep.subr.mxu0 0.0
        %2027 = vmatpush2.msra.mxu0 0.0
        %2028 = vmatprep.subr.mxu0 0.0
        %2029 = vmatpush2.msra.mxu0 0.0
        %2030 = vmatprep.subr.mxu0 0.0
        %2031 = vmatpush2.msra.mxu0 0.0
        %2032 = vmatprep.mubr.f32.mxu0 0.0
        %v2033 = vand.u32 %v1661, 4294901760
        %v2034 = vsub.f32 %v1661, %v2033
        %v2035 = vand.u32 %v2034, 4294901760
        %2036 = vmatmul.mubr.f32.gmra.mxu0 %v2035
        %v2037 = vpop.f32.mrf.mxu0
        %v2038 = vadd.f32 %v1943, %v2037
        %v2039 = vpop.f32.mrf.mxu0
        %2040 = vmatprep.mubr.f32.mxu0 0.0
        %v2041 = vand.u32 %v1664, 4294901760
        %v2042 = vsub.f32 %v1664, %v2041
        %v2043 = vand.u32 %v2042, 4294901760
        %2044 = vmatmul.mubr.f32.gmra.mxu0 %v2043
        %v2045 = vpop.f32.mrf.mxu0
        %v2046 = vadd.f32 %v1950, %v2045
        %v2047 = vpop.f32.mrf.mxu0
        %2048 = vmatprep.mubr.f32.mxu0 0.0
        %v2049 = vand.u32 %v1667, 4294901760
        %v2050 = vsub.f32 %v1667, %v2049
        %v2051 = vand.u32 %v2050, 4294901760
        %2052 = vmatmul.mubr.f32.gmra.mxu0 %v2051
        %v2053 = vpop.f32.mrf.mxu0
        %v2054 = vadd.f32 %v1957, %v2053
        %v2055 = vpop.f32.mrf.mxu0
        %2056 = vmatprep.mubr.f32.mxu0 0.0
        %v2057 = vand.u32 %v1670, 4294901760
        %v2058 = vsub.f32 %v1670, %v2057
        %v2059 = vand.u32 %v2058, 4294901760
        %2060 = vmatmul.mubr.f32.gmra.mxu0 %v2059
        %v2061 = vpop.f32.mrf.mxu0
        %v2062 = vadd.f32 %v1964, %v2061
        %v2063 = vpop.f32.mrf.mxu0
        %2064 = vdwg.mxu0
        %2065 = vmatprep.subr.mxu0 0.0
        %2066 = vmatpush1.msra.mxu0 0.0
        %2067 = vmatprep.subr.mxu0 0.0
        %2068 = vmatpush1.msra.mxu0 0.0
        %2069 = vmatprep.subr.mxu0 0.0
        %2070 = vmatpush1.msra.mxu0 0.0
        %2071 = vmatprep.subr.mxu0 0.0
        %2072 = vmatpush1.msra.mxu0 0.0
        %2073 = vmatprep.subr.mxu0 0.0
        %2074 = vmatpush1.msra.mxu0 0.0
        %2075 = vmatprep.subr.mxu0 0.0
        %2076 = vmatpush1.msra.mxu0 0.0
        %2077 = vmatprep.subr.mxu0 0.0
        %2078 = vmatpush1.msra.mxu0 0.0
        %2079 = vmatprep.subr.mxu0 0.0
        %2080 = vmatpush1.msra.mxu0 0.0
        %2081 = vmatprep.subr.mxu0 0.0
        %2082 = vmatpush1.msra.mxu0 0.0
        %2083 = vmatprep.subr.mxu0 0.0
        %2084 = vmatpush1.msra.mxu0 0.0
        %2085 = vmatprep.subr.mxu0 0.0
        %2086 = vmatpush1.msra.mxu0 0.0
        %2087 = vmatprep.subr.mxu0 0.0
        %2088 = vmatpush1.msra.mxu0 0.0
        %2089 = vmatprep.subr.mxu0 0.0
        %2090 = vmatpush1.msra.mxu0 0.0
        %2091 = vmatprep.subr.mxu0 0.0
        %2092 = vmatpush1.msra.mxu0 0.0
        %2093 = vmatprep.subr.mxu0 0.0
        %2094 = vmatpush1.msra.mxu0 0.0
        %2095 = vmatprep.subr.mxu0 0.0
        %v2096 = vand.u32 %v484, 4294901760
        %v2097 = vsub.f32 %v484, %v2096
        %v2098 = vand.u32 %v2097, 4294901760
        %2099 = vmatpush1.msra.mxu0 %v2098
        %2100 = vmatprep.subr.mxu0 0.0
        %2101 = vmatpush2.msra.mxu0 0.0
        %2102 = vmatprep.subr.mxu0 0.0
        %2103 = vmatpush2.msra.mxu0 0.0
        %2104 = vmatprep.subr.mxu0 0.0
        %2105 = vmatpush2.msra.mxu0 0.0
        %2106 = vmatprep.subr.mxu0 0.0
        %2107 = vmatpush2.msra.mxu0 0.0
        %2108 = vmatprep.subr.mxu0 0.0
        %2109 = vmatpush2.msra.mxu0 0.0
        %2110 = vmatprep.subr.mxu0 0.0
        %2111 = vmatpush2.msra.mxu0 0.0
        %2112 = vmatprep.subr.mxu0 0.0
        %2113 = vmatpush2.msra.mxu0 0.0
        %2114 = vmatprep.subr.mxu0 0.0
        %2115 = vmatpush2.msra.mxu0 0.0
        %2116 = vmatprep.subr.mxu0 0.0
        %2117 = vmatpush2.msra.mxu0 0.0
        %2118 = vmatprep.subr.mxu0 0.0
        %2119 = vmatpush2.msra.mxu0 0.0
        %2120 = vmatprep.subr.mxu0 0.0
        %2121 = vmatpush2.msra.mxu0 0.0
        %2122 = vmatprep.subr.mxu0 0.0
        %2123 = vmatpush2.msra.mxu0 0.0
        %2124 = vmatprep.subr.mxu0 0.0
        %2125 = vmatpush2.msra.mxu0 0.0
        %2126 = vmatprep.subr.mxu0 0.0
        %2127 = vmatpush2.msra.mxu0 0.0
        %2128 = vmatprep.subr.mxu0 0.0
        %2129 = vmatpush2.msra.mxu0 0.0
        %2130 = vmatprep.subr.mxu0 0.0
        %2131 = vmatpush2.msra.mxu0 0.0
        %2132 = vmatprep.mubr.f32.mxu0 0.0
        %v2133 = vand.u32 %v1661, 4294901760
        %2134 = vmatmul.mubr.f32.gmra.mxu0 %v2133
        %v2135 = vpop.f32.mrf.mxu0
        %v2136 = vadd.f32 %v2038, %v2135
        %v2137 = vpop.f32.mrf.mxu0
        %2138 = vmatprep.mubr.f32.mxu0 0.0
        %v2139 = vand.u32 %v1664, 4294901760
        %2140 = vmatmul.mubr.f32.gmra.mxu0 %v2139
        %v2141 = vpop.f32.mrf.mxu0
        %v2142 = vadd.f32 %v2046, %v2141
        %v2143 = vpop.f32.mrf.mxu0
        %2144 = vmatprep.mubr.f32.mxu0 0.0
        %v2145 = vand.u32 %v1667, 4294901760
        %2146 = vmatmul.mubr.f32.gmra.mxu0 %v2145
        %v2147 = vpop.f32.mrf.mxu0
        %v2148 = vadd.f32 %v2054, %v2147
        %v2149 = vpop.f32.mrf.mxu0
        %2150 = vmatprep.mubr.f32.mxu0 0.0
        %v2151 = vand.u32 %v1670, 4294901760
        %2152 = vmatmul.mubr.f32.gmra.mxu0 %v2151
        %v2153 = vpop.f32.mrf.mxu0
        %v2154 = vadd.f32 %v2062, %v2153
        %v2155 = vpop.f32.mrf.mxu0
        %2156 = vdwg.mxu0
        %2157 = vmatprep.subr.mxu0 0.0
        %2158 = vmatpush1.msra.mxu0 0.0
        %2159 = vmatprep.subr.mxu0 0.0
        %2160 = vmatpush1.msra.mxu0 0.0
        %2161 = vmatprep.subr.mxu0 0.0
        %2162 = vmatpush1.msra.mxu0 0.0
        %2163 = vmatprep.subr.mxu0 0.0
        %2164 = vmatpush1.msra.mxu0 0.0
        %2165 = vmatprep.subr.mxu0 0.0
        %2166 = vmatpush1.msra.mxu0 0.0
        %2167 = vmatprep.subr.mxu0 0.0
        %2168 = vmatpush1.msra.mxu0 0.0
        %2169 = vmatprep.subr.mxu0 0.0
        %2170 = vmatpush1.msra.mxu0 0.0
        %2171 = vmatprep.subr.mxu0 0.0
        %2172 = vmatpush1.msra.mxu0 0.0
        %2173 = vmatprep.subr.mxu0 0.0
        %2174 = vmatpush1.msra.mxu0 0.0
        %2175 = vmatprep.subr.mxu0 0.0
        %2176 = vmatpush1.msra.mxu0 0.0
        %2177 = vmatprep.subr.mxu0 0.0
        %2178 = vmatpush1.msra.mxu0 0.0
        %2179 = vmatprep.subr.mxu0 0.0
        %2180 = vmatpush1.msra.mxu0 0.0
        %2181 = vmatprep.subr.mxu0 0.0
        %2182 = vmatpush1.msra.mxu0 0.0
        %2183 = vmatprep.subr.mxu0 0.0
        %2184 = vmatpush1.msra.mxu0 0.0
        %2185 = vmatprep.subr.mxu0 0.0
        %2186 = vmatpush1.msra.mxu0 0.0
        %2187 = vmatprep.subr.mxu0 0.0
        %v2188 = vand.u32 %v484, 4294901760
        %2189 = vmatpush1.msra.mxu0 %v2188
        %2190 = vmatprep.subr.mxu0 0.0
        %2191 = vmatpush2.msra.mxu0 0.0
        %2192 = vmatprep.subr.mxu0 0.0
        %2193 = vmatpush2.msra.mxu0 0.0
        %2194 = vmatprep.subr.mxu0 0.0
        %2195 = vmatpush2.msra.mxu0 0.0
        %2196 = vmatprep.subr.mxu0 0.0
        %2197 = vmatpush2.msra.mxu0 0.0
        %2198 = vmatprep.subr.mxu0 0.0
        %2199 = vmatpush2.msra.mxu0 0.0
        %2200 = vmatprep.subr.mxu0 0.0
        %2201 = vmatpush2.msra.mxu0 0.0
        %2202 = vmatprep.subr.mxu0 0.0
        %2203 = vmatpush2.msra.mxu0 0.0
        %2204 = vmatprep.subr.mxu0 0.0
        %2205 = vmatpush2.msra.mxu0 0.0
        %2206 = vmatprep.subr.mxu0 0.0
        %2207 = vmatpush2.msra.mxu0 0.0
        %2208 = vmatprep.subr.mxu0 0.0
        %2209 = vmatpush2.msra.mxu0 0.0
        %2210 = vmatprep.subr.mxu0 0.0
        %2211 = vmatpush2.msra.mxu0 0.0
        %2212 = vmatprep.subr.mxu0 0.0
        %2213 = vmatpush2.msra.mxu0 0.0
        %2214 = vmatprep.subr.mxu0 0.0
        %2215 = vmatpush2.msra.mxu0 0.0
        %2216 = vmatprep.subr.mxu0 0.0
        %2217 = vmatpush2.msra.mxu0 0.0
        %2218 = vmatprep.subr.mxu0 0.0
        %2219 = vmatpush2.msra.mxu0 0.0
        %2220 = vmatprep.subr.mxu0 0.0
        %2221 = vmatpush2.msra.mxu0 0.0
        %2222 = vmatprep.mubr.f32.mxu0 0.0
        %v2223 = vand.u32 %v1661, 4294901760
        %2224 = vmatmul.mubr.f32.gmra.mxu0 %v2223
        %v2225 = vpop.f32.mrf.mxu0
        %v2226 = vadd.f32 %v2136, %v2225
        %v2227 = vpop.f32.mrf.mxu0
        %2228 = vmatprep.mubr.f32.mxu0 0.0
        %v2229 = vand.u32 %v1664, 4294901760
        %2230 = vmatmul.mubr.f32.gmra.mxu0 %v2229
        %v2231 = vpop.f32.mrf.mxu0
        %v2232 = vadd.f32 %v2142, %v2231
        %v2233 = vpop.f32.mrf.mxu0
        %2234 = vmatprep.mubr.f32.mxu0 0.0
        %v2235 = vand.u32 %v1667, 4294901760
        %2236 = vmatmul.mubr.f32.gmra.mxu0 %v2235
        %v2237 = vpop.f32.mrf.mxu0
        %v2238 = vadd.f32 %v2148, %v2237
        %v2239 = vpop.f32.mrf.mxu0
        %2240 = vmatprep.mubr.f32.mxu0 0.0
        %v2241 = vand.u32 %v1670, 4294901760
        %2242 = vmatmul.mubr.f32.gmra.mxu0 %v2241
        %v2243 = vpop.f32.mrf.mxu0
        %v2244 = vadd.f32 %v2154, %v2243
        %v2245 = vpop.f32.mrf.mxu0
        %2246 = vdwg.mxu0
        %v2248 = vsel %vm485, %v480, 0
        %v2251 = vsel %vm485, %v481, 0
        %v2254 = vsel %vm485, %v482, 0
        %v2257 = vsel %vm485, %v483, 0
        %2259 = vmatprep.subr.mxu0 0.0
        %2260 = vmatpush1.msra.mxu0 0.0
        %2261 = vmatprep.subr.mxu0 0.0
        %2262 = vmatpush1.msra.mxu0 0.0
        %2263 = vmatprep.subr.mxu0 0.0
        %2264 = vmatpush1.msra.mxu0 0.0
        %2265 = vmatprep.subr.mxu0 0.0
        %2266 = vmatpush1.msra.mxu0 0.0
        %2267 = vmatprep.subr.mxu0 0.0
        %2268 = vmatpush1.msra.mxu0 0.0
        %2269 = vmatprep.subr.mxu0 0.0
        %2270 = vmatpush1.msra.mxu0 0.0
        %2271 = vmatprep.subr.mxu0 0.0
        %2272 = vmatpush1.msra.mxu0 0.0
        %2273 = vmatprep.subr.mxu0 0.0
        %2274 = vmatpush1.msra.mxu0 0.0
        %2275 = vmatprep.subr.mxu0 0.0
        %2276 = vmatpush1.msra.mxu0 0.0
        %2277 = vmatprep.subr.mxu0 0.0
        %2278 = vmatpush1.msra.mxu0 0.0
        %2279 = vmatprep.subr.mxu0 0.0
        %2280 = vmatpush1.msra.mxu0 0.0
        %2281 = vmatprep.subr.mxu0 0.0
        %2282 = vmatpush1.msra.mxu0 0.0
        %2283 = vmatprep.subr.mxu0 0.0
        %2284 = vmatpush1.msra.mxu0 0.0
        %2285 = vmatprep.subr.mxu0 0.0
        %2286 = vmatpush1.msra.mxu0 0.0
        %2287 = vmatprep.subr.mxu0 0.0
        %2288 = vmatpush1.msra.mxu0 0.0
        %2289 = vmatprep.subr.mxu0 0.0
        %v2290 = vand.u32 %v484, 4294901760
        %2291 = vmatpush1.msra.mxu0 %v2290
        %2292 = vmatprep.subr.mxu0 0.0
        %2293 = vmatpush2.msra.mxu0 0.0
        %2294 = vmatprep.subr.mxu0 0.0
        %2295 = vmatpush2.msra.mxu0 0.0
        %2296 = vmatprep.subr.mxu0 0.0
        %2297 = vmatpush2.msra.mxu0 0.0
        %2298 = vmatprep.subr.mxu0 0.0
        %2299 = vmatpush2.msra.mxu0 0.0
        %2300 = vmatprep.subr.mxu0 0.0
        %2301 = vmatpush2.msra.mxu0 0.0
        %2302 = vmatprep.subr.mxu0 0.0
        %2303 = vmatpush2.msra.mxu0 0.0
        %2304 = vmatprep.subr.mxu0 0.0
        %2305 = vmatpush2.msra.mxu0 0.0
        %2306 = vmatprep.subr.mxu0 0.0
        %2307 = vmatpush2.msra.mxu0 0.0
        %2308 = vmatprep.subr.mxu0 0.0
        %2309 = vmatpush2.msra.mxu0 0.0
        %2310 = vmatprep.subr.mxu0 0.0
        %2311 = vmatpush2.msra.mxu0 0.0
        %2312 = vmatprep.subr.mxu0 0.0
        %2313 = vmatpush2.msra.mxu0 0.0
        %2314 = vmatprep.subr.mxu0 0.0
        %2315 = vmatpush2.msra.mxu0 0.0
        %2316 = vmatprep.subr.mxu0 0.0
        %2317 = vmatpush2.msra.mxu0 0.0
        %2318 = vmatprep.subr.mxu0 0.0
        %2319 = vmatpush2.msra.mxu0 0.0
        %2320 = vmatprep.subr.mxu0 0.0
        %2321 = vmatpush2.msra.mxu0 0.0
        %2322 = vmatprep.subr.mxu0 0.0
        %2323 = vmatpush2.msra.mxu0 0.0
        %2324 = vmatprep.mubr.f32.mxu0 0.0
        %v2325 = vand.u32 %v2248, 4294901760
        %v2326 = vsub.f32 %v2248, %v2325
        %v2327 = vand.u32 %v2326, 4294901760
        %v2328 = vsub.f32 %v2326, %v2327
        %v2329 = vand.u32 %v2328, 4294901760
        %2330 = vmatmul.mubr.f32.gmra.mxu0 %v2329
        %v2331 = vpop.f32.mrf.mxu0
        %v2332 = vadd.f32 0.0, %v2331
        %v2333 = vpop.f32.mrf.mxu0
        %2334 = vmatprep.mubr.f32.mxu0 0.0
        %v2335 = vand.u32 %v2251, 4294901760
        %v2336 = vsub.f32 %v2251, %v2335
        %v2337 = vand.u32 %v2336, 4294901760
        %v2338 = vsub.f32 %v2336, %v2337
        %v2339 = vand.u32 %v2338, 4294901760
        %2340 = vmatmul.mubr.f32.gmra.mxu0 %v2339
        %v2341 = vpop.f32.mrf.mxu0
        %v2342 = vadd.f32 0.0, %v2341
        %v2343 = vpop.f32.mrf.mxu0
        %2344 = vmatprep.mubr.f32.mxu0 0.0
        %v2345 = vand.u32 %v2254, 4294901760
        %v2346 = vsub.f32 %v2254, %v2345
        %v2347 = vand.u32 %v2346, 4294901760
        %v2348 = vsub.f32 %v2346, %v2347
        %v2349 = vand.u32 %v2348, 4294901760
        %2350 = vmatmul.mubr.f32.gmra.mxu0 %v2349
        %v2351 = vpop.f32.mrf.mxu0
        %v2352 = vadd.f32 0.0, %v2351
        %v2353 = vpop.f32.mrf.mxu0
        %2354 = vmatprep.mubr.f32.mxu0 0.0
        %v2355 = vand.u32 %v2257, 4294901760
        %v2356 = vsub.f32 %v2257, %v2355
        %v2357 = vand.u32 %v2356, 4294901760
        %v2358 = vsub.f32 %v2356, %v2357
        %v2359 = vand.u32 %v2358, 4294901760
        %2360 = vmatmul.mubr.f32.gmra.mxu0 %v2359
        %v2361 = vpop.f32.mrf.mxu0
        %v2362 = vadd.f32 0.0, %v2361
        %v2363 = vpop.f32.mrf.mxu0
        %2364 = vdwg.mxu0
        %2365 = vmatprep.subr.mxu0 0.0
        %2366 = vmatpush1.msra.mxu0 0.0
        %2367 = vmatprep.subr.mxu0 0.0
        %2368 = vmatpush1.msra.mxu0 0.0
        %2369 = vmatprep.subr.mxu0 0.0
        %2370 = vmatpush1.msra.mxu0 0.0
        %2371 = vmatprep.subr.mxu0 0.0
        %2372 = vmatpush1.msra.mxu0 0.0
        %2373 = vmatprep.subr.mxu0 0.0
        %2374 = vmatpush1.msra.mxu0 0.0
        %2375 = vmatprep.subr.mxu0 0.0
        %2376 = vmatpush1.msra.mxu0 0.0
        %2377 = vmatprep.subr.mxu0 0.0
        %2378 = vmatpush1.msra.mxu0 0.0
        %2379 = vmatprep.subr.mxu0 0.0
        %2380 = vmatpush1.msra.mxu0 0.0
        %2381 = vmatprep.subr.mxu0 0.0
        %2382 = vmatpush1.msra.mxu0 0.0
        %2383 = vmatprep.subr.mxu0 0.0
        %2384 = vmatpush1.msra.mxu0 0.0
        %2385 = vmatprep.subr.mxu0 0.0
        %2386 = vmatpush1.msra.mxu0 0.0
        %2387 = vmatprep.subr.mxu0 0.0
        %2388 = vmatpush1.msra.mxu0 0.0
        %2389 = vmatprep.subr.mxu0 0.0
        %2390 = vmatpush1.msra.mxu0 0.0
        %2391 = vmatprep.subr.mxu0 0.0
        %2392 = vmatpush1.msra.mxu0 0.0
        %2393 = vmatprep.subr.mxu0 0.0
        %2394 = vmatpush1.msra.mxu0 0.0
        %2395 = vmatprep.subr.mxu0 0.0
        %v2396 = vand.u32 %v484, 4294901760
        %v2397 = vsub.f32 %v484, %v2396
        %v2398 = vand.u32 %v2397, 4294901760
        %v2399 = vsub.f32 %v2397, %v2398
        %v2400 = vand.u32 %v2399, 4294901760
        %2401 = vmatpush1.msra.mxu0 %v2400
        %2402 = vmatprep.subr.mxu0 0.0
        %2403 = vmatpush2.msra.mxu0 0.0
        %2404 = vmatprep.subr.mxu0 0.0
        %2405 = vmatpush2.msra.mxu0 0.0
        %2406 = vmatprep.subr.mxu0 0.0
        %2407 = vmatpush2.msra.mxu0 0.0
        %2408 = vmatprep.subr.mxu0 0.0
        %2409 = vmatpush2.msra.mxu0 0.0
        %2410 = vmatprep.subr.mxu0 0.0
        %2411 = vmatpush2.msra.mxu0 0.0
        %2412 = vmatprep.subr.mxu0 0.0
        %2413 = vmatpush2.msra.mxu0 0.0
        %2414 = vmatprep.subr.mxu0 0.0
        %2415 = vmatpush2.msra.mxu0 0.0
        %2416 = vmatprep.subr.mxu0 0.0
        %2417 = vmatpush2.msra.mxu0 0.0
        %2418 = vmatprep.subr.mxu0 0.0
        %2419 = vmatpush2.msra.mxu0 0.0
        %2420 = vmatprep.subr.mxu0 0.0
        %2421 = vmatpush2.msra.mxu0 0.0
        %2422 = vmatprep.subr.mxu0 0.0
        %2423 = vmatpush2.msra.mxu0 0.0
        %2424 = vmatprep.subr.mxu0 0.0
        %2425 = vmatpush2.msra.mxu0 0.0
        %2426 = vmatprep.subr.mxu0 0.0
        %2427 = vmatpush2.msra.mxu0 0.0
        %2428 = vmatprep.subr.mxu0 0.0
        %2429 = vmatpush2.msra.mxu0 0.0
        %2430 = vmatprep.subr.mxu0 0.0
        %2431 = vmatpush2.msra.mxu0 0.0
        %2432 = vmatprep.subr.mxu0 0.0
        %2433 = vmatpush2.msra.mxu0 0.0
        %2434 = vmatprep.mubr.f32.mxu0 0.0
        %v2435 = vand.u32 %v2248, 4294901760
        %2436 = vmatmul.mubr.f32.gmra.mxu0 %v2435
        %v2437 = vpop.f32.mrf.mxu0
        %v2438 = vadd.f32 %v2332, %v2437
        %v2439 = vpop.f32.mrf.mxu0
        %2440 = vmatprep.mubr.f32.mxu0 0.0
        %v2441 = vand.u32 %v2251, 4294901760
        %2442 = vmatmul.mubr.f32.gmra.mxu0 %v2441
        %v2443 = vpop.f32.mrf.mxu0
        %v2444 = vadd.f32 %v2342, %v2443
        %v2445 = vpop.f32.mrf.mxu0
        %2446 = vmatprep.mubr.f32.mxu0 0.0
        %v2447 = vand.u32 %v2254, 4294901760
        %2448 = vmatmul.mubr.f32.gmra.mxu0 %v2447
        %v2449 = vpop.f32.mrf.mxu0
        %v2450 = vadd.f32 %v2352, %v2449
        %v2451 = vpop.f32.mrf.mxu0
        %2452 = vmatprep.mubr.f32.mxu0 0.0
        %v2453 = vand.u32 %v2257, 4294901760
        %2454 = vmatmul.mubr.f32.gmra.mxu0 %v2453
        %v2455 = vpop.f32.mrf.mxu0
        %v2456 = vadd.f32 %v2362, %v2455
        %v2457 = vpop.f32.mrf.mxu0
        %2458 = vdwg.mxu0
        %2459 = vmatprep.subr.mxu0 0.0
        %2460 = vmatpush1.msra.mxu0 0.0
        %2461 = vmatprep.subr.mxu0 0.0
        %2462 = vmatpush1.msra.mxu0 0.0
        %2463 = vmatprep.subr.mxu0 0.0
        %2464 = vmatpush1.msra.mxu0 0.0
        %2465 = vmatprep.subr.mxu0 0.0
        %2466 = vmatpush1.msra.mxu0 0.0
        %2467 = vmatprep.subr.mxu0 0.0
        %2468 = vmatpush1.msra.mxu0 0.0
        %2469 = vmatprep.subr.mxu0 0.0
        %2470 = vmatpush1.msra.mxu0 0.0
        %2471 = vmatprep.subr.mxu0 0.0
        %2472 = vmatpush1.msra.mxu0 0.0
        %2473 = vmatprep.subr.mxu0 0.0
        %2474 = vmatpush1.msra.mxu0 0.0
        %2475 = vmatprep.subr.mxu0 0.0
        %2476 = vmatpush1.msra.mxu0 0.0
        %2477 = vmatprep.subr.mxu0 0.0
        %2478 = vmatpush1.msra.mxu0 0.0
        %2479 = vmatprep.subr.mxu0 0.0
        %2480 = vmatpush1.msra.mxu0 0.0
        %2481 = vmatprep.subr.mxu0 0.0
        %2482 = vmatpush1.msra.mxu0 0.0
        %2483 = vmatprep.subr.mxu0 0.0
        %2484 = vmatpush1.msra.mxu0 0.0
        %2485 = vmatprep.subr.mxu0 0.0
        %2486 = vmatpush1.msra.mxu0 0.0
        %2487 = vmatprep.subr.mxu0 0.0
        %2488 = vmatpush1.msra.mxu0 0.0
        %2489 = vmatprep.subr.mxu0 0.0
        %v2490 = vand.u32 %v484, 4294901760
        %v2491 = vsub.f32 %v484, %v2490
        %2492 = vmatpush1.msra.mxu0 %v2491
        %2493 = vmatprep.subr.mxu0 0.0
        %2494 = vmatpush2.msra.mxu0 0.0
        %2495 = vmatprep.subr.mxu0 0.0
        %2496 = vmatpush2.msra.mxu0 0.0
        %2497 = vmatprep.subr.mxu0 0.0
        %2498 = vmatpush2.msra.mxu0 0.0
        %2499 = vmatprep.subr.mxu0 0.0
        %2500 = vmatpush2.msra.mxu0 0.0
        %2501 = vmatprep.subr.mxu0 0.0
        %2502 = vmatpush2.msra.mxu0 0.0
        %2503 = vmatprep.subr.mxu0 0.0
        %2504 = vmatpush2.msra.mxu0 0.0
        %2505 = vmatprep.subr.mxu0 0.0
        %2506 = vmatpush2.msra.mxu0 0.0
        %2507 = vmatprep.subr.mxu0 0.0
        %2508 = vmatpush2.msra.mxu0 0.0
        %2509 = vmatprep.subr.mxu0 0.0
        %2510 = vmatpush2.msra.mxu0 0.0
        %2511 = vmatprep.subr.mxu0 0.0
        %2512 = vmatpush2.msra.mxu0 0.0
        %2513 = vmatprep.subr.mxu0 0.0
        %2514 = vmatpush2.msra.mxu0 0.0
        %2515 = vmatprep.subr.mxu0 0.0
        %2516 = vmatpush2.msra.mxu0 0.0
        %2517 = vmatprep.subr.mxu0 0.0
        %2518 = vmatpush2.msra.mxu0 0.0
        %2519 = vmatprep.subr.mxu0 0.0
        %2520 = vmatpush2.msra.mxu0 0.0
        %2521 = vmatprep.subr.mxu0 0.0
        %2522 = vmatpush2.msra.mxu0 0.0
        %2523 = vmatprep.subr.mxu0 0.0
        %2524 = vmatpush2.msra.mxu0 0.0
        %2525 = vmatprep.mubr.f32.mxu0 0.0
        %v2526 = vand.u32 %v2248, 4294901760
        %v2527 = vsub.f32 %v2248, %v2526
        %2528 = vmatmul.mubr.f32.gmra.mxu0 %v2527
        %v2529 = vpop.f32.mrf.mxu0
        %v2530 = vadd.f32 %v2438, %v2529
        %v2531 = vpop.f32.mrf.mxu0
        %2532 = vmatprep.mubr.f32.mxu0 0.0
        %v2533 = vand.u32 %v2251, 4294901760
        %v2534 = vsub.f32 %v2251, %v2533
        %2535 = vmatmul.mubr.f32.gmra.mxu0 %v2534
        %v2536 = vpop.f32.mrf.mxu0
        %v2537 = vadd.f32 %v2444, %v2536
        %v2538 = vpop.f32.mrf.mxu0
        %2539 = vmatprep.mubr.f32.mxu0 0.0
        %v2540 = vand.u32 %v2254, 4294901760
        %v2541 = vsub.f32 %v2254, %v2540
        %2542 = vmatmul.mubr.f32.gmra.mxu0 %v2541
        %v2543 = vpop.f32.mrf.mxu0
        %v2544 = vadd.f32 %v2450, %v2543
        %v2545 = vpop.f32.mrf.mxu0
        %2546 = vmatprep.mubr.f32.mxu0 0.0
        %v2547 = vand.u32 %v2257, 4294901760
        %v2548 = vsub.f32 %v2257, %v2547
        %2549 = vmatmul.mubr.f32.gmra.mxu0 %v2548
        %v2550 = vpop.f32.mrf.mxu0
        %v2551 = vadd.f32 %v2456, %v2550
        %v2552 = vpop.f32.mrf.mxu0
        %2553 = vdwg.mxu0
        %2554 = vmatprep.subr.mxu0 0.0
        %2555 = vmatpush1.msra.mxu0 0.0
        %2556 = vmatprep.subr.mxu0 0.0
        %2557 = vmatpush1.msra.mxu0 0.0
        %2558 = vmatprep.subr.mxu0 0.0
        %2559 = vmatpush1.msra.mxu0 0.0
        %2560 = vmatprep.subr.mxu0 0.0
        %2561 = vmatpush1.msra.mxu0 0.0
        %2562 = vmatprep.subr.mxu0 0.0
        %2563 = vmatpush1.msra.mxu0 0.0
        %2564 = vmatprep.subr.mxu0 0.0
        %2565 = vmatpush1.msra.mxu0 0.0
        %2566 = vmatprep.subr.mxu0 0.0
        %2567 = vmatpush1.msra.mxu0 0.0
        %2568 = vmatprep.subr.mxu0 0.0
        %2569 = vmatpush1.msra.mxu0 0.0
        %2570 = vmatprep.subr.mxu0 0.0
        %2571 = vmatpush1.msra.mxu0 0.0
        %2572 = vmatprep.subr.mxu0 0.0
        %2573 = vmatpush1.msra.mxu0 0.0
        %2574 = vmatprep.subr.mxu0 0.0
        %2575 = vmatpush1.msra.mxu0 0.0
        %2576 = vmatprep.subr.mxu0 0.0
        %2577 = vmatpush1.msra.mxu0 0.0
        %2578 = vmatprep.subr.mxu0 0.0
        %2579 = vmatpush1.msra.mxu0 0.0
        %2580 = vmatprep.subr.mxu0 0.0
        %2581 = vmatpush1.msra.mxu0 0.0
        %2582 = vmatprep.subr.mxu0 0.0
        %2583 = vmatpush1.msra.mxu0 0.0
        %2584 = vmatprep.subr.mxu0 0.0
        %v2585 = vand.u32 %v484, 4294901760
        %2586 = vmatpush1.msra.mxu0 %v2585
        %2587 = vmatprep.subr.mxu0 0.0
        %2588 = vmatpush2.msra.mxu0 0.0
        %2589 = vmatprep.subr.mxu0 0.0
        %2590 = vmatpush2.msra.mxu0 0.0
        %2591 = vmatprep.subr.mxu0 0.0
        %2592 = vmatpush2.msra.mxu0 0.0
        %2593 = vmatprep.subr.mxu0 0.0
        %2594 = vmatpush2.msra.mxu0 0.0
        %2595 = vmatprep.subr.mxu0 0.0
        %2596 = vmatpush2.msra.mxu0 0.0
        %2597 = vmatprep.subr.mxu0 0.0
        %2598 = vmatpush2.msra.mxu0 0.0
        %2599 = vmatprep.subr.mxu0 0.0
        %2600 = vmatpush2.msra.mxu0 0.0
        %2601 = vmatprep.subr.mxu0 0.0
        %2602 = vmatpush2.msra.mxu0 0.0
        %2603 = vmatprep.subr.mxu0 0.0
        %2604 = vmatpush2.msra.mxu0 0.0
        %2605 = vmatprep.subr.mxu0 0.0
        %2606 = vmatpush2.msra.mxu0 0.0
        %2607 = vmatprep.subr.mxu0 0.0
        %2608 = vmatpush2.msra.mxu0 0.0
        %2609 = vmatprep.subr.mxu0 0.0
        %2610 = vmatpush2.msra.mxu0 0.0
        %2611 = vmatprep.subr.mxu0 0.0
        %2612 = vmatpush2.msra.mxu0 0.0
        %2613 = vmatprep.subr.mxu0 0.0
        %2614 = vmatpush2.msra.mxu0 0.0
        %2615 = vmatprep.subr.mxu0 0.0
        %2616 = vmatpush2.msra.mxu0 0.0
        %2617 = vmatprep.subr.mxu0 0.0
        %2618 = vmatpush2.msra.mxu0 0.0
        %2619 = vmatprep.mubr.f32.mxu0 0.0
        %v2620 = vand.u32 %v2248, 4294901760
        %v2621 = vsub.f32 %v2248, %v2620
        %v2622 = vand.u32 %v2621, 4294901760
        %2623 = vmatmul.mubr.f32.gmra.mxu0 %v2622
        %v2624 = vpop.f32.mrf.mxu0
        %v2625 = vadd.f32 %v2530, %v2624
        %v2626 = vpop.f32.mrf.mxu0
        %2627 = vmatprep.mubr.f32.mxu0 0.0
        %v2628 = vand.u32 %v2251, 4294901760
        %v2629 = vsub.f32 %v2251, %v2628
        %v2630 = vand.u32 %v2629, 4294901760
        %2631 = vmatmul.mubr.f32.gmra.mxu0 %v2630
        %v2632 = vpop.f32.mrf.mxu0
        %v2633 = vadd.f32 %v2537, %v2632
        %v2634 = vpop.f32.mrf.mxu0
        %2635 = vmatprep.mubr.f32.mxu0 0.0
        %v2636 = vand.u32 %v2254, 4294901760
        %v2637 = vsub.f32 %v2254, %v2636
        %v2638 = vand.u32 %v2637, 4294901760
        %2639 = vmatmul.mubr.f32.gmra.mxu0 %v2638
        %v2640 = vpop.f32.mrf.mxu0
        %v2641 = vadd.f32 %v2544, %v2640
        %v2642 = vpop.f32.mrf.mxu0
        %2643 = vmatprep.mubr.f32.mxu0 0.0
        %v2644 = vand.u32 %v2257, 4294901760
        %v2645 = vsub.f32 %v2257, %v2644
        %v2646 = vand.u32 %v2645, 4294901760
        %2647 = vmatmul.mubr.f32.gmra.mxu0 %v2646
        %v2648 = vpop.f32.mrf.mxu0
        %v2649 = vadd.f32 %v2551, %v2648
        %v2650 = vpop.f32.mrf.mxu0
        %2651 = vdwg.mxu0
        %2652 = vmatprep.subr.mxu0 0.0
        %2653 = vmatpush1.msra.mxu0 0.0
        %2654 = vmatprep.subr.mxu0 0.0
        %2655 = vmatpush1.msra.mxu0 0.0
        %2656 = vmatprep.subr.mxu0 0.0
        %2657 = vmatpush1.msra.mxu0 0.0
        %2658 = vmatprep.subr.mxu0 0.0
        %2659 = vmatpush1.msra.mxu0 0.0
        %2660 = vmatprep.subr.mxu0 0.0
        %2661 = vmatpush1.msra.mxu0 0.0
        %2662 = vmatprep.subr.mxu0 0.0
        %2663 = vmatpush1.msra.mxu0 0.0
        %2664 = vmatprep.subr.mxu0 0.0
        %2665 = vmatpush1.msra.mxu0 0.0
        %2666 = vmatprep.subr.mxu0 0.0
        %2667 = vmatpush1.msra.mxu0 0.0
        %2668 = vmatprep.subr.mxu0 0.0
        %2669 = vmatpush1.msra.mxu0 0.0
        %2670 = vmatprep.subr.mxu0 0.0
        %2671 = vmatpush1.msra.mxu0 0.0
        %2672 = vmatprep.subr.mxu0 0.0
        %2673 = vmatpush1.msra.mxu0 0.0
        %2674 = vmatprep.subr.mxu0 0.0
        %2675 = vmatpush1.msra.mxu0 0.0
        %2676 = vmatprep.subr.mxu0 0.0
        %2677 = vmatpush1.msra.mxu0 0.0
        %2678 = vmatprep.subr.mxu0 0.0
        %2679 = vmatpush1.msra.mxu0 0.0
        %2680 = vmatprep.subr.mxu0 0.0
        %2681 = vmatpush1.msra.mxu0 0.0
        %2682 = vmatprep.subr.mxu0 0.0
        %v2683 = vand.u32 %v484, 4294901760
        %v2684 = vsub.f32 %v484, %v2683
        %v2685 = vand.u32 %v2684, 4294901760
        %2686 = vmatpush1.msra.mxu0 %v2685
        %2687 = vmatprep.subr.mxu0 0.0
        %2688 = vmatpush2.msra.mxu0 0.0
        %2689 = vmatprep.subr.mxu0 0.0
        %2690 = vmatpush2.msra.mxu0 0.0
        %2691 = vmatprep.subr.mxu0 0.0
        %2692 = vmatpush2.msra.mxu0 0.0
        %2693 = vmatprep.subr.mxu0 0.0
        %2694 = vmatpush2.msra.mxu0 0.0
        %2695 = vmatprep.subr.mxu0 0.0
        %2696 = vmatpush2.msra.mxu0 0.0
        %2697 = vmatprep.subr.mxu0 0.0
        %2698 = vmatpush2.msra.mxu0 0.0
        %2699 = vmatprep.subr.mxu0 0.0
        %2700 = vmatpush2.msra.mxu0 0.0
        %2701 = vmatprep.subr.mxu0 0.0
        %2702 = vmatpush2.msra.mxu0 0.0
        %2703 = vmatprep.subr.mxu0 0.0
        %2704 = vmatpush2.msra.mxu0 0.0
        %2705 = vmatprep.subr.mxu0 0.0
        %2706 = vmatpush2.msra.mxu0 0.0
        %2707 = vmatprep.subr.mxu0 0.0
        %2708 = vmatpush2.msra.mxu0 0.0
        %2709 = vmatprep.subr.mxu0 0.0
        %2710 = vmatpush2.msra.mxu0 0.0
        %2711 = vmatprep.subr.mxu0 0.0
        %2712 = vmatpush2.msra.mxu0 0.0
        %2713 = vmatprep.subr.mxu0 0.0
        %2714 = vmatpush2.msra.mxu0 0.0
        %2715 = vmatprep.subr.mxu0 0.0
        %2716 = vmatpush2.msra.mxu0 0.0
        %2717 = vmatprep.subr.mxu0 0.0
        %2718 = vmatpush2.msra.mxu0 0.0
        %2719 = vmatprep.mubr.f32.mxu0 0.0
        %v2720 = vand.u32 %v2248, 4294901760
        %2721 = vmatmul.mubr.f32.gmra.mxu0 %v2720
        %v2722 = vpop.f32.mrf.mxu0
        %v2723 = vadd.f32 %v2625, %v2722
        %v2724 = vpop.f32.mrf.mxu0
        %2725 = vmatprep.mubr.f32.mxu0 0.0
        %v2726 = vand.u32 %v2251, 4294901760
        %2727 = vmatmul.mubr.f32.gmra.mxu0 %v2726
        %v2728 = vpop.f32.mrf.mxu0
        %v2729 = vadd.f32 %v2633, %v2728
        %v2730 = vpop.f32.mrf.mxu0
        %2731 = vmatprep.mubr.f32.mxu0 0.0
        %v2732 = vand.u32 %v2254, 4294901760
        %2733 = vmatmul.mubr.f32.gmra.mxu0 %v2732
        %v2734 = vpop.f32.mrf.mxu0
        %v2735 = vadd.f32 %v2641, %v2734
        %v2736 = vpop.f32.mrf.mxu0
        %2737 = vmatprep.mubr.f32.mxu0 0.0
        %v2738 = vand.u32 %v2257, 4294901760
        %2739 = vmatmul.mubr.f32.gmra.mxu0 %v2738
        %v2740 = vpop.f32.mrf.mxu0
        %v2741 = vadd.f32 %v2649, %v2740
        %v2742 = vpop.f32.mrf.mxu0
        %2743 = vdwg.mxu0
        %2744 = vmatprep.subr.mxu0 0.0
        %2745 = vmatpush1.msra.mxu0 0.0
        %2746 = vmatprep.subr.mxu0 0.0
        %2747 = vmatpush1.msra.mxu0 0.0
        %2748 = vmatprep.subr.mxu0 0.0
        %2749 = vmatpush1.msra.mxu0 0.0
        %2750 = vmatprep.subr.mxu0 0.0
        %2751 = vmatpush1.msra.mxu0 0.0
        %2752 = vmatprep.subr.mxu0 0.0
        %2753 = vmatpush1.msra.mxu0 0.0
        %2754 = vmatprep.subr.mxu0 0.0
        %2755 = vmatpush1.msra.mxu0 0.0
        %2756 = vmatprep.subr.mxu0 0.0
        %2757 = vmatpush1.msra.mxu0 0.0
        %2758 = vmatprep.subr.mxu0 0.0
        %2759 = vmatpush1.msra.mxu0 0.0
        %2760 = vmatprep.subr.mxu0 0.0
        %2761 = vmatpush1.msra.mxu0 0.0
        %2762 = vmatprep.subr.mxu0 0.0
        %2763 = vmatpush1.msra.mxu0 0.0
        %2764 = vmatprep.subr.mxu0 0.0
        %2765 = vmatpush1.msra.mxu0 0.0
        %2766 = vmatprep.subr.mxu0 0.0
        %2767 = vmatpush1.msra.mxu0 0.0
        %2768 = vmatprep.subr.mxu0 0.0
        %2769 = vmatpush1.msra.mxu0 0.0
        %2770 = vmatprep.subr.mxu0 0.0
        %2771 = vmatpush1.msra.mxu0 0.0
        %2772 = vmatprep.subr.mxu0 0.0
        %2773 = vmatpush1.msra.mxu0 0.0
        %2774 = vmatprep.subr.mxu0 0.0
        %v2775 = vand.u32 %v484, 4294901760
        %2776 = vmatpush1.msra.mxu0 %v2775
        %2777 = vmatprep.subr.mxu0 0.0
        %2778 = vmatpush2.msra.mxu0 0.0
        %2779 = vmatprep.subr.mxu0 0.0
        %2780 = vmatpush2.msra.mxu0 0.0
        %2781 = vmatprep.subr.mxu0 0.0
        %2782 = vmatpush2.msra.mxu0 0.0
        %2783 = vmatprep.subr.mxu0 0.0
        %2784 = vmatpush2.msra.mxu0 0.0
        %2785 = vmatprep.subr.mxu0 0.0
        %2786 = vmatpush2.msra.mxu0 0.0
        %2787 = vmatprep.subr.mxu0 0.0
        %2788 = vmatpush2.msra.mxu0 0.0
        %2789 = vmatprep.subr.mxu0 0.0
        %2790 = vmatpush2.msra.mxu0 0.0
        %2791 = vmatprep.subr.mxu0 0.0
        %2792 = vmatpush2.msra.mxu0 0.0
        %2793 = vmatprep.subr.mxu0 0.0
        %2794 = vmatpush2.msra.mxu0 0.0
        %2795 = vmatprep.subr.mxu0 0.0
        %2796 = vmatpush2.msra.mxu0 0.0
        %2797 = vmatprep.subr.mxu0 0.0
        %2798 = vmatpush2.msra.mxu0 0.0
        %2799 = vmatprep.subr.mxu0 0.0
        %2800 = vmatpush2.msra.mxu0 0.0
        %2801 = vmatprep.subr.mxu0 0.0
        %2802 = vmatpush2.msra.mxu0 0.0
        %2803 = vmatprep.subr.mxu0 0.0
        %2804 = vmatpush2.msra.mxu0 0.0
        %2805 = vmatprep.subr.mxu0 0.0
        %2806 = vmatpush2.msra.mxu0 0.0
        %2807 = vmatprep.subr.mxu0 0.0
        %2808 = vmatpush2.msra.mxu0 0.0
        %2809 = vmatprep.mubr.f32.mxu0 0.0
        %v2810 = vand.u32 %v2248, 4294901760
        %2811 = vmatmul.mubr.f32.gmra.mxu0 %v2810
        %v2812 = vpop.f32.mrf.mxu0
        %v2813 = vadd.f32 %v2723, %v2812
        %v2814 = vpop.f32.mrf.mxu0
        %2815 = vmatprep.mubr.f32.mxu0 0.0
        %v2816 = vand.u32 %v2251, 4294901760
        %2817 = vmatmul.mubr.f32.gmra.mxu0 %v2816
        %v2818 = vpop.f32.mrf.mxu0
        %v2819 = vadd.f32 %v2729, %v2818
        %v2820 = vpop.f32.mrf.mxu0
        %2821 = vmatprep.mubr.f32.mxu0 0.0
        %v2822 = vand.u32 %v2254, 4294901760
        %2823 = vmatmul.mubr.f32.gmra.mxu0 %v2822
        %v2824 = vpop.f32.mrf.mxu0
        %v2825 = vadd.f32 %v2735, %v2824
        %v2826 = vpop.f32.mrf.mxu0
        %2827 = vmatprep.mubr.f32.mxu0 0.0
        %v2828 = vand.u32 %v2257, 4294901760
        %2829 = vmatmul.mubr.f32.gmra.mxu0 %v2828
        %v2830 = vpop.f32.mrf.mxu0
        %v2831 = vadd.f32 %v2741, %v2830
        %v2832 = vpop.f32.mrf.mxu0
        %2833 = vdwg.mxu0
        %vm2834 = vcmask 195584
        %2835 = vst.msk [vmem:[#allocation2] sm:$0xff] %vm2834, 0.0
        %2836 = vst.msk [vmem:[#allocation2 + $0x18] sm:$0xff] %vm2834, 0.0
        %vm2837 = vcmask 1047744
        %2838 = vst.msk [vmem:[#allocation2 + $0x10] sm:$0xff] %vm2837, 0.0
        %2839 = vst.msk [vmem:[#allocation2 + $0x28] sm:$0xff] %vm2837, 0.0
        %v2840 = vmul.f32 %v1052, 0.75
        %v2841 = vmul.f32 %v1052, 0.25
        %v2842 = vadd.f32 %v2840, %v2841
        %2844 = vrot.lane.b32.xlu0 %v2842, 24
        %v2845 = vpop.permute.xlu0 %2844
        %vm2847 = vcmask 322752
        %2848 = vst.msk [vmem:[#allocation2] sm:$0xf] %vm2847, %v2845
        %v2849 = vmul.f32 %v1639, 0.75
        %v2850 = vmul.f32 %v1639, 0.25
        %v2851 = vadd.f32 %v2849, %v2850
        %v2853 = vrot.slane %v2851, 4
        %2854 = vrot.lane.b32.xlu0 %v2853, 24
        %v2855 = vpop.permute.xlu0 %2854
        %vm2857 = vcmask 326852
        %2858 = vst.msk [vmem:[#allocation2] sm:$0xf0] %vm2857, %v2855
        %v2859 = vmul.f32 %v2226, 0.75
        %v2860 = vmul.f32 %v2226, 0.25
        %v2861 = vadd.f32 %v2859, %v2860
        %2863 = vrot.lane.b32.xlu0 %v2861, 24
        %v2864 = vpop.permute.xlu0 %2863
        %2866 = vst.msk [vmem:[#allocation2 + $0x18] sm:$0xf] %vm2847, %v2864
        %v2867 = vmul.f32 %v2813, 0.75
        %v2868 = vmul.f32 %v2813, 0.25
        %v2869 = vadd.f32 %v2867, %v2868
        %v2871 = vrot.slane %v2869, 4
        %2872 = vrot.lane.b32.xlu0 %v2871, 24
        %v2873 = vpop.permute.xlu0 %2872
        %2875 = vst.msk [vmem:[#allocation2 + $0x18] sm:$0xf0] %vm2857, %v2873
        %v2877 = vrot.slane %v2841, 4
        %v2879 = vadd.f32 %v2840, %v2877
        %2881 = vrot.lane.b32.xlu0 %v2879, 40
        %v2882 = vpop.permute.xlu0 %2881
        %vm2884 = vcmask 453952
        %2885 = vst.msk [vmem:[#allocation2] sm:$0xf] %vm2884, %v2882
        %v2887 = vrot.slane %v2850, 4
        %v2889 = vadd.f32 %v2849, %v2887
        %v2891 = vrot.slane %v2889, 4
        %2892 = vrot.lane.b32.xlu0 %v2891, 40
        %v2893 = vpop.permute.xlu0 %2892
        %vm2895 = vcmask 458052
        %2896 = vst.msk [vmem:[#allocation2] sm:$0xf0] %vm2895, %v2893
        %v2898 = vrot.slane %v2860, 4
        %v2900 = vadd.f32 %v2859, %v2898
        %2902 = vrot.lane.b32.xlu0 %v2900, 40
        %v2903 = vpop.permute.xlu0 %2902
        %2905 = vst.msk [vmem:[#allocation2 + $0x18] sm:$0xf] %vm2884, %v2903
        %v2907 = vrot.slane %v2868, 4
        %v2909 = vadd.f32 %v2867, %v2907
        %v2911 = vrot.slane %v2909, 4
        %2912 = vrot.lane.b32.xlu0 %v2911, 40
        %v2913 = vpop.permute.xlu0 %2912
        %2915 = vst.msk [vmem:[#allocation2 + $0x18] sm:$0xf0] %vm2895, %v2913
        %v2916 = vrot.slane %v2879, 4
        %2917 = vrot.lane.b32.xlu0 %v2916, 56
        %v2918 = vpop.permute.xlu0 %2917
        %vm2920 = vcmask 585152
        %2921 = vst.msk [vmem:[#allocation2] sm:$0xf] %vm2920, %v2918
        %2922 = vrot.lane.b32.xlu0 %v2889, 56
        %v2923 = vpop.permute.xlu0 %2922
        %vm2925 = vcmask 589252
        %2926 = vst.msk [vmem:[#allocation2] sm:$0xf0] %vm2925, %v2923
        %v2927 = vrot.slane %v2900, 4
        %2928 = vrot.lane.b32.xlu0 %v2927, 56
        %v2929 = vpop.permute.xlu0 %2928
        %2931 = vst.msk [vmem:[#allocation2 + $0x18] sm:$0xf] %vm2920, %v2929
        %2932 = vrot.lane.b32.xlu0 %v2909, 56
        %v2933 = vpop.permute.xlu0 %2932
        %2935 = vst.msk [vmem:[#allocation2 + $0x18] sm:$0xf0] %vm2925, %v2933
        %v2936 = vmul.f32 %v1058, 0.25
        %v2938 = vrot.slane %v2936, 4
        %v2940 = vadd.f32 %v2840, %v2938
        %v2942 = vrot.slane %v2940, 4
        %2943 = vrot.lane.b32.xlu0 %v2942, 72
        %v2944 = vpop.permute.xlu0 %2943
        %vm2946 = vcmask 716352
        %2947 = vst.msk [vmem:[#allocation2] sm:$0xf] %vm2946, %v2944
        %v2948 = vmul.f32 %v1645, 0.25
        %v2950 = vrot.slane %v2948, 4
        %v2952 = vadd.f32 %v2849, %v2950
        %2954 = vrot.lane.b32.xlu0 %v2952, 72
        %v2955 = vpop.permute.xlu0 %2954
        %vm2957 = vcmask 720452
        %2958 = vst.msk [vmem:[#allocation2] sm:$0xf0] %vm2957, %v2955
        %v2959 = vmul.f32 %v2232, 0.25
        %v2961 = vrot.slane %v2959, 4
        %v2963 = vadd.f32 %v2859, %v2961
        %v2965 = vrot.slane %v2963, 4
        %2966 = vrot.lane.b32.xlu0 %v2965, 72
        %v2967 = vpop.permute.xlu0 %2966
        %2969 = vst.msk [vmem:[#allocation2 + $0x18] sm:$0xf] %vm2946, %v2967
        %v2970 = vmul.f32 %v2819, 0.25
        %v2972 = vrot.slane %v2970, 4
        %v2974 = vadd.f32 %v2867, %v2972
        %2976 = vrot.lane.b32.xlu0 %v2974, 72
        %v2977 = vpop.permute.xlu0 %2976
        %2979 = vst.msk [vmem:[#allocation2 + $0x18] sm:$0xf0] %vm2957, %v2977
        %v2980 = vmul.f32 %v1058, 0.75
        %v2981 = vadd.f32 %v2980, %v2877
        %2983 = vrot.lane.b32.xlu0 %v2981, 88
        %v2984 = vpop.permute.xlu0 %2983
        %vm2986 = vcmask 847552
        %2987 = vst.msk [vmem:[#allocation2] sm:$0xf] %vm2986, %v2984
        %v2988 = vmul.f32 %v1645, 0.75
        %v2989 = vadd.f32 %v2988, %v2887
        %v2991 = vrot.slane %v2989, 4
        %2992 = vrot.lane.b32.xlu0 %v2991, 88
        %v2993 = vpop.permute.xlu0 %2992
        %vm2995 = vcmask 851652
        %2996 = vst.msk [vmem:[#allocation2] sm:$0xf0] %vm2995, %v2993
        %v2997 = vmul.f32 %v2232, 0.75
        %v2998 = vadd.f32 %v2997, %v2898
        %3000 = vrot.lane.b32.xlu0 %v2998, 88
        %v3001 = vpop.permute.xlu0 %3000
        %3003 = vst.msk [vmem:[#allocation2 + $0x18] sm:$0xf] %vm2986, %v3001
        %v3004 = vmul.f32 %v2819, 0.75
        %v3005 = vadd.f32 %v3004, %v2907
        %v3007 = vrot.slane %v3005, 4
        %3008 = vrot.lane.b32.xlu0 %v3007, 88
        %v3009 = vpop.permute.xlu0 %3008
        %3011 = vst.msk [vmem:[#allocation2 + $0x18] sm:$0xf0] %vm2995, %v3009
        %v3012 = vadd.f32 %v2980, %v2938
        %3014 = vrot.lane.b32.xlu0 %v3012, 104
        %v3015 = vpop.permute.xlu0 %3014
        %vm3017 = vcmask 978752
        %3018 = vst.msk [vmem:[#allocation2] sm:$0xf] %vm3017, %v3015
        %v3019 = vadd.f32 %v2988, %v2950
        %v3021 = vrot.slane %v3019, 4
        %3022 = vrot.lane.b32.xlu0 %v3021, 104
        %v3023 = vpop.permute.xlu0 %3022
        %vm3025 = vcmask 982852
        %3026 = vst.msk [vmem:[#allocation2] sm:$0xf0] %vm3025, %v3023
        %v3027 = vadd.f32 %v2997, %v2961
        %3029 = vrot.lane.b32.xlu0 %v3027, 104
        %v3030 = vpop.permute.xlu0 %3029
        %3032 = vst.msk [vmem:[#allocation2 + $0x18] sm:$0xf] %vm3017, %v3030
        %v3033 = vadd.f32 %v3004, %v2972
        %v3035 = vrot.slane %v3033, 4
        %3036 = vrot.lane.b32.xlu0 %v3035, 104
        %v3037 = vpop.permute.xlu0 %3036
        %3039 = vst.msk [vmem:[#allocation2 + $0x18] sm:$0xf0] %vm3025, %v3037
        %v3040 = vrot.slane %v3012, 4
        %3041 = vrot.lane.b32.xlu0 %v3040, 120
        %v3042 = vpop.permute.xlu0 %3041
        %vm3044 = vcmask 1044416
        %3045 = vst.msk [vmem:[#allocation2] sm:$0xf] %vm3044, %v3042
        %vm3046 = vcmask 60416
        %3047 = vst.msk [vmem:[#allocation2 + $0x8] sm:$0xf] %vm3046, %v3042
        %3048 = vrot.lane.b32.xlu0 %v3019, 120
        %v3049 = vpop.permute.xlu0 %3048
        %vm3051 = vcmask 1048516
        %3052 = vst.msk [vmem:[#allocation2] sm:$0xf0] %vm3051, %v3049
        %vm3053 = vcmask 64516
        %3054 = vst.msk [vmem:[#allocation2 + $0x8] sm:$0xf0] %vm3053, %v3049
        %v3055 = vrot.slane %v3027, 4
        %3056 = vrot.lane.b32.xlu0 %v3055, 120
        %v3057 = vpop.permute.xlu0 %3056
        %3059 = vst.msk [vmem:[#allocation2 + $0x18] sm:$0xf] %vm3044, %v3057
        %3060 = vst.msk [vmem:[#allocation2 + $0x20] sm:$0xf] %vm3046, %v3057
        %3061 = vrot.lane.b32.xlu0 %v3033, 120
        %v3062 = vpop.permute.xlu0 %3061
        %3064 = vst.msk [vmem:[#allocation2 + $0x18] sm:$0xf0] %vm3051, %v3062
        %3065 = vst.msk [vmem:[#allocation2 + $0x20] sm:$0xf0] %vm3053, %v3062
        %v3066 = vmul.f32 %v1064, 0.25
        %v3068 = vrot.slane %v3066, 4
        %v3070 = vadd.f32 %v2980, %v3068
        %v3072 = vrot.slane %v3070, 4
        %3073 = vrot.lane.b32.xlu0 %v3072, 8
        %v3074 = vpop.permute.xlu0 %3073
        %vm3076 = vcmask 191552
        %3077 = vst.msk [vmem:[#allocation2 + $0x8] sm:$0xf] %vm3076, %v3074
        %v3078 = vmul.f32 %v1651, 0.25
        %v3080 = vrot.slane %v3078, 4
        %v3082 = vadd.f32 %v2988, %v3080
        %3084 = vrot.lane.b32.xlu0 %v3082, 8
        %v3085 = vpop.permute.xlu0 %3084
        %vm3087 = vcmask 195652
        %3088 = vst.msk [vmem:[#allocation2 + $0x8] sm:$0xf0] %vm3087, %v3085
        %v3089 = vmul.f32 %v2238, 0.25
        %v3091 = vrot.slane %v3089, 4
        %v3093 = vadd.f32 %v2997, %v3091
        %v3095 = vrot.slane %v3093, 4
        %3096 = vrot.lane.b32.xlu0 %v3095, 8
        %v3097 = vpop.permute.xlu0 %3096
        %3099 = vst.msk [vmem:[#allocation2 + $0x20] sm:$0xf] %vm3076, %v3097
        %v3100 = vmul.f32 %v2825, 0.25
        %v3102 = vrot.slane %v3100, 4
        %v3104 = vadd.f32 %v3004, %v3102
        %3106 = vrot.lane.b32.xlu0 %v3104, 8
        %v3107 = vpop.permute.xlu0 %3106
        %3109 = vst.msk [vmem:[#allocation2 + $0x20] sm:$0xf0] %vm3087, %v3107
        %v3110 = vmul.f32 %v1064, 0.75
        %v3111 = vadd.f32 %v3110, %v2938
        %3113 = vrot.lane.b32.xlu0 %v3111, 24
        %v3114 = vpop.permute.xlu0 %3113
        %3116 = vst.msk [vmem:[#allocation2 + $0x8] sm:$0xf] %vm2847, %v3114
        %v3117 = vmul.f32 %v1651, 0.75
        %v3118 = vadd.f32 %v3117, %v2950
        %v3120 = vrot.slane %v3118, 4
        %3121 = vrot.lane.b32.xlu0 %v3120, 24
        %v3122 = vpop.permute.xlu0 %3121
        %3124 = vst.msk [vmem:[#allocation2 + $0x8] sm:$0xf0] %vm2857, %v3122
        %v3125 = vmul.f32 %v2238, 0.75
        %v3126 = vadd.f32 %v3125, %v2961
        %3128 = vrot.lane.b32.xlu0 %v3126, 24
        %v3129 = vpop.permute.xlu0 %3128
        %3131 = vst.msk [vmem:[#allocation2 + $0x20] sm:$0xf] %vm2847, %v3129
        %v3132 = vmul.f32 %v2825, 0.75
        %v3133 = vadd.f32 %v3132, %v2972
        %v3135 = vrot.slane %v3133, 4
        %3136 = vrot.lane.b32.xlu0 %v3135, 24
        %v3137 = vpop.permute.xlu0 %3136
        %3139 = vst.msk [vmem:[#allocation2 + $0x20] sm:$0xf0] %vm2857, %v3137
        %v3140 = vadd.f32 %v3110, %v3068
        %3142 = vrot.lane.b32.xlu0 %v3140, 40
        %v3143 = vpop.permute.xlu0 %3142
        %3145 = vst.msk [vmem:[#allocation2 + $0x8] sm:$0xf] %vm2884, %v3143
        %v3146 = vadd.f32 %v3117, %v3080
        %v3148 = vrot.slane %v3146, 4
        %3149 = vrot.lane.b32.xlu0 %v3148, 40
        %v3150 = vpop.permute.xlu0 %3149
        %3152 = vst.msk [vmem:[#allocation2 + $0x8] sm:$0xf0] %vm2895, %v3150
        %v3153 = vadd.f32 %v3125, %v3091
        %3155 = vrot.lane.b32.xlu0 %v3153, 40
        %v3156 = vpop.permute.xlu0 %3155
        %3158 = vst.msk [vmem:[#allocation2 + $0x20] sm:$0xf] %vm2884, %v3156
        %v3159 = vadd.f32 %v3132, %v3102
        %v3161 = vrot.slane %v3159, 4
        %3162 = vrot.lane.b32.xlu0 %v3161, 40
        %v3163 = vpop.permute.xlu0 %3162
        %3165 = vst.msk [vmem:[#allocation2 + $0x20] sm:$0xf0] %vm2895, %v3163
        %v3166 = vrot.slane %v3140, 4
        %3167 = vrot.lane.b32.xlu0 %v3166, 56
        %v3168 = vpop.permute.xlu0 %3167
        %3170 = vst.msk [vmem:[#allocation2 + $0x8] sm:$0xf] %vm2920, %v3168
        %3171 = vrot.lane.b32.xlu0 %v3146, 56
        %v3172 = vpop.permute.xlu0 %3171
        %3174 = vst.msk [vmem:[#allocation2 + $0x8] sm:$0xf0] %vm2925, %v3172
        %v3175 = vrot.slane %v3153, 4
        %3176 = vrot.lane.b32.xlu0 %v3175, 56
        %v3177 = vpop.permute.xlu0 %3176
        %3179 = vst.msk [vmem:[#allocation2 + $0x20] sm:$0xf] %vm2920, %v3177
        %3180 = vrot.lane.b32.xlu0 %v3159, 56
        %v3181 = vpop.permute.xlu0 %3180
        %3183 = vst.msk [vmem:[#allocation2 + $0x20] sm:$0xf0] %vm2925, %v3181
        %v3184 = vmul.f32 %v1070, 0.25
        %v3186 = vrot.slane %v3184, 4
        %v3188 = vadd.f32 %v3110, %v3186
        %v3190 = vrot.slane %v3188, 4
        %3191 = vrot.lane.b32.xlu0 %v3190, 72
        %v3192 = vpop.permute.xlu0 %3191
        %3194 = vst.msk [vmem:[#allocation2 + $0x8] sm:$0xf] %vm2946, %v3192
        %v3195 = vmul.f32 %v1657, 0.25
        %v3197 = vrot.slane %v3195, 4
        %v3199 = vadd.f32 %v3117, %v3197
        %3201 = vrot.lane.b32.xlu0 %v3199, 72
        %v3202 = vpop.permute.xlu0 %3201
        %3204 = vst.msk [vmem:[#allocation2 + $0x8] sm:$0xf0] %vm2957, %v3202
        %v3205 = vmul.f32 %v2244, 0.25
        %v3207 = vrot.slane %v3205, 4
        %v3209 = vadd.f32 %v3125, %v3207
        %v3211 = vrot.slane %v3209, 4
        %3212 = vrot.lane.b32.xlu0 %v3211, 72
        %v3213 = vpop.permute.xlu0 %3212
        %3215 = vst.msk [vmem:[#allocation2 + $0x20] sm:$0xf] %vm2946, %v3213
        %v3216 = vmul.f32 %v2831, 0.25
        %v3218 = vrot.slane %v3216, 4
        %v3220 = vadd.f32 %v3132, %v3218
        %3222 = vrot.lane.b32.xlu0 %v3220, 72
        %v3223 = vpop.permute.xlu0 %3222
        %3225 = vst.msk [vmem:[#allocation2 + $0x20] sm:$0xf0] %vm2957, %v3223
        %v3226 = vmul.f32 %v1070, 0.75
        %v3227 = vadd.f32 %v3226, %v3068
        %3229 = vrot.lane.b32.xlu0 %v3227, 88
        %v3230 = vpop.permute.xlu0 %3229
        %3232 = vst.msk [vmem:[#allocation2 + $0x8] sm:$0xf] %vm2986, %v3230
        %v3233 = vmul.f32 %v1657, 0.75
        %v3234 = vadd.f32 %v3233, %v3080
        %v3236 = vrot.slane %v3234, 4
        %3237 = vrot.lane.b32.xlu0 %v3236, 88
        %v3238 = vpop.permute.xlu0 %3237
        %3240 = vst.msk [vmem:[#allocation2 + $0x8] sm:$0xf0] %vm2995, %v3238
        %v3241 = vmul.f32 %v2244, 0.75
        %v3242 = vadd.f32 %v3241, %v3091
        %3244 = vrot.lane.b32.xlu0 %v3242, 88
        %v3245 = vpop.permute.xlu0 %3244
        %3247 = vst.msk [vmem:[#allocation2 + $0x20] sm:$0xf] %vm2986, %v3245
        %v3248 = vmul.f32 %v2831, 0.75
        %v3249 = vadd.f32 %v3248, %v3102
        %v3251 = vrot.slane %v3249, 4
        %3252 = vrot.lane.b32.xlu0 %v3251, 88
        %v3253 = vpop.permute.xlu0 %3252
        %3255 = vst.msk [vmem:[#allocation2 + $0x20] sm:$0xf0] %vm2995, %v3253
        %v3256 = vadd.f32 %v3226, %v3186
        %3258 = vrot.lane.b32.xlu0 %v3256, 104
        %v3259 = vpop.permute.xlu0 %3258
        %3261 = vst.msk [vmem:[#allocation2 + $0x8] sm:$0xf] %vm3017, %v3259
        %v3262 = vadd.f32 %v3233, %v3197
        %v3264 = vrot.slane %v3262, 4
        %3265 = vrot.lane.b32.xlu0 %v3264, 104
        %v3266 = vpop.permute.xlu0 %3265
        %3268 = vst.msk [vmem:[#allocation2 + $0x8] sm:$0xf0] %vm3025, %v3266
        %v3269 = vadd.f32 %v3241, %v3207
        %3271 = vrot.lane.b32.xlu0 %v3269, 104
        %v3272 = vpop.permute.xlu0 %3271
        %3274 = vst.msk [vmem:[#allocation2 + $0x20] sm:$0xf] %vm3017, %v3272
        %v3275 = vadd.f32 %v3248, %v3218
        %v3277 = vrot.slane %v3275, 4
        %3278 = vrot.lane.b32.xlu0 %v3277, 104
        %v3279 = vpop.permute.xlu0 %3278
        %3281 = vst.msk [vmem:[#allocation2 + $0x20] sm:$0xf0] %vm3025, %v3279
        %v3282 = vrot.slane %v3256, 4
        %3283 = vrot.lane.b32.xlu0 %v3282, 120
        %v3284 = vpop.permute.xlu0 %3283
        %3286 = vst.msk [vmem:[#allocation2 + $0x8] sm:$0xf] %vm3044, %v3284
        %3287 = vst.msk [vmem:[#allocation2 + $0x10] sm:$0xf] %vm3046, %v3284
        %3288 = vrot.lane.b32.xlu0 %v3262, 120
        %v3289 = vpop.permute.xlu0 %3288
        %3291 = vst.msk [vmem:[#allocation2 + $0x8] sm:$0xf0] %vm3051, %v3289
        %3292 = vst.msk [vmem:[#allocation2 + $0x10] sm:$0xf0] %vm3053, %v3289
        %v3293 = vrot.slane %v3269, 4
        %3294 = vrot.lane.b32.xlu0 %v3293, 120
        %v3295 = vpop.permute.xlu0 %3294
        %3297 = vst.msk [vmem:[#allocation2 + $0x20] sm:$0xf] %vm3044, %v3295
        %3298 = vst.msk [vmem:[#allocation2 + $0x28] sm:$0xf] %vm3046, %v3295
        %3299 = vrot.lane.b32.xlu0 %v3275, 120
        %v3300 = vpop.permute.xlu0 %3299
        %3302 = vst.msk [vmem:[#allocation2 + $0x20] sm:$0xf0] %vm3051, %v3300
        %3303 = vst.msk [vmem:[#allocation2 + $0x28] sm:$0xf0] %vm3053, %v3300
        %v3304 = vadd.f32 %v3226, %v3184
        %v3306 = vrot.slane %v3304, 4
        %3307 = vrot.lane.b32.xlu0 %v3306, 8
        %v3308 = vpop.permute.xlu0 %3307
        %3310 = vst.msk [vmem:[#allocation2 + $0x10] sm:$0xf] %vm3076, %v3308
        %v3311 = vadd.f32 %v3233, %v3195
        %3313 = vrot.lane.b32.xlu0 %v3311, 8
        %v3314 = vpop.permute.xlu0 %3313
        %3316 = vst.msk [vmem:[#allocation2 + $0x10] sm:$0xf0] %vm3087, %v3314
        %v3317 = vadd.f32 %v3241, %v3205
        %v3319 = vrot.slane %v3317, 4
        %3320 = vrot.lane.b32.xlu0 %v3319, 8
        %v3321 = vpop.permute.xlu0 %3320
        %3323 = vst.msk [vmem:[#allocation2 + $0x28] sm:$0xf] %vm3076, %v3321
        %v3324 = vadd.f32 %v3248, %v3216
        %3326 = vrot.lane.b32.xlu0 %v3324, 8
        %v3327 = vpop.permute.xlu0 %3326
        %3329 = vst.msk [vmem:[#allocation2 + $0x28] sm:$0xf0] %vm3087, %v3327
        %v3330 = vld [vmem:[%s4] sm:$0xf]
        %v3331 = vld [vmem:[%s6] sm:$0xf]
        %v3332 = vld [vmem:[%s5] ss:$2 sm:$0x3]
        %s3333 = scalar_lea.vmem %s5, 1
        %v3334 = vld [vmem:[%s3333] ss:$2 sm:$0x3]
        %v3335 = vld [vmem:[#allocation2] sm:$0xff]
        %v3336 = vld [vmem:[#allocation2 + $0x8] sm:$0xff]
        %v3337 = vld [vmem:[#allocation2 + $0x10] sm:$0xff]
        %v3338 = vld [vmem:[#allocation2 + $0x18] sm:$0xf]
        %v3339 = vld [vmem:[#allocation2 + $0x20] sm:$0xf]
        %v3340 = vld [vmem:[#allocation2 + $0x28] sm:$0xf]
        %3342 = vrot.lane.b32.xlu0 %v3330, 92
        %v3343 = vpop.permute.xlu0 %3342
        %3350 = vrot.lane.b32.xlu0 %v3335, 105
        %v3351 = vpop.permute.xlu0 %3350
        %3352 = vrot.lane.b32.xlu0 %v3336, 105
        %v3353 = vpop.permute.xlu0 %3352
        %3354 = vrot.lane.b32.xlu0 %v3337, 105
        %v3355 = vpop.permute.xlu0 %3354
        %3356 = vrot.lane.b32.xlu0 %v3338, 105
        %v3357 = vpop.permute.xlu0 %3356
        %3358 = vrot.lane.b32.xlu0 %v3339, 105
        %v3359 = vpop.permute.xlu0 %3358
        %3360 = vrot.lane.b32.xlu0 %v3340, 105
        %v3361 = vpop.permute.xlu0 %3360
        %vm3362 = vcmask 859136
        %v3363 = vsel %vm3362, %v3351, %v3353
        %v3364 = vsel %vm3362, %v3353, %v3355
        %v3365 = vsel %vm3362, %v3357, %v3359
        %v3366 = vsel %vm3362, %v3359, %v3361
        %vm3369 = vcmask 97280
        %v3370 = vsel %vm3369, %v3343, 0
        %vm3372 = vcmask 1043456
        %v3373 = vsel %vm3372, %v3365, 0
        %v3375 = vsel %vm3372, %v3366, 0
        %3377 = vmatprep.subr.mxu0 0.0
        %3378 = vmatpush1.msra.mxu0 0.0
        %3379 = vmatprep.subr.mxu0 0.0
        %3380 = vmatpush1.msra.mxu0 0.0
        %3381 = vmatprep.subr.mxu0 0.0
        %3382 = vmatpush1.msra.mxu0 0.0
        %3383 = vmatprep.subr.mxu0 0.0
        %3384 = vmatpush1.msra.mxu0 0.0
        %3385 = vmatprep.subr.mxu0 0.0
        %3386 = vmatpush1.msra.mxu0 0.0
        %3387 = vmatprep.subr.mxu0 0.0
        %3388 = vmatpush1.msra.mxu0 0.0
        %3389 = vmatprep.subr.mxu0 0.0
        %3390 = vmatpush1.msra.mxu0 0.0
        %3391 = vmatprep.subr.mxu0 0.0
        %3392 = vmatpush1.msra.mxu0 0.0
        %3393 = vmatprep.subr.mxu0 0.0
        %3394 = vmatpush1.msra.mxu0 0.0
        %3395 = vmatprep.subr.mxu0 0.0
        %3396 = vmatpush1.msra.mxu0 0.0
        %3397 = vmatprep.subr.mxu0 0.0
        %3398 = vmatpush1.msra.mxu0 0.0
        %3399 = vmatprep.subr.mxu0 0.0
        %3400 = vmatpush1.msra.mxu0 0.0
        %3401 = vmatprep.subr.mxu0 0.0
        %3402 = vmatpush1.msra.mxu0 0.0
        %3403 = vmatprep.subr.mxu0 0.0
        %3404 = vmatpush1.msra.mxu0 0.0
        %3405 = vmatprep.subr.mxu0 %v3375
        %3406 = vmatpush1.msra.mxu0 %v3373
        %3407 = vmatprep.subr.mxu0 %v3364
        %3408 = vmatpush1.msra.mxu0 %v3363
        %3409 = vmatprep.subr.mxu0 0.0
        %3410 = vmatpush2.msra.mxu0 0.0
        %3411 = vmatprep.subr.mxu0 0.0
        %3412 = vmatpush2.msra.mxu0 0.0
        %3413 = vmatprep.subr.mxu0 0.0
        %3414 = vmatpush2.msra.mxu0 0.0
        %3415 = vmatprep.subr.mxu0 0.0
        %3416 = vmatpush2.msra.mxu0 0.0
        %3417 = vmatprep.subr.mxu0 0.0
        %3418 = vmatpush2.msra.mxu0 0.0
        %3419 = vmatprep.subr.mxu0 0.0
        %3420 = vmatpush2.msra.mxu0 0.0
        %3421 = vmatprep.subr.mxu0 0.0
        %3422 = vmatpush2.msra.mxu0 0.0
        %3423 = vmatprep.subr.mxu0 0.0
        %3424 = vmatpush2.msra.mxu0 0.0
        %3425 = vmatprep.subr.mxu0 0.0
        %3426 = vmatpush2.msra.mxu0 0.0
        %3427 = vmatprep.subr.mxu0 0.0
        %3428 = vmatpush2.msra.mxu0 0.0
        %3429 = vmatprep.subr.mxu0 0.0
        %3430 = vmatpush2.msra.mxu0 0.0
        %3431 = vmatprep.subr.mxu0 0.0
        %3432 = vmatpush2.msra.mxu0 0.0
        %3433 = vmatprep.subr.mxu0 0.0
        %3434 = vmatpush2.msra.mxu0 0.0
        %3435 = vmatprep.subr.mxu0 0.0
        %3436 = vmatpush2.msra.mxu0 0.0
        %3437 = vmatprep.subr.mxu0 0.0
        %3438 = vmatpush2.msra.mxu0 0.0
        %3439 = vmatprep.subr.mxu0 0.0
        %3440 = vmatpush2.msra.mxu0 0.0
        %3441 = vmatprep.mubr.f32.mxu0 0.0
        %3442 = vmatmul.mubr.f32.gmra.mxu0 %v3370
        %v3443 = vpop.f32.mrf.mxu0
        %v3444 = vadd.f32 0.0, %v3443
        %v3445 = vpop.f32.mrf.mxu0
        %v3446 = vadd.f32 0.0, %v3445
        %3447 = vdwg.mxu0
        %3448 = vrot.lane.b32.xlu0 %v3335, 121
        %v3449 = vpop.permute.xlu0 %3448
        %3450 = vrot.lane.b32.xlu0 %v3336, 121
        %v3451 = vpop.permute.xlu0 %3450
        %3452 = vrot.lane.b32.xlu0 %v3337, 121
        %v3453 = vpop.permute.xlu0 %3452
        %3454 = vrot.lane.b32.xlu0 %v3338, 121
        %v3455 = vpop.permute.xlu0 %3454
        %3456 = vrot.lane.b32.xlu0 %v3339, 121
        %v3457 = vpop.permute.xlu0 %3456
        %3458 = vrot.lane.b32.xlu0 %v3340, 121
        %v3459 = vpop.permute.xlu0 %3458
        %vm3460 = vcmask 990208
        %v3461 = vsel %vm3460, %v3449, %v3451
        %v3462 = vsel %vm3460, %v3451, %v3453
        %v3463 = vsel %vm3460, %v3455, %v3457
        %v3464 = vsel %vm3460, %v3457, %v3459
        %v3467 = vsel %vm3369, %v3330, 0
        %v3469 = vsel %vm3372, %v3463, 0
        %v3471 = vsel %vm3372, %v3464, 0
        %3473 = vmatprep.subr.mxu0 0.0
        %3474 = vmatpush1.msra.mxu0 0.0
        %3475 = vmatprep.subr.mxu0 0.0
        %3476 = vmatpush1.msra.mxu0 0.0
        %3477 = vmatprep.subr.mxu0 0.0
        %3478 = vmatpush1.msra.mxu0 0.0
        %3479 = vmatprep.subr.mxu0 0.0
        %3480 = vmatpush1.msra.mxu0 0.0
        %3481 = vmatprep.subr.mxu0 0.0
        %3482 = vmatpush1.msra.mxu0 0.0
        %3483 = vmatprep.subr.mxu0 0.0
        %3484 = vmatpush1.msra.mxu0 0.0
        %3485 = vmatprep.subr.mxu0 0.0
        %3486 = vmatpush1.msra.mxu0 0.0
        %3487 = vmatprep.subr.mxu0 0.0
        %3488 = vmatpush1.msra.mxu0 0.0
        %3489 = vmatprep.subr.mxu0 0.0
        %3490 = vmatpush1.msra.mxu0 0.0
        %3491 = vmatprep.subr.mxu0 0.0
        %3492 = vmatpush1.msra.mxu0 0.0
        %3493 = vmatprep.subr.mxu0 0.0
        %3494 = vmatpush1.msra.mxu0 0.0
        %3495 = vmatprep.subr.mxu0 0.0
        %3496 = vmatpush1.msra.mxu0 0.0
        %3497 = vmatprep.subr.mxu0 0.0
        %3498 = vmatpush1.msra.mxu0 0.0
        %3499 = vmatprep.subr.mxu0 0.0
        %3500 = vmatpush1.msra.mxu0 0.0
        %3501 = vmatprep.subr.mxu0 %v3471
        %3502 = vmatpush1.msra.mxu0 %v3469
        %3503 = vmatprep.subr.mxu0 %v3462
        %3504 = vmatpush1.msra.mxu0 %v3461
        %3505 = vmatprep.subr.mxu0 0.0
        %3506 = vmatpush2.msra.mxu0 0.0
        %3507 = vmatprep.subr.mxu0 0.0
        %3508 = vmatpush2.msra.mxu0 0.0
        %3509 = vmatprep.subr.mxu0 0.0
        %3510 = vmatpush2.msra.mxu0 0.0
        %3511 = vmatprep.subr.mxu0 0.0
        %3512 = vmatpush2.msra.mxu0 0.0
        %3513 = vmatprep.subr.mxu0 0.0
        %3514 = vmatpush2.msra.mxu0 0.0
        %3515 = vmatprep.subr.mxu0 0.0
        %3516 = vmatpush2.msra.mxu0 0.0
        %3517 = vmatprep.subr.mxu0 0.0
        %3518 = vmatpush2.msra.mxu0 0.0
        %3519 = vmatprep.subr.mxu0 0.0
        %3520 = vmatpush2.msra.mxu0 0.0
        %3521 = vmatprep.subr.mxu0 0.0
        %3522 = vmatpush2.msra.mxu0 0.0
        %3523 = vmatprep.subr.mxu0 0.0
        %3524 = vmatpush2.msra.mxu0 0.0
        %3525 = vmatprep.subr.mxu0 0.0
        %3526 = vmatpush2.msra.mxu0 0.0
        %3527 = vmatprep.subr.mxu0 0.0
        %3528 = vmatpush2.msra.mxu0 0.0
        %3529 = vmatprep.subr.mxu0 0.0
        %3530 = vmatpush2.msra.mxu0 0.0
        %3531 = vmatprep.subr.mxu0 0.0
        %3532 = vmatpush2.msra.mxu0 0.0
        %3533 = vmatprep.subr.mxu0 0.0
        %3534 = vmatpush2.msra.mxu0 0.0
        %3535 = vmatprep.subr.mxu0 0.0
        %3536 = vmatpush2.msra.mxu0 0.0
        %3537 = vmatprep.mubr.f32.mxu0 0.0
        %3538 = vmatmul.mubr.f32.gmra.mxu0 %v3467
        %v3539 = vpop.f32.mrf.mxu0
        %v3540 = vadd.f32 %v3444, %v3539
        %v3541 = vpop.f32.mrf.mxu0
        %v3542 = vadd.f32 %v3446, %v3541
        %3543 = vdwg.mxu0
        %3544 = vrot.lane.b32.xlu0 %v3330, 80
        %v3545 = vpop.permute.xlu0 %3544
        %3546 = vrot.lane.b32.xlu0 %v3335, 104
        %v3547 = vpop.permute.xlu0 %3546
        %3548 = vrot.lane.b32.xlu0 %v3336, 104
        %v3549 = vpop.permute.xlu0 %3548
        %3550 = vrot.lane.b32.xlu0 %v3337, 104
        %v3551 = vpop.permute.xlu0 %3550
        %3552 = vrot.lane.b32.xlu0 %v3338, 104
        %v3553 = vpop.permute.xlu0 %3552
        %3554 = vrot.lane.b32.xlu0 %v3339, 104
        %v3555 = vpop.permute.xlu0 %3554
        %3556 = vrot.lane.b32.xlu0 %v3340, 104
        %v3557 = vpop.permute.xlu0 %3556
        %vm3558 = vcmask 850944
        %v3559 = vsel %vm3558, %v3547, %v3549
        %v3560 = vsel %vm3558, %v3549, %v3551
        %v3561 = vsel %vm3558, %v3553, %v3555
        %v3562 = vsel %vm3558, %v3555, %v3557
        %v3565 = vsel %vm3369, %v3545, 0
        %v3567 = vsel %vm3372, %v3561, 0
        %v3569 = vsel %vm3372, %v3562, 0
        %3571 = vmatprep.subr.mxu0 0.0
        %3572 = vmatpush1.msra.mxu0 0.0
        %3573 = vmatprep.subr.mxu0 0.0
        %3574 = vmatpush1.msra.mxu0 0.0
        %3575 = vmatprep.subr.mxu0 0.0
        %3576 = vmatpush1.msra.mxu0 0.0
        %3577 = vmatprep.subr.mxu0 0.0
        %3578 = vmatpush1.msra.mxu0 0.0
        %3579 = vmatprep.subr.mxu0 0.0
        %3580 = vmatpush1.msra.mxu0 0.0
        %3581 = vmatprep.subr.mxu0 0.0
        %3582 = vmatpush1.msra.mxu0 0.0
        %3583 = vmatprep.subr.mxu0 0.0
        %3584 = vmatpush1.msra.mxu0 0.0
        %3585 = vmatprep.subr.mxu0 0.0
        %3586 = vmatpush1.msra.mxu0 0.0
        %3587 = vmatprep.subr.mxu0 0.0
        %3588 = vmatpush1.msra.mxu0 0.0
        %3589 = vmatprep.subr.mxu0 0.0
        %3590 = vmatpush1.msra.mxu0 0.0
        %3591 = vmatprep.subr.mxu0 0.0
        %3592 = vmatpush1.msra.mxu0 0.0
        %3593 = vmatprep.subr.mxu0 0.0
        %3594 = vmatpush1.msra.mxu0 0.0
        %3595 = vmatprep.subr.mxu0 0.0
        %3596 = vmatpush1.msra.mxu0 0.0
        %3597 = vmatprep.subr.mxu0 0.0
        %3598 = vmatpush1.msra.mxu0 0.0
        %3599 = vmatprep.subr.mxu0 %v3569
        %3600 = vmatpush1.msra.mxu0 %v3567
        %3601 = vmatprep.subr.mxu0 %v3560
        %3602 = vmatpush1.msra.mxu0 %v3559
        %3603 = vmatprep.subr.mxu0 0.0
        %3604 = vmatpush2.msra.mxu0 0.0
        %3605 = vmatprep.subr.mxu0 0.0
        %3606 = vmatpush2.msra.mxu0 0.0
        %3607 = vmatprep.subr.mxu0 0.0
        %3608 = vmatpush2.msra.mxu0 0.0
        %3609 = vmatprep.subr.mxu0 0.0
        %3610 = vmatpush2.msra.mxu0 0.0
        %3611 = vmatprep.subr.mxu0 0.0
        %3612 = vmatpush2.msra.mxu0 0.0
        %3613 = vmatprep.subr.mxu0 0.0
        %3614 = vmatpush2.msra.mxu0 0.0
        %3615 = vmatprep.subr.mxu0 0.0
        %3616 = vmatpush2.msra.mxu0 0.0
        %3617 = vmatprep.subr.mxu0 0.0
        %3618 = vmatpush2.msra.mxu0 0.0
        %3619 = vmatprep.subr.mxu0 0.0
        %3620 = vmatpush2.msra.mxu0 0.0
        %3621 = vmatprep.subr.mxu0 0.0
        %3622 = vmatpush2.msra.mxu0 0.0
        %3623 = vmatprep.subr.mxu0 0.0
        %3624 = vmatpush2.msra.mxu0 0.0
        %3625 = vmatprep.subr.mxu0 0.0
        %3626 = vmatpush2.msra.mxu0 0.0
        %3627 = vmatprep.subr.mxu0 0.0
        %3628 = vmatpush2.msra.mxu0 0.0
        %3629 = vmatprep.subr.mxu0 0.0
        %3630 = vmatpush2.msra.mxu0 0.0
        %3631 = vmatprep.subr.mxu0 0.0
        %3632 = vmatpush2.msra.mxu0 0.0
        %3633 = vmatprep.subr.mxu0 0.0
        %3634 = vmatpush2.msra.mxu0 0.0
        %3635 = vmatprep.mubr.f32.mxu0 0.0
        %3636 = vmatmul.mubr.f32.gmra.mxu0 %v3565
        %v3637 = vpop.f32.mrf.mxu0
        %v3638 = vadd.f32 0.0, %v3637
        %v3639 = vpop.f32.mrf.mxu0
        %v3640 = vadd.f32 0.0, %v3639
        %3641 = vdwg.mxu0
        %3642 = vrot.lane.b32.xlu0 %v3330, 116
        %v3643 = vpop.permute.xlu0 %3642
        %3644 = vrot.lane.b32.xlu0 %v3335, 120
        %v3645 = vpop.permute.xlu0 %3644
        %3646 = vrot.lane.b32.xlu0 %v3336, 120
        %v3647 = vpop.permute.xlu0 %3646
        %3648 = vrot.lane.b32.xlu0 %v3337, 120
        %v3649 = vpop.permute.xlu0 %3648
        %3650 = vrot.lane.b32.xlu0 %v3338, 120
        %v3651 = vpop.permute.xlu0 %3650
        %3652 = vrot.lane.b32.xlu0 %v3339, 120
        %v3653 = vpop.permute.xlu0 %3652
        %3654 = vrot.lane.b32.xlu0 %v3340, 120
        %v3655 = vpop.permute.xlu0 %3654
        %vm3656 = vcmask 982016
        %v3657 = vsel %vm3656, %v3645, %v3647
        %v3658 = vsel %vm3656, %v3647, %v3649
        %v3659 = vsel %vm3656, %v3651, %v3653
        %v3660 = vsel %vm3656, %v3653, %v3655
        %v3663 = vsel %vm3369, %v3643, 0
        %v3665 = vsel %vm3372, %v3659, 0
        %v3667 = vsel %vm3372, %v3660, 0
        %3669 = vmatprep.subr.mxu0 0.0
        %3670 = vmatpush1.msra.mxu0 0.0
        %3671 = vmatprep.subr.mxu0 0.0
        %3672 = vmatpush1.msra.mxu0 0.0
        %3673 = vmatprep.subr.mxu0 0.0
        %3674 = vmatpush1.msra.mxu0 0.0
        %3675 = vmatprep.subr.mxu0 0.0
        %3676 = vmatpush1.msra.mxu0 0.0
        %3677 = vmatprep.subr.mxu0 0.0
        %3678 = vmatpush1.msra.mxu0 0.0
        %3679 = vmatprep.subr.mxu0 0.0
        %3680 = vmatpush1.msra.mxu0 0.0
        %3681 = vmatprep.subr.mxu0 0.0
        %3682 = vmatpush1.msra.mxu0 0.0
        %3683 = vmatprep.subr.mxu0 0.0
        %3684 = vmatpush1.msra.mxu0 0.0
        %3685 = vmatprep.subr.mxu0 0.0
        %3686 = vmatpush1.msra.mxu0 0.0
        %3687 = vmatprep.subr.mxu0 0.0
        %3688 = vmatpush1.msra.mxu0 0.0
        %3689 = vmatprep.subr.mxu0 0.0
        %3690 = vmatpush1.msra.mxu0 0.0
        %3691 = vmatprep.subr.mxu0 0.0
        %3692 = vmatpush1.msra.mxu0 0.0
        %3693 = vmatprep.subr.mxu0 0.0
        %3694 = vmatpush1.msra.mxu0 0.0
        %3695 = vmatprep.subr.mxu0 0.0
        %3696 = vmatpush1.msra.mxu0 0.0
        %3697 = vmatprep.subr.mxu0 %v3667
        %3698 = vmatpush1.msra.mxu0 %v3665
        %3699 = vmatprep.subr.mxu0 %v3658
        %3700 = vmatpush1.msra.mxu0 %v3657
        %3701 = vmatprep.subr.mxu0 0.0
        %3702 = vmatpush2.msra.mxu0 0.0
        %3703 = vmatprep.subr.mxu0 0.0
        %3704 = vmatpush2.msra.mxu0 0.0
        %3705 = vmatprep.subr.mxu0 0.0
        %3706 = vmatpush2.msra.mxu0 0.0
        %3707 = vmatprep.subr.mxu0 0.0
        %3708 = vmatpush2.msra.mxu0 0.0
        %3709 = vmatprep.subr.mxu0 0.0
        %3710 = vmatpush2.msra.mxu0 0.0
        %3711 = vmatprep.subr.mxu0 0.0
        %3712 = vmatpush2.msra.mxu0 0.0
        %3713 = vmatprep.subr.mxu0 0.0
        %3714 = vmatpush2.msra.mxu0 0.0
        %3715 = vmatprep.subr.mxu0 0.0
        %3716 = vmatpush2.msra.mxu0 0.0
        %3717 = vmatprep.subr.mxu0 0.0
        %3718 = vmatpush2.msra.mxu0 0.0
        %3719 = vmatprep.subr.mxu0 0.0
        %3720 = vmatpush2.msra.mxu0 0.0
        %3721 = vmatprep.subr.mxu0 0.0
        %3722 = vmatpush2.msra.mxu0 0.0
        %3723 = vmatprep.subr.mxu0 0.0
        %3724 = vmatpush2.msra.mxu0 0.0
        %3725 = vmatprep.subr.mxu0 0.0
        %3726 = vmatpush2.msra.mxu0 0.0
        %3727 = vmatprep.subr.mxu0 0.0
        %3728 = vmatpush2.msra.mxu0 0.0
        %3729 = vmatprep.subr.mxu0 0.0
        %3730 = vmatpush2.msra.mxu0 0.0
        %3731 = vmatprep.subr.mxu0 0.0
        %3732 = vmatpush2.msra.mxu0 0.0
        %3733 = vmatprep.mubr.f32.mxu0 0.0
        %3734 = vmatmul.mubr.f32.gmra.mxu0 %v3663
        %v3735 = vpop.f32.mrf.mxu0
        %v3736 = vadd.f32 %v3638, %v3735
        %v3737 = vpop.f32.mrf.mxu0
        %v3738 = vadd.f32 %v3640, %v3737
        %3739 = vdwg.mxu0
        %3740 = vrot.lane.b32.xlu0 %v3330, 68
        %v3741 = vpop.permute.xlu0 %3740
        %3742 = vrot.lane.b32.xlu0 %v3335, 103
        %v3743 = vpop.permute.xlu0 %3742
        %3744 = vrot.lane.b32.xlu0 %v3336, 103
        %v3745 = vpop.permute.xlu0 %3744
        %3746 = vrot.lane.b32.xlu0 %v3337, 103
        %v3747 = vpop.permute.xlu0 %3746
        %3748 = vrot.lane.b32.xlu0 %v3338, 103
        %v3749 = vpop.permute.xlu0 %3748
        %3750 = vrot.lane.b32.xlu0 %v3339, 103
        %v3751 = vpop.permute.xlu0 %3750
        %3752 = vrot.lane.b32.xlu0 %v3340, 103
        %v3753 = vpop.permute.xlu0 %3752
        %vm3754 = vcmask 842752
        %v3755 = vsel %vm3754, %v3743, %v3745
        %v3756 = vsel %vm3754, %v3745, %v3747
        %v3757 = vsel %vm3754, %v3749, %v3751
        %v3758 = vsel %vm3754, %v3751, %v3753
        %v3761 = vsel %vm3369, %v3741, 0
        %v3763 = vsel %vm3372, %v3757, 0
        %v3765 = vsel %vm3372, %v3758, 0
        %3767 = vmatprep.subr.mxu0 0.0
        %3768 = vmatpush1.msra.mxu0 0.0
        %3769 = vmatprep.subr.mxu0 0.0
        %3770 = vmatpush1.msra.mxu0 0.0
        %3771 = vmatprep.subr.mxu0 0.0
        %3772 = vmatpush1.msra.mxu0 0.0
        %3773 = vmatprep.subr.mxu0 0.0
        %3774 = vmatpush1.msra.mxu0 0.0
        %3775 = vmatprep.subr.mxu0 0.0
        %3776 = vmatpush1.msra.mxu0 0.0
        %3777 = vmatprep.subr.mxu0 0.0
        %3778 = vmatpush1.msra.mxu0 0.0
        %3779 = vmatprep.subr.mxu0 0.0
        %3780 = vmatpush1.msra.mxu0 0.0
        %3781 = vmatprep.subr.mxu0 0.0
        %3782 = vmatpush1.msra.mxu0 0.0
        %3783 = vmatprep.subr.mxu0 0.0
        %3784 = vmatpush1.msra.mxu0 0.0
        %3785 = vmatprep.subr.mxu0 0.0
        %3786 = vmatpush1.msra.mxu0 0.0
        %3787 = vmatprep.subr.mxu0 0.0
        %3788 = vmatpush1.msra.mxu0 0.0
        %3789 = vmatprep.subr.mxu0 0.0
        %3790 = vmatpush1.msra.mxu0 0.0
        %3791 = vmatprep.subr.mxu0 0.0
        %3792 = vmatpush1.msra.mxu0 0.0
        %3793 = vmatprep.subr.mxu0 0.0
        %3794 = vmatpush1.msra.mxu0 0.0
        %3795 = vmatprep.subr.mxu0 %v3765
        %3796 = vmatpush1.msra.mxu0 %v3763
        %3797 = vmatprep.subr.mxu0 %v3756
        %3798 = vmatpush1.msra.mxu0 %v3755
        %3799 = vmatprep.subr.mxu0 0.0
        %3800 = vmatpush2.msra.mxu0 0.0
        %3801 = vmatprep.subr.mxu0 0.0
        %3802 = vmatpush2.msra.mxu0 0.0
        %3803 = vmatprep.subr.mxu0 0.0
        %3804 = vmatpush2.msra.mxu0 0.0
        %3805 = vmatprep.subr.mxu0 0.0
        %3806 = vmatpush2.msra.mxu0 0.0
        %3807 = vmatprep.subr.mxu0 0.0
        %3808 = vmatpush2.msra.mxu0 0.0
        %3809 = vmatprep.subr.mxu0 0.0
        %3810 = vmatpush2.msra.mxu0 0.0
        %3811 = vmatprep.subr.mxu0 0.0
        %3812 = vmatpush2.msra.mxu0 0.0
        %3813 = vmatprep.subr.mxu0 0.0
        %3814 = vmatpush2.msra.mxu0 0.0
        %3815 = vmatprep.subr.mxu0 0.0
        %3816 = vmatpush2.msra.mxu0 0.0
        %3817 = vmatprep.subr.mxu0 0.0
        %3818 = vmatpush2.msra.mxu0 0.0
        %3819 = vmatprep.subr.mxu0 0.0
        %3820 = vmatpush2.msra.mxu0 0.0
        %3821 = vmatprep.subr.mxu0 0.0
        %3822 = vmatpush2.msra.mxu0 0.0
        %3823 = vmatprep.subr.mxu0 0.0
        %3824 = vmatpush2.msra.mxu0 0.0
        %3825 = vmatprep.subr.mxu0 0.0
        %3826 = vmatpush2.msra.mxu0 0.0
        %3827 = vmatprep.subr.mxu0 0.0
        %3828 = vmatpush2.msra.mxu0 0.0
        %3829 = vmatprep.subr.mxu0 0.0
        %3830 = vmatpush2.msra.mxu0 0.0
        %3831 = vmatprep.mubr.f32.mxu0 0.0
        %3832 = vmatmul.mubr.f32.gmra.mxu0 %v3761
        %v3833 = vpop.f32.mrf.mxu0
        %v3834 = vadd.f32 0.0, %v3833
        %v3835 = vpop.f32.mrf.mxu0
        %v3836 = vadd.f32 0.0, %v3835
        %3837 = vdwg.mxu0
        %3838 = vrot.lane.b32.xlu0 %v3330, 104
        %v3839 = vpop.permute.xlu0 %3838
        %3840 = vrot.lane.b32.xlu0 %v3335, 119
        %v3841 = vpop.permute.xlu0 %3840
        %3842 = vrot.lane.b32.xlu0 %v3336, 119
        %v3843 = vpop.permute.xlu0 %3842
        %3844 = vrot.lane.b32.xlu0 %v3337, 119
        %v3845 = vpop.permute.xlu0 %3844
        %3846 = vrot.lane.b32.xlu0 %v3338, 119
        %v3847 = vpop.permute.xlu0 %3846
        %3848 = vrot.lane.b32.xlu0 %v3339, 119
        %v3849 = vpop.permute.xlu0 %3848
        %3850 = vrot.lane.b32.xlu0 %v3340, 119
        %v3851 = vpop.permute.xlu0 %3850
        %vm3852 = vcmask 973824
        %v3853 = vsel %vm3852, %v3841, %v3843
        %v3854 = vsel %vm3852, %v3843, %v3845
        %v3855 = vsel %vm3852, %v3847, %v3849
        %v3856 = vsel %vm3852, %v3849, %v3851
        %v3859 = vsel %vm3369, %v3839, 0
        %v3861 = vsel %vm3372, %v3855, 0
        %v3863 = vsel %vm3372, %v3856, 0
        %3865 = vmatprep.subr.mxu0 0.0
        %3866 = vmatpush1.msra.mxu0 0.0
        %3867 = vmatprep.subr.mxu0 0.0
        %3868 = vmatpush1.msra.mxu0 0.0
        %3869 = vmatprep.subr.mxu0 0.0
        %3870 = vmatpush1.msra.mxu0 0.0
        %3871 = vmatprep.subr.mxu0 0.0
        %3872 = vmatpush1.msra.mxu0 0.0
        %3873 = vmatprep.subr.mxu0 0.0
        %3874 = vmatpush1.msra.mxu0 0.0
        %3875 = vmatprep.subr.mxu0 0.0
        %3876 = vmatpush1.msra.mxu0 0.0
        %3877 = vmatprep.subr.mxu0 0.0
        %3878 = vmatpush1.msra.mxu0 0.0
        %3879 = vmatprep.subr.mxu0 0.0
        %3880 = vmatpush1.msra.mxu0 0.0
        %3881 = vmatprep.subr.mxu0 0.0
        %3882 = vmatpush1.msra.mxu0 0.0
        %3883 = vmatprep.subr.mxu0 0.0
        %3884 = vmatpush1.msra.mxu0 0.0
        %3885 = vmatprep.subr.mxu0 0.0
        %3886 = vmatpush1.msra.mxu0 0.0
        %3887 = vmatprep.subr.mxu0 0.0
        %3888 = vmatpush1.msra.mxu0 0.0
        %3889 = vmatprep.subr.mxu0 0.0
        %3890 = vmatpush1.msra.mxu0 0.0
        %3891 = vmatprep.subr.mxu0 0.0
        %3892 = vmatpush1.msra.mxu0 0.0
        %3893 = vmatprep.subr.mxu0 %v3863
        %3894 = vmatpush1.msra.mxu0 %v3861
        %3895 = vmatprep.subr.mxu0 %v3854
        %3896 = vmatpush1.msra.mxu0 %v3853
        %3897 = vmatprep.subr.mxu0 0.0
        %3898 = vmatpush2.msra.mxu0 0.0
        %3899 = vmatprep.subr.mxu0 0.0
        %3900 = vmatpush2.msra.mxu0 0.0
        %3901 = vmatprep.subr.mxu0 0.0
        %3902 = vmatpush2.msra.mxu0 0.0
        %3903 = vmatprep.subr.mxu0 0.0
        %3904 = vmatpush2.msra.mxu0 0.0
        %3905 = vmatprep.subr.mxu0 0.0
        %3906 = vmatpush2.msra.mxu0 0.0
        %3907 = vmatprep.subr.mxu0 0.0
        %3908 = vmatpush2.msra.mxu0 0.0
        %3909 = vmatprep.subr.mxu0 0.0
        %3910 = vmatpush2.msra.mxu0 0.0
        %3911 = vmatprep.subr.mxu0 0.0
        %3912 = vmatpush2.msra.mxu0 0.0
        %3913 = vmatprep.subr.mxu0 0.0
        %3914 = vmatpush2.msra.mxu0 0.0
        %3915 = vmatprep.subr.mxu0 0.0
        %3916 = vmatpush2.msra.mxu0 0.0
        %3917 = vmatprep.subr.mxu0 0.0
        %3918 = vmatpush2.msra.mxu0 0.0
        %3919 = vmatprep.subr.mxu0 0.0
        %3920 = vmatpush2.msra.mxu0 0.0
        %3921 = vmatprep.subr.mxu0 0.0
        %3922 = vmatpush2.msra.mxu0 0.0
        %3923 = vmatprep.subr.mxu0 0.0
        %3924 = vmatpush2.msra.mxu0 0.0
        %3925 = vmatprep.subr.mxu0 0.0
        %3926 = vmatpush2.msra.mxu0 0.0
        %3927 = vmatprep.subr.mxu0 0.0
        %3928 = vmatpush2.msra.mxu0 0.0
        %3929 = vmatprep.mubr.f32.mxu0 0.0
        %3930 = vmatmul.mubr.f32.gmra.mxu0 %v3859
        %v3931 = vpop.f32.mrf.mxu0
        %v3932 = vadd.f32 %v3834, %v3931
        %v3933 = vpop.f32.mrf.mxu0
        %v3934 = vadd.f32 %v3836, %v3933
        %3935 = vdwg.mxu0
        %3936 = vrot.lane.b32.xlu0 %v3330, 56
        %v3937 = vpop.permute.xlu0 %3936
        %3938 = vrot.lane.b32.xlu0 %v3335, 89
        %v3939 = vpop.permute.xlu0 %3938
        %3940 = vrot.lane.b32.xlu0 %v3336, 89
        %v3941 = vpop.permute.xlu0 %3940
        %3942 = vrot.lane.b32.xlu0 %v3337, 89
        %v3943 = vpop.permute.xlu0 %3942
        %3944 = vrot.lane.b32.xlu0 %v3338, 89
        %v3945 = vpop.permute.xlu0 %3944
        %3946 = vrot.lane.b32.xlu0 %v3339, 89
        %v3947 = vpop.permute.xlu0 %3946
        %3948 = vrot.lane.b32.xlu0 %v3340, 89
        %v3949 = vpop.permute.xlu0 %3948
        %vm3950 = vcmask 728064
        %v3951 = vsel %vm3950, %v3939, %v3941
        %v3952 = vsel %vm3950, %v3941, %v3943
        %v3953 = vsel %vm3950, %v3945, %v3947
        %v3954 = vsel %vm3950, %v3947, %v3949
        %v3957 = vsel %vm3369, %v3937, 0
        %v3959 = vsel %vm3372, %v3953, 0
        %v3961 = vsel %vm3372, %v3954, 0
        %3963 = vmatprep.subr.mxu0 0.0
        %3964 = vmatpush1.msra.mxu0 0.0
        %3965 = vmatprep.subr.mxu0 0.0
        %3966 = vmatpush1.msra.mxu0 0.0
        %3967 = vmatprep.subr.mxu0 0.0
        %3968 = vmatpush1.msra.mxu0 0.0
        %3969 = vmatprep.subr.mxu0 0.0
        %3970 = vmatpush1.msra.mxu0 0.0
        %3971 = vmatprep.subr.mxu0 0.0
        %3972 = vmatpush1.msra.mxu0 0.0
        %3973 = vmatprep.subr.mxu0 0.0
        %3974 = vmatpush1.msra.mxu0 0.0
        %3975 = vmatprep.subr.mxu0 0.0
        %3976 = vmatpush1.msra.mxu0 0.0
        %3977 = vmatprep.subr.mxu0 0.0
        %3978 = vmatpush1.msra.mxu0 0.0
        %3979 = vmatprep.subr.mxu0 0.0
        %3980 = vmatpush1.msra.mxu0 0.0
        %3981 = vmatprep.subr.mxu0 0.0
        %3982 = vmatpush1.msra.mxu0 0.0
        %3983 = vmatprep.subr.mxu0 0.0
        %3984 = vmatpush1.msra.mxu0 0.0
        %3985 = vmatprep.subr.mxu0 0.0
        %3986 = vmatpush1.msra.mxu0 0.0
        %3987 = vmatprep.subr.mxu0 0.0
        %3988 = vmatpush1.msra.mxu0 0.0
        %3989 = vmatprep.subr.mxu0 0.0
        %3990 = vmatpush1.msra.mxu0 0.0
        %3991 = vmatprep.subr.mxu0 %v3961
        %3992 = vmatpush1.msra.mxu0 %v3959
        %3993 = vmatprep.subr.mxu0 %v3952
        %3994 = vmatpush1.msra.mxu0 %v3951
        %3995 = vmatprep.subr.mxu0 0.0
        %3996 = vmatpush2.msra.mxu0 0.0
        %3997 = vmatprep.subr.mxu0 0.0
        %3998 = vmatpush2.msra.mxu0 0.0
        %3999 = vmatprep.subr.mxu0 0.0
        %4000 = vmatpush2.msra.mxu0 0.0
        %4001 = vmatprep.subr.mxu0 0.0
        %4002 = vmatpush2.msra.mxu0 0.0
        %4003 = vmatprep.subr.mxu0 0.0
        %4004 = vmatpush2.msra.mxu0 0.0
        %4005 = vmatprep.subr.mxu0 0.0
        %4006 = vmatpush2.msra.mxu0 0.0
        %4007 = vmatprep.subr.mxu0 0.0
        %4008 = vmatpush2.msra.mxu0 0.0
        %4009 = vmatprep.subr.mxu0 0.0
        %4010 = vmatpush2.msra.mxu0 0.0
        %4011 = vmatprep.subr.mxu0 0.0
        %4012 = vmatpush2.msra.mxu0 0.0
        %4013 = vmatprep.subr.mxu0 0.0
        %4014 = vmatpush2.msra.mxu0 0.0
        %4015 = vmatprep.subr.mxu0 0.0
        %4016 = vmatpush2.msra.mxu0 0.0
        %4017 = vmatprep.subr.mxu0 0.0
        %4018 = vmatpush2.msra.mxu0 0.0
        %4019 = vmatprep.subr.mxu0 0.0
        %4020 = vmatpush2.msra.mxu0 0.0
        %4021 = vmatprep.subr.mxu0 0.0
        %4022 = vmatpush2.msra.mxu0 0.0
        %4023 = vmatprep.subr.mxu0 0.0
        %4024 = vmatpush2.msra.mxu0 0.0
        %4025 = vmatprep.subr.mxu0 0.0
        %4026 = vmatpush2.msra.mxu0 0.0
        %4027 = vmatprep.mubr.f32.mxu0 0.0
        %4028 = vmatmul.mubr.f32.gmra.mxu0 %v3957
        %v4029 = vpop.f32.mrf.mxu0
        %v4030 = vadd.f32 0.0, %v4029
        %v4031 = vpop.f32.mrf.mxu0
        %v4032 = vadd.f32 0.0, %v4031
        %4033 = vdwg.mxu0
        %v4034 = vadd.f32 %v3540, %v4030
        %v4035 = vadd.f32 %v3542, %v4032
        %4036 = vrot.lane.b32.xlu0 %v3330, 44
        %v4037 = vpop.permute.xlu0 %4036
        %4038 = vrot.lane.b32.xlu0 %v3335, 88
        %v4039 = vpop.permute.xlu0 %4038
        %4040 = vrot.lane.b32.xlu0 %v3336, 88
        %v4041 = vpop.permute.xlu0 %4040
        %4042 = vrot.lane.b32.xlu0 %v3337, 88
        %v4043 = vpop.permute.xlu0 %4042
        %4044 = vrot.lane.b32.xlu0 %v3338, 88
        %v4045 = vpop.permute.xlu0 %4044
        %4046 = vrot.lane.b32.xlu0 %v3339, 88
        %v4047 = vpop.permute.xlu0 %4046
        %4048 = vrot.lane.b32.xlu0 %v3340, 88
        %v4049 = vpop.permute.xlu0 %4048
        %vm4050 = vcmask 719872
        %v4051 = vsel %vm4050, %v4039, %v4041
        %v4052 = vsel %vm4050, %v4041, %v4043
        %v4053 = vsel %vm4050, %v4045, %v4047
        %v4054 = vsel %vm4050, %v4047, %v4049
        %v4057 = vsel %vm3369, %v4037, 0
        %v4059 = vsel %vm3372, %v4053, 0
        %v4061 = vsel %vm3372, %v4054, 0
        %4063 = vmatprep.subr.mxu0 0.0
        %4064 = vmatpush1.msra.mxu0 0.0
        %4065 = vmatprep.subr.mxu0 0.0
        %4066 = vmatpush1.msra.mxu0 0.0
        %4067 = vmatprep.subr.mxu0 0.0
        %4068 = vmatpush1.msra.mxu0 0.0
        %4069 = vmatprep.subr.mxu0 0.0
        %4070 = vmatpush1.msra.mxu0 0.0
        %4071 = vmatprep.subr.mxu0 0.0
        %4072 = vmatpush1.msra.mxu0 0.0
        %4073 = vmatprep.subr.mxu0 0.0
        %4074 = vmatpush1.msra.mxu0 0.0
        %4075 = vmatprep.subr.mxu0 0.0
        %4076 = vmatpush1.msra.mxu0 0.0
        %4077 = vmatprep.subr.mxu0 0.0
        %4078 = vmatpush1.msra.mxu0 0.0
        %4079 = vmatprep.subr.mxu0 0.0
        %4080 = vmatpush1.msra.mxu0 0.0
        %4081 = vmatprep.subr.mxu0 0.0
        %4082 = vmatpush1.msra.mxu0 0.0
        %4083 = vmatprep.subr.mxu0 0.0
        %4084 = vmatpush1.msra.mxu0 0.0
        %4085 = vmatprep.subr.mxu0 0.0
        %4086 = vmatpush1.msra.mxu0 0.0
        %4087 = vmatprep.subr.mxu0 0.0
        %4088 = vmatpush1.msra.mxu0 0.0
        %4089 = vmatprep.subr.mxu0 0.0
        %4090 = vmatpush1.msra.mxu0 0.0
        %4091 = vmatprep.subr.mxu0 %v4061
        %4092 = vmatpush1.msra.mxu0 %v4059
        %4093 = vmatprep.subr.mxu0 %v4052
        %4094 = vmatpush1.msra.mxu0 %v4051
        %4095 = vmatprep.subr.mxu0 0.0
        %4096 = vmatpush2.msra.mxu0 0.0
        %4097 = vmatprep.subr.mxu0 0.0
        %4098 = vmatpush2.msra.mxu0 0.0
        %4099 = vmatprep.subr.mxu0 0.0
        %4100 = vmatpush2.msra.mxu0 0.0
        %4101 = vmatprep.subr.mxu0 0.0
        %4102 = vmatpush2.msra.mxu0 0.0
        %4103 = vmatprep.subr.mxu0 0.0
        %4104 = vmatpush2.msra.mxu0 0.0
        %4105 = vmatprep.subr.mxu0 0.0
        %4106 = vmatpush2.msra.mxu0 0.0
        %4107 = vmatprep.subr.mxu0 0.0
        %4108 = vmatpush2.msra.mxu0 0.0
        %4109 = vmatprep.subr.mxu0 0.0
        %4110 = vmatpush2.msra.mxu0 0.0
        %4111 = vmatprep.subr.mxu0 0.0
        %4112 = vmatpush2.msra.mxu0 0.0
        %4113 = vmatprep.subr.mxu0 0.0
        %4114 = vmatpush2.msra.mxu0 0.0
        %4115 = vmatprep.subr.mxu0 0.0
        %4116 = vmatpush2.msra.mxu0 0.0
        %4117 = vmatprep.subr.mxu0 0.0
        %4118 = vmatpush2.msra.mxu0 0.0
        %4119 = vmatprep.subr.mxu0 0.0
        %4120 = vmatpush2.msra.mxu0 0.0
        %4121 = vmatprep.subr.mxu0 0.0
        %4122 = vmatpush2.msra.mxu0 0.0
        %4123 = vmatprep.subr.mxu0 0.0
        %4124 = vmatpush2.msra.mxu0 0.0
        %4125 = vmatprep.subr.mxu0 0.0
        %4126 = vmatpush2.msra.mxu0 0.0
        %4127 = vmatprep.mubr.f32.mxu0 0.0
        %4128 = vmatmul.mubr.f32.gmra.mxu0 %v4057
        %v4129 = vpop.f32.mrf.mxu0
        %v4130 = vadd.f32 0.0, %v4129
        %v4131 = vpop.f32.mrf.mxu0
        %v4132 = vadd.f32 0.0, %v4131
        %4133 = vdwg.mxu0
        %v4134 = vadd.f32 %v3736, %v4130
        %v4135 = vadd.f32 %v3738, %v4132
        %4136 = vrot.lane.b32.xlu0 %v3330, 32
        %v4137 = vpop.permute.xlu0 %4136
        %4138 = vrot.lane.b32.xlu0 %v3335, 87
        %v4139 = vpop.permute.xlu0 %4138
        %4140 = vrot.lane.b32.xlu0 %v3336, 87
        %v4141 = vpop.permute.xlu0 %4140
        %4142 = vrot.lane.b32.xlu0 %v3337, 87
        %v4143 = vpop.permute.xlu0 %4142
        %4144 = vrot.lane.b32.xlu0 %v3338, 87
        %v4145 = vpop.permute.xlu0 %4144
        %4146 = vrot.lane.b32.xlu0 %v3339, 87
        %v4147 = vpop.permute.xlu0 %4146
        %4148 = vrot.lane.b32.xlu0 %v3340, 87
        %v4149 = vpop.permute.xlu0 %4148
        %vm4150 = vcmask 711680
        %v4151 = vsel %vm4150, %v4139, %v4141
        %v4152 = vsel %vm4150, %v4141, %v4143
        %v4153 = vsel %vm4150, %v4145, %v4147
        %v4154 = vsel %vm4150, %v4147, %v4149
        %v4157 = vsel %vm3369, %v4137, 0
        %v4159 = vsel %vm3372, %v4153, 0
        %v4161 = vsel %vm3372, %v4154, 0
        %4163 = vmatprep.subr.mxu0 0.0
        %4164 = vmatpush1.msra.mxu0 0.0
        %4165 = vmatprep.subr.mxu0 0.0
        %4166 = vmatpush1.msra.mxu0 0.0
        %4167 = vmatprep.subr.mxu0 0.0
        %4168 = vmatpush1.msra.mxu0 0.0
        %4169 = vmatprep.subr.mxu0 0.0
        %4170 = vmatpush1.msra.mxu0 0.0
        %4171 = vmatprep.subr.mxu0 0.0
        %4172 = vmatpush1.msra.mxu0 0.0
        %4173 = vmatprep.subr.mxu0 0.0
        %4174 = vmatpush1.msra.mxu0 0.0
        %4175 = vmatprep.subr.mxu0 0.0
        %4176 = vmatpush1.msra.mxu0 0.0
        %4177 = vmatprep.subr.mxu0 0.0
        %4178 = vmatpush1.msra.mxu0 0.0
        %4179 = vmatprep.subr.mxu0 0.0
        %4180 = vmatpush1.msra.mxu0 0.0
        %4181 = vmatprep.subr.mxu0 0.0
        %4182 = vmatpush1.msra.mxu0 0.0
        %4183 = vmatprep.subr.mxu0 0.0
        %4184 = vmatpush1.msra.mxu0 0.0
        %4185 = vmatprep.subr.mxu0 0.0
        %4186 = vmatpush1.msra.mxu0 0.0
        %4187 = vmatprep.subr.mxu0 0.0
        %4188 = vmatpush1.msra.mxu0 0.0
        %4189 = vmatprep.subr.mxu0 0.0
        %4190 = vmatpush1.msra.mxu0 0.0
        %4191 = vmatprep.subr.mxu0 %v4161
        %4192 = vmatpush1.msra.mxu0 %v4159
        %4193 = vmatprep.subr.mxu0 %v4152
        %4194 = vmatpush1.msra.mxu0 %v4151
        %4195 = vmatprep.subr.mxu0 0.0
        %4196 = vmatpush2.msra.mxu0 0.0
        %4197 = vmatprep.subr.mxu0 0.0
        %4198 = vmatpush2.msra.mxu0 0.0
        %4199 = vmatprep.subr.mxu0 0.0
        %4200 = vmatpush2.msra.mxu0 0.0
        %4201 = vmatprep.subr.mxu0 0.0
        %4202 = vmatpush2.msra.mxu0 0.0
        %4203 = vmatprep.subr.mxu0 0.0
        %4204 = vmatpush2.msra.mxu0 0.0
        %4205 = vmatprep.subr.mxu0 0.0
        %4206 = vmatpush2.msra.mxu0 0.0
        %4207 = vmatprep.subr.mxu0 0.0
        %4208 = vmatpush2.msra.mxu0 0.0
        %4209 = vmatprep.subr.mxu0 0.0
        %4210 = vmatpush2.msra.mxu0 0.0
        %4211 = vmatprep.subr.mxu0 0.0
        %4212 = vmatpush2.msra.mxu0 0.0
        %4213 = vmatprep.subr.mxu0 0.0
        %4214 = vmatpush2.msra.mxu0 0.0
        %4215 = vmatprep.subr.mxu0 0.0
        %4216 = vmatpush2.msra.mxu0 0.0
        %4217 = vmatprep.subr.mxu0 0.0
        %4218 = vmatpush2.msra.mxu0 0.0
        %4219 = vmatprep.subr.mxu0 0.0
        %4220 = vmatpush2.msra.mxu0 0.0
        %4221 = vmatprep.subr.mxu0 0.0
        %4222 = vmatpush2.msra.mxu0 0.0
        %4223 = vmatprep.subr.mxu0 0.0
        %4224 = vmatpush2.msra.mxu0 0.0
        %4225 = vmatprep.subr.mxu0 0.0
        %4226 = vmatpush2.msra.mxu0 0.0
        %4227 = vmatprep.mubr.f32.mxu0 0.0
        %4228 = vmatmul.mubr.f32.gmra.mxu0 %v4157
        %v4229 = vpop.f32.mrf.mxu0
        %v4230 = vadd.f32 0.0, %v4229
        %v4231 = vpop.f32.mrf.mxu0
        %v4232 = vadd.f32 0.0, %v4231
        %4233 = vdwg.mxu0
        %v4234 = vadd.f32 %v3932, %v4230
        %v4235 = vadd.f32 %v3934, %v4232
        %v4237 = vlaneseq
        %v4238 = vshrl.u32 %v4237, 7
        %v4239 = vsub.s32 0, %v4238
        %v4240 = vrot.slane %v3332, %v4239
        %v4241 = vlaneseq
        %v4242 = vshrl.u32 %v4241, 7
        %v4243 = vsub.s32 1, %v4242
        %v4244 = vrot.slane %v3332, %v4243
        %v4247 = vmul.f32 %v4240, %v4034
        %v4248 = vmul.f32 %v4244, %v4035
        %v4249 = vadd.f32 %v4134, %v4247
        %v4250 = vadd.f32 %v4135, %v4248
        %v4252 = vlaneseq
        %v4253 = vshrl.u32 %v4252, 7
        %v4254 = vsub.s32 0, %v4253
        %v4255 = vrot.slane %v3334, %v4254
        %v4256 = vlaneseq
        %v4257 = vshrl.u32 %v4256, 7
        %v4258 = vsub.s32 1, %v4257
        %v4259 = vrot.slane %v3334, %v4258
        %v4262 = vmul.f32 %v4255, %v4234
        %v4263 = vmul.f32 %v4259, %v4235
        %v4264 = vadd.f32 %v4249, %v4262
        %v4265 = vadd.f32 %v4250, %v4263
        %4267 = vset.pattern.permute.xlu0 0
        %4268 = vperm.xlu0 %4267, %v3331
        %v4269 = vpop.permute.xlu0 %4268
        %v4271 = vadd.f32 %v4264, %v4269
        %v4272 = vadd.f32 %v4265, %v4269
        %v4275 = vcombine.low %v4271, %v4272
        %4277 = vst [vmem:[%s375] sm:$0xff] %v4275
        %v4278 = vld [vmem:[#allocation2] sm:$0xf0]
        %v4279 = vld [vmem:[#allocation2 + $0x8] sm:$0xf0]
        %v4280 = vld [vmem:[#allocation2 + $0x10] sm:$0xf0]
        %v4281 = vld [vmem:[#allocation2 + $0x18] sm:$0xff]
        %v4282 = vld [vmem:[#allocation2 + $0x20] sm:$0xff]
        %v4283 = vld [vmem:[#allocation2 + $0x28] sm:$0xff]
        %v4290 = vrot.slane %v4278, 4
        %v4291 = vrot.slane %v4281, 4
        %v4292 = vsel %vm3372, %v4290, %v4291
        %v4293 = vrot.slane %v4279, 4
        %v4294 = vrot.slane %v4282, 4
        %v4295 = vsel %vm3372, %v4293, %v4294
        %v4296 = vrot.slane %v4280, 4
        %v4297 = vrot.slane %v4283, 4
        %v4298 = vsel %vm3372, %v4296, %v4297
        %4299 = vrot.lane.b32.xlu0 %v4292, 105
        %v4300 = vpop.permute.xlu0 %4299
        %4301 = vrot.lane.b32.xlu0 %v4295, 105
        %v4302 = vpop.permute.xlu0 %4301
        %4303 = vrot.lane.b32.xlu0 %v4298, 105
        %v4304 = vpop.permute.xlu0 %4303
        %4305 = vrot.lane.b32.xlu0 %v4291, 105
        %v4306 = vpop.permute.xlu0 %4305
        %4307 = vrot.lane.b32.xlu0 %v4294, 105
        %v4308 = vpop.permute.xlu0 %4307
        %4309 = vrot.lane.b32.xlu0 %v4297, 105
        %v4310 = vpop.permute.xlu0 %4309
        %v4311 = vsel %vm3362, %v4300, %v4302
        %v4312 = vsel %vm3362, %v4302, %v4304
        %v4313 = vsel %vm3362, %v4306, %v4308
        %v4314 = vsel %vm3362, %v4308, %v4310
        %v4317 = vsel %vm3372, %v4313, 0
        %v4319 = vsel %vm3372, %v4314, 0
        %4321 = vmatprep.subr.mxu0 0.0
        %4322 = vmatpush1.msra.mxu0 0.0
        %4323 = vmatprep.subr.mxu0 0.0
        %4324 = vmatpush1.msra.mxu0 0.0
        %4325 = vmatprep.subr.mxu0 0.0
        %4326 = vmatpush1.msra.mxu0 0.0
        %4327 = vmatprep.subr.mxu0 0.0
        %4328 = vmatpush1.msra.mxu0 0.0
        %4329 = vmatprep.subr.mxu0 0.0
        %4330 = vmatpush1.msra.mxu0 0.0
        %4331 = vmatprep.subr.mxu0 0.0
        %4332 = vmatpush1.msra.mxu0 0.0
        %4333 = vmatprep.subr.mxu0 0.0
        %4334 = vmatpush1.msra.mxu0 0.0
        %4335 = vmatprep.subr.mxu0 0.0
        %4336 = vmatpush1.msra.mxu0 0.0
        %4337 = vmatprep.subr.mxu0 0.0
        %4338 = vmatpush1.msra.mxu0 0.0
        %4339 = vmatprep.subr.mxu0 0.0
        %4340 = vmatpush1.msra.mxu0 0.0
        %4341 = vmatprep.subr.mxu0 0.0
        %4342 = vmatpush1.msra.mxu0 0.0
        %4343 = vmatprep.subr.mxu0 0.0
        %4344 = vmatpush1.msra.mxu0 0.0
        %4345 = vmatprep.subr.mxu0 0.0
        %4346 = vmatpush1.msra.mxu0 0.0
        %4347 = vmatprep.subr.mxu0 0.0
        %4348 = vmatpush1.msra.mxu0 0.0
        %4349 = vmatprep.subr.mxu0 %v4319
        %4350 = vmatpush1.msra.mxu0 %v4317
        %4351 = vmatprep.subr.mxu0 %v4312
        %4352 = vmatpush1.msra.mxu0 %v4311
        %4353 = vmatprep.subr.mxu0 0.0
        %4354 = vmatpush2.msra.mxu0 0.0
        %4355 = vmatprep.subr.mxu0 0.0
        %4356 = vmatpush2.msra.mxu0 0.0
        %4357 = vmatprep.subr.mxu0 0.0
        %4358 = vmatpush2.msra.mxu0 0.0
        %4359 = vmatprep.subr.mxu0 0.0
        %4360 = vmatpush2.msra.mxu0 0.0
        %4361 = vmatprep.subr.mxu0 0.0
        %4362 = vmatpush2.msra.mxu0 0.0
        %4363 = vmatprep.subr.mxu0 0.0
        %4364 = vmatpush2.msra.mxu0 0.0
        %4365 = vmatprep.subr.mxu0 0.0
        %4366 = vmatpush2.msra.mxu0 0.0
        %4367 = vmatprep.subr.mxu0 0.0
        %4368 = vmatpush2.msra.mxu0 0.0
        %4369 = vmatprep.subr.mxu0 0.0
        %4370 = vmatpush2.msra.mxu0 0.0
        %4371 = vmatprep.subr.mxu0 0.0
        %4372 = vmatpush2.msra.mxu0 0.0
        %4373 = vmatprep.subr.mxu0 0.0
        %4374 = vmatpush2.msra.mxu0 0.0
        %4375 = vmatprep.subr.mxu0 0.0
        %4376 = vmatpush2.msra.mxu0 0.0
        %4377 = vmatprep.subr.mxu0 0.0
        %4378 = vmatpush2.msra.mxu0 0.0
        %4379 = vmatprep.subr.mxu0 0.0
        %4380 = vmatpush2.msra.mxu0 0.0
        %4381 = vmatprep.subr.mxu0 0.0
        %4382 = vmatpush2.msra.mxu0 0.0
        %4383 = vmatprep.subr.mxu0 0.0
        %4384 = vmatpush2.msra.mxu0 0.0
        %4385 = vmatprep.mubr.f32.mxu0 0.0
        %4386 = vmatmul.mubr.f32.gmra.mxu0 %v3370
        %v4387 = vpop.f32.mrf.mxu0
        %v4388 = vadd.f32 0.0, %v4387
        %v4389 = vpop.f32.mrf.mxu0
        %v4390 = vadd.f32 0.0, %v4389
        %4391 = vdwg.mxu0
        %4392 = vrot.lane.b32.xlu0 %v4292, 121
        %v4393 = vpop.permute.xlu0 %4392
        %4394 = vrot.lane.b32.xlu0 %v4295, 121
        %v4395 = vpop.permute.xlu0 %4394
        %4396 = vrot.lane.b32.xlu0 %v4298, 121
        %v4397 = vpop.permute.xlu0 %4396
        %4398 = vrot.lane.b32.xlu0 %v4291, 121
        %v4399 = vpop.permute.xlu0 %4398
        %4400 = vrot.lane.b32.xlu0 %v4294, 121
        %v4401 = vpop.permute.xlu0 %4400
        %4402 = vrot.lane.b32.xlu0 %v4297, 121
        %v4403 = vpop.permute.xlu0 %4402
        %v4404 = vsel %vm3460, %v4393, %v4395
        %v4405 = vsel %vm3460, %v4395, %v4397
        %v4406 = vsel %vm3460, %v4399, %v4401
        %v4407 = vsel %vm3460, %v4401, %v4403
        %v4410 = vsel %vm3372, %v4406, 0
        %v4412 = vsel %vm3372, %v4407, 0
        %4414 = vmatprep.subr.mxu0 0.0
        %4415 = vmatpush1.msra.mxu0 0.0
        %4416 = vmatprep.subr.mxu0 0.0
        %4417 = vmatpush1.msra.mxu0 0.0
        %4418 = vmatprep.subr.mxu0 0.0
        %4419 = vmatpush1.msra.mxu0 0.0
        %4420 = vmatprep.subr.mxu0 0.0
        %4421 = vmatpush1.msra.mxu0 0.0
        %4422 = vmatprep.subr.mxu0 0.0
        %4423 = vmatpush1.msra.mxu0 0.0
        %4424 = vmatprep.subr.mxu0 0.0
        %4425 = vmatpush1.msra.mxu0 0.0
        %4426 = vmatprep.subr.mxu0 0.0
        %4427 = vmatpush1.msra.mxu0 0.0
        %4428 = vmatprep.subr.mxu0 0.0
        %4429 = vmatpush1.msra.mxu0 0.0
        %4430 = vmatprep.subr.mxu0 0.0
        %4431 = vmatpush1.msra.mxu0 0.0
        %4432 = vmatprep.subr.mxu0 0.0
        %4433 = vmatpush1.msra.mxu0 0.0
        %4434 = vmatprep.subr.mxu0 0.0
        %4435 = vmatpush1.msra.mxu0 0.0
        %4436 = vmatprep.subr.mxu0 0.0
        %4437 = vmatpush1.msra.mxu0 0.0
        %4438 = vmatprep.subr.mxu0 0.0
        %4439 = vmatpush1.msra.mxu0 0.0
        %4440 = vmatprep.subr.mxu0 0.0
        %4441 = vmatpush1.msra.mxu0 0.0
        %4442 = vmatprep.subr.mxu0 %v4412
        %4443 = vmatpush1.msra.mxu0 %v4410
        %4444 = vmatprep.subr.mxu0 %v4405
        %4445 = vmatpush1.msra.mxu0 %v4404
        %4446 = vmatprep.subr.mxu0 0.0
        %4447 = vmatpush2.msra.mxu0 0.0
        %4448 = vmatprep.subr.mxu0 0.0
        %4449 = vmatpush2.msra.mxu0 0.0
        %4450 = vmatprep.subr.mxu0 0.0
        %4451 = vmatpush2.msra.mxu0 0.0
        %4452 = vmatprep.subr.mxu0 0.0
        %4453 = vmatpush2.msra.mxu0 0.0
        %4454 = vmatprep.subr.mxu0 0.0
        %4455 = vmatpush2.msra.mxu0 0.0
        %4456 = vmatprep.subr.mxu0 0.0
        %4457 = vmatpush2.msra.mxu0 0.0
        %4458 = vmatprep.subr.mxu0 0.0
        %4459 = vmatpush2.msra.mxu0 0.0
        %4460 = vmatprep.subr.mxu0 0.0
        %4461 = vmatpush2.msra.mxu0 0.0
        %4462 = vmatprep.subr.mxu0 0.0
        %4463 = vmatpush2.msra.mxu0 0.0
        %4464 = vmatprep.subr.mxu0 0.0
        %4465 = vmatpush2.msra.mxu0 0.0
        %4466 = vmatprep.subr.mxu0 0.0
        %4467 = vmatpush2.msra.mxu0 0.0
        %4468 = vmatprep.subr.mxu0 0.0
        %4469 = vmatpush2.msra.mxu0 0.0
        %4470 = vmatprep.subr.mxu0 0.0
        %4471 = vmatpush2.msra.mxu0 0.0
        %4472 = vmatprep.subr.mxu0 0.0
        %4473 = vmatpush2.msra.mxu0 0.0
        %4474 = vmatprep.subr.mxu0 0.0
        %4475 = vmatpush2.msra.mxu0 0.0
        %4476 = vmatprep.subr.mxu0 0.0
        %4477 = vmatpush2.msra.mxu0 0.0
        %4478 = vmatprep.mubr.f32.mxu0 0.0
        %4479 = vmatmul.mubr.f32.gmra.mxu0 %v3467
        %v4480 = vpop.f32.mrf.mxu0
        %v4481 = vadd.f32 %v4388, %v4480
        %v4482 = vpop.f32.mrf.mxu0
        %v4483 = vadd.f32 %v4390, %v4482
        %4484 = vdwg.mxu0
        %4485 = vrot.lane.b32.xlu0 %v4292, 104
        %v4486 = vpop.permute.xlu0 %4485
        %4487 = vrot.lane.b32.xlu0 %v4295, 104
        %v4488 = vpop.permute.xlu0 %4487
        %4489 = vrot.lane.b32.xlu0 %v4298, 104
        %v4490 = vpop.permute.xlu0 %4489
        %4491 = vrot.lane.b32.xlu0 %v4291, 104
        %v4492 = vpop.permute.xlu0 %4491
        %4493 = vrot.lane.b32.xlu0 %v4294, 104
        %v4494 = vpop.permute.xlu0 %4493
        %4495 = vrot.lane.b32.xlu0 %v4297, 104
        %v4496 = vpop.permute.xlu0 %4495
        %v4497 = vsel %vm3558, %v4486, %v4488
        %v4498 = vsel %vm3558, %v4488, %v4490
        %v4499 = vsel %vm3558, %v4492, %v4494
        %v4500 = vsel %vm3558, %v4494, %v4496
        %v4503 = vsel %vm3372, %v4499, 0
        %v4505 = vsel %vm3372, %v4500, 0
        %4507 = vmatprep.subr.mxu0 0.0
        %4508 = vmatpush1.msra.mxu0 0.0
        %4509 = vmatprep.subr.mxu0 0.0
        %4510 = vmatpush1.msra.mxu0 0.0
        %4511 = vmatprep.subr.mxu0 0.0
        %4512 = vmatpush1.msra.mxu0 0.0
        %4513 = vmatprep.subr.mxu0 0.0
        %4514 = vmatpush1.msra.mxu0 0.0
        %4515 = vmatprep.subr.mxu0 0.0
        %4516 = vmatpush1.msra.mxu0 0.0
        %4517 = vmatprep.subr.mxu0 0.0
        %4518 = vmatpush1.msra.mxu0 0.0
        %4519 = vmatprep.subr.mxu0 0.0
        %4520 = vmatpush1.msra.mxu0 0.0
        %4521 = vmatprep.subr.mxu0 0.0
        %4522 = vmatpush1.msra.mxu0 0.0
        %4523 = vmatprep.subr.mxu0 0.0
        %4524 = vmatpush1.msra.mxu0 0.0
        %4525 = vmatprep.subr.mxu0 0.0
        %4526 = vmatpush1.msra.mxu0 0.0
        %4527 = vmatprep.subr.mxu0 0.0
        %4528 = vmatpush1.msra.mxu0 0.0
        %4529 = vmatprep.subr.mxu0 0.0
        %4530 = vmatpush1.msra.mxu0 0.0
        %4531 = vmatprep.subr.mxu0 0.0
        %4532 = vmatpush1.msra.mxu0 0.0
        %4533 = vmatprep.subr.mxu0 0.0
        %4534 = vmatpush1.msra.mxu0 0.0
        %4535 = vmatprep.subr.mxu0 %v4505
        %4536 = vmatpush1.msra.mxu0 %v4503
        %4537 = vmatprep.subr.mxu0 %v4498
        %4538 = vmatpush1.msra.mxu0 %v4497
        %4539 = vmatprep.subr.mxu0 0.0
        %4540 = vmatpush2.msra.mxu0 0.0
        %4541 = vmatprep.subr.mxu0 0.0
        %4542 = vmatpush2.msra.mxu0 0.0
        %4543 = vmatprep.subr.mxu0 0.0
        %4544 = vmatpush2.msra.mxu0 0.0
        %4545 = vmatprep.subr.mxu0 0.0
        %4546 = vmatpush2.msra.mxu0 0.0
        %4547 = vmatprep.subr.mxu0 0.0
        %4548 = vmatpush2.msra.mxu0 0.0
        %4549 = vmatprep.subr.mxu0 0.0
        %4550 = vmatpush2.msra.mxu0 0.0
        %4551 = vmatprep.subr.mxu0 0.0
        %4552 = vmatpush2.msra.mxu0 0.0
        %4553 = vmatprep.subr.mxu0 0.0
        %4554 = vmatpush2.msra.mxu0 0.0
        %4555 = vmatprep.subr.mxu0 0.0
        %4556 = vmatpush2.msra.mxu0 0.0
        %4557 = vmatprep.subr.mxu0 0.0
        %4558 = vmatpush2.msra.mxu0 0.0
        %4559 = vmatprep.subr.mxu0 0.0
        %4560 = vmatpush2.msra.mxu0 0.0
        %4561 = vmatprep.subr.mxu0 0.0
        %4562 = vmatpush2.msra.mxu0 0.0
        %4563 = vmatprep.subr.mxu0 0.0
        %4564 = vmatpush2.msra.mxu0 0.0
        %4565 = vmatprep.subr.mxu0 0.0
        %4566 = vmatpush2.msra.mxu0 0.0
        %4567 = vmatprep.subr.mxu0 0.0
        %4568 = vmatpush2.msra.mxu0 0.0
        %4569 = vmatprep.subr.mxu0 0.0
        %4570 = vmatpush2.msra.mxu0 0.0
        %4571 = vmatprep.mubr.f32.mxu0 0.0
        %4572 = vmatmul.mubr.f32.gmra.mxu0 %v3565
        %v4573 = vpop.f32.mrf.mxu0
        %v4574 = vadd.f32 0.0, %v4573
        %v4575 = vpop.f32.mrf.mxu0
        %v4576 = vadd.f32 0.0, %v4575
        %4577 = vdwg.mxu0
        %4578 = vrot.lane.b32.xlu0 %v4292, 120
        %v4579 = vpop.permute.xlu0 %4578
        %4580 = vrot.lane.b32.xlu0 %v4295, 120
        %v4581 = vpop.permute.xlu0 %4580
        %4582 = vrot.lane.b32.xlu0 %v4298, 120
        %v4583 = vpop.permute.xlu0 %4582
        %4584 = vrot.lane.b32.xlu0 %v4291, 120
        %v4585 = vpop.permute.xlu0 %4584
        %4586 = vrot.lane.b32.xlu0 %v4294, 120
        %v4587 = vpop.permute.xlu0 %4586
        %4588 = vrot.lane.b32.xlu0 %v4297, 120
        %v4589 = vpop.permute.xlu0 %4588
        %v4590 = vsel %vm3656, %v4579, %v4581
        %v4591 = vsel %vm3656, %v4581, %v4583
        %v4592 = vsel %vm3656, %v4585, %v4587
        %v4593 = vsel %vm3656, %v4587, %v4589
        %v4596 = vsel %vm3372, %v4592, 0
        %v4598 = vsel %vm3372, %v4593, 0
        %4600 = vmatprep.subr.mxu0 0.0
        %4601 = vmatpush1.msra.mxu0 0.0
        %4602 = vmatprep.subr.mxu0 0.0
        %4603 = vmatpush1.msra.mxu0 0.0
        %4604 = vmatprep.subr.mxu0 0.0
        %4605 = vmatpush1.msra.mxu0 0.0
        %4606 = vmatprep.subr.mxu0 0.0
        %4607 = vmatpush1.msra.mxu0 0.0
        %4608 = vmatprep.subr.mxu0 0.0
        %4609 = vmatpush1.msra.mxu0 0.0
        %4610 = vmatprep.subr.mxu0 0.0
        %4611 = vmatpush1.msra.mxu0 0.0
        %4612 = vmatprep.subr.mxu0 0.0
        %4613 = vmatpush1.msra.mxu0 0.0
        %4614 = vmatprep.subr.mxu0 0.0
        %4615 = vmatpush1.msra.mxu0 0.0
        %4616 = vmatprep.subr.mxu0 0.0
        %4617 = vmatpush1.msra.mxu0 0.0
        %4618 = vmatprep.subr.mxu0 0.0
        %4619 = vmatpush1.msra.mxu0 0.0
        %4620 = vmatprep.subr.mxu0 0.0
        %4621 = vmatpush1.msra.mxu0 0.0
        %4622 = vmatprep.subr.mxu0 0.0
        %4623 = vmatpush1.msra.mxu0 0.0
        %4624 = vmatprep.subr.mxu0 0.0
        %4625 = vmatpush1.msra.mxu0 0.0
        %4626 = vmatprep.subr.mxu0 0.0
        %4627 = vmatpush1.msra.mxu0 0.0
        %4628 = vmatprep.subr.mxu0 %v4598
        %4629 = vmatpush1.msra.mxu0 %v4596
        %4630 = vmatprep.subr.mxu0 %v4591
        %4631 = vmatpush1.msra.mxu0 %v4590
        %4632 = vmatprep.subr.mxu0 0.0
        %4633 = vmatpush2.msra.mxu0 0.0
        %4634 = vmatprep.subr.mxu0 0.0
        %4635 = vmatpush2.msra.mxu0 0.0
        %4636 = vmatprep.subr.mxu0 0.0
        %4637 = vmatpush2.msra.mxu0 0.0
        %4638 = vmatprep.subr.mxu0 0.0
        %4639 = vmatpush2.msra.mxu0 0.0
        %4640 = vmatprep.subr.mxu0 0.0
        %4641 = vmatpush2.msra.mxu0 0.0
        %4642 = vmatprep.subr.mxu0 0.0
        %4643 = vmatpush2.msra.mxu0 0.0
        %4644 = vmatprep.subr.mxu0 0.0
        %4645 = vmatpush2.msra.mxu0 0.0
        %4646 = vmatprep.subr.mxu0 0.0
        %4647 = vmatpush2.msra.mxu0 0.0
        %4648 = vmatprep.subr.mxu0 0.0
        %4649 = vmatpush2.msra.mxu0 0.0
        %4650 = vmatprep.subr.mxu0 0.0
        %4651 = vmatpush2.msra.mxu0 0.0
        %4652 = vmatprep.subr.mxu0 0.0
        %4653 = vmatpush2.msra.mxu0 0.0
        %4654 = vmatprep.subr.mxu0 0.0
        %4655 = vmatpush2.msra.mxu0 0.0
        %4656 = vmatprep.subr.mxu0 0.0
        %4657 = vmatpush2.msra.mxu0 0.0
        %4658 = vmatprep.subr.mxu0 0.0
        %4659 = vmatpush2.msra.mxu0 0.0
        %4660 = vmatprep.subr.mxu0 0.0
        %4661 = vmatpush2.msra.mxu0 0.0
        %4662 = vmatprep.subr.mxu0 0.0
        %4663 = vmatpush2.msra.mxu0 0.0
        %4664 = vmatprep.mubr.f32.mxu0 0.0
        %4665 = vmatmul.mubr.f32.gmra.mxu0 %v3663
        %v4666 = vpop.f32.mrf.mxu0
        %v4667 = vadd.f32 %v4574, %v4666
        %v4668 = vpop.f32.mrf.mxu0
        %v4669 = vadd.f32 %v4576, %v4668
        %4670 = vdwg.mxu0
        %4671 = vrot.lane.b32.xlu0 %v4292, 103
        %v4672 = vpop.permute.xlu0 %4671
        %4673 = vrot.lane.b32.xlu0 %v4295, 103
        %v4674 = vpop.permute.xlu0 %4673
        %4675 = vrot.lane.b32.xlu0 %v4298, 103
        %v4676 = vpop.permute.xlu0 %4675
        %4677 = vrot.lane.b32.xlu0 %v4291, 103
        %v4678 = vpop.permute.xlu0 %4677
        %4679 = vrot.lane.b32.xlu0 %v4294, 103
        %v4680 = vpop.permute.xlu0 %4679
        %4681 = vrot.lane.b32.xlu0 %v4297, 103
        %v4682 = vpop.permute.xlu0 %4681
        %v4683 = vsel %vm3754, %v4672, %v4674
        %v4684 = vsel %vm3754, %v4674, %v4676
        %v4685 = vsel %vm3754, %v4678, %v4680
        %v4686 = vsel %vm3754, %v4680, %v4682
        %v4689 = vsel %vm3372, %v4685, 0
        %v4691 = vsel %vm3372, %v4686, 0
        %4693 = vmatprep.subr.mxu0 0.0
        %4694 = vmatpush1.msra.mxu0 0.0
        %4695 = vmatprep.subr.mxu0 0.0
        %4696 = vmatpush1.msra.mxu0 0.0
        %4697 = vmatprep.subr.mxu0 0.0
        %4698 = vmatpush1.msra.mxu0 0.0
        %4699 = vmatprep.subr.mxu0 0.0
        %4700 = vmatpush1.msra.mxu0 0.0
        %4701 = vmatprep.subr.mxu0 0.0
        %4702 = vmatpush1.msra.mxu0 0.0
        %4703 = vmatprep.subr.mxu0 0.0
        %4704 = vmatpush1.msra.mxu0 0.0
        %4705 = vmatprep.subr.mxu0 0.0
        %4706 = vmatpush1.msra.mxu0 0.0
        %4707 = vmatprep.subr.mxu0 0.0
        %4708 = vmatpush1.msra.mxu0 0.0
        %4709 = vmatprep.subr.mxu0 0.0
        %4710 = vmatpush1.msra.mxu0 0.0
        %4711 = vmatprep.subr.mxu0 0.0
        %4712 = vmatpush1.msra.mxu0 0.0
        %4713 = vmatprep.subr.mxu0 0.0
        %4714 = vmatpush1.msra.mxu0 0.0
        %4715 = vmatprep.subr.mxu0 0.0
        %4716 = vmatpush1.msra.mxu0 0.0
        %4717 = vmatprep.subr.mxu0 0.0
        %4718 = vmatpush1.msra.mxu0 0.0
        %4719 = vmatprep.subr.mxu0 0.0
        %4720 = vmatpush1.msra.mxu0 0.0
        %4721 = vmatprep.subr.mxu0 %v4691
        %4722 = vmatpush1.msra.mxu0 %v4689
        %4723 = vmatprep.subr.mxu0 %v4684
        %4724 = vmatpush1.msra.mxu0 %v4683
        %4725 = vmatprep.subr.mxu0 0.0
        %4726 = vmatpush2.msra.mxu0 0.0
        %4727 = vmatprep.subr.mxu0 0.0
        %4728 = vmatpush2.msra.mxu0 0.0
        %4729 = vmatprep.subr.mxu0 0.0
        %4730 = vmatpush2.msra.mxu0 0.0
        %4731 = vmatprep.subr.mxu0 0.0
        %4732 = vmatpush2.msra.mxu0 0.0
        %4733 = vmatprep.subr.mxu0 0.0
        %4734 = vmatpush2.msra.mxu0 0.0
        %4735 = vmatprep.subr.mxu0 0.0
        %4736 = vmatpush2.msra.mxu0 0.0
        %4737 = vmatprep.subr.mxu0 0.0
        %4738 = vmatpush2.msra.mxu0 0.0
        %4739 = vmatprep.subr.mxu0 0.0
        %4740 = vmatpush2.msra.mxu0 0.0
        %4741 = vmatprep.subr.mxu0 0.0
        %4742 = vmatpush2.msra.mxu0 0.0
        %4743 = vmatprep.subr.mxu0 0.0
        %4744 = vmatpush2.msra.mxu0 0.0
        %4745 = vmatprep.subr.mxu0 0.0
        %4746 = vmatpush2.msra.mxu0 0.0
        %4747 = vmatprep.subr.mxu0 0.0
        %4748 = vmatpush2.msra.mxu0 0.0
        %4749 = vmatprep.subr.mxu0 0.0
        %4750 = vmatpush2.msra.mxu0 0.0
        %4751 = vmatprep.subr.mxu0 0.0
        %4752 = vmatpush2.msra.mxu0 0.0
        %4753 = vmatprep.subr.mxu0 0.0
        %4754 = vmatpush2.msra.mxu0 0.0
        %4755 = vmatprep.subr.mxu0 0.0
        %4756 = vmatpush2.msra.mxu0 0.0
        %4757 = vmatprep.mubr.f32.mxu0 0.0
        %4758 = vmatmul.mubr.f32.gmra.mxu0 %v3761
        %v4759 = vpop.f32.mrf.mxu0
        %v4760 = vadd.f32 0.0, %v4759
        %v4761 = vpop.f32.mrf.mxu0
        %v4762 = vadd.f32 0.0, %v4761
        %4763 = vdwg.mxu0
        %4764 = vrot.lane.b32.xlu0 %v4292, 119
        %v4765 = vpop.permute.xlu0 %4764
        %4766 = vrot.lane.b32.xlu0 %v4295, 119
        %v4767 = vpop.permute.xlu0 %4766
        %4768 = vrot.lane.b32.xlu0 %v4298, 119
        %v4769 = vpop.permute.xlu0 %4768
        %4770 = vrot.lane.b32.xlu0 %v4291, 119
        %v4771 = vpop.permute.xlu0 %4770
        %4772 = vrot.lane.b32.xlu0 %v4294, 119
        %v4773 = vpop.permute.xlu0 %4772
        %4774 = vrot.lane.b32.xlu0 %v4297, 119
        %v4775 = vpop.permute.xlu0 %4774
        %v4776 = vsel %vm3852, %v4765, %v4767
        %v4777 = vsel %vm3852, %v4767, %v4769
        %v4778 = vsel %vm3852, %v4771, %v4773
        %v4779 = vsel %vm3852, %v4773, %v4775
        %v4782 = vsel %vm3372, %v4778, 0
        %v4784 = vsel %vm3372, %v4779, 0
        %4786 = vmatprep.subr.mxu0 0.0
        %4787 = vmatpush1.msra.mxu0 0.0
        %4788 = vmatprep.subr.mxu0 0.0
        %4789 = vmatpush1.msra.mxu0 0.0
        %4790 = vmatprep.subr.mxu0 0.0
        %4791 = vmatpush1.msra.mxu0 0.0
        %4792 = vmatprep.subr.mxu0 0.0
        %4793 = vmatpush1.msra.mxu0 0.0
        %4794 = vmatprep.subr.mxu0 0.0
        %4795 = vmatpush1.msra.mxu0 0.0
        %4796 = vmatprep.subr.mxu0 0.0
        %4797 = vmatpush1.msra.mxu0 0.0
        %4798 = vmatprep.subr.mxu0 0.0
        %4799 = vmatpush1.msra.mxu0 0.0
        %4800 = vmatprep.subr.mxu0 0.0
        %4801 = vmatpush1.msra.mxu0 0.0
        %4802 = vmatprep.subr.mxu0 0.0
        %4803 = vmatpush1.msra.mxu0 0.0
        %4804 = vmatprep.subr.mxu0 0.0
        %4805 = vmatpush1.msra.mxu0 0.0
        %4806 = vmatprep.subr.mxu0 0.0
        %4807 = vmatpush1.msra.mxu0 0.0
        %4808 = vmatprep.subr.mxu0 0.0
        %4809 = vmatpush1.msra.mxu0 0.0
        %4810 = vmatprep.subr.mxu0 0.0
        %4811 = vmatpush1.msra.mxu0 0.0
        %4812 = vmatprep.subr.mxu0 0.0
        %4813 = vmatpush1.msra.mxu0 0.0
        %4814 = vmatprep.subr.mxu0 %v4784
        %4815 = vmatpush1.msra.mxu0 %v4782
        %4816 = vmatprep.subr.mxu0 %v4777
        %4817 = vmatpush1.msra.mxu0 %v4776
        %4818 = vmatprep.subr.mxu0 0.0
        %4819 = vmatpush2.msra.mxu0 0.0
        %4820 = vmatprep.subr.mxu0 0.0
        %4821 = vmatpush2.msra.mxu0 0.0
        %4822 = vmatprep.subr.mxu0 0.0
        %4823 = vmatpush2.msra.mxu0 0.0
        %4824 = vmatprep.subr.mxu0 0.0
        %4825 = vmatpush2.msra.mxu0 0.0
        %4826 = vmatprep.subr.mxu0 0.0
        %4827 = vmatpush2.msra.mxu0 0.0
        %4828 = vmatprep.subr.mxu0 0.0
        %4829 = vmatpush2.msra.mxu0 0.0
        %4830 = vmatprep.subr.mxu0 0.0
        %4831 = vmatpush2.msra.mxu0 0.0
        %4832 = vmatprep.subr.mxu0 0.0
        %4833 = vmatpush2.msra.mxu0 0.0
        %4834 = vmatprep.subr.mxu0 0.0
        %4835 = vmatpush2.msra.mxu0 0.0
        %4836 = vmatprep.subr.mxu0 0.0
        %4837 = vmatpush2.msra.mxu0 0.0
        %4838 = vmatprep.subr.mxu0 0.0
        %4839 = vmatpush2.msra.mxu0 0.0
        %4840 = vmatprep.subr.mxu0 0.0
        %4841 = vmatpush2.msra.mxu0 0.0
        %4842 = vmatprep.subr.mxu0 0.0
        %4843 = vmatpush2.msra.mxu0 0.0
        %4844 = vmatprep.subr.mxu0 0.0
        %4845 = vmatpush2.msra.mxu0 0.0
        %4846 = vmatprep.subr.mxu0 0.0
        %4847 = vmatpush2.msra.mxu0 0.0
        %4848 = vmatprep.subr.mxu0 0.0
        %4849 = vmatpush2.msra.mxu0 0.0
        %4850 = vmatprep.mubr.f32.mxu0 0.0
        %4851 = vmatmul.mubr.f32.gmra.mxu0 %v3859
        %v4852 = vpop.f32.mrf.mxu0
        %v4853 = vadd.f32 %v4760, %v4852
        %v4854 = vpop.f32.mrf.mxu0
        %v4855 = vadd.f32 %v4762, %v4854
        %4856 = vdwg.mxu0
        %4857 = vrot.lane.b32.xlu0 %v4292, 89
        %v4858 = vpop.permute.xlu0 %4857
        %4859 = vrot.lane.b32.xlu0 %v4295, 89
        %v4860 = vpop.permute.xlu0 %4859
        %4861 = vrot.lane.b32.xlu0 %v4298, 89
        %v4862 = vpop.permute.xlu0 %4861
        %4863 = vrot.lane.b32.xlu0 %v4291, 89
        %v4864 = vpop.permute.xlu0 %4863
        %4865 = vrot.lane.b32.xlu0 %v4294, 89
        %v4866 = vpop.permute.xlu0 %4865
        %4867 = vrot.lane.b32.xlu0 %v4297, 89
        %v4868 = vpop.permute.xlu0 %4867
        %v4869 = vsel %vm3950, %v4858, %v4860
        %v4870 = vsel %vm3950, %v4860, %v4862
        %v4871 = vsel %vm3950, %v4864, %v4866
        %v4872 = vsel %vm3950, %v4866, %v4868
        %v4875 = vsel %vm3372, %v4871, 0
        %v4877 = vsel %vm3372, %v4872, 0
        %4879 = vmatprep.subr.mxu0 0.0
        %4880 = vmatpush1.msra.mxu0 0.0
        %4881 = vmatprep.subr.mxu0 0.0
        %4882 = vmatpush1.msra.mxu0 0.0
        %4883 = vmatprep.subr.mxu0 0.0
        %4884 = vmatpush1.msra.mxu0 0.0
        %4885 = vmatprep.subr.mxu0 0.0
        %4886 = vmatpush1.msra.mxu0 0.0
        %4887 = vmatprep.subr.mxu0 0.0
        %4888 = vmatpush1.msra.mxu0 0.0
        %4889 = vmatprep.subr.mxu0 0.0
        %4890 = vmatpush1.msra.mxu0 0.0
        %4891 = vmatprep.subr.mxu0 0.0
        %4892 = vmatpush1.msra.mxu0 0.0
        %4893 = vmatprep.subr.mxu0 0.0
        %4894 = vmatpush1.msra.mxu0 0.0
        %4895 = vmatprep.subr.mxu0 0.0
        %4896 = vmatpush1.msra.mxu0 0.0
        %4897 = vmatprep.subr.mxu0 0.0
        %4898 = vmatpush1.msra.mxu0 0.0
        %4899 = vmatprep.subr.mxu0 0.0
        %4900 = vmatpush1.msra.mxu0 0.0
        %4901 = vmatprep.subr.mxu0 0.0
        %4902 = vmatpush1.msra.mxu0 0.0
        %4903 = vmatprep.subr.mxu0 0.0
        %4904 = vmatpush1.msra.mxu0 0.0
        %4905 = vmatprep.subr.mxu0 0.0
        %4906 = vmatpush1.msra.mxu0 0.0
        %4907 = vmatprep.subr.mxu0 %v4877
        %4908 = vmatpush1.msra.mxu0 %v4875
        %4909 = vmatprep.subr.mxu0 %v4870
        %4910 = vmatpush1.msra.mxu0 %v4869
        %4911 = vmatprep.subr.mxu0 0.0
        %4912 = vmatpush2.msra.mxu0 0.0
        %4913 = vmatprep.subr.mxu0 0.0
        %4914 = vmatpush2.msra.mxu0 0.0
        %4915 = vmatprep.subr.mxu0 0.0
        %4916 = vmatpush2.msra.mxu0 0.0
        %4917 = vmatprep.subr.mxu0 0.0
        %4918 = vmatpush2.msra.mxu0 0.0
        %4919 = vmatprep.subr.mxu0 0.0
        %4920 = vmatpush2.msra.mxu0 0.0
        %4921 = vmatprep.subr.mxu0 0.0
        %4922 = vmatpush2.msra.mxu0 0.0
        %4923 = vmatprep.subr.mxu0 0.0
        %4924 = vmatpush2.msra.mxu0 0.0
        %4925 = vmatprep.subr.mxu0 0.0
        %4926 = vmatpush2.msra.mxu0 0.0
        %4927 = vmatprep.subr.mxu0 0.0
        %4928 = vmatpush2.msra.mxu0 0.0
        %4929 = vmatprep.subr.mxu0 0.0
        %4930 = vmatpush2.msra.mxu0 0.0
        %4931 = vmatprep.subr.mxu0 0.0
        %4932 = vmatpush2.msra.mxu0 0.0
        %4933 = vmatprep.subr.mxu0 0.0
        %4934 = vmatpush2.msra.mxu0 0.0
        %4935 = vmatprep.subr.mxu0 0.0
        %4936 = vmatpush2.msra.mxu0 0.0
        %4937 = vmatprep.subr.mxu0 0.0
        %4938 = vmatpush2.msra.mxu0 0.0
        %4939 = vmatprep.subr.mxu0 0.0
        %4940 = vmatpush2.msra.mxu0 0.0
        %4941 = vmatprep.subr.mxu0 0.0
        %4942 = vmatpush2.msra.mxu0 0.0
        %4943 = vmatprep.mubr.f32.mxu0 0.0
        %4944 = vmatmul.mubr.f32.gmra.mxu0 %v3957
        %v4945 = vpop.f32.mrf.mxu0
        %v4946 = vadd.f32 0.0, %v4945
        %v4947 = vpop.f32.mrf.mxu0
        %v4948 = vadd.f32 0.0, %v4947
        %4949 = vdwg.mxu0
        %v4950 = vadd.f32 %v4481, %v4946
        %v4951 = vadd.f32 %v4483, %v4948
        %4952 = vrot.lane.b32.xlu0 %v4292, 88
        %v4953 = vpop.permute.xlu0 %4952
        %4954 = vrot.lane.b32.xlu0 %v4295, 88
        %v4955 = vpop.permute.xlu0 %4954
        %4956 = vrot.lane.b32.xlu0 %v4298, 88
        %v4957 = vpop.permute.xlu0 %4956
        %4958 = vrot.lane.b32.xlu0 %v4291, 88
        %v4959 = vpop.permute.xlu0 %4958
        %4960 = vrot.lane.b32.xlu0 %v4294, 88
        %v4961 = vpop.permute.xlu0 %4960
        %4962 = vrot.lane.b32.xlu0 %v4297, 88
        %v4963 = vpop.permute.xlu0 %4962
        %v4964 = vsel %vm4050, %v4953, %v4955
        %v4965 = vsel %vm4050, %v4955, %v4957
        %v4966 = vsel %vm4050, %v4959, %v4961
        %v4967 = vsel %vm4050, %v4961, %v4963
        %v4970 = vsel %vm3372, %v4966, 0
        %v4972 = vsel %vm3372, %v4967, 0
        %4974 = vmatprep.subr.mxu0 0.0
        %4975 = vmatpush1.msra.mxu0 0.0
        %4976 = vmatprep.subr.mxu0 0.0
        %4977 = vmatpush1.msra.mxu0 0.0
        %4978 = vmatprep.subr.mxu0 0.0
        %4979 = vmatpush1.msra.mxu0 0.0
        %4980 = vmatprep.subr.mxu0 0.0
        %4981 = vmatpush1.msra.mxu0 0.0
        %4982 = vmatprep.subr.mxu0 0.0
        %4983 = vmatpush1.msra.mxu0 0.0
        %4984 = vmatprep.subr.mxu0 0.0
        %4985 = vmatpush1.msra.mxu0 0.0
        %4986 = vmatprep.subr.mxu0 0.0
        %4987 = vmatpush1.msra.mxu0 0.0
        %4988 = vmatprep.subr.mxu0 0.0
        %4989 = vmatpush1.msra.mxu0 0.0
        %4990 = vmatprep.subr.mxu0 0.0
        %4991 = vmatpush1.msra.mxu0 0.0
        %4992 = vmatprep.subr.mxu0 0.0
        %4993 = vmatpush1.msra.mxu0 0.0
        %4994 = vmatprep.subr.mxu0 0.0
        %4995 = vmatpush1.msra.mxu0 0.0
        %4996 = vmatprep.subr.mxu0 0.0
        %4997 = vmatpush1.msra.mxu0 0.0
        %4998 = vmatprep.subr.mxu0 0.0
        %4999 = vmatpush1.msra.mxu0 0.0
        %5000 = vmatprep.subr.mxu0 0.0
        %5001 = vmatpush1.msra.mxu0 0.0
        %5002 = vmatprep.subr.mxu0 %v4972
        %5003 = vmatpush1.msra.mxu0 %v4970
        %5004 = vmatprep.subr.mxu0 %v4965
        %5005 = vmatpush1.msra.mxu0 %v4964
        %5006 = vmatprep.subr.mxu0 0.0
        %5007 = vmatpush2.msra.mxu0 0.0
        %5008 = vmatprep.subr.mxu0 0.0
        %5009 = vmatpush2.msra.mxu0 0.0
        %5010 = vmatprep.subr.mxu0 0.0
        %5011 = vmatpush2.msra.mxu0 0.0
        %5012 = vmatprep.subr.mxu0 0.0
        %5013 = vmatpush2.msra.mxu0 0.0
        %5014 = vmatprep.subr.mxu0 0.0
        %5015 = vmatpush2.msra.mxu0 0.0
        %5016 = vmatprep.subr.mxu0 0.0
        %5017 = vmatpush2.msra.mxu0 0.0
        %5018 = vmatprep.subr.mxu0 0.0
        %5019 = vmatpush2.msra.mxu0 0.0
        %5020 = vmatprep.subr.mxu0 0.0
        %5021 = vmatpush2.msra.mxu0 0.0
        %5022 = vmatprep.subr.mxu0 0.0
        %5023 = vmatpush2.msra.mxu0 0.0
        %5024 = vmatprep.subr.mxu0 0.0
        %5025 = vmatpush2.msra.mxu0 0.0
        %5026 = vmatprep.subr.mxu0 0.0
        %5027 = vmatpush2.msra.mxu0 0.0
        %5028 = vmatprep.subr.mxu0 0.0
        %5029 = vmatpush2.msra.mxu0 0.0
        %5030 = vmatprep.subr.mxu0 0.0
        %5031 = vmatpush2.msra.mxu0 0.0
        %5032 = vmatprep.subr.mxu0 0.0
        %5033 = vmatpush2.msra.mxu0 0.0
        %5034 = vmatprep.subr.mxu0 0.0
        %5035 = vmatpush2.msra.mxu0 0.0
        %5036 = vmatprep.subr.mxu0 0.0
        %5037 = vmatpush2.msra.mxu0 0.0
        %5038 = vmatprep.mubr.f32.mxu0 0.0
        %5039 = vmatmul.mubr.f32.gmra.mxu0 %v4057
        %v5040 = vpop.f32.mrf.mxu0
        %v5041 = vadd.f32 0.0, %v5040
        %v5042 = vpop.f32.mrf.mxu0
        %v5043 = vadd.f32 0.0, %v5042
        %5044 = vdwg.mxu0
        %v5045 = vadd.f32 %v4667, %v5041
        %v5046 = vadd.f32 %v4669, %v5043
        %5047 = vrot.lane.b32.xlu0 %v4292, 87
        %v5048 = vpop.permute.xlu0 %5047
        %5049 = vrot.lane.b32.xlu0 %v4295, 87
        %v5050 = vpop.permute.xlu0 %5049
        %5051 = vrot.lane.b32.xlu0 %v4298, 87
        %v5052 = vpop.permute.xlu0 %5051
        %5053 = vrot.lane.b32.xlu0 %v4291, 87
        %v5054 = vpop.permute.xlu0 %5053
        %5055 = vrot.lane.b32.xlu0 %v4294, 87
        %v5056 = vpop.permute.xlu0 %5055
        %5057 = vrot.lane.b32.xlu0 %v4297, 87
        %v5058 = vpop.permute.xlu0 %5057
        %v5059 = vsel %vm4150, %v5048, %v5050
        %v5060 = vsel %vm4150, %v5050, %v5052
        %v5061 = vsel %vm4150, %v5054, %v5056
        %v5062 = vsel %vm4150, %v5056, %v5058
        %v5065 = vsel %vm3372, %v5061, 0
        %v5067 = vsel %vm3372, %v5062, 0
        %5069 = vmatprep.subr.mxu0 0.0
        %5070 = vmatpush1.msra.mxu0 0.0
        %5071 = vmatprep.subr.mxu0 0.0
        %5072 = vmatpush1.msra.mxu0 0.0
        %5073 = vmatprep.subr.mxu0 0.0
        %5074 = vmatpush1.msra.mxu0 0.0
        %5075 = vmatprep.subr.mxu0 0.0
        %5076 = vmatpush1.msra.mxu0 0.0
        %5077 = vmatprep.subr.mxu0 0.0
        %5078 = vmatpush1.msra.mxu0 0.0
        %5079 = vmatprep.subr.mxu0 0.0
        %5080 = vmatpush1.msra.mxu0 0.0
        %5081 = vmatprep.subr.mxu0 0.0
        %5082 = vmatpush1.msra.mxu0 0.0
        %5083 = vmatprep.subr.mxu0 0.0
        %5084 = vmatpush1.msra.mxu0 0.0
        %5085 = vmatprep.subr.mxu0 0.0
        %5086 = vmatpush1.msra.mxu0 0.0
        %5087 = vmatprep.subr.mxu0 0.0
        %5088 = vmatpush1.msra.mxu0 0.0
        %5089 = vmatprep.subr.mxu0 0.0
        %5090 = vmatpush1.msra.mxu0 0.0
        %5091 = vmatprep.subr.mxu0 0.0
        %5092 = vmatpush1.msra.mxu0 0.0
        %5093 = vmatprep.subr.mxu0 0.0
        %5094 = vmatpush1.msra.mxu0 0.0
        %5095 = vmatprep.subr.mxu0 0.0
        %5096 = vmatpush1.msra.mxu0 0.0
        %5097 = vmatprep.subr.mxu0 %v5067
        %5098 = vmatpush1.msra.mxu0 %v5065
        %5099 = vmatprep.subr.mxu0 %v5060
        %5100 = vmatpush1.msra.mxu0 %v5059
        %5101 = vmatprep.subr.mxu0 0.0
        %5102 = vmatpush2.msra.mxu0 0.0
        %5103 = vmatprep.subr.mxu0 0.0
        %5104 = vmatpush2.msra.mxu0 0.0
        %5105 = vmatprep.subr.mxu0 0.0
        %5106 = vmatpush2.msra.mxu0 0.0
        %5107 = vmatprep.subr.mxu0 0.0
        %5108 = vmatpush2.msra.mxu0 0.0
        %5109 = vmatprep.subr.mxu0 0.0
        %5110 = vmatpush2.msra.mxu0 0.0
        %5111 = vmatprep.subr.mxu0 0.0
        %5112 = vmatpush2.msra.mxu0 0.0
        %5113 = vmatprep.subr.mxu0 0.0
        %5114 = vmatpush2.msra.mxu0 0.0
        %5115 = vmatprep.subr.mxu0 0.0
        %5116 = vmatpush2.msra.mxu0 0.0
        %5117 = vmatprep.subr.mxu0 0.0
        %5118 = vmatpush2.msra.mxu0 0.0
        %5119 = vmatprep.subr.mxu0 0.0
        %5120 = vmatpush2.msra.mxu0 0.0
        %5121 = vmatprep.subr.mxu0 0.0
        %5122 = vmatpush2.msra.mxu0 0.0
        %5123 = vmatprep.subr.mxu0 0.0
        %5124 = vmatpush2.msra.mxu0 0.0
        %5125 = vmatprep.subr.mxu0 0.0
        %5126 = vmatpush2.msra.mxu0 0.0
        %5127 = vmatprep.subr.mxu0 0.0
        %5128 = vmatpush2.msra.mxu0 0.0
        %5129 = vmatprep.subr.mxu0 0.0
        %5130 = vmatpush2.msra.mxu0 0.0
        %5131 = vmatprep.subr.mxu0 0.0
        %5132 = vmatpush2.msra.mxu0 0.0
        %5133 = vmatprep.mubr.f32.mxu0 0.0
        %5134 = vmatmul.mubr.f32.gmra.mxu0 %v4157
        %v5135 = vpop.f32.mrf.mxu0
        %v5136 = vadd.f32 0.0, %v5135
        %v5137 = vpop.f32.mrf.mxu0
        %v5138 = vadd.f32 0.0, %v5137
        %5139 = vdwg.mxu0
        %v5140 = vadd.f32 %v4853, %v5136
        %v5141 = vadd.f32 %v4855, %v5138
        %v5142 = vmul.f32 %v4240, %v4950
        %v5143 = vmul.f32 %v4244, %v4951
        %v5144 = vadd.f32 %v5045, %v5142
        %v5145 = vadd.f32 %v5046, %v5143
        %v5146 = vmul.f32 %v4255, %v5140
        %v5147 = vmul.f32 %v4259, %v5141
        %v5148 = vadd.f32 %v5144, %v5146
        %v5149 = vadd.f32 %v5145, %v5147
        %v5150 = vadd.f32 %v5148, %v4269
        %v5151 = vadd.f32 %v5149, %v4269
        %v5154 = vcombine.low %v5150, %v5151
        %5156 = vst [vmem:[%s375 + $0x8] sm:$0xff] %v5154
        %s5157 = sand.u32 %s223, 1
        %s5158 = scalar_lea.sflag [#allocation4], %s5157
        %s5159 = sand.u32 %s223, 1
        %s5160 = smul.addr %s5159, 16
        %s5161 = scalar_lea.vmem [#allocation3], %s5160
        // Predicated region
        $region49: #{tpu_custom_call.1} parent=47 // pred_check
          %p5162 = pneg %p233
        $region50: #{tpu_custom_call.1} parent=47 // pred_check_branch
          %5164 = sbr.rel (%p5162) target = $region52
        $region51: #{tpu_custom_call.1} parent=47 // pred_region
          %s5165 = smul.u32 4, %s26
          %s5167 = ssub.s32 256, 256
          %5168 = vsyncadd %s5158, %s5167
          %s5169 = smul.addr %s25, 16
          %s5170 = sadd.s32 %s5165, %s5169
          %s5171 = smul.addr %s5170, 64
          %s5172 = scalar_lea.hbm %s7, %s5171
          %s5174 = sshll.u32 %s5161, 4
          %s5175 = int_to_ptr.vmem [resolvable:$true] %s5174
          %5177 = dma.vmem_to_hbm [thread:$0]  %s5175, 256, %s5172, %s5158
        $region52: #{tpu_custom_call.1} parent=47 // pred_fallthru
          _
      $region48: #{tpu_custom_call.1} parent=5 // pred_fallthru
        _
      %p5178 = scmp.le.s32.totalorder 2, %s16
      // Predicated region
      $region53: #{tpu_custom_call.1} parent=5 // pred_check
        %p5179 = pneg %p5178
      $region54: #{tpu_custom_call.1} parent=5 // pred_check_branch
        %5181 = sbr.rel (%p5179) target = $region56
      $region55: #{tpu_custom_call.1} parent=5 // pred_region
        %s5182 = ssub.s32 %s16, 2
        // Predicated region
        $region57: #{tpu_custom_call.1} parent=55 // pred_check
          %p5183 = pneg %p239
        $region58: #{tpu_custom_call.1} parent=55 // pred_check_branch
          %5185 = sbr.rel (%p5183) target = $region60
        $region59: #{tpu_custom_call.1} parent=55 // pred_region
          %s5186 = sand.u32 %s224, 1
          %s5187 = scalar_lea.sflag [#allocation4], %s5186
          %s5188 = sand.u32 %s224, 1
          %s5189 = smul.addr %s5188, 16
          %s5190 = scalar_lea.vmem [#allocation3], %s5189
          %5191 = dma.done %s5187, 256
        $region60: #{tpu_custom_call.1} parent=55 // pred_fallthru
          _
      $region56: #{tpu_custom_call.1} parent=5 // pred_fallthru
        _
    $region6: #{tpu_custom_call.1} parent=1 // loop_footer
      %s20 = sadd.s32 1, %s16
    $region7: #{tpu_custom_call.1} parent=1 // loop_footer_branch
      %15 = sbr.rel target = $region3
    $region8: #{tpu_custom_call.1} parent=1 // loop_exit
      _
    %5192 = vsyncpa [#allocation4], 1
    %s5193 = scalar_lea.sflag [#allocation4], 1
    %5194 = vsyncpa %s5193, 1

</llo_original>
